<compile_context>
chip_gen: v7x
topology: tpu7x:2x2x1
jax: 0.10.0
libtpu: 0.0.40
codegen_flags: <defaults>
</compile_context>

<pallas_src>
import math
from functools import partial

import jax
import jax.numpy as jnp
from jax import lax
from jax.experimental import pallas as pl
from jax.experimental.pallas import tpu as pltpu


# ----------------------------------------------------------------------------
# In-kernel VDP helpers (traced inside the Pallas kernel body)
# ----------------------------------------------------------------------------

def _ln_vdp(x, vx, g, b, eps=1e-5):
    m = jnp.mean(x, axis=-1, keepdims=True)
    d = x - m
    s = jnp.mean(d * d, axis=-1, keepdims=True)
    inv = lax.rsqrt(s + eps)
    mu = g * d * inv + b
    jac = g * inv
    return mu, jac * jac * vx


def _softmax_vdp(s, vs, approx):
    m = jnp.max(s, axis=-1, keepdims=True)
    e = jnp.exp(s - m)
    if approx:
        p = e * pl.reciprocal(jnp.sum(e, axis=-1, keepdims=True), approx=True)
    else:
        p = e / jnp.sum(e, axis=-1, keepdims=True)
    t = jnp.sum(p * p * vs, axis=-1, keepdims=True)
    vp = p * p * (t + (1.0 - 2.0 * p) * vs)
    return p, vp


def _nt_dot(a, b):
    # a @ b.T via MXU NT contraction (contract last dims) — no XLU transpose.
    return lax.dot_general(a, b, (((1,), (1,)), ((), ())),
                           preferred_element_type=jnp.float32)


def _dot(a, b):
    return jnp.dot(a, b, preferred_element_type=jnp.float32)


# ----------------------------------------------------------------------------
# Fully fused ViT-VDP forward kernel (one batch element per grid step)
# ----------------------------------------------------------------------------

def _vit_kernel(*refs, h, kdim, n_blocks, n_clas, inv_np2):
    """Input refs (per grid step b):
         [0]            x_patch block (1, S, d)
         [1..4]         emb:  W (d,k), var_W (d,k), b (1,k), pos (S,k)
         per block (11): g1,b1 (1,k); Wqkv,W2qkv,varWqkv (k,3k); g2,b2 (1,k);
                         Wfc,W2fc,varWfc (k,k); bfc (1,k)
         per clas layer (4): W, W2, var_W (din,dout); b (1,dout)
       Outputs: mu (1,1,C), var (1,1,C).  Scratch: attention merge buffers (S,k) x2.
    """
    n_in = 5 + 11 * n_blocks + 4 * (n_clas + 1)
    in_refs = refs[:n_in]
    mu_ref, var_ref = refs[n_in], refs[n_in + 1]
    amu_ref, avar_ref = refs[n_in + 2], refs[n_in + 3]

    # --- Embedding LinearVDP with var_x == 0 (exact: var = x^2 @ var_W), fused pos add.
    xp = in_refs[0][0]                                        # (S, d)
    x = _dot(xp, in_refs[1][...]) + in_refs[3][...] + in_refs[4][...]
    vx = _dot(xp * xp, in_refs[2][...])

    dh = kdim // h
    inv_rd = 1.0 / math.sqrt(kdim)
    inv_rd2 = inv_rd * inv_rd

    idx = 5
    for bi in range(n_blocks):
        g1 = in_refs[idx][...];     b1 = in_refs[idx + 1][...]
        wqkv = in_refs[idx + 2][...]; w2qkv = in_refs[idx + 3][...]; vwqkv = in_refs[idx + 4][...]
        g2 = in_refs[idx + 5][...]; b2 = in_refs[idx + 6][...]
        wfc = in_refs[idx + 7][...]; w2fc = in_refs[idx + 8][...]; vwfc = in_refs[idx + 9][...]
        bfc = in_refs[idx + 10][...]
        idx += 11

        if bi != 0:   # block 0 has no norm1 (matches the PyTorch forward)
            x, vx = _ln_vdp(x, vx, g1, b1)

        # Fused Q|K|V LinearVDP (no bias):  mu = x @ W ; var = vx @ (W^2+var_W) + x^2 @ var_W
        qkv = _dot(x, wqkv)                                   # (S, 3k)
        vqkv = _dot(vx, w2qkv) + _dot(x * x, vwqkv)

        for j in range(h):
            q = qkv[:, j * dh:(j + 1) * dh]
            vq = vqkv[:, j * dh:(j + 1) * dh]
            kk = qkv[:, kdim + j * dh: kdim + (j + 1) * dh]
            vk = vqkv[:, kdim + j * dh: kdim + (j + 1) * dh]
            v = qkv[:, 2 * kdim + j * dh: 2 * kdim + (j + 1) * dh]
            vv = vqkv[:, 2 * kdim + j * dh: 2 * kdim + (j + 1) * dh]

            # quadratic_vdp(q, vq, k^T, vk^T), then / sqrt(d), / d  (fused variance form)
            s = _nt_dot(q, kk) * inv_rd
            vs = (_nt_dot(vq, kk * kk + vk) + _nt_dot(q * q, vk)) * inv_rd2

            p, vp = _softmax_vdp(s, vs, approx=True)

            # quadratic_vdp(p, vp, v, vv)
            o = _dot(p, v)
            vo = _dot(vp, v * v + vv) + _dot(p * p, vv)

            # merge heads: head j occupies columns [j*dh, (j+1)*dh)
            amu_ref[:, j * dh:(j + 1) * dh] = o
            avar_ref[:, j * dh:(j + 1) * dh] = vo

        a = amu_ref[...]
        va = avar_ref[...]

        # residual_vdp (identity mode) around attention
        # TODO(synk): only the 'identity' residual mode is implemented (other modes not in source)
        r = x + a
        vr = vx + va

        # LayerNormVDP (norm2)
        r2, vr2 = _ln_vdp(r, vr, g2, b2)

        # FC LinearVDP + relu_vdp + residual_vdp, fused
        f = _dot(r2, wfc) + bfc
        vf = _dot(vr2, w2fc) + _dot(r2 * r2, vwfc)
        jr = (f > 0).astype(f.dtype)
        x = r2 + f * jr
        vx = vr2 + vf * jr

    # --- mean pool over tokens + classifier MLP (LinearVDP+ReLU)* + LinearVDP + softmax_vdp
    xm = jnp.mean(x, axis=0, keepdims=True)                   # (1, k)
    vm = jnp.mean(vx, axis=0, keepdims=True) * inv_np2        # matches original /nb_p**2

    for li in range(n_clas + 1):
        w = in_refs[idx][...]; w2 = in_refs[idx + 1][...]
        vw = in_refs[idx + 2][...]; b = in_refs[idx + 3][...]
        idx += 4
        mu = _dot(xm, w) + b
        var = _dot(vm, w2) + _dot(xm * xm, vw)
        if li < n_clas:
            jr = (mu > 0).astype(mu.dtype)
            xm, vm = mu * jr, var * jr
        else:
            # softmax_vdp (exact reciprocal so probabilities sum to 1 tightly)
            m = jnp.max(mu, axis=-1, keepdims=True)
            e = jnp.exp(mu - m)
            p = e / jnp.sum(e, axis=-1, keepdims=True)
            t = jnp.sum(p * p * var, axis=-1, keepdims=True)
            mu_ref[0] = p
            var_ref[0] = p * p * (t + (1.0 - 2.0 * p) * var)


# ----------------------------------------------------------------------------
# Plain-JAX glue (one-time layout ops only)
# ----------------------------------------------------------------------------

def patchify(x, n_patches):
    # matches the PyTorch loop: flatten order per patch is (c, ph, pw)
    n, c, hh, ww = x.shape
    assert hh == ww
    ps = hh // n_patches
    x = x.reshape(n, c, n_patches, ps, n_patches, ps)
    x = jnp.transpose(x, (0, 2, 4, 1, 3, 5))
    return x.reshape(n, n_patches * n_patches, c * ps * ps)


def get_positional_encoding(k, seq):
    # standard sinusoidal encoding (original helper's source not provided)
    pos = jnp.arange(seq, dtype=jnp.float32)[:, None]
    i = jnp.arange(k, dtype=jnp.float32)[None, :]
    angle = pos / jnp.power(10000.0, (2.0 * jnp.floor(i / 2.0)) / k)
    return jnp.where((jnp.arange(k)[None, :] % 2) == 0, jnp.sin(angle), jnp.cos(angle))


# ----------------------------------------------------------------------------
# Parameter construction (deterministic, synthetic); w2pv = W*W + var_W precomputed
# ----------------------------------------------------------------------------

def init_linear(key, d_in, d_out, var_init, bias=True):
    kw, kb = jax.random.split(key)
    bound = 1.0 / math.sqrt(d_in)
    w = jax.random.uniform(kw, (d_in, d_out), jnp.float32, -bound, bound)
    var_w = jnp.full((d_in, d_out), var_init, jnp.float32)
    b = (jax.random.uniform(kb, (d_out,), jnp.float32, -bound, bound)
         if bias else jnp.zeros((d_out,), jnp.float32))
    return {"w": w, "var_w": var_w, "w2pv": w * w + var_w, "b": b}


def init_layernorm(kdim):
    return {"gamma": jnp.ones((kdim,), jnp.float32), "beta": jnp.zeros((kdim,), jnp.float32)}


def init_vit_vdp(key, cfg):
    n, _h = cfg["dim"]
    kdim = cfg["emb"][0]
    d = cfg["patch_size"] ** 2
    vi = cfg["var_init"]
    keys = jax.random.split(key, 1 + 4 * n + len(cfg["emb"]))
    ki = iter(keys)

    params = {}
    params["pos"] = get_positional_encoding(kdim, cfg["n_patches"] ** 2)
    params["emb"] = init_linear(next(ki), d, kdim, vi, bias=True)

    blocks = []
    for i in range(n):
        q = init_linear(next(ki), kdim, kdim, vi, bias=False)
        kk = init_linear(next(ki), kdim, kdim, vi, bias=False)
        v = init_linear(next(ki), kdim, kdim, vi, bias=False)
        wqkv = jnp.concatenate([q["w"], kk["w"], v["w"]], axis=1)
        vwqkv = jnp.concatenate([q["var_w"], kk["var_w"], v["var_w"]], axis=1)
        blocks.append({
            "norm1": init_layernorm(kdim),   # placeholder for block 0 (statically skipped)
            "norm2": init_layernorm(kdim),
            "wqkv": wqkv,
            "vwqkv": vwqkv,
            "w2qkv": wqkv * wqkv + vwqkv,
            "fc": init_linear(next(ki), kdim, kdim, vi, bias=True),
        })
    params["blocks"] = blocks
    params["clas"] = [init_linear(next(ki), cfg["emb"][i], cfg["emb"][i + 1], vi, bias=True)
                      for i in range(len(cfg["emb"]) - 1)]
    params["classifier"] = init_linear(next(ki), cfg["emb"][-1], cfg["nb_classes"], vi, bias=True)
    return params


# ----------------------------------------------------------------------------
# Forward pass (mirrors ViT_VDP.forward) — single fused pallas_call, grid over batch
# ----------------------------------------------------------------------------

def vit_vdp_forward(params, x, cfg):
    n, h = cfg["dim"]
    nb_p = cfg["n_patches"]
    nb_classes = cfg["nb_classes"]
    k = cfg["emb"][0]
    n_blocks = n - 1
    n_clas = len(cfg["emb"]) - 1
    # cfg["tol"] / cfg["residual"]: see TODO notes at top (identity residual, no tol clamp).

    xp = patchify(x, nb_p)                                     # (B, S, d)
    B, S, d = xp.shape

    def bcast(shape):
        nd = len(shape)
        return pl.BlockSpec(shape, lambda b, _nd=nd: (0,) * _nd)

    arrays = [xp]
    specs = [pl.BlockSpec((1, S, d), lambda b: (b, 0, 0))]

    pe = params["emb"]
    arrays += [pe["w"], pe["var_w"], pe["b"].reshape(1, k), params["pos"]]
    specs += [bcast((d, k)), bcast((d, k)), bcast((1, k)), bcast((S, k))]

    for i in range(n_blocks):
        blk = params["blocks"][i]
        arrays += [blk["norm1"]["gamma"].reshape(1, k), blk["norm1"]["beta"].reshape(1, k),
                   blk["wqkv"], blk["w2qkv"], blk["vwqkv"],
                   blk["norm2"]["gamma"].reshape(1, k), blk["norm2"]["beta"].reshape(1, k),
                   blk["fc"]["w"], blk["fc"]["w2pv"], blk["fc"]["var_w"],
                   blk["fc"]["b"].reshape(1, k)]
        specs += [bcast((1, k)), bcast((1, k)),
                  bcast((k, 3 * k)), bcast((k, 3 * k)), bcast((k, 3 * k)),
                  bcast((1, k)), bcast((1, k)),
                  bcast((k, k)), bcast((k, k)), bcast((k, k)), bcast((1, k))]

    for p in list(params["clas"]) + [params["classifier"]]:
        din, dout = p["w"].shape
        arrays += [p["w"], p["w2pv"], p["var_w"], p["b"].reshape(1, dout)]
        specs += [bcast((din, dout)), bcast((din, dout)), bcast((din, dout)), bcast((1, dout))]

    out_spec = pl.BlockSpec((1, 1, nb_classes), lambda b: (b, 0, 0))
    kern = partial(_vit_kernel, h=h, kdim=k, n_blocks=n_blocks, n_clas=n_clas,
                   inv_np2=1.0 / float(nb_p ** 2))

    mu, var = pl.pallas_call(
        kern,
        grid=(B,),
        in_specs=specs,
        out_specs=(out_spec, out_spec),
        out_shape=(jax.ShapeDtypeStruct((B, 1, nb_classes), jnp.float32),
                   jax.ShapeDtypeStruct((B, 1, nb_classes), jnp.float32)),
        scratch_shapes=[pltpu.VMEM((S, k), jnp.float32),
                        pltpu.VMEM((S, k), jnp.float32)],
        compiler_params=pltpu.CompilerParams(dimension_semantics=("parallel",)),
    )(*arrays)
    return mu[:, 0, :], var[:, 0, :]


# ----------------------------------------------------------------------------
# Main
# ----------------------------------------------------------------------------

if __name__ == "__main__":
    cfg = {
        "dim": (3, 2),          # n = 3 blocks (forward runs n-1 = 2), h = 2 heads
        "emb": [32, 16],        # k = 32, one hidden classifier layer of 16
        "patch_size": 4,        # d = 16 per patch (single channel)
        "n_patches": 4,         # S = 16 patches
        "residual": "identity",
        "tol": 1e-3,
        "var_init": 1e-8,
        "nb_classes": 10,
    }

    key = jax.random.PRNGKey(0)
    k_params, k_input = jax.random.split(key)
    params = init_vit_vdp(k_params, cfg)

    B, C = 2, 1
    H = W = cfg["n_patches"] * cfg["patch_size"]    # 16 x 16 image
    x = jax.random.normal(k_input, (B, C, H, W), dtype=jnp.float32)

    fwd = jax.jit(partial(vit_vdp_forward, cfg=cfg))
    probs, var_probs = fwd(params, x)
    jax.block_until_ready((probs, var_probs))

    assert probs.shape == (B, cfg["nb_classes"])
    assert var_probs.shape == (B, cfg["nb_classes"])
    assert bool(jnp.all(jnp.isfinite(probs))) and bool(jnp.all(jnp.isfinite(var_probs)))
    assert bool(jnp.allclose(jnp.sum(probs, axis=-1), 1.0, atol=1e-5))

    print("KERNEL_OK")
</pallas_src>

<mosaic_0001>
module attributes {stable_mosaic.version = 11 : i64} {
  func.func @_vit_kernel(%arg0: i32, %arg1: memref<1x16x16xf32, #tpu.memory_space<vmem>>, %arg2: memref<16x32xf32, #tpu.memory_space<vmem>>, %arg3: memref<16x32xf32, #tpu.memory_space<vmem>>, %arg4: memref<1x32xf32, #tpu.memory_space<vmem>>, %arg5: memref<16x32xf32, #tpu.memory_space<vmem>>, %arg6: memref<1x32xf32, #tpu.memory_space<vmem>>, %arg7: memref<1x32xf32, #tpu.memory_space<vmem>>, %arg8: memref<32x96xf32, #tpu.memory_space<vmem>>, %arg9: memref<32x96xf32, #tpu.memory_space<vmem>>, %arg10: memref<32x96xf32, #tpu.memory_space<vmem>>, %arg11: memref<1x32xf32, #tpu.memory_space<vmem>>, %arg12: memref<1x32xf32, #tpu.memory_space<vmem>>, %arg13: memref<32x32xf32, #tpu.memory_space<vmem>>, %arg14: memref<32x32xf32, #tpu.memory_space<vmem>>, %arg15: memref<32x32xf32, #tpu.memory_space<vmem>>, %arg16: memref<1x32xf32, #tpu.memory_space<vmem>>, %arg17: memref<1x32xf32, #tpu.memory_space<vmem>>, %arg18: memref<1x32xf32, #tpu.memory_space<vmem>>, %arg19: memref<32x96xf32, #tpu.memory_space<vmem>>, %arg20: memref<32x96xf32, #tpu.memory_space<vmem>>, %arg21: memref<32x96xf32, #tpu.memory_space<vmem>>, %arg22: memref<1x32xf32, #tpu.memory_space<vmem>>, %arg23: memref<1x32xf32, #tpu.memory_space<vmem>>, %arg24: memref<32x32xf32, #tpu.memory_space<vmem>>, %arg25: memref<32x32xf32, #tpu.memory_space<vmem>>, %arg26: memref<32x32xf32, #tpu.memory_space<vmem>>, %arg27: memref<1x32xf32, #tpu.memory_space<vmem>>, %arg28: memref<32x16xf32, #tpu.memory_space<vmem>>, %arg29: memref<32x16xf32, #tpu.memory_space<vmem>>, %arg30: memref<32x16xf32, #tpu.memory_space<vmem>>, %arg31: memref<1x16xf32, #tpu.memory_space<vmem>>, %arg32: memref<16x10xf32, #tpu.memory_space<vmem>>, %arg33: memref<16x10xf32, #tpu.memory_space<vmem>>, %arg34: memref<16x10xf32, #tpu.memory_space<vmem>>, %arg35: memref<1x10xf32, #tpu.memory_space<vmem>>, %arg36: memref<1x1x10xf32, #tpu.memory_space<vmem>>, %arg37: memref<1x1x10xf32, #tpu.memory_space<vmem>>, %arg38: memref<16x32xf32, #tpu.memory_space<vmem>>, %arg39: memref<16x32xf32, #tpu.memory_space<vmem>>) attributes {dimension_semantics = [#tpu.dimension_semantics<parallel>], iteration_bounds = array<i64: 2>, scalar_prefetch = 0 : i64, scratch_operands = 2 : i64, tpu.core_type = #tpu.core_type<tc>, window_params = [{transform_indices = @transform_0, window_bounds = array<i64: 1, 16, 16>}, {pipeline_mode = #tpu.pipeline_mode<synchronous>, transform_indices = @transform_1, window_bounds = array<i64: 16, 32>}, {pipeline_mode = #tpu.pipeline_mode<synchronous>, transform_indices = @transform_2, window_bounds = array<i64: 16, 32>}, {pipeline_mode = #tpu.pipeline_mode<synchronous>, transform_indices = @transform_3, window_bounds = array<i64: 1, 32>}, {pipeline_mode = #tpu.pipeline_mode<synchronous>, transform_indices = @transform_4, window_bounds = array<i64: 16, 32>}, {pipeline_mode = #tpu.pipeline_mode<synchronous>, transform_indices = @transform_5, window_bounds = array<i64: 1, 32>}, {pipeline_mode = #tpu.pipeline_mode<synchronous>, transform_indices = @transform_6, window_bounds = array<i64: 1, 32>}, {pipeline_mode = #tpu.pipeline_mode<synchronous>, transform_indices = @transform_7, window_bounds = array<i64: 32, 96>}, {pipeline_mode = #tpu.pipeline_mode<synchronous>, transform_indices = @transform_8, window_bounds = array<i64: 32, 96>}, {pipeline_mode = #tpu.pipeline_mode<synchronous>, transform_indices = @transform_9, window_bounds = array<i64: 32, 96>}, {pipeline_mode = #tpu.pipeline_mode<synchronous>, transform_indices = @transform_10, window_bounds = array<i64: 1, 32>}, {pipeline_mode = #tpu.pipeline_mode<synchronous>, transform_indices = @transform_11, window_bounds = array<i64: 1, 32>}, {pipeline_mode = #tpu.pipeline_mode<synchronous>, transform_indices = @transform_12, window_bounds = array<i64: 32, 32>}, {pipeline_mode = #tpu.pipeline_mode<synchronous>, transform_indices = @transform_13, window_bounds = array<i64: 32, 32>}, {pipeline_mode = #tpu.pipeline_mode<synchronous>, transform_indices = @transform_14, window_bounds = array<i64: 32, 32>}, {pipeline_mode = #tpu.pipeline_mode<synchronous>, transform_indices = @transform_15, window_bounds = array<i64: 1, 32>}, {pipeline_mode = #tpu.pipeline_mode<synchronous>, transform_indices = @transform_16, window_bounds = array<i64: 1, 32>}, {pipeline_mode = #tpu.pipeline_mode<synchronous>, transform_indices = @transform_17, window_bounds = array<i64: 1, 32>}, {pipeline_mode = #tpu.pipeline_mode<synchronous>, transform_indices = @transform_18, window_bounds = array<i64: 32, 96>}, {pipeline_mode = #tpu.pipeline_mode<synchronous>, transform_indices = @transform_19, window_bounds = array<i64: 32, 96>}, {pipeline_mode = #tpu.pipeline_mode<synchronous>, transform_indices = @transform_20, window_bounds = array<i64: 32, 96>}, {pipeline_mode = #tpu.pipeline_mode<synchronous>, transform_indices = @transform_21, window_bounds = array<i64: 1, 32>}, {pipeline_mode = #tpu.pipeline_mode<synchronous>, transform_indices = @transform_22, window_bounds = array<i64: 1, 32>}, {pipeline_mode = #tpu.pipeline_mode<synchronous>, transform_indices = @transform_23, window_bounds = array<i64: 32, 32>}, {pipeline_mode = #tpu.pipeline_mode<synchronous>, transform_indices = @transform_24, window_bounds = array<i64: 32, 32>}, {pipeline_mode = #tpu.pipeline_mode<synchronous>, transform_indices = @transform_25, window_bounds = array<i64: 32, 32>}, {pipeline_mode = #tpu.pipeline_mode<synchronous>, transform_indices = @transform_26, window_bounds = array<i64: 1, 32>}, {pipeline_mode = #tpu.pipeline_mode<synchronous>, transform_indices = @transform_27, window_bounds = array<i64: 32, 16>}, {pipeline_mode = #tpu.pipeline_mode<synchronous>, transform_indices = @transform_28, window_bounds = array<i64: 32, 16>}, {pipeline_mode = #tpu.pipeline_mode<synchronous>, transform_indices = @transform_29, window_bounds = array<i64: 32, 16>}, {pipeline_mode = #tpu.pipeline_mode<synchronous>, transform_indices = @transform_30, window_bounds = array<i64: 1, 16>}, {pipeline_mode = #tpu.pipeline_mode<synchronous>, transform_indices = @transform_31, window_bounds = array<i64: 16, 10>}, {pipeline_mode = #tpu.pipeline_mode<synchronous>, transform_indices = @transform_32, window_bounds = array<i64: 16, 10>}, {pipeline_mode = #tpu.pipeline_mode<synchronous>, transform_indices = @transform_33, window_bounds = array<i64: 16, 10>}, {pipeline_mode = #tpu.pipeline_mode<synchronous>, transform_indices = @transform_34, window_bounds = array<i64: 1, 10>}, {transform_indices = @transform_35, window_bounds = array<i64: 1, 1, 10>}, {transform_indices = @transform_36, window_bounds = array<i64: 1, 1, 10>}]} {
    %c0 = arith.constant 0 : index
    %c0_0 = arith.constant 0 : index
    %c0_1 = arith.constant 0 : index
    %0 = vector.load %arg1[%c0, %c0_0, %c0_1] : memref<1x16x16xf32, #tpu.memory_space<vmem>>, vector<1x16x16xf32>
    %1 = vector.shape_cast %0 : vector<1x16x16xf32> to vector<16x16xf32>
    %c0_2 = arith.constant 0 : index
    %c0_3 = arith.constant 0 : index
    %2 = vector.load %arg2[%c0_2, %c0_3] : memref<16x32xf32, #tpu.memory_space<vmem>>, vector<16x32xf32>
    %cst = arith.constant dense<0.000000e+00> : vector<16x32xf32>
    %3 = tpu.matmul %1, %2, %cst {dimension_numbers = #tpu.dot_dimension_numbers<[1], [0], [0], [1], [0, 0, 1, 1], [], []>} : vector<16x16xf32>, vector<16x32xf32>, vector<16x32xf32> -> vector<16x32xf32>
    %c0_4 = arith.constant 0 : index
    %c0_5 = arith.constant 0 : index
    %4 = vector.load %arg4[%c0_4, %c0_5] : memref<1x32xf32, #tpu.memory_space<vmem>>, vector<1x32xf32>
    %5 = vector.broadcast %4 : vector<1x32xf32> to vector<16x32xf32>
    %6 = arith.addf %3, %5 : vector<16x32xf32>
    %c0_6 = arith.constant 0 : index
    %c0_7 = arith.constant 0 : index
    %7 = vector.load %arg5[%c0_6, %c0_7] : memref<16x32xf32, #tpu.memory_space<vmem>>, vector<16x32xf32>
    %8 = arith.addf %6, %7 : vector<16x32xf32>
    %9 = arith.mulf %1, %1 : vector<16x16xf32>
    %c0_8 = arith.constant 0 : index
    %c0_9 = arith.constant 0 : index
    %10 = vector.load %arg3[%c0_8, %c0_9] : memref<16x32xf32, #tpu.memory_space<vmem>>, vector<16x32xf32>
    %cst_10 = arith.constant dense<0.000000e+00> : vector<16x32xf32>
    %11 = tpu.matmul %9, %10, %cst_10 {dimension_numbers = #tpu.dot_dimension_numbers<[1], [0], [0], [1], [0, 0, 1, 1], [], []>} : vector<16x16xf32>, vector<16x32xf32>, vector<16x32xf32> -> vector<16x32xf32>
    %c0_11 = arith.constant 0 : index
    %c0_12 = arith.constant 0 : index
    %12 = vector.load %arg8[%c0_11, %c0_12] : memref<32x96xf32, #tpu.memory_space<vmem>>, vector<32x96xf32>
    %c0_13 = arith.constant 0 : index
    %c0_14 = arith.constant 0 : index
    %13 = vector.load %arg9[%c0_13, %c0_14] : memref<32x96xf32, #tpu.memory_space<vmem>>, vector<32x96xf32>
    %c0_15 = arith.constant 0 : index
    %c0_16 = arith.constant 0 : index
    %14 = vector.load %arg10[%c0_15, %c0_16] : memref<32x96xf32, #tpu.memory_space<vmem>>, vector<32x96xf32>
    %c0_17 = arith.constant 0 : index
    %c0_18 = arith.constant 0 : index
    %15 = vector.load %arg11[%c0_17, %c0_18] : memref<1x32xf32, #tpu.memory_space<vmem>>, vector<1x32xf32>
    %c0_19 = arith.constant 0 : index
    %c0_20 = arith.constant 0 : index
    %16 = vector.load %arg12[%c0_19, %c0_20] : memref<1x32xf32, #tpu.memory_space<vmem>>, vector<1x32xf32>
    %c0_21 = arith.constant 0 : index
    %c0_22 = arith.constant 0 : index
    %17 = vector.load %arg13[%c0_21, %c0_22] : memref<32x32xf32, #tpu.memory_space<vmem>>, vector<32x32xf32>
    %c0_23 = arith.constant 0 : index
    %c0_24 = arith.constant 0 : index
    %18 = vector.load %arg14[%c0_23, %c0_24] : memref<32x32xf32, #tpu.memory_space<vmem>>, vector<32x32xf32>
    %c0_25 = arith.constant 0 : index
    %c0_26 = arith.constant 0 : index
    %19 = vector.load %arg15[%c0_25, %c0_26] : memref<32x32xf32, #tpu.memory_space<vmem>>, vector<32x32xf32>
    %c0_27 = arith.constant 0 : index
    %c0_28 = arith.constant 0 : index
    %20 = vector.load %arg16[%c0_27, %c0_28] : memref<1x32xf32, #tpu.memory_space<vmem>>, vector<1x32xf32>
    %cst_29 = arith.constant dense<0.000000e+00> : vector<16x96xf32>
    %21 = tpu.matmul %8, %12, %cst_29 {dimension_numbers = #tpu.dot_dimension_numbers<[1], [0], [0], [1], [0, 0, 1, 1], [], []>} : vector<16x32xf32>, vector<32x96xf32>, vector<16x96xf32> -> vector<16x96xf32>
    %cst_30 = arith.constant dense<0.000000e+00> : vector<16x96xf32>
    %22 = tpu.matmul %11, %13, %cst_30 {dimension_numbers = #tpu.dot_dimension_numbers<[1], [0], [0], [1], [0, 0, 1, 1], [], []>} : vector<16x32xf32>, vector<32x96xf32>, vector<16x96xf32> -> vector<16x96xf32>
    %23 = arith.mulf %8, %8 : vector<16x32xf32>
    %cst_31 = arith.constant dense<0.000000e+00> : vector<16x96xf32>
    %24 = tpu.matmul %23, %14, %cst_31 {dimension_numbers = #tpu.dot_dimension_numbers<[1], [0], [0], [1], [0, 0, 1, 1], [], []>} : vector<16x32xf32>, vector<32x96xf32>, vector<16x96xf32> -> vector<16x96xf32>
    %25 = arith.addf %22, %24 : vector<16x96xf32>
    %26 = vector.extract_strided_slice %21 {offsets = [0, 0], sizes = [16, 16], strides = [1, 1]} : vector<16x96xf32> to vector<16x16xf32>
    %27 = vector.extract_strided_slice %25 {offsets = [0, 0], sizes = [16, 16], strides = [1, 1]} : vector<16x96xf32> to vector<16x16xf32>
    %28 = vector.extract_strided_slice %21 {offsets = [0, 32], sizes = [16, 16], strides = [1, 1]} : vector<16x96xf32> to vector<16x16xf32>
    %29 = vector.extract_strided_slice %25 {offsets = [0, 32], sizes = [16, 16], strides = [1, 1]} : vector<16x96xf32> to vector<16x16xf32>
    %30 = vector.extract_strided_slice %21 {offsets = [0, 64], sizes = [16, 16], strides = [1, 1]} : vector<16x96xf32> to vector<16x16xf32>
    %31 = vector.extract_strided_slice %25 {offsets = [0, 64], sizes = [16, 16], strides = [1, 1]} : vector<16x96xf32> to vector<16x16xf32>
    %cst_32 = arith.constant dense<0.000000e+00> : vector<16x16xf32>
    %32 = tpu.matmul %26, %28, %cst_32 {dimension_numbers = #tpu.dot_dimension_numbers<[1], [1], [0], [0], [0, 0, 1, 0], [], []>} : vector<16x16xf32>, vector<16x16xf32>, vector<16x16xf32> -> vector<16x16xf32>
    %cst_33 = arith.constant 0.176776692 : f32
    %33 = vector.broadcast %cst_33 : f32 to vector<16x16xf32>
    %34 = arith.mulf %32, %33 : vector<16x16xf32>
    %35 = arith.mulf %28, %28 : vector<16x16xf32>
    %36 = arith.addf %35, %29 : vector<16x16xf32>
    %cst_34 = arith.constant dense<0.000000e+00> : vector<16x16xf32>
    %37 = tpu.matmul %27, %36, %cst_34 {dimension_numbers = #tpu.dot_dimension_numbers<[1], [1], [0], [0], [0, 0, 1, 0], [], []>} : vector<16x16xf32>, vector<16x16xf32>, vector<16x16xf32> -> vector<16x16xf32>
    %38 = arith.mulf %26, %26 : vector<16x16xf32>
    %cst_35 = arith.constant dense<0.000000e+00> : vector<16x16xf32>
    %39 = tpu.matmul %38, %29, %cst_35 {dimension_numbers = #tpu.dot_dimension_numbers<[1], [1], [0], [0], [0, 0, 1, 0], [], []>} : vector<16x16xf32>, vector<16x16xf32>, vector<16x16xf32> -> vector<16x16xf32>
    %40 = arith.addf %37, %39 : vector<16x16xf32>
    %cst_36 = arith.constant 3.125000e-02 : f32
    %41 = vector.broadcast %cst_36 : f32 to vector<16x16xf32>
    %42 = arith.mulf %40, %41 : vector<16x16xf32>
    %cst_37 = arith.constant dense<0xFF800000> : vector<16xf32>
    %43 = vector.multi_reduction <maximumf>, %34, %cst_37 [1] : vector<16x16xf32> to vector<16xf32>
    %44 = vector.shape_cast %43 : vector<16xf32> to vector<16x1xf32>
    %45 = vector.broadcast %44 : vector<16x1xf32> to vector<16x16xf32>
    %46 = arith.subf %34, %45 : vector<16x16xf32>
    %47 = math.exp %46 : vector<16x16xf32>
    %cst_38 = arith.constant dense<0.000000e+00> : vector<16xf32>
    %48 = vector.multi_reduction <add>, %47, %cst_38 [1] : vector<16x16xf32> to vector<16xf32>
    %49 = vector.shape_cast %48 : vector<16xf32> to vector<16x1xf32>
    %50 = tpu.reciprocal %49 {approx = true} : vector<16x1xf32> -> vector<16x1xf32>
    %51 = vector.broadcast %50 : vector<16x1xf32> to vector<16x16xf32>
    %52 = arith.mulf %47, %51 : vector<16x16xf32>
    %53 = arith.mulf %52, %52 : vector<16x16xf32>
    %54 = arith.mulf %53, %42 : vector<16x16xf32>
    %cst_39 = arith.constant dense<0.000000e+00> : vector<16xf32>
    %55 = vector.multi_reduction <add>, %54, %cst_39 [1] : vector<16x16xf32> to vector<16xf32>
    %56 = vector.shape_cast %55 : vector<16xf32> to vector<16x1xf32>
    %57 = arith.mulf %52, %52 : vector<16x16xf32>
    %cst_40 = arith.constant 2.000000e+00 : f32
    %58 = vector.broadcast %cst_40 : f32 to vector<16x16xf32>
    %59 = arith.mulf %58, %52 : vector<16x16xf32>
    %cst_41 = arith.constant 1.000000e+00 : f32
    %60 = vector.broadcast %cst_41 : f32 to vector<16x16xf32>
    %61 = arith.subf %60, %59 : vector<16x16xf32>
    %62 = arith.mulf %61, %42 : vector<16x16xf32>
    %63 = vector.broadcast %56 : vector<16x1xf32> to vector<16x16xf32>
    %64 = arith.addf %63, %62 : vector<16x16xf32>
    %65 = arith.mulf %57, %64 : vector<16x16xf32>
    %cst_42 = arith.constant dense<0.000000e+00> : vector<16x16xf32>
    %66 = tpu.matmul %52, %30, %cst_42 {dimension_numbers = #tpu.dot_dimension_numbers<[1], [0], [0], [1], [0, 0, 1, 1], [], []>} : vector<16x16xf32>, vector<16x16xf32>, vector<16x16xf32> -> vector<16x16xf32>
    %67 = arith.mulf %30, %30 : vector<16x16xf32>
    %68 = arith.addf %67, %31 : vector<16x16xf32>
    %cst_43 = arith.constant dense<0.000000e+00> : vector<16x16xf32>
    %69 = tpu.matmul %65, %68, %cst_43 {dimension_numbers = #tpu.dot_dimension_numbers<[1], [0], [0], [1], [0, 0, 1, 1], [], []>} : vector<16x16xf32>, vector<16x16xf32>, vector<16x16xf32> -> vector<16x16xf32>
    %70 = arith.mulf %52, %52 : vector<16x16xf32>
    %cst_44 = arith.constant dense<0.000000e+00> : vector<16x16xf32>
    %71 = tpu.matmul %70, %31, %cst_44 {dimension_numbers = #tpu.dot_dimension_numbers<[1], [0], [0], [1], [0, 0, 1, 1], [], []>} : vector<16x16xf32>, vector<16x16xf32>, vector<16x16xf32> -> vector<16x16xf32>
    %72 = arith.addf %69, %71 : vector<16x16xf32>
    %c0_45 = arith.constant 0 : index
    %c0_46 = arith.constant 0 : index
    %73 = vector.load %arg38[%c0_45, %c0_46] : memref<16x32xf32, #tpu.memory_space<vmem>>, vector<16x16xf32>
    tpu.vector_store %arg38[%c0_45, %c0_46], %66 {strides = array<i32>} : memref<16x32xf32, #tpu.memory_space<vmem>>, vector<16x16xf32>,
    %c0_47 = arith.constant 0 : index
    %c0_48 = arith.constant 0 : index
    %74 = vector.load %arg39[%c0_47, %c0_48] : memref<16x32xf32, #tpu.memory_space<vmem>>, vector<16x16xf32>
    tpu.vector_store %arg39[%c0_47, %c0_48], %72 {strides = array<i32>} : memref<16x32xf32, #tpu.memory_space<vmem>>, vector<16x16xf32>,
    %75 = vector.extract_strided_slice %21 {offsets = [0, 16], sizes = [16, 16], strides = [1, 1]} : vector<16x96xf32> to vector<16x16xf32>
    %76 = vector.extract_strided_slice %25 {offsets = [0, 16], sizes = [16, 16], strides = [1, 1]} : vector<16x96xf32> to vector<16x16xf32>
    %77 = vector.extract_strided_slice %21 {offsets = [0, 48], sizes = [16, 16], strides = [1, 1]} : vector<16x96xf32> to vector<16x16xf32>
    %78 = vector.extract_strided_slice %25 {offsets = [0, 48], sizes = [16, 16], strides = [1, 1]} : vector<16x96xf32> to vector<16x16xf32>
    %79 = vector.extract_strided_slice %21 {offsets = [0, 80], sizes = [16, 16], strides = [1, 1]} : vector<16x96xf32> to vector<16x16xf32>
    %80 = vector.extract_strided_slice %25 {offsets = [0, 80], sizes = [16, 16], strides = [1, 1]} : vector<16x96xf32> to vector<16x16xf32>
    %cst_49 = arith.constant dense<0.000000e+00> : vector<16x16xf32>
    %81 = tpu.matmul %75, %77, %cst_49 {dimension_numbers = #tpu.dot_dimension_numbers<[1], [1], [0], [0], [0, 0, 1, 0], [], []>} : vector<16x16xf32>, vector<16x16xf32>, vector<16x16xf32> -> vector<16x16xf32>
    %cst_50 = arith.constant 0.176776692 : f32
    %82 = vector.broadcast %cst_50 : f32 to vector<16x16xf32>
    %83 = arith.mulf %81, %82 : vector<16x16xf32>
    %84 = arith.mulf %77, %77 : vector<16x16xf32>
    %85 = arith.addf %84, %78 : vector<16x16xf32>
    %cst_51 = arith.constant dense<0.000000e+00> : vector<16x16xf32>
    %86 = tpu.matmul %76, %85, %cst_51 {dimension_numbers = #tpu.dot_dimension_numbers<[1], [1], [0], [0], [0, 0, 1, 0], [], []>} : vector<16x16xf32>, vector<16x16xf32>, vector<16x16xf32> -> vector<16x16xf32>
    %87 = arith.mulf %75, %75 : vector<16x16xf32>
    %cst_52 = arith.constant dense<0.000000e+00> : vector<16x16xf32>
    %88 = tpu.matmul %87, %78, %cst_52 {dimension_numbers = #tpu.dot_dimension_numbers<[1], [1], [0], [0], [0, 0, 1, 0], [], []>} : vector<16x16xf32>, vector<16x16xf32>, vector<16x16xf32> -> vector<16x16xf32>
    %89 = arith.addf %86, %88 : vector<16x16xf32>
    %cst_53 = arith.constant 3.125000e-02 : f32
    %90 = vector.broadcast %cst_53 : f32 to vector<16x16xf32>
    %91 = arith.mulf %89, %90 : vector<16x16xf32>
    %cst_54 = arith.constant dense<0xFF800000> : vector<16xf32>
    %92 = vector.multi_reduction <maximumf>, %83, %cst_54 [1] : vector<16x16xf32> to vector<16xf32>
    %93 = vector.shape_cast %92 : vector<16xf32> to vector<16x1xf32>
    %94 = vector.broadcast %93 : vector<16x1xf32> to vector<16x16xf32>
    %95 = arith.subf %83, %94 : vector<16x16xf32>
    %96 = math.exp %95 : vector<16x16xf32>
    %cst_55 = arith.constant dense<0.000000e+00> : vector<16xf32>
    %97 = vector.multi_reduction <add>, %96, %cst_55 [1] : vector<16x16xf32> to vector<16xf32>
    %98 = vector.shape_cast %97 : vector<16xf32> to vector<16x1xf32>
    %99 = tpu.reciprocal %98 {approx = true} : vector<16x1xf32> -> vector<16x1xf32>
    %100 = vector.broadcast %99 : vector<16x1xf32> to vector<16x16xf32>
    %101 = arith.mulf %96, %100 : vector<16x16xf32>
    %102 = arith.mulf %101, %101 : vector<16x16xf32>
    %103 = arith.mulf %102, %91 : vector<16x16xf32>
    %cst_56 = arith.constant dense<0.000000e+00> : vector<16xf32>
    %104 = vector.multi_reduction <add>, %103, %cst_56 [1] : vector<16x16xf32> to vector<16xf32>
    %105 = vector.shape_cast %104 : vector<16xf32> to vector<16x1xf32>
    %106 = arith.mulf %101, %101 : vector<16x16xf32>
    %cst_57 = arith.constant 2.000000e+00 : f32
    %107 = vector.broadcast %cst_57 : f32 to vector<16x16xf32>
    %108 = arith.mulf %107, %101 : vector<16x16xf32>
    %cst_58 = arith.constant 1.000000e+00 : f32
    %109 = vector.broadcast %cst_58 : f32 to vector<16x16xf32>
    %110 = arith.subf %109, %108 : vector<16x16xf32>
    %111 = arith.mulf %110, %91 : vector<16x16xf32>
    %112 = vector.broadcast %105 : vector<16x1xf32> to vector<16x16xf32>
    %113 = arith.addf %112, %111 : vector<16x16xf32>
    %114 = arith.mulf %106, %113 : vector<16x16xf32>
    %cst_59 = arith.constant dense<0.000000e+00> : vector<16x16xf32>
    %115 = tpu.matmul %101, %79, %cst_59 {dimension_numbers = #tpu.dot_dimension_numbers<[1], [0], [0], [1], [0, 0, 1, 1], [], []>} : vector<16x16xf32>, vector<16x16xf32>, vector<16x16xf32> -> vector<16x16xf32>
    %116 = arith.mulf %79, %79 : vector<16x16xf32>
    %117 = arith.addf %116, %80 : vector<16x16xf32>
    %cst_60 = arith.constant dense<0.000000e+00> : vector<16x16xf32>
    %118 = tpu.matmul %114, %117, %cst_60 {dimension_numbers = #tpu.dot_dimension_numbers<[1], [0], [0], [1], [0, 0, 1, 1], [], []>} : vector<16x16xf32>, vector<16x16xf32>, vector<16x16xf32> -> vector<16x16xf32>
    %119 = arith.mulf %101, %101 : vector<16x16xf32>
    %cst_61 = arith.constant dense<0.000000e+00> : vector<16x16xf32>
    %120 = tpu.matmul %119, %80, %cst_61 {dimension_numbers = #tpu.dot_dimension_numbers<[1], [0], [0], [1], [0, 0, 1, 1], [], []>} : vector<16x16xf32>, vector<16x16xf32>, vector<16x16xf32> -> vector<16x16xf32>
    %121 = arith.addf %118, %120 : vector<16x16xf32>
    %c0_62 = arith.constant 0 : index
    %c16 = arith.constant 16 : index
    %122 = vector.load %arg38[%c0_62, %c16] : memref<16x32xf32, #tpu.memory_space<vmem>>, vector<16x16xf32>
    tpu.vector_store %arg38[%c0_62, %c16], %115 {strides = array<i32>} : memref<16x32xf32, #tpu.memory_space<vmem>>, vector<16x16xf32>,
    %c0_63 = arith.constant 0 : index
    %c16_64 = arith.constant 16 : index
    %123 = vector.load %arg39[%c0_63, %c16_64] : memref<16x32xf32, #tpu.memory_space<vmem>>, vector<16x16xf32>
    tpu.vector_store %arg39[%c0_63, %c16_64], %121 {strides = array<i32>} : memref<16x32xf32, #tpu.memory_space<vmem>>, vector<16x16xf32>,
    %c0_65 = arith.constant 0 : index
    %c0_66 = arith.constant 0 : index
    %124 = vector.load %arg38[%c0_65, %c0_66] : memref<16x32xf32, #tpu.memory_space<vmem>>, vector<16x32xf32>
    %c0_67 = arith.constant 0 : index
    %c0_68 = arith.constant 0 : index
    %125 = vector.load %arg39[%c0_67, %c0_68] : memref<16x32xf32, #tpu.memory_space<vmem>>, vector<16x32xf32>
    %126 = arith.addf %8, %124 : vector<16x32xf32>
    %127 = arith.addf %11, %125 : vector<16x32xf32>
    %cst_69 = arith.constant dense<0.000000e+00> : vector<16xf32>
    %128 = vector.multi_reduction <add>, %126, %cst_69 [1] : vector<16x32xf32> to vector<16xf32>
    %129 = vector.shape_cast %128 : vector<16xf32> to vector<16x1xf32>
    %cst_70 = arith.constant 3.200000e+01 : f32
    %130 = vector.broadcast %cst_70 : f32 to vector<16x1xf32>
    %131 = arith.divf %129, %130 : vector<16x1xf32>
    %132 = vector.broadcast %131 : vector<16x1xf32> to vector<16x32xf32>
    %133 = arith.subf %126, %132 : vector<16x32xf32>
    %134 = arith.mulf %133, %133 : vector<16x32xf32>
    %cst_71 = arith.constant dense<0.000000e+00> : vector<16xf32>
    %135 = vector.multi_reduction <add>, %134, %cst_71 [1] : vector<16x32xf32> to vector<16xf32>
    %136 = vector.shape_cast %135 : vector<16xf32> to vector<16x1xf32>
    %cst_72 = arith.constant 3.200000e+01 : f32
    %137 = vector.broadcast %cst_72 : f32 to vector<16x1xf32>
    %138 = arith.divf %136, %137 : vector<16x1xf32>
    %cst_73 = arith.constant 9.99999974E-6 : f32
    %139 = vector.broadcast %cst_73 : f32 to vector<16x1xf32>
    %140 = arith.addf %138, %139 : vector<16x1xf32>
    %141 = math.rsqrt %140 : vector<16x1xf32>
    %142 = vector.broadcast %15 : vector<1x32xf32> to vector<16x32xf32>
    %143 = arith.mulf %142, %133 : vector<16x32xf32>
    %144 = vector.broadcast %141 : vector<16x1xf32> to vector<16x32xf32>
    %145 = arith.mulf %143, %144 : vector<16x32xf32>
    %146 = vector.broadcast %16 : vector<1x32xf32> to vector<16x32xf32>
    %147 = arith.addf %145, %146 : vector<16x32xf32>
    %148 = vector.broadcast %15 : vector<1x32xf32> to vector<16x32xf32>
    %149 = vector.broadcast %141 : vector<16x1xf32> to vector<16x32xf32>
    %150 = arith.mulf %148, %149 : vector<16x32xf32>
    %151 = arith.mulf %150, %150 : vector<16x32xf32>
    %152 = arith.mulf %151, %127 : vector<16x32xf32>
    %cst_74 = arith.constant dense<0.000000e+00> : vector<16x32xf32>
    %153 = tpu.matmul %147, %17, %cst_74 {dimension_numbers = #tpu.dot_dimension_numbers<[1], [0], [0], [1], [0, 0, 1, 1], [], []>} : vector<16x32xf32>, vector<32x32xf32>, vector<16x32xf32> -> vector<16x32xf32>
    %154 = vector.broadcast %20 : vector<1x32xf32> to vector<16x32xf32>
    %155 = arith.addf %153, %154 : vector<16x32xf32>
    %cst_75 = arith.constant dense<0.000000e+00> : vector<16x32xf32>
    %156 = tpu.matmul %152, %18, %cst_75 {dimension_numbers = #tpu.dot_dimension_numbers<[1], [0], [0], [1], [0, 0, 1, 1], [], []>} : vector<16x32xf32>, vector<32x32xf32>, vector<16x32xf32> -> vector<16x32xf32>
    %157 = arith.mulf %147, %147 : vector<16x32xf32>
    %cst_76 = arith.constant dense<0.000000e+00> : vector<16x32xf32>
    %158 = tpu.matmul %157, %19, %cst_76 {dimension_numbers = #tpu.dot_dimension_numbers<[1], [0], [0], [1], [0, 0, 1, 1], [], []>} : vector<16x32xf32>, vector<32x32xf32>, vector<16x32xf32> -> vector<16x32xf32>
    %159 = arith.addf %156, %158 : vector<16x32xf32>
    %cst_77 = arith.constant 0.000000e+00 : f32
    %160 = vector.broadcast %cst_77 : f32 to vector<16x32xf32>
    %161 = arith.cmpf ogt, %155, %160 : vector<16x32xf32>
    %162 = arith.extui %161 : vector<16x32xi1> to vector<16x32xi32>
    %163 = arith.sitofp %162 : vector<16x32xi32> to vector<16x32xf32>
    %164 = arith.mulf %155, %163 : vector<16x32xf32>
    %165 = arith.addf %147, %164 : vector<16x32xf32>
    %166 = arith.mulf %159, %163 : vector<16x32xf32>
    %167 = arith.addf %152, %166 : vector<16x32xf32>
    %c0_78 = arith.constant 0 : index
    %c0_79 = arith.constant 0 : index
    %168 = vector.load %arg17[%c0_78, %c0_79] : memref<1x32xf32, #tpu.memory_space<vmem>>, vector<1x32xf32>
    %c0_80 = arith.constant 0 : index
    %c0_81 = arith.constant 0 : index
    %169 = vector.load %arg18[%c0_80, %c0_81] : memref<1x32xf32, #tpu.memory_space<vmem>>, vector<1x32xf32>
    %c0_82 = arith.constant 0 : index
    %c0_83 = arith.constant 0 : index
    %170 = vector.load %arg19[%c0_82, %c0_83] : memref<32x96xf32, #tpu.memory_space<vmem>>, vector<32x96xf32>
    %c0_84 = arith.constant 0 : index
    %c0_85 = arith.constant 0 : index
    %171 = vector.load %arg20[%c0_84, %c0_85] : memref<32x96xf32, #tpu.memory_space<vmem>>, vector<32x96xf32>
    %c0_86 = arith.constant 0 : index
    %c0_87 = arith.constant 0 : index
    %172 = vector.load %arg21[%c0_86, %c0_87] : memref<32x96xf32, #tpu.memory_space<vmem>>, vector<32x96xf32>
    %c0_88 = arith.constant 0 : index
    %c0_89 = arith.constant 0 : index
    %173 = vector.load %arg22[%c0_88, %c0_89] : memref<1x32xf32, #tpu.memory_space<vmem>>, vector<1x32xf32>
    %c0_90 = arith.constant 0 : index
    %c0_91 = arith.constant 0 : index
    %174 = vector.load %arg23[%c0_90, %c0_91] : memref<1x32xf32, #tpu.memory_space<vmem>>, vector<1x32xf32>
    %c0_92 = arith.constant 0 : index
    %c0_93 = arith.constant 0 : index
    %175 = vector.load %arg24[%c0_92, %c0_93] : memref<32x32xf32, #tpu.memory_space<vmem>>, vector<32x32xf32>
    %c0_94 = arith.constant 0 : index
    %c0_95 = arith.constant 0 : index
    %176 = vector.load %arg25[%c0_94, %c0_95] : memref<32x32xf32, #tpu.memory_space<vmem>>, vector<32x32xf32>
    %c0_96 = arith.constant 0 : index
    %c0_97 = arith.constant 0 : index
    %177 = vector.load %arg26[%c0_96, %c0_97] : memref<32x32xf32, #tpu.memory_space<vmem>>, vector<32x32xf32>
    %c0_98 = arith.constant 0 : index
    %c0_99 = arith.constant 0 : index
    %178 = vector.load %arg27[%c0_98, %c0_99] : memref<1x32xf32, #tpu.memory_space<vmem>>, vector<1x32xf32>
    %cst_100 = arith.constant dense<0.000000e+00> : vector<16xf32>
    %179 = vector.multi_reduction <add>, %165, %cst_100 [1] : vector<16x32xf32> to vector<16xf32>
    %180 = vector.shape_cast %179 : vector<16xf32> to vector<16x1xf32>
    %cst_101 = arith.constant 3.200000e+01 : f32
    %181 = vector.broadcast %cst_101 : f32 to vector<16x1xf32>
    %182 = arith.divf %180, %181 : vector<16x1xf32>
    %183 = vector.broadcast %182 : vector<16x1xf32> to vector<16x32xf32>
    %184 = arith.subf %165, %183 : vector<16x32xf32>
    %185 = arith.mulf %184, %184 : vector<16x32xf32>
    %cst_102 = arith.constant dense<0.000000e+00> : vector<16xf32>
    %186 = vector.multi_reduction <add>, %185, %cst_102 [1] : vector<16x32xf32> to vector<16xf32>
    %187 = vector.shape_cast %186 : vector<16xf32> to vector<16x1xf32>
    %cst_103 = arith.constant 3.200000e+01 : f32
    %188 = vector.broadcast %cst_103 : f32 to vector<16x1xf32>
    %189 = arith.divf %187, %188 : vector<16x1xf32>
    %cst_104 = arith.constant 9.99999974E-6 : f32
    %190 = vector.broadcast %cst_104 : f32 to vector<16x1xf32>
    %191 = arith.addf %189, %190 : vector<16x1xf32>
    %192 = math.rsqrt %191 : vector<16x1xf32>
    %193 = vector.broadcast %168 : vector<1x32xf32> to vector<16x32xf32>
    %194 = arith.mulf %193, %184 : vector<16x32xf32>
    %195 = vector.broadcast %192 : vector<16x1xf32> to vector<16x32xf32>
    %196 = arith.mulf %194, %195 : vector<16x32xf32>
    %197 = vector.broadcast %169 : vector<1x32xf32> to vector<16x32xf32>
    %198 = arith.addf %196, %197 : vector<16x32xf32>
    %199 = vector.broadcast %168 : vector<1x32xf32> to vector<16x32xf32>
    %200 = vector.broadcast %192 : vector<16x1xf32> to vector<16x32xf32>
    %201 = arith.mulf %199, %200 : vector<16x32xf32>
    %202 = arith.mulf %201, %201 : vector<16x32xf32>
    %203 = arith.mulf %202, %167 : vector<16x32xf32>
    %cst_105 = arith.constant dense<0.000000e+00> : vector<16x96xf32>
    %204 = tpu.matmul %198, %170, %cst_105 {dimension_numbers = #tpu.dot_dimension_numbers<[1], [0], [0], [1], [0, 0, 1, 1], [], []>} : vector<16x32xf32>, vector<32x96xf32>, vector<16x96xf32> -> vector<16x96xf32>
    %cst_106 = arith.constant dense<0.000000e+00> : vector<16x96xf32>
    %205 = tpu.matmul %203, %171, %cst_106 {dimension_numbers = #tpu.dot_dimension_numbers<[1], [0], [0], [1], [0, 0, 1, 1], [], []>} : vector<16x32xf32>, vector<32x96xf32>, vector<16x96xf32> -> vector<16x96xf32>
    %206 = arith.mulf %198, %198 : vector<16x32xf32>
    %cst_107 = arith.constant dense<0.000000e+00> : vector<16x96xf32>
    %207 = tpu.matmul %206, %172, %cst_107 {dimension_numbers = #tpu.dot_dimension_numbers<[1], [0], [0], [1], [0, 0, 1, 1], [], []>} : vector<16x32xf32>, vector<32x96xf32>, vector<16x96xf32> -> vector<16x96xf32>
    %208 = arith.addf %205, %207 : vector<16x96xf32>
    %209 = vector.extract_strided_slice %204 {offsets = [0, 0], sizes = [16, 16], strides = [1, 1]} : vector<16x96xf32> to vector<16x16xf32>
    %210 = vector.extract_strided_slice %208 {offsets = [0, 0], sizes = [16, 16], strides = [1, 1]} : vector<16x96xf32> to vector<16x16xf32>
    %211 = vector.extract_strided_slice %204 {offsets = [0, 32], sizes = [16, 16], strides = [1, 1]} : vector<16x96xf32> to vector<16x16xf32>
    %212 = vector.extract_strided_slice %208 {offsets = [0, 32], sizes = [16, 16], strides = [1, 1]} : vector<16x96xf32> to vector<16x16xf32>
    %213 = vector.extract_strided_slice %204 {offsets = [0, 64], sizes = [16, 16], strides = [1, 1]} : vector<16x96xf32> to vector<16x16xf32>
    %214 = vector.extract_strided_slice %208 {offsets = [0, 64], sizes = [16, 16], strides = [1, 1]} : vector<16x96xf32> to vector<16x16xf32>
    %cst_108 = arith.constant dense<0.000000e+00> : vector<16x16xf32>
    %215 = tpu.matmul %209, %211, %cst_108 {dimension_numbers = #tpu.dot_dimension_numbers<[1], [1], [0], [0], [0, 0, 1, 0], [], []>} : vector<16x16xf32>, vector<16x16xf32>, vector<16x16xf32> -> vector<16x16xf32>
    %cst_109 = arith.constant 0.176776692 : f32
    %216 = vector.broadcast %cst_109 : f32 to vector<16x16xf32>
    %217 = arith.mulf %215, %216 : vector<16x16xf32>
    %218 = arith.mulf %211, %211 : vector<16x16xf32>
    %219 = arith.addf %218, %212 : vector<16x16xf32>
    %cst_110 = arith.constant dense<0.000000e+00> : vector<16x16xf32>
    %220 = tpu.matmul %210, %219, %cst_110 {dimension_numbers = #tpu.dot_dimension_numbers<[1], [1], [0], [0], [0, 0, 1, 0], [], []>} : vector<16x16xf32>, vector<16x16xf32>, vector<16x16xf32> -> vector<16x16xf32>
    %221 = arith.mulf %209, %209 : vector<16x16xf32>
    %cst_111 = arith.constant dense<0.000000e+00> : vector<16x16xf32>
    %222 = tpu.matmul %221, %212, %cst_111 {dimension_numbers = #tpu.dot_dimension_numbers<[1], [1], [0], [0], [0, 0, 1, 0], [], []>} : vector<16x16xf32>, vector<16x16xf32>, vector<16x16xf32> -> vector<16x16xf32>
    %223 = arith.addf %220, %222 : vector<16x16xf32>
    %cst_112 = arith.constant 3.125000e-02 : f32
    %224 = vector.broadcast %cst_112 : f32 to vector<16x16xf32>
    %225 = arith.mulf %223, %224 : vector<16x16xf32>
    %cst_113 = arith.constant dense<0xFF800000> : vector<16xf32>
    %226 = vector.multi_reduction <maximumf>, %217, %cst_113 [1] : vector<16x16xf32> to vector<16xf32>
    %227 = vector.shape_cast %226 : vector<16xf32> to vector<16x1xf32>
    %228 = vector.broadcast %227 : vector<16x1xf32> to vector<16x16xf32>
    %229 = arith.subf %217, %228 : vector<16x16xf32>
    %230 = math.exp %229 : vector<16x16xf32>
    %cst_114 = arith.constant dense<0.000000e+00> : vector<16xf32>
    %231 = vector.multi_reduction <add>, %230, %cst_114 [1] : vector<16x16xf32> to vector<16xf32>
    %232 = vector.shape_cast %231 : vector<16xf32> to vector<16x1xf32>
    %233 = tpu.reciprocal %232 {approx = true} : vector<16x1xf32> -> vector<16x1xf32>
    %234 = vector.broadcast %233 : vector<16x1xf32> to vector<16x16xf32>
    %235 = arith.mulf %230, %234 : vector<16x16xf32>
    %236 = arith.mulf %235, %235 : vector<16x16xf32>
    %237 = arith.mulf %236, %225 : vector<16x16xf32>
    %cst_115 = arith.constant dense<0.000000e+00> : vector<16xf32>
    %238 = vector.multi_reduction <add>, %237, %cst_115 [1] : vector<16x16xf32> to vector<16xf32>
    %239 = vector.shape_cast %238 : vector<16xf32> to vector<16x1xf32>
    %240 = arith.mulf %235, %235 : vector<16x16xf32>
    %cst_116 = arith.constant 2.000000e+00 : f32
    %241 = vector.broadcast %cst_116 : f32 to vector<16x16xf32>
    %242 = arith.mulf %241, %235 : vector<16x16xf32>
    %cst_117 = arith.constant 1.000000e+00 : f32
    %243 = vector.broadcast %cst_117 : f32 to vector<16x16xf32>
    %244 = arith.subf %243, %242 : vector<16x16xf32>
    %245 = arith.mulf %244, %225 : vector<16x16xf32>
    %246 = vector.broadcast %239 : vector<16x1xf32> to vector<16x16xf32>
    %247 = arith.addf %246, %245 : vector<16x16xf32>
    %248 = arith.mulf %240, %247 : vector<16x16xf32>
    %cst_118 = arith.constant dense<0.000000e+00> : vector<16x16xf32>
    %249 = tpu.matmul %235, %213, %cst_118 {dimension_numbers = #tpu.dot_dimension_numbers<[1], [0], [0], [1], [0, 0, 1, 1], [], []>} : vector<16x16xf32>, vector<16x16xf32>, vector<16x16xf32> -> vector<16x16xf32>
    %250 = arith.mulf %213, %213 : vector<16x16xf32>
    %251 = arith.addf %250, %214 : vector<16x16xf32>
    %cst_119 = arith.constant dense<0.000000e+00> : vector<16x16xf32>
    %252 = tpu.matmul %248, %251, %cst_119 {dimension_numbers = #tpu.dot_dimension_numbers<[1], [0], [0], [1], [0, 0, 1, 1], [], []>} : vector<16x16xf32>, vector<16x16xf32>, vector<16x16xf32> -> vector<16x16xf32>
    %253 = arith.mulf %235, %235 : vector<16x16xf32>
    %cst_120 = arith.constant dense<0.000000e+00> : vector<16x16xf32>
    %254 = tpu.matmul %253, %214, %cst_120 {dimension_numbers = #tpu.dot_dimension_numbers<[1], [0], [0], [1], [0, 0, 1, 1], [], []>} : vector<16x16xf32>, vector<16x16xf32>, vector<16x16xf32> -> vector<16x16xf32>
    %255 = arith.addf %252, %254 : vector<16x16xf32>
    %c0_121 = arith.constant 0 : index
    %c0_122 = arith.constant 0 : index
    %256 = vector.load %arg38[%c0_121, %c0_122] : memref<16x32xf32, #tpu.memory_space<vmem>>, vector<16x16xf32>
    tpu.vector_store %arg38[%c0_121, %c0_122], %249 {strides = array<i32>} : memref<16x32xf32, #tpu.memory_space<vmem>>, vector<16x16xf32>,
    %c0_123 = arith.constant 0 : index
    %c0_124 = arith.constant 0 : index
    %257 = vector.load %arg39[%c0_123, %c0_124] : memref<16x32xf32, #tpu.memory_space<vmem>>, vector<16x16xf32>
    tpu.vector_store %arg39[%c0_123, %c0_124], %255 {strides = array<i32>} : memref<16x32xf32, #tpu.memory_space<vmem>>, vector<16x16xf32>,
    %258 = vector.extract_strided_slice %204 {offsets = [0, 16], sizes = [16, 16], strides = [1, 1]} : vector<16x96xf32> to vector<16x16xf32>
    %259 = vector.extract_strided_slice %208 {offsets = [0, 16], sizes = [16, 16], strides = [1, 1]} : vector<16x96xf32> to vector<16x16xf32>
    %260 = vector.extract_strided_slice %204 {offsets = [0, 48], sizes = [16, 16], strides = [1, 1]} : vector<16x96xf32> to vector<16x16xf32>
    %261 = vector.extract_strided_slice %208 {offsets = [0, 48], sizes = [16, 16], strides = [1, 1]} : vector<16x96xf32> to vector<16x16xf32>
    %262 = vector.extract_strided_slice %204 {offsets = [0, 80], sizes = [16, 16], strides = [1, 1]} : vector<16x96xf32> to vector<16x16xf32>
    %263 = vector.extract_strided_slice %208 {offsets = [0, 80], sizes = [16, 16], strides = [1, 1]} : vector<16x96xf32> to vector<16x16xf32>
    %cst_125 = arith.constant dense<0.000000e+00> : vector<16x16xf32>
    %264 = tpu.matmul %258, %260, %cst_125 {dimension_numbers = #tpu.dot_dimension_numbers<[1], [1], [0], [0], [0, 0, 1, 0], [], []>} : vector<16x16xf32>, vector<16x16xf32>, vector<16x16xf32> -> vector<16x16xf32>
    %cst_126 = arith.constant 0.176776692 : f32
    %265 = vector.broadcast %cst_126 : f32 to vector<16x16xf32>
    %266 = arith.mulf %264, %265 : vector<16x16xf32>
    %267 = arith.mulf %260, %260 : vector<16x16xf32>
    %268 = arith.addf %267, %261 : vector<16x16xf32>
    %cst_127 = arith.constant dense<0.000000e+00> : vector<16x16xf32>
    %269 = tpu.matmul %259, %268, %cst_127 {dimension_numbers = #tpu.dot_dimension_numbers<[1], [1], [0], [0], [0, 0, 1, 0], [], []>} : vector<16x16xf32>, vector<16x16xf32>, vector<16x16xf32> -> vector<16x16xf32>
    %270 = arith.mulf %258, %258 : vector<16x16xf32>
    %cst_128 = arith.constant dense<0.000000e+00> : vector<16x16xf32>
    %271 = tpu.matmul %270, %261, %cst_128 {dimension_numbers = #tpu.dot_dimension_numbers<[1], [1], [0], [0], [0, 0, 1, 0], [], []>} : vector<16x16xf32>, vector<16x16xf32>, vector<16x16xf32> -> vector<16x16xf32>
    %272 = arith.addf %269, %271 : vector<16x16xf32>
    %cst_129 = arith.constant 3.125000e-02 : f32
    %273 = vector.broadcast %cst_129 : f32 to vector<16x16xf32>
    %274 = arith.mulf %272, %273 : vector<16x16xf32>
    %cst_130 = arith.constant dense<0xFF800000> : vector<16xf32>
    %275 = vector.multi_reduction <maximumf>, %266, %cst_130 [1] : vector<16x16xf32> to vector<16xf32>
    %276 = vector.shape_cast %275 : vector<16xf32> to vector<16x1xf32>
    %277 = vector.broadcast %276 : vector<16x1xf32> to vector<16x16xf32>
    %278 = arith.subf %266, %277 : vector<16x16xf32>
    %279 = math.exp %278 : vector<16x16xf32>
    %cst_131 = arith.constant dense<0.000000e+00> : vector<16xf32>
    %280 = vector.multi_reduction <add>, %279, %cst_131 [1] : vector<16x16xf32> to vector<16xf32>
    %281 = vector.shape_cast %280 : vector<16xf32> to vector<16x1xf32>
    %282 = tpu.reciprocal %281 {approx = true} : vector<16x1xf32> -> vector<16x1xf32>
    %283 = vector.broadcast %282 : vector<16x1xf32> to vector<16x16xf32>
    %284 = arith.mulf %279, %283 : vector<16x16xf32>
    %285 = arith.mulf %284, %284 : vector<16x16xf32>
    %286 = arith.mulf %285, %274 : vector<16x16xf32>
    %cst_132 = arith.constant dense<0.000000e+00> : vector<16xf32>
    %287 = vector.multi_reduction <add>, %286, %cst_132 [1] : vector<16x16xf32> to vector<16xf32>
    %288 = vector.shape_cast %287 : vector<16xf32> to vector<16x1xf32>
    %289 = arith.mulf %284, %284 : vector<16x16xf32>
    %cst_133 = arith.constant 2.000000e+00 : f32
    %290 = vector.broadcast %cst_133 : f32 to vector<16x16xf32>
    %291 = arith.mulf %290, %284 : vector<16x16xf32>
    %cst_134 = arith.constant 1.000000e+00 : f32
    %292 = vector.broadcast %cst_134 : f32 to vector<16x16xf32>
    %293 = arith.subf %292, %291 : vector<16x16xf32>
    %294 = arith.mulf %293, %274 : vector<16x16xf32>
    %295 = vector.broadcast %288 : vector<16x1xf32> to vector<16x16xf32>
    %296 = arith.addf %295, %294 : vector<16x16xf32>
    %297 = arith.mulf %289, %296 : vector<16x16xf32>
    %cst_135 = arith.constant dense<0.000000e+00> : vector<16x16xf32>
    %298 = tpu.matmul %284, %262, %cst_135 {dimension_numbers = #tpu.dot_dimension_numbers<[1], [0], [0], [1], [0, 0, 1, 1], [], []>} : vector<16x16xf32>, vector<16x16xf32>, vector<16x16xf32> -> vector<16x16xf32>
    %299 = arith.mulf %262, %262 : vector<16x16xf32>
    %300 = arith.addf %299, %263 : vector<16x16xf32>
    %cst_136 = arith.constant dense<0.000000e+00> : vector<16x16xf32>
    %301 = tpu.matmul %297, %300, %cst_136 {dimension_numbers = #tpu.dot_dimension_numbers<[1], [0], [0], [1], [0, 0, 1, 1], [], []>} : vector<16x16xf32>, vector<16x16xf32>, vector<16x16xf32> -> vector<16x16xf32>
    %302 = arith.mulf %284, %284 : vector<16x16xf32>
    %cst_137 = arith.constant dense<0.000000e+00> : vector<16x16xf32>
    %303 = tpu.matmul %302, %263, %cst_137 {dimension_numbers = #tpu.dot_dimension_numbers<[1], [0], [0], [1], [0, 0, 1, 1], [], []>} : vector<16x16xf32>, vector<16x16xf32>, vector<16x16xf32> -> vector<16x16xf32>
    %304 = arith.addf %301, %303 : vector<16x16xf32>
    %c0_138 = arith.constant 0 : index
    %c16_139 = arith.constant 16 : index
    %305 = vector.load %arg38[%c0_138, %c16_139] : memref<16x32xf32, #tpu.memory_space<vmem>>, vector<16x16xf32>
    tpu.vector_store %arg38[%c0_138, %c16_139], %298 {strides = array<i32>} : memref<16x32xf32, #tpu.memory_space<vmem>>, vector<16x16xf32>,
    %c0_140 = arith.constant 0 : index
    %c16_141 = arith.constant 16 : index
    %306 = vector.load %arg39[%c0_140, %c16_141] : memref<16x32xf32, #tpu.memory_space<vmem>>, vector<16x16xf32>
    tpu.vector_store %arg39[%c0_140, %c16_141], %304 {strides = array<i32>} : memref<16x32xf32, #tpu.memory_space<vmem>>, vector<16x16xf32>,
    %c0_142 = arith.constant 0 : index
    %c0_143 = arith.constant 0 : index
    %307 = vector.load %arg38[%c0_142, %c0_143] : memref<16x32xf32, #tpu.memory_space<vmem>>, vector<16x32xf32>
    %c0_144 = arith.constant 0 : index
    %c0_145 = arith.constant 0 : index
    %308 = vector.load %arg39[%c0_144, %c0_145] : memref<16x32xf32, #tpu.memory_space<vmem>>, vector<16x32xf32>
    %309 = arith.addf %198, %307 : vector<16x32xf32>
    %310 = arith.addf %203, %308 : vector<16x32xf32>
    %cst_146 = arith.constant dense<0.000000e+00> : vector<16xf32>
    %311 = vector.multi_reduction <add>, %309, %cst_146 [1] : vector<16x32xf32> to vector<16xf32>
    %312 = vector.shape_cast %311 : vector<16xf32> to vector<16x1xf32>
    %cst_147 = arith.constant 3.200000e+01 : f32
    %313 = vector.broadcast %cst_147 : f32 to vector<16x1xf32>
    %314 = arith.divf %312, %313 : vector<16x1xf32>
    %315 = vector.broadcast %314 : vector<16x1xf32> to vector<16x32xf32>
    %316 = arith.subf %309, %315 : vector<16x32xf32>
    %317 = arith.mulf %316, %316 : vector<16x32xf32>
    %cst_148 = arith.constant dense<0.000000e+00> : vector<16xf32>
    %318 = vector.multi_reduction <add>, %317, %cst_148 [1] : vector<16x32xf32> to vector<16xf32>
    %319 = vector.shape_cast %318 : vector<16xf32> to vector<16x1xf32>
    %cst_149 = arith.constant 3.200000e+01 : f32
    %320 = vector.broadcast %cst_149 : f32 to vector<16x1xf32>
    %321 = arith.divf %319, %320 : vector<16x1xf32>
    %cst_150 = arith.constant 9.99999974E-6 : f32
    %322 = vector.broadcast %cst_150 : f32 to vector<16x1xf32>
    %323 = arith.addf %321, %322 : vector<16x1xf32>
    %324 = math.rsqrt %323 : vector<16x1xf32>
    %325 = vector.broadcast %173 : vector<1x32xf32> to vector<16x32xf32>
    %326 = arith.mulf %325, %316 : vector<16x32xf32>
    %327 = vector.broadcast %324 : vector<16x1xf32> to vector<16x32xf32>
    %328 = arith.mulf %326, %327 : vector<16x32xf32>
    %329 = vector.broadcast %174 : vector<1x32xf32> to vector<16x32xf32>
    %330 = arith.addf %328, %329 : vector<16x32xf32>
    %331 = vector.broadcast %173 : vector<1x32xf32> to vector<16x32xf32>
    %332 = vector.broadcast %324 : vector<16x1xf32> to vector<16x32xf32>
    %333 = arith.mulf %331, %332 : vector<16x32xf32>
    %334 = arith.mulf %333, %333 : vector<16x32xf32>
    %335 = arith.mulf %334, %310 : vector<16x32xf32>
    %cst_151 = arith.constant dense<0.000000e+00> : vector<16x32xf32>
    %336 = tpu.matmul %330, %175, %cst_151 {dimension_numbers = #tpu.dot_dimension_numbers<[1], [0], [0], [1], [0, 0, 1, 1], [], []>} : vector<16x32xf32>, vector<32x32xf32>, vector<16x32xf32> -> vector<16x32xf32>
    %337 = vector.broadcast %178 : vector<1x32xf32> to vector<16x32xf32>
    %338 = arith.addf %336, %337 : vector<16x32xf32>
    %cst_152 = arith.constant dense<0.000000e+00> : vector<16x32xf32>
    %339 = tpu.matmul %335, %176, %cst_152 {dimension_numbers = #tpu.dot_dimension_numbers<[1], [0], [0], [1], [0, 0, 1, 1], [], []>} : vector<16x32xf32>, vector<32x32xf32>, vector<16x32xf32> -> vector<16x32xf32>
    %340 = arith.mulf %330, %330 : vector<16x32xf32>
    %cst_153 = arith.constant dense<0.000000e+00> : vector<16x32xf32>
    %341 = tpu.matmul %340, %177, %cst_153 {dimension_numbers = #tpu.dot_dimension_numbers<[1], [0], [0], [1], [0, 0, 1, 1], [], []>} : vector<16x32xf32>, vector<32x32xf32>, vector<16x32xf32> -> vector<16x32xf32>
    %342 = arith.addf %339, %341 : vector<16x32xf32>
    %cst_154 = arith.constant 0.000000e+00 : f32
    %343 = vector.broadcast %cst_154 : f32 to vector<16x32xf32>
    %344 = arith.cmpf ogt, %338, %343 : vector<16x32xf32>
    %345 = arith.extui %344 : vector<16x32xi1> to vector<16x32xi32>
    %346 = arith.sitofp %345 : vector<16x32xi32> to vector<16x32xf32>
    %347 = arith.mulf %338, %346 : vector<16x32xf32>
    %348 = arith.addf %330, %347 : vector<16x32xf32>
    %349 = arith.mulf %342, %346 : vector<16x32xf32>
    %350 = arith.addf %335, %349 : vector<16x32xf32>
    %cst_155 = arith.constant dense<0.000000e+00> : vector<32xf32>
    %351 = vector.multi_reduction <add>, %348, %cst_155 [0] : vector<16x32xf32> to vector<32xf32>
    %352 = vector.shape_cast %351 : vector<32xf32> to vector<1x32xf32>
    %cst_156 = arith.constant 1.600000e+01 : f32
    %353 = vector.broadcast %cst_156 : f32 to vector<1x32xf32>
    %354 = arith.divf %352, %353 : vector<1x32xf32>
    %cst_157 = arith.constant dense<0.000000e+00> : vector<32xf32>
    %355 = vector.multi_reduction <add>, %350, %cst_157 [0] : vector<16x32xf32> to vector<32xf32>
    %356 = vector.shape_cast %355 : vector<32xf32> to vector<1x32xf32>
    %cst_158 = arith.constant 1.600000e+01 : f32
    %357 = vector.broadcast %cst_158 : f32 to vector<1x32xf32>
    %358 = arith.divf %356, %357 : vector<1x32xf32>
    %cst_159 = arith.constant 6.250000e-02 : f32
    %359 = vector.broadcast %cst_159 : f32 to vector<1x32xf32>
    %360 = arith.mulf %358, %359 : vector<1x32xf32>
    %c0_160 = arith.constant 0 : index
    %c0_161 = arith.constant 0 : index
    %361 = vector.load %arg28[%c0_160, %c0_161] : memref<32x16xf32, #tpu.memory_space<vmem>>, vector<32x16xf32>
    %c0_162 = arith.constant 0 : index
    %c0_163 = arith.constant 0 : index
    %362 = vector.load %arg29[%c0_162, %c0_163] : memref<32x16xf32, #tpu.memory_space<vmem>>, vector<32x16xf32>
    %c0_164 = arith.constant 0 : index
    %c0_165 = arith.constant 0 : index
    %363 = vector.load %arg30[%c0_164, %c0_165] : memref<32x16xf32, #tpu.memory_space<vmem>>, vector<32x16xf32>
    %c0_166 = arith.constant 0 : index
    %c0_167 = arith.constant 0 : index
    %364 = vector.load %arg31[%c0_166, %c0_167] : memref<1x16xf32, #tpu.memory_space<vmem>>, vector<1x16xf32>
    %cst_168 = arith.constant dense<0.000000e+00> : vector<1x16xf32>
    %365 = tpu.matmul %354, %361, %cst_168 {dimension_numbers = #tpu.dot_dimension_numbers<[1], [0], [0], [1], [0, 0, 1, 1], [], []>} : vector<1x32xf32>, vector<32x16xf32>, vector<1x16xf32> -> vector<1x16xf32>
    %366 = arith.addf %365, %364 : vector<1x16xf32>
    %cst_169 = arith.constant dense<0.000000e+00> : vector<1x16xf32>
    %367 = tpu.matmul %360, %362, %cst_169 {dimension_numbers = #tpu.dot_dimension_numbers<[1], [0], [0], [1], [0, 0, 1, 1], [], []>} : vector<1x32xf32>, vector<32x16xf32>, vector<1x16xf32> -> vector<1x16xf32>
    %368 = arith.mulf %354, %354 : vector<1x32xf32>
    %cst_170 = arith.constant dense<0.000000e+00> : vector<1x16xf32>
    %369 = tpu.matmul %368, %363, %cst_170 {dimension_numbers = #tpu.dot_dimension_numbers<[1], [0], [0], [1], [0, 0, 1, 1], [], []>} : vector<1x32xf32>, vector<32x16xf32>, vector<1x16xf32> -> vector<1x16xf32>
    %370 = arith.addf %367, %369 : vector<1x16xf32>
    %cst_171 = arith.constant 0.000000e+00 : f32
    %371 = vector.broadcast %cst_171 : f32 to vector<1x16xf32>
    %372 = arith.cmpf ogt, %366, %371 : vector<1x16xf32>
    %373 = arith.extui %372 : vector<1x16xi1> to vector<1x16xi32>
    %374 = arith.sitofp %373 : vector<1x16xi32> to vector<1x16xf32>
    %375 = arith.mulf %366, %374 : vector<1x16xf32>
    %376 = arith.mulf %370, %374 : vector<1x16xf32>
    %c0_172 = arith.constant 0 : index
    %c0_173 = arith.constant 0 : index
    %377 = vector.load %arg32[%c0_172, %c0_173] : memref<16x10xf32, #tpu.memory_space<vmem>>, vector<16x10xf32>
    %c0_174 = arith.constant 0 : index
    %c0_175 = arith.constant 0 : index
    %378 = vector.load %arg33[%c0_174, %c0_175] : memref<16x10xf32, #tpu.memory_space<vmem>>, vector<16x10xf32>
    %c0_176 = arith.constant 0 : index
    %c0_177 = arith.constant 0 : index
    %379 = vector.load %arg34[%c0_176, %c0_177] : memref<16x10xf32, #tpu.memory_space<vmem>>, vector<16x10xf32>
    %c0_178 = arith.constant 0 : index
    %c0_179 = arith.constant 0 : index
    %380 = vector.load %arg35[%c0_178, %c0_179] : memref<1x10xf32, #tpu.memory_space<vmem>>, vector<1x10xf32>
    %cst_180 = arith.constant dense<0.000000e+00> : vector<1x10xf32>
    %381 = tpu.matmul %375, %377, %cst_180 {dimension_numbers = #tpu.dot_dimension_numbers<[1], [0], [0], [1], [0, 0, 1, 1], [], []>} : vector<1x16xf32>, vector<16x10xf32>, vector<1x10xf32> -> vector<1x10xf32>
    %382 = arith.addf %381, %380 : vector<1x10xf32>
    %cst_181 = arith.constant dense<0.000000e+00> : vector<1x10xf32>
    %383 = tpu.matmul %376, %378, %cst_181 {dimension_numbers = #tpu.dot_dimension_numbers<[1], [0], [0], [1], [0, 0, 1, 1], [], []>} : vector<1x16xf32>, vector<16x10xf32>, vector<1x10xf32> -> vector<1x10xf32>
    %384 = arith.mulf %375, %375 : vector<1x16xf32>
    %cst_182 = arith.constant dense<0.000000e+00> : vector<1x10xf32>
    %385 = tpu.matmul %384, %379, %cst_182 {dimension_numbers = #tpu.dot_dimension_numbers<[1], [0], [0], [1], [0, 0, 1, 1], [], []>} : vector<1x16xf32>, vector<16x10xf32>, vector<1x10xf32> -> vector<1x10xf32>
    %386 = arith.addf %383, %385 : vector<1x10xf32>
    %cst_183 = arith.constant dense<0xFF800000> : vector<1xf32>
    %387 = vector.multi_reduction <maximumf>, %382, %cst_183 [1] : vector<1x10xf32> to vector<1xf32>
    %388 = vector.shape_cast %387 : vector<1xf32> to vector<1x1xf32>
    %389 = vector.broadcast %388 : vector<1x1xf32> to vector<1x10xf32>
    %390 = arith.subf %382, %389 : vector<1x10xf32>
    %391 = math.exp %390 : vector<1x10xf32>
    %cst_184 = arith.constant dense<0.000000e+00> : vector<1xf32>
    %392 = vector.multi_reduction <add>, %391, %cst_184 [1] : vector<1x10xf32> to vector<1xf32>
    %393 = vector.shape_cast %392 : vector<1xf32> to vector<1x1xf32>
    %394 = vector.broadcast %393 : vector<1x1xf32> to vector<1x10xf32>
    %395 = arith.divf %391, %394 : vector<1x10xf32>
    %396 = arith.mulf %395, %395 : vector<1x10xf32>
    %397 = arith.mulf %396, %386 : vector<1x10xf32>
    %cst_185 = arith.constant dense<0.000000e+00> : vector<1xf32>
    %398 = vector.multi_reduction <add>, %397, %cst_185 [1] : vector<1x10xf32> to vector<1xf32>
    %399 = vector.shape_cast %398 : vector<1xf32> to vector<1x1xf32>
    %c0_186 = arith.constant 0 : index
    %c0_187 = arith.constant 0 : index
    %c0_188 = arith.constant 0 : index
    %400 = vector.load %arg36[%c0_186, %c0_187, %c0_188] : memref<1x1x10xf32, #tpu.memory_space<vmem>>, vector<1x1x10xf32>
    %401 = vector.shape_cast %400 : vector<1x1x10xf32> to vector<1x10xf32>
    %402 = vector.shape_cast %395 : vector<1x10xf32> to vector<1x1x10xf32>
    tpu.vector_store %arg36[%c0_186, %c0_187, %c0_188], %402 {strides = array<i32>} : memref<1x1x10xf32, #tpu.memory_space<vmem>>, vector<1x1x10xf32>,
    %403 = arith.mulf %395, %395 : vector<1x10xf32>
    %cst_189 = arith.constant 2.000000e+00 : f32
    %404 = vector.broadcast %cst_189 : f32 to vector<1x10xf32>
    %405 = arith.mulf %404, %395 : vector<1x10xf32>
    %cst_190 = arith.constant 1.000000e+00 : f32
    %406 = vector.broadcast %cst_190 : f32 to vector<1x10xf32>
    %407 = arith.subf %406, %405 : vector<1x10xf32>
    %408 = arith.mulf %407, %386 : vector<1x10xf32>
    %409 = vector.broadcast %399 : vector<1x1xf32> to vector<1x10xf32>
    %410 = arith.addf %409, %408 : vector<1x10xf32>
    %411 = arith.mulf %403, %410 : vector<1x10xf32>
    %c0_191 = arith.constant 0 : index
    %c0_192 = arith.constant 0 : index
    %c0_193 = arith.constant 0 : index
    %412 = vector.load %arg37[%c0_191, %c0_192, %c0_193] : memref<1x1x10xf32, #tpu.memory_space<vmem>>, vector<1x1x10xf32>
    %413 = vector.shape_cast %412 : vector<1x1x10xf32> to vector<1x10xf32>
    %414 = vector.shape_cast %411 : vector<1x10xf32> to vector<1x1x10xf32>
    tpu.vector_store %arg37[%c0_191, %c0_192, %c0_193], %414 {strides = array<i32>} : memref<1x1x10xf32, #tpu.memory_space<vmem>>, vector<1x1x10xf32>,
    return
  }
  func.func @transform_0(%arg0: i32) -> (i32, i32, i32) {
    %c0_i32 = arith.constant 0 : i32
    %c0_i32_0 = arith.constant 0 : i32
    %c0_i32_1 = arith.constant 0 : i32
    return %arg0, %c0_i32, %c0_i32_0 : i32, i32, i32
  }
  func.func @transform_1(%arg0: i32) -> (i32, i32) {
    %c0_i32 = arith.constant 0 : i32
    %c0_i32_0 = arith.constant 0 : i32
    %c0_i32_1 = arith.constant 0 : i32
    return %c0_i32, %c0_i32_0 : i32, i32
  }
  func.func @transform_2(%arg0: i32) -> (i32, i32) {
    %c0_i32 = arith.constant 0 : i32
    %c0_i32_0 = arith.constant 0 : i32
    %c0_i32_1 = arith.constant 0 : i32
    return %c0_i32, %c0_i32_0 : i32, i32
  }
  func.func @transform_3(%arg0: i32) -> (i32, i32) {
    %c0_i32 = arith.constant 0 : i32
    %c0_i32_0 = arith.constant 0 : i32
    %c0_i32_1 = arith.constant 0 : i32
    return %c0_i32, %c0_i32_0 : i32, i32
  }
  func.func @transform_4(%arg0: i32) -> (i32, i32) {
    %c0_i32 = arith.constant 0 : i32
    %c0_i32_0 = arith.constant 0 : i32
    %c0_i32_1 = arith.constant 0 : i32
    return %c0_i32, %c0_i32_0 : i32, i32
  }
  func.func @transform_5(%arg0: i32) -> (i32, i32) {
    %c0_i32 = arith.constant 0 : i32
    %c0_i32_0 = arith.constant 0 : i32
    %c0_i32_1 = arith.constant 0 : i32
    return %c0_i32, %c0_i32_0 : i32, i32
  }
  func.func @transform_6(%arg0: i32) -> (i32, i32) {
    %c0_i32 = arith.constant 0 : i32
    %c0_i32_0 = arith.constant 0 : i32
    %c0_i32_1 = arith.constant 0 : i32
    return %c0_i32, %c0_i32_0 : i32, i32
  }
  func.func @transform_7(%arg0: i32) -> (i32, i32) {
    %c0_i32 = arith.constant 0 : i32
    %c0_i32_0 = arith.constant 0 : i32
    %c0_i32_1 = arith.constant 0 : i32
    return %c0_i32, %c0_i32_0 : i32, i32
  }
  func.func @transform_8(%arg0: i32) -> (i32, i32) {
    %c0_i32 = arith.constant 0 : i32
    %c0_i32_0 = arith.constant 0 : i32
    %c0_i32_1 = arith.constant 0 : i32
    return %c0_i32, %c0_i32_0 : i32, i32
  }
  func.func @transform_9(%arg0: i32) -> (i32, i32) {
    %c0_i32 = arith.constant 0 : i32
    %c0_i32_0 = arith.constant 0 : i32
    %c0_i32_1 = arith.constant 0 : i32
    return %c0_i32, %c0_i32_0 : i32, i32
  }
  func.func @transform_10(%arg0: i32) -> (i32, i32) {
    %c0_i32 = arith.constant 0 : i32
    %c0_i32_0 = arith.constant 0 : i32
    %c0_i32_1 = arith.constant 0 : i32
    return %c0_i32, %c0_i32_0 : i32, i32
  }
  func.func @transform_11(%arg0: i32) -> (i32, i32) {
    %c0_i32 = arith.constant 0 : i32
    %c0_i32_0 = arith.constant 0 : i32
    %c0_i32_1 = arith.constant 0 : i32
    return %c0_i32, %c0_i32_0 : i32, i32
  }
  func.func @transform_12(%arg0: i32) -> (i32, i32) {
    %c0_i32 = arith.constant 0 : i32
    %c0_i32_0 = arith.constant 0 : i32
    %c0_i32_1 = arith.constant 0 : i32
    return %c0_i32, %c0_i32_0 : i32, i32
  }
  func.func @transform_13(%arg0: i32) -> (i32, i32) {
    %c0_i32 = arith.constant 0 : i32
    %c0_i32_0 = arith.constant 0 : i32
    %c0_i32_1 = arith.constant 0 : i32
    return %c0_i32, %c0_i32_0 : i32, i32
  }
  func.func @transform_14(%arg0: i32) -> (i32, i32) {
    %c0_i32 = arith.constant 0 : i32
    %c0_i32_0 = arith.constant 0 : i32
    %c0_i32_1 = arith.constant 0 : i32
    return %c0_i32, %c0_i32_0 : i32, i32
  }
  func.func @transform_15(%arg0: i32) -> (i32, i32) {
    %c0_i32 = arith.constant 0 : i32
    %c0_i32_0 = arith.constant 0 : i32
    %c0_i32_1 = arith.constant 0 : i32
    return %c0_i32, %c0_i32_0 : i32, i32
  }
  func.func @transform_16(%arg0: i32) -> (i32, i32) {
    %c0_i32 = arith.constant 0 : i32
    %c0_i32_0 = arith.constant 0 : i32
    %c0_i32_1 = arith.constant 0 : i32
    return %c0_i32, %c0_i32_0 : i32, i32
  }
  func.func @transform_17(%arg0: i32) -> (i32, i32) {
    %c0_i32 = arith.constant 0 : i32
    %c0_i32_0 = arith.constant 0 : i32
    %c0_i32_1 = arith.constant 0 : i32
    return %c0_i32, %c0_i32_0 : i32, i32
  }
  func.func @transform_18(%arg0: i32) -> (i32, i32) {
    %c0_i32 = arith.constant 0 : i32
    %c0_i32_0 = arith.constant 0 : i32
    %c0_i32_1 = arith.constant 0 : i32
    return %c0_i32, %c0_i32_0 : i32, i32
  }
  func.func @transform_19(%arg0: i32) -> (i32, i32) {
    %c0_i32 = arith.constant 0 : i32
    %c0_i32_0 = arith.constant 0 : i32
    %c0_i32_1 = arith.constant 0 : i32
    return %c0_i32, %c0_i32_0 : i32, i32
  }
  func.func @transform_20(%arg0: i32) -> (i32, i32) {
    %c0_i32 = arith.constant 0 : i32
    %c0_i32_0 = arith.constant 0 : i32
    %c0_i32_1 = arith.constant 0 : i32
    return %c0_i32, %c0_i32_0 : i32, i32
  }
  func.func @transform_21(%arg0: i32) -> (i32, i32) {
    %c0_i32 = arith.constant 0 : i32
    %c0_i32_0 = arith.constant 0 : i32
    %c0_i32_1 = arith.constant 0 : i32
    return %c0_i32, %c0_i32_0 : i32, i32
  }
  func.func @transform_22(%arg0: i32) -> (i32, i32) {
    %c0_i32 = arith.constant 0 : i32
    %c0_i32_0 = arith.constant 0 : i32
    %c0_i32_1 = arith.constant 0 : i32
    return %c0_i32, %c0_i32_0 : i32, i32
  }
  func.func @transform_23(%arg0: i32) -> (i32, i32) {
    %c0_i32 = arith.constant 0 : i32
    %c0_i32_0 = arith.constant 0 : i32
    %c0_i32_1 = arith.constant 0 : i32
    return %c0_i32, %c0_i32_0 : i32, i32
  }
  func.func @transform_24(%arg0: i32) -> (i32, i32) {
    %c0_i32 = arith.constant 0 : i32
    %c0_i32_0 = arith.constant 0 : i32
    %c0_i32_1 = arith.constant 0 : i32
    return %c0_i32, %c0_i32_0 : i32, i32
  }
  func.func @transform_25(%arg0: i32) -> (i32, i32) {
    %c0_i32 = arith.constant 0 : i32
    %c0_i32_0 = arith.constant 0 : i32
    %c0_i32_1 = arith.constant 0 : i32
    return %c0_i32, %c0_i32_0 : i32, i32
  }
  func.func @transform_26(%arg0: i32) -> (i32, i32) {
    %c0_i32 = arith.constant 0 : i32
    %c0_i32_0 = arith.constant 0 : i32
    %c0_i32_1 = arith.constant 0 : i32
    return %c0_i32, %c0_i32_0 : i32, i32
  }
  func.func @transform_27(%arg0: i32) -> (i32, i32) {
    %c0_i32 = arith.constant 0 : i32
    %c0_i32_0 = arith.constant 0 : i32
    %c0_i32_1 = arith.constant 0 : i32
    return %c0_i32, %c0_i32_0 : i32, i32
  }
  func.func @transform_28(%arg0: i32) -> (i32, i32) {
    %c0_i32 = arith.constant 0 : i32
    %c0_i32_0 = arith.constant 0 : i32
    %c0_i32_1 = arith.constant 0 : i32
    return %c0_i32, %c0_i32_0 : i32, i32
  }
  func.func @transform_29(%arg0: i32) -> (i32, i32) {
    %c0_i32 = arith.constant 0 : i32
    %c0_i32_0 = arith.constant 0 : i32
    %c0_i32_1 = arith.constant 0 : i32
    return %c0_i32, %c0_i32_0 : i32, i32
  }
  func.func @transform_30(%arg0: i32) -> (i32, i32) {
    %c0_i32 = arith.constant 0 : i32
    %c0_i32_0 = arith.constant 0 : i32
    %c0_i32_1 = arith.constant 0 : i32
    return %c0_i32, %c0_i32_0 : i32, i32
  }
  func.func @transform_31(%arg0: i32) -> (i32, i32) {
    %c0_i32 = arith.constant 0 : i32
    %c0_i32_0 = arith.constant 0 : i32
    %c0_i32_1 = arith.constant 0 : i32
    return %c0_i32, %c0_i32_0 : i32, i32
  }
  func.func @transform_32(%arg0: i32) -> (i32, i32) {
    %c0_i32 = arith.constant 0 : i32
    %c0_i32_0 = arith.constant 0 : i32
    %c0_i32_1 = arith.constant 0 : i32
    return %c0_i32, %c0_i32_0 : i32, i32
  }
  func.func @transform_33(%arg0: i32) -> (i32, i32) {
    %c0_i32 = arith.constant 0 : i32
    %c0_i32_0 = arith.constant 0 : i32
    %c0_i32_1 = arith.constant 0 : i32
    return %c0_i32, %c0_i32_0 : i32, i32
  }
  func.func @transform_34(%arg0: i32) -> (i32, i32) {
    %c0_i32 = arith.constant 0 : i32
    %c0_i32_0 = arith.constant 0 : i32
    %c0_i32_1 = arith.constant 0 : i32
    return %c0_i32, %c0_i32_0 : i32, i32
  }
  func.func @transform_35(%arg0: i32) -> (i32, i32, i32) {
    %c0_i32 = arith.constant 0 : i32
    %c0_i32_0 = arith.constant 0 : i32
    %c0_i32_1 = arith.constant 0 : i32
    return %arg0, %c0_i32, %c0_i32_0 : i32, i32, i32
  }
  func.func @transform_36(%arg0: i32) -> (i32, i32, i32) {
    %c0_i32 = arith.constant 0 : i32
    %c0_i32_0 = arith.constant 0 : i32
    %c0_i32_1 = arith.constant 0 : i32
    return %arg0, %c0_i32, %c0_i32_0 : i32, i32, i32
  }
}

</mosaic_0001>

<llo_original>
// kernel: vit_vdp_forward.1
$region0: #{vit_vdp_forward.1}
  #allocation0 [shape = 'u32[]', space=smem, size = 0x4, offset = 0x4, fixed_abs, tag = 'smem constant byte address 0x4 - core index']
  #allocation1 [shape = 'u32[144,128]{1,0:T(1,128)}', space=vmem, size = 0x12000, scoped, tag = 'internal scratch']
  #allocation2 [shape = 'f32[16,32]{1,0:T(8,128)}', space=vmem, size = 0x2000, scoped, tag = 'scratch operand']
  #allocation3 [shape = 'f32[16,32]{1,0:T(8,128)}', space=vmem, size = 0x2000, scoped, tag = 'scratch operand']
  %s0 = inlined_call_operand.smem [shape: u32[37], index: -1, kind: input, shape index: {}]
  %s1 = sld [smem:[%s0]]
  %s2 = scalar_lea.smem %s0, 1
  %s3 = sld [smem:[%s2]]
  %s4 = scalar_lea.smem %s0, 2
  %s5 = sld [smem:[%s4]]
  %s6 = scalar_lea.smem %s0, 3
  %s7 = sld [smem:[%s6]]
  %s8 = scalar_lea.smem %s0, 4
  %s9 = sld [smem:[%s8]]
  %s10 = scalar_lea.smem %s0, 5
  %s11 = sld [smem:[%s10]]
  %s12 = scalar_lea.smem %s0, 6
  %s13 = sld [smem:[%s12]]
  %s14 = scalar_lea.smem %s0, 7
  %s15 = sld [smem:[%s14]]
  %s16 = scalar_lea.smem %s0, 8
  %s17 = sld [smem:[%s16]]
  %s18 = scalar_lea.smem %s0, 9
  %s19 = sld [smem:[%s18]]
  %s20 = scalar_lea.smem %s0, 10
  %s21 = sld [smem:[%s20]]
  %s22 = scalar_lea.smem %s0, 11
  %s23 = sld [smem:[%s22]]
  %s24 = scalar_lea.smem %s0, 12
  %s25 = sld [smem:[%s24]]
  %s26 = scalar_lea.smem %s0, 13
  %s27 = sld [smem:[%s26]]
  %s28 = scalar_lea.smem %s0, 14
  %s29 = sld [smem:[%s28]]
  %s30 = scalar_lea.smem %s0, 15
  %s31 = sld [smem:[%s30]]
  %s32 = scalar_lea.smem %s0, 16
  %s33 = sld [smem:[%s32]]
  %s34 = scalar_lea.smem %s0, 17
  %s35 = sld [smem:[%s34]]
  %s36 = scalar_lea.smem %s0, 18
  %s37 = sld [smem:[%s36]]
  %s38 = scalar_lea.smem %s0, 19
  %s39 = sld [smem:[%s38]]
  %s40 = scalar_lea.smem %s0, 20
  %s41 = sld [smem:[%s40]]
  %s42 = scalar_lea.smem %s0, 21
  %s43 = sld [smem:[%s42]]
  %s44 = scalar_lea.smem %s0, 22
  %s45 = sld [smem:[%s44]]
  %s46 = scalar_lea.smem %s0, 23
  %s47 = sld [smem:[%s46]]
  %s48 = scalar_lea.smem %s0, 24
  %s49 = sld [smem:[%s48]]
  %s50 = scalar_lea.smem %s0, 25
  %s51 = sld [smem:[%s50]]
  %s52 = scalar_lea.smem %s0, 26
  %s53 = sld [smem:[%s52]]
  %s54 = scalar_lea.smem %s0, 27
  %s55 = sld [smem:[%s54]]
  %s56 = scalar_lea.smem %s0, 28
  %s57 = sld [smem:[%s56]]
  %s58 = scalar_lea.smem %s0, 29
  %s59 = sld [smem:[%s58]]
  %s60 = scalar_lea.smem %s0, 30
  %s61 = sld [smem:[%s60]]
  %s62 = scalar_lea.smem %s0, 31
  %s63 = sld [smem:[%s62]]
  %s64 = scalar_lea.smem %s0, 32
  %s65 = sld [smem:[%s64]]
  %s66 = scalar_lea.smem %s0, 33
  %s67 = sld [smem:[%s66]]
  %s68 = scalar_lea.smem %s0, 34
  %s69 = sld [smem:[%s68]]
  %s70 = scalar_lea.smem %s0, 35
  %s71 = sld [smem:[%s70]]
  %s72 = scalar_lea.smem %s0, 36
  %s73 = sld [smem:[%s72]]
  %74 = xla_tuple %s71, %s73
  %s75 = sld [smem:[#allocation0]]
  $region181: #{vit_vdp_forward.1} parent=0
    _
  %s77 = ssub.s32 1, %s75
  %s78 = scalar_select 0, %s77, %s75
  $region1: #{vit_vdp_forward.1} parent=0
    #allocation4 [shape = 'u8[1024]{0}', space=vmem, size = 0x400, scoped, tag = 'output window, operand 0']
    #allocation5 [shape = 's32[2]{0}', space=sflag, size = 0x8, scoped, tag = 'scoped memory for vit_vdp_forward.1']
    #allocation6 [shape = 'u8[1024]{0}', space=vmem, size = 0x400, scoped, tag = 'output window, operand 1']
    #allocation7 [shape = 's32[2]{0}', space=sflag, size = 0x8, scoped, tag = 'scoped memory for vit_vdp_forward.1']
    %79 = vsyncpa [#allocation5], 0
    %s80 = scalar_lea.sflag [#allocation5], 1
    %81 = vsyncpa %s80, 0
    %82 = vsyncpa [#allocation7], 0
    %s83 = scalar_lea.sflag [#allocation7], 1
    %84 = vsyncpa %s83, 0
    loop: start=0, step=1, limit=4
    $region2: #{vit_vdp_forward.1} parent=1 // loop_pre_header
      _
    $region3: #{vit_vdp_forward.1} parent=1 // loop_header
      %s86 = sphi 0, %s90
      %p87 = scmp.ge.s32.totalorder %s86, 4
      %s96 = sphi 0, %s98
      %s99 = sphi 0, %s96
      %s100 = sphi 0, %s99
      %s116 = sphi 0, %s100
      %s120 = sphi 0, %s120
      %s122 = sphi 0, %s120
      %s123 = sphi 0, %s122
      %s137 = sphi 0, %s123
      %s141 = sphi 0, %s141
      %s143 = sphi 0, %s141
      %s144 = sphi 0, %s143
      %s158 = sphi 0, %s144
      %s162 = sphi 0, %s162
      %s164 = sphi 0, %s162
      %s165 = sphi 0, %s164
      %s179 = sphi 0, %s165
      %s183 = sphi 0, %s183
      %s185 = sphi 0, %s183
      %s186 = sphi 0, %s185
      %s200 = sphi 0, %s186
      %s204 = sphi 0, %s204
      %s206 = sphi 0, %s204
      %s207 = sphi 0, %s206
      %s221 = sphi 0, %s207
      %s225 = sphi 0, %s225
      %s227 = sphi 0, %s225
      %s228 = sphi 0, %s227
      %s242 = sphi 0, %s228
      %s246 = sphi 0, %s246
      %s248 = sphi 0, %s246
      %s249 = sphi 0, %s248
      %s263 = sphi 0, %s249
      %s267 = sphi 0, %s267
      %s269 = sphi 0, %s267
      %s270 = sphi 0, %s269
      %s284 = sphi 0, %s270
      %s288 = sphi 0, %s288
      %s290 = sphi 0, %s288
      %s291 = sphi 0, %s290
      %s305 = sphi 0, %s291
      %s309 = sphi 0, %s309
      %s311 = sphi 0, %s309
      %s312 = sphi 0, %s311
      %s326 = sphi 0, %s312
      %s330 = sphi 0, %s330
      %s332 = sphi 0, %s330
      %s333 = sphi 0, %s332
      %s347 = sphi 0, %s333
      %s351 = sphi 0, %s351
      %s353 = sphi 0, %s351
      %s354 = sphi 0, %s353
      %s368 = sphi 0, %s354
      %s372 = sphi 0, %s372
      %s374 = sphi 0, %s372
      %s375 = sphi 0, %s374
      %s389 = sphi 0, %s375
      %s393 = sphi 0, %s393
      %s395 = sphi 0, %s393
      %s396 = sphi 0, %s395
      %s410 = sphi 0, %s396
      %s414 = sphi 0, %s414
      %s416 = sphi 0, %s414
      %s417 = sphi 0, %s416
      %s431 = sphi 0, %s417
      %s435 = sphi 0, %s435
      %s437 = sphi 0, %s435
      %s438 = sphi 0, %s437
      %s452 = sphi 0, %s438
      %s456 = sphi 0, %s456
      %s458 = sphi 0, %s456
      %s459 = sphi 0, %s458
      %s473 = sphi 0, %s459
      %s477 = sphi 0, %s477
      %s479 = sphi 0, %s477
      %s480 = sphi 0, %s479
      %s494 = sphi 0, %s480
      %s498 = sphi 0, %s498
      %s500 = sphi 0, %s498
      %s501 = sphi 0, %s500
      %s515 = sphi 0, %s501
      %s519 = sphi 0, %s519
      %s521 = sphi 0, %s519
      %s522 = sphi 0, %s521
      %s536 = sphi 0, %s522
      %s540 = sphi 0, %s540
      %s542 = sphi 0, %s540
      %s543 = sphi 0, %s542
      %s557 = sphi 0, %s543
      %s561 = sphi 0, %s561
      %s563 = sphi 0, %s561
      %s564 = sphi 0, %s563
      %s578 = sphi 0, %s564
      %s582 = sphi 0, %s582
      %s584 = sphi 0, %s582
      %s585 = sphi 0, %s584
      %s599 = sphi 0, %s585
      %s603 = sphi 0, %s603
      %s605 = sphi 0, %s603
      %s606 = sphi 0, %s605
      %s620 = sphi 0, %s606
      %s624 = sphi 0, %s624
      %s626 = sphi 0, %s624
      %s627 = sphi 0, %s626
      %s641 = sphi 0, %s627
      %s645 = sphi 0, %s645
      %s647 = sphi 0, %s645
      %s648 = sphi 0, %s647
      %s662 = sphi 0, %s648
      %s666 = sphi 0, %s666
      %s668 = sphi 0, %s666
      %s669 = sphi 0, %s668
      %s683 = sphi 0, %s669
      %s687 = sphi 0, %s687
      %s689 = sphi 0, %s687
      %s690 = sphi 0, %s689
      %s704 = sphi 0, %s690
      %s708 = sphi 0, %s708
      %s710 = sphi 0, %s708
      %s711 = sphi 0, %s710
      %s725 = sphi 0, %s711
      %s729 = sphi 0, %s729
      %s731 = sphi 0, %s729
      %s732 = sphi 0, %s731
      %s746 = sphi 0, %s732
      %s750 = sphi 0, %s750
      %s752 = sphi 0, %s750
      %s753 = sphi 0, %s752
      %s767 = sphi 0, %s753
      %s771 = sphi 0, %s771
      %s773 = sphi 0, %s771
      %s774 = sphi 0, %s773
      %s788 = sphi 0, %s774
      %s792 = sphi 0, %s792
      %s794 = sphi 0, %s792
      %s795 = sphi 0, %s794
      %s809 = sphi 0, %s795
      %s813 = sphi 0, %s813
      %s815 = sphi 0, %s813
      %s816 = sphi 0, %s815
      %s830 = sphi 0, %s816
      %s836 = sphi 0, %s838
      %s839 = sphi 0, %s836
      %s840 = sphi 0, %s839
      %s856 = sphi 0, %s840
      %s862 = sphi 0, %s864
      %s865 = sphi 0, %s862
      %s866 = sphi 0, %s865
      %s882 = sphi 0, %s866
    $region4: #{vit_vdp_forward.1} parent=1 // loop_header_branch
      %89 = sbr.rel (%p87) target = $region8
    $region5: #{vit_vdp_forward.1} parent=1 // loop_body
      %s91 = ssub.s32 %s86, 1
      %s92 = ssub.s32 %s86, 2
      %s93 = sadd.s32 %s86, 1
      %s94 = ssub.s32 %s86, %s93
      %p95 = scmp.eq.s32.totalorder %s94, 0
      %s97 = sadd.s32 %s96, 1
      %s98 = scalar_select %p95, %s96, %s97
      %p101 = pneg %p95
      %p102 = scmp.eq.s32.totalorder %s86, 1
      %p103 = por %p101, %p102
      %p104 = scmp.ne.s32.totalorder %s96, %s99
      %p105 = scmp.eq.s32.totalorder %s86, 0
      %p106 = por %p104, %p105
      %p107 = scmp.ne.s32.totalorder %s96, %s99
      %p108 = scmp.eq.s32.totalorder %s91, 1
      %p109 = por %p107, %p108
      %p110 = scmp.ne.s32.totalorder %s99, %s100
      %p111 = scmp.eq.s32.totalorder %s91, 0
      %p112 = por %p110, %p111
      %p113 = scmp.ne.s32.totalorder %s99, %s100
      %p114 = scmp.eq.s32.totalorder %s92, 1
      %p115 = por %p113, %p114
      %p117 = scmp.ne.s32.totalorder %s100, %s116
      %p118 = scmp.eq.s32.totalorder %s92, 0
      %p119 = por %p117, %p118
      %s121 = sadd.s32 %s120, 1
      %p124 = scmp.eq.s32.totalorder %s86, 1
      %p125 = scmp.ne.s32.totalorder %s120, %s122
      %p126 = scmp.eq.s32.totalorder %s86, 0
      %p127 = por %p125, %p126
      %p128 = scmp.ne.s32.totalorder %s120, %s122
      %p129 = scmp.eq.s32.totalorder %s91, 1
      %p130 = por %p128, %p129
      %p131 = scmp.ne.s32.totalorder %s122, %s123
      %p132 = scmp.eq.s32.totalorder %s91, 0
      %p133 = por %p131, %p132
      %p134 = scmp.ne.s32.totalorder %s122, %s123
      %p135 = scmp.eq.s32.totalorder %s92, 1
      %p136 = por %p134, %p135
      %p138 = scmp.ne.s32.totalorder %s123, %s137
      %p139 = scmp.eq.s32.totalorder %s92, 0
      %p140 = por %p138, %p139
      %s142 = sadd.s32 %s141, 1
      %p145 = scmp.eq.s32.totalorder %s86, 1
      %p146 = scmp.ne.s32.totalorder %s141, %s143
      %p147 = scmp.eq.s32.totalorder %s86, 0
      %p148 = por %p146, %p147
      %p149 = scmp.ne.s32.totalorder %s141, %s143
      %p150 = scmp.eq.s32.totalorder %s91, 1
      %p151 = por %p149, %p150
      %p152 = scmp.ne.s32.totalorder %s143, %s144
      %p153 = scmp.eq.s32.totalorder %s91, 0
      %p154 = por %p152, %p153
      %p155 = scmp.ne.s32.totalorder %s143, %s144
      %p156 = scmp.eq.s32.totalorder %s92, 1
      %p157 = por %p155, %p156
      %p159 = scmp.ne.s32.totalorder %s144, %s158
      %p160 = scmp.eq.s32.totalorder %s92, 0
      %p161 = por %p159, %p160
      %s163 = sadd.s32 %s162, 1
      %p166 = scmp.eq.s32.totalorder %s86, 1
      %p167 = scmp.ne.s32.totalorder %s162, %s164
      %p168 = scmp.eq.s32.totalorder %s86, 0
      %p169 = por %p167, %p168
      %p170 = scmp.ne.s32.totalorder %s162, %s164
      %p171 = scmp.eq.s32.totalorder %s91, 1
      %p172 = por %p170, %p171
      %p173 = scmp.ne.s32.totalorder %s164, %s165
      %p174 = scmp.eq.s32.totalorder %s91, 0
      %p175 = por %p173, %p174
      %p176 = scmp.ne.s32.totalorder %s164, %s165
      %p177 = scmp.eq.s32.totalorder %s92, 1
      %p178 = por %p176, %p177
      %p180 = scmp.ne.s32.totalorder %s165, %s179
      %p181 = scmp.eq.s32.totalorder %s92, 0
      %p182 = por %p180, %p181
      %s184 = sadd.s32 %s183, 1
      %p187 = scmp.eq.s32.totalorder %s86, 1
      %p188 = scmp.ne.s32.totalorder %s183, %s185
      %p189 = scmp.eq.s32.totalorder %s86, 0
      %p190 = por %p188, %p189
      %p191 = scmp.ne.s32.totalorder %s183, %s185
      %p192 = scmp.eq.s32.totalorder %s91, 1
      %p193 = por %p191, %p192
      %p194 = scmp.ne.s32.totalorder %s185, %s186
      %p195 = scmp.eq.s32.totalorder %s91, 0
      %p196 = por %p194, %p195
      %p197 = scmp.ne.s32.totalorder %s185, %s186
      %p198 = scmp.eq.s32.totalorder %s92, 1
      %p199 = por %p197, %p198
      %p201 = scmp.ne.s32.totalorder %s186, %s200
      %p202 = scmp.eq.s32.totalorder %s92, 0
      %p203 = por %p201, %p202
      %s205 = sadd.s32 %s204, 1
      %p208 = scmp.eq.s32.totalorder %s86, 1
      %p209 = scmp.ne.s32.totalorder %s204, %s206
      %p210 = scmp.eq.s32.totalorder %s86, 0
      %p211 = por %p209, %p210
      %p212 = scmp.ne.s32.totalorder %s204, %s206
      %p213 = scmp.eq.s32.totalorder %s91, 1
      %p214 = por %p212, %p213
      %p215 = scmp.ne.s32.totalorder %s206, %s207
      %p216 = scmp.eq.s32.totalorder %s91, 0
      %p217 = por %p215, %p216
      %p218 = scmp.ne.s32.totalorder %s206, %s207
      %p219 = scmp.eq.s32.totalorder %s92, 1
      %p220 = por %p218, %p219
      %p222 = scmp.ne.s32.totalorder %s207, %s221
      %p223 = scmp.eq.s32.totalorder %s92, 0
      %p224 = por %p222, %p223
      %s226 = sadd.s32 %s225, 1
      %p229 = scmp.eq.s32.totalorder %s86, 1
      %p230 = scmp.ne.s32.totalorder %s225, %s227
      %p231 = scmp.eq.s32.totalorder %s86, 0
      %p232 = por %p230, %p231
      %p233 = scmp.ne.s32.totalorder %s225, %s227
      %p234 = scmp.eq.s32.totalorder %s91, 1
      %p235 = por %p233, %p234
      %p236 = scmp.ne.s32.totalorder %s227, %s228
      %p237 = scmp.eq.s32.totalorder %s91, 0
      %p238 = por %p236, %p237
      %p239 = scmp.ne.s32.totalorder %s227, %s228
      %p240 = scmp.eq.s32.totalorder %s92, 1
      %p241 = por %p239, %p240
      %p243 = scmp.ne.s32.totalorder %s228, %s242
      %p244 = scmp.eq.s32.totalorder %s92, 0
      %p245 = por %p243, %p244
      %s247 = sadd.s32 %s246, 1
      %p250 = scmp.eq.s32.totalorder %s86, 1
      %p251 = scmp.ne.s32.totalorder %s246, %s248
      %p252 = scmp.eq.s32.totalorder %s86, 0
      %p253 = por %p251, %p252
      %p254 = scmp.ne.s32.totalorder %s246, %s248
      %p255 = scmp.eq.s32.totalorder %s91, 1
      %p256 = por %p254, %p255
      %p257 = scmp.ne.s32.totalorder %s248, %s249
      %p258 = scmp.eq.s32.totalorder %s91, 0
      %p259 = por %p257, %p258
      %p260 = scmp.ne.s32.totalorder %s248, %s249
      %p261 = scmp.eq.s32.totalorder %s92, 1
      %p262 = por %p260, %p261
      %p264 = scmp.ne.s32.totalorder %s249, %s263
      %p265 = scmp.eq.s32.totalorder %s92, 0
      %p266 = por %p264, %p265
      %s268 = sadd.s32 %s267, 1
      %p271 = scmp.eq.s32.totalorder %s86, 1
      %p272 = scmp.ne.s32.totalorder %s267, %s269
      %p273 = scmp.eq.s32.totalorder %s86, 0
      %p274 = por %p272, %p273
      %p275 = scmp.ne.s32.totalorder %s267, %s269
      %p276 = scmp.eq.s32.totalorder %s91, 1
      %p277 = por %p275, %p276
      %p278 = scmp.ne.s32.totalorder %s269, %s270
      %p279 = scmp.eq.s32.totalorder %s91, 0
      %p280 = por %p278, %p279
      %p281 = scmp.ne.s32.totalorder %s269, %s270
      %p282 = scmp.eq.s32.totalorder %s92, 1
      %p283 = por %p281, %p282
      %p285 = scmp.ne.s32.totalorder %s270, %s284
      %p286 = scmp.eq.s32.totalorder %s92, 0
      %p287 = por %p285, %p286
      %s289 = sadd.s32 %s288, 1
      %p292 = scmp.eq.s32.totalorder %s86, 1
      %p293 = scmp.ne.s32.totalorder %s288, %s290
      %p294 = scmp.eq.s32.totalorder %s86, 0
      %p295 = por %p293, %p294
      %p296 = scmp.ne.s32.totalorder %s288, %s290
      %p297 = scmp.eq.s32.totalorder %s91, 1
      %p298 = por %p296, %p297
      %p299 = scmp.ne.s32.totalorder %s290, %s291
      %p300 = scmp.eq.s32.totalorder %s91, 0
      %p301 = por %p299, %p300
      %p302 = scmp.ne.s32.totalorder %s290, %s291
      %p303 = scmp.eq.s32.totalorder %s92, 1
      %p304 = por %p302, %p303
      %p306 = scmp.ne.s32.totalorder %s291, %s305
      %p307 = scmp.eq.s32.totalorder %s92, 0
      %p308 = por %p306, %p307
      %s310 = sadd.s32 %s309, 1
      %p313 = scmp.eq.s32.totalorder %s86, 1
      %p314 = scmp.ne.s32.totalorder %s309, %s311
      %p315 = scmp.eq.s32.totalorder %s86, 0
      %p316 = por %p314, %p315
      %p317 = scmp.ne.s32.totalorder %s309, %s311
      %p318 = scmp.eq.s32.totalorder %s91, 1
      %p319 = por %p317, %p318
      %p320 = scmp.ne.s32.totalorder %s311, %s312
      %p321 = scmp.eq.s32.totalorder %s91, 0
      %p322 = por %p320, %p321
      %p323 = scmp.ne.s32.totalorder %s311, %s312
      %p324 = scmp.eq.s32.totalorder %s92, 1
      %p325 = por %p323, %p324
      %p327 = scmp.ne.s32.totalorder %s312, %s326
      %p328 = scmp.eq.s32.totalorder %s92, 0
      %p329 = por %p327, %p328
      %s331 = sadd.s32 %s330, 1
      %p334 = scmp.eq.s32.totalorder %s86, 1
      %p335 = scmp.ne.s32.totalorder %s330, %s332
      %p336 = scmp.eq.s32.totalorder %s86, 0
      %p337 = por %p335, %p336
      %p338 = scmp.ne.s32.totalorder %s330, %s332
      %p339 = scmp.eq.s32.totalorder %s91, 1
      %p340 = por %p338, %p339
      %p341 = scmp.ne.s32.totalorder %s332, %s333
      %p342 = scmp.eq.s32.totalorder %s91, 0
      %p343 = por %p341, %p342
      %p344 = scmp.ne.s32.totalorder %s332, %s333
      %p345 = scmp.eq.s32.totalorder %s92, 1
      %p346 = por %p344, %p345
      %p348 = scmp.ne.s32.totalorder %s333, %s347
      %p349 = scmp.eq.s32.totalorder %s92, 0
      %p350 = por %p348, %p349
      %s352 = sadd.s32 %s351, 1
      %p355 = scmp.eq.s32.totalorder %s86, 1
      %p356 = scmp.ne.s32.totalorder %s351, %s353
      %p357 = scmp.eq.s32.totalorder %s86, 0
      %p358 = por %p356, %p357
      %p359 = scmp.ne.s32.totalorder %s351, %s353
      %p360 = scmp.eq.s32.totalorder %s91, 1
      %p361 = por %p359, %p360
      %p362 = scmp.ne.s32.totalorder %s353, %s354
      %p363 = scmp.eq.s32.totalorder %s91, 0
      %p364 = por %p362, %p363
      %p365 = scmp.ne.s32.totalorder %s353, %s354
      %p366 = scmp.eq.s32.totalorder %s92, 1
      %p367 = por %p365, %p366
      %p369 = scmp.ne.s32.totalorder %s354, %s368
      %p370 = scmp.eq.s32.totalorder %s92, 0
      %p371 = por %p369, %p370
      %s373 = sadd.s32 %s372, 1
      %p376 = scmp.eq.s32.totalorder %s86, 1
      %p377 = scmp.ne.s32.totalorder %s372, %s374
      %p378 = scmp.eq.s32.totalorder %s86, 0
      %p379 = por %p377, %p378
      %p380 = scmp.ne.s32.totalorder %s372, %s374
      %p381 = scmp.eq.s32.totalorder %s91, 1
      %p382 = por %p380, %p381
      %p383 = scmp.ne.s32.totalorder %s374, %s375
      %p384 = scmp.eq.s32.totalorder %s91, 0
      %p385 = por %p383, %p384
      %p386 = scmp.ne.s32.totalorder %s374, %s375
      %p387 = scmp.eq.s32.totalorder %s92, 1
      %p388 = por %p386, %p387
      %p390 = scmp.ne.s32.totalorder %s375, %s389
      %p391 = scmp.eq.s32.totalorder %s92, 0
      %p392 = por %p390, %p391
      %s394 = sadd.s32 %s393, 1
      %p397 = scmp.eq.s32.totalorder %s86, 1
      %p398 = scmp.ne.s32.totalorder %s393, %s395
      %p399 = scmp.eq.s32.totalorder %s86, 0
      %p400 = por %p398, %p399
      %p401 = scmp.ne.s32.totalorder %s393, %s395
      %p402 = scmp.eq.s32.totalorder %s91, 1
      %p403 = por %p401, %p402
      %p404 = scmp.ne.s32.totalorder %s395, %s396
      %p405 = scmp.eq.s32.totalorder %s91, 0
      %p406 = por %p404, %p405
      %p407 = scmp.ne.s32.totalorder %s395, %s396
      %p408 = scmp.eq.s32.totalorder %s92, 1
      %p409 = por %p407, %p408
      %p411 = scmp.ne.s32.totalorder %s396, %s410
      %p412 = scmp.eq.s32.totalorder %s92, 0
      %p413 = por %p411, %p412
      %s415 = sadd.s32 %s414, 1
      %p418 = scmp.eq.s32.totalorder %s86, 1
      %p419 = scmp.ne.s32.totalorder %s414, %s416
      %p420 = scmp.eq.s32.totalorder %s86, 0
      %p421 = por %p419, %p420
      %p422 = scmp.ne.s32.totalorder %s414, %s416
      %p423 = scmp.eq.s32.totalorder %s91, 1
      %p424 = por %p422, %p423
      %p425 = scmp.ne.s32.totalorder %s416, %s417
      %p426 = scmp.eq.s32.totalorder %s91, 0
      %p427 = por %p425, %p426
      %p428 = scmp.ne.s32.totalorder %s416, %s417
      %p429 = scmp.eq.s32.totalorder %s92, 1
      %p430 = por %p428, %p429
      %p432 = scmp.ne.s32.totalorder %s417, %s431
      %p433 = scmp.eq.s32.totalorder %s92, 0
      %p434 = por %p432, %p433
      %s436 = sadd.s32 %s435, 1
      %p439 = scmp.eq.s32.totalorder %s86, 1
      %p440 = scmp.ne.s32.totalorder %s435, %s437
      %p441 = scmp.eq.s32.totalorder %s86, 0
      %p442 = por %p440, %p441
      %p443 = scmp.ne.s32.totalorder %s435, %s437
      %p444 = scmp.eq.s32.totalorder %s91, 1
      %p445 = por %p443, %p444
      %p446 = scmp.ne.s32.totalorder %s437, %s438
      %p447 = scmp.eq.s32.totalorder %s91, 0
      %p448 = por %p446, %p447
      %p449 = scmp.ne.s32.totalorder %s437, %s438
      %p450 = scmp.eq.s32.totalorder %s92, 1
      %p451 = por %p449, %p450
      %p453 = scmp.ne.s32.totalorder %s438, %s452
      %p454 = scmp.eq.s32.totalorder %s92, 0
      %p455 = por %p453, %p454
      %s457 = sadd.s32 %s456, 1
      %p460 = scmp.eq.s32.totalorder %s86, 1
      %p461 = scmp.ne.s32.totalorder %s456, %s458
      %p462 = scmp.eq.s32.totalorder %s86, 0
      %p463 = por %p461, %p462
      %p464 = scmp.ne.s32.totalorder %s456, %s458
      %p465 = scmp.eq.s32.totalorder %s91, 1
      %p466 = por %p464, %p465
      %p467 = scmp.ne.s32.totalorder %s458, %s459
      %p468 = scmp.eq.s32.totalorder %s91, 0
      %p469 = por %p467, %p468
      %p470 = scmp.ne.s32.totalorder %s458, %s459
      %p471 = scmp.eq.s32.totalorder %s92, 1
      %p472 = por %p470, %p471
      %p474 = scmp.ne.s32.totalorder %s459, %s473
      %p475 = scmp.eq.s32.totalorder %s92, 0
      %p476 = por %p474, %p475
      %s478 = sadd.s32 %s477, 1
      %p481 = scmp.eq.s32.totalorder %s86, 1
      %p482 = scmp.ne.s32.totalorder %s477, %s479
      %p483 = scmp.eq.s32.totalorder %s86, 0
      %p484 = por %p482, %p483
      %p485 = scmp.ne.s32.totalorder %s477, %s479
      %p486 = scmp.eq.s32.totalorder %s91, 1
      %p487 = por %p485, %p486
      %p488 = scmp.ne.s32.totalorder %s479, %s480
      %p489 = scmp.eq.s32.totalorder %s91, 0
      %p490 = por %p488, %p489
      %p491 = scmp.ne.s32.totalorder %s479, %s480
      %p492 = scmp.eq.s32.totalorder %s92, 1
      %p493 = por %p491, %p492
      %p495 = scmp.ne.s32.totalorder %s480, %s494
      %p496 = scmp.eq.s32.totalorder %s92, 0
      %p497 = por %p495, %p496
      %s499 = sadd.s32 %s498, 1
      %p502 = scmp.eq.s32.totalorder %s86, 1
      %p503 = scmp.ne.s32.totalorder %s498, %s500
      %p504 = scmp.eq.s32.totalorder %s86, 0
      %p505 = por %p503, %p504
      %p506 = scmp.ne.s32.totalorder %s498, %s500
      %p507 = scmp.eq.s32.totalorder %s91, 1
      %p508 = por %p506, %p507
      %p509 = scmp.ne.s32.totalorder %s500, %s501
      %p510 = scmp.eq.s32.totalorder %s91, 0
      %p511 = por %p509, %p510
      %p512 = scmp.ne.s32.totalorder %s500, %s501
      %p513 = scmp.eq.s32.totalorder %s92, 1
      %p514 = por %p512, %p513
      %p516 = scmp.ne.s32.totalorder %s501, %s515
      %p517 = scmp.eq.s32.totalorder %s92, 0
      %p518 = por %p516, %p517
      %s520 = sadd.s32 %s519, 1
      %p523 = scmp.eq.s32.totalorder %s86, 1
      %p524 = scmp.ne.s32.totalorder %s519, %s521
      %p525 = scmp.eq.s32.totalorder %s86, 0
      %p526 = por %p524, %p525
      %p527 = scmp.ne.s32.totalorder %s519, %s521
      %p528 = scmp.eq.s32.totalorder %s91, 1
      %p529 = por %p527, %p528
      %p530 = scmp.ne.s32.totalorder %s521, %s522
      %p531 = scmp.eq.s32.totalorder %s91, 0
      %p532 = por %p530, %p531
      %p533 = scmp.ne.s32.totalorder %s521, %s522
      %p534 = scmp.eq.s32.totalorder %s92, 1
      %p535 = por %p533, %p534
      %p537 = scmp.ne.s32.totalorder %s522, %s536
      %p538 = scmp.eq.s32.totalorder %s92, 0
      %p539 = por %p537, %p538
      %s541 = sadd.s32 %s540, 1
      %p544 = scmp.eq.s32.totalorder %s86, 1
      %p545 = scmp.ne.s32.totalorder %s540, %s542
      %p546 = scmp.eq.s32.totalorder %s86, 0
      %p547 = por %p545, %p546
      %p548 = scmp.ne.s32.totalorder %s540, %s542
      %p549 = scmp.eq.s32.totalorder %s91, 1
      %p550 = por %p548, %p549
      %p551 = scmp.ne.s32.totalorder %s542, %s543
      %p552 = scmp.eq.s32.totalorder %s91, 0
      %p553 = por %p551, %p552
      %p554 = scmp.ne.s32.totalorder %s542, %s543
      %p555 = scmp.eq.s32.totalorder %s92, 1
      %p556 = por %p554, %p555
      %p558 = scmp.ne.s32.totalorder %s543, %s557
      %p559 = scmp.eq.s32.totalorder %s92, 0
      %p560 = por %p558, %p559
      %s562 = sadd.s32 %s561, 1
      %p565 = scmp.eq.s32.totalorder %s86, 1
      %p566 = scmp.ne.s32.totalorder %s561, %s563
      %p567 = scmp.eq.s32.totalorder %s86, 0
      %p568 = por %p566, %p567
      %p569 = scmp.ne.s32.totalorder %s561, %s563
      %p570 = scmp.eq.s32.totalorder %s91, 1
      %p571 = por %p569, %p570
      %p572 = scmp.ne.s32.totalorder %s563, %s564
      %p573 = scmp.eq.s32.totalorder %s91, 0
      %p574 = por %p572, %p573
      %p575 = scmp.ne.s32.totalorder %s563, %s564
      %p576 = scmp.eq.s32.totalorder %s92, 1
      %p577 = por %p575, %p576
      %p579 = scmp.ne.s32.totalorder %s564, %s578
      %p580 = scmp.eq.s32.totalorder %s92, 0
      %p581 = por %p579, %p580
      %s583 = sadd.s32 %s582, 1
      %p586 = scmp.eq.s32.totalorder %s86, 1
      %p587 = scmp.ne.s32.totalorder %s582, %s584
      %p588 = scmp.eq.s32.totalorder %s86, 0
      %p589 = por %p587, %p588
      %p590 = scmp.ne.s32.totalorder %s582, %s584
      %p591 = scmp.eq.s32.totalorder %s91, 1
      %p592 = por %p590, %p591
      %p593 = scmp.ne.s32.totalorder %s584, %s585
      %p594 = scmp.eq.s32.totalorder %s91, 0
      %p595 = por %p593, %p594
      %p596 = scmp.ne.s32.totalorder %s584, %s585
      %p597 = scmp.eq.s32.totalorder %s92, 1
      %p598 = por %p596, %p597
      %p600 = scmp.ne.s32.totalorder %s585, %s599
      %p601 = scmp.eq.s32.totalorder %s92, 0
      %p602 = por %p600, %p601
      %s604 = sadd.s32 %s603, 1
      %p607 = scmp.eq.s32.totalorder %s86, 1
      %p608 = scmp.ne.s32.totalorder %s603, %s605
      %p609 = scmp.eq.s32.totalorder %s86, 0
      %p610 = por %p608, %p609
      %p611 = scmp.ne.s32.totalorder %s603, %s605
      %p612 = scmp.eq.s32.totalorder %s91, 1
      %p613 = por %p611, %p612
      %p614 = scmp.ne.s32.totalorder %s605, %s606
      %p615 = scmp.eq.s32.totalorder %s91, 0
      %p616 = por %p614, %p615
      %p617 = scmp.ne.s32.totalorder %s605, %s606
      %p618 = scmp.eq.s32.totalorder %s92, 1
      %p619 = por %p617, %p618
      %p621 = scmp.ne.s32.totalorder %s606, %s620
      %p622 = scmp.eq.s32.totalorder %s92, 0
      %p623 = por %p621, %p622
      %s625 = sadd.s32 %s624, 1
      %p628 = scmp.eq.s32.totalorder %s86, 1
      %p629 = scmp.ne.s32.totalorder %s624, %s626
      %p630 = scmp.eq.s32.totalorder %s86, 0
      %p631 = por %p629, %p630
      %p632 = scmp.ne.s32.totalorder %s624, %s626
      %p633 = scmp.eq.s32.totalorder %s91, 1
      %p634 = por %p632, %p633
      %p635 = scmp.ne.s32.totalorder %s626, %s627
      %p636 = scmp.eq.s32.totalorder %s91, 0
      %p637 = por %p635, %p636
      %p638 = scmp.ne.s32.totalorder %s626, %s627
      %p639 = scmp.eq.s32.totalorder %s92, 1
      %p640 = por %p638, %p639
      %p642 = scmp.ne.s32.totalorder %s627, %s641
      %p643 = scmp.eq.s32.totalorder %s92, 0
      %p644 = por %p642, %p643
      %s646 = sadd.s32 %s645, 1
      %p649 = scmp.eq.s32.totalorder %s86, 1
      %p650 = scmp.ne.s32.totalorder %s645, %s647
      %p651 = scmp.eq.s32.totalorder %s86, 0
      %p652 = por %p650, %p651
      %p653 = scmp.ne.s32.totalorder %s645, %s647
      %p654 = scmp.eq.s32.totalorder %s91, 1
      %p655 = por %p653, %p654
      %p656 = scmp.ne.s32.totalorder %s647, %s648
      %p657 = scmp.eq.s32.totalorder %s91, 0
      %p658 = por %p656, %p657
      %p659 = scmp.ne.s32.totalorder %s647, %s648
      %p660 = scmp.eq.s32.totalorder %s92, 1
      %p661 = por %p659, %p660
      %p663 = scmp.ne.s32.totalorder %s648, %s662
      %p664 = scmp.eq.s32.totalorder %s92, 0
      %p665 = por %p663, %p664
      %s667 = sadd.s32 %s666, 1
      %p670 = scmp.eq.s32.totalorder %s86, 1
      %p671 = scmp.ne.s32.totalorder %s666, %s668
      %p672 = scmp.eq.s32.totalorder %s86, 0
      %p673 = por %p671, %p672
      %p674 = scmp.ne.s32.totalorder %s666, %s668
      %p675 = scmp.eq.s32.totalorder %s91, 1
      %p676 = por %p674, %p675
      %p677 = scmp.ne.s32.totalorder %s668, %s669
      %p678 = scmp.eq.s32.totalorder %s91, 0
      %p679 = por %p677, %p678
      %p680 = scmp.ne.s32.totalorder %s668, %s669
      %p681 = scmp.eq.s32.totalorder %s92, 1
      %p682 = por %p680, %p681
      %p684 = scmp.ne.s32.totalorder %s669, %s683
      %p685 = scmp.eq.s32.totalorder %s92, 0
      %p686 = por %p684, %p685
      %s688 = sadd.s32 %s687, 1
      %p691 = scmp.eq.s32.totalorder %s86, 1
      %p692 = scmp.ne.s32.totalorder %s687, %s689
      %p693 = scmp.eq.s32.totalorder %s86, 0
      %p694 = por %p692, %p693
      %p695 = scmp.ne.s32.totalorder %s687, %s689
      %p696 = scmp.eq.s32.totalorder %s91, 1
      %p697 = por %p695, %p696
      %p698 = scmp.ne.s32.totalorder %s689, %s690
      %p699 = scmp.eq.s32.totalorder %s91, 0
      %p700 = por %p698, %p699
      %p701 = scmp.ne.s32.totalorder %s689, %s690
      %p702 = scmp.eq.s32.totalorder %s92, 1
      %p703 = por %p701, %p702
      %p705 = scmp.ne.s32.totalorder %s690, %s704
      %p706 = scmp.eq.s32.totalorder %s92, 0
      %p707 = por %p705, %p706
      %s709 = sadd.s32 %s708, 1
      %p712 = scmp.eq.s32.totalorder %s86, 1
      %p713 = scmp.ne.s32.totalorder %s708, %s710
      %p714 = scmp.eq.s32.totalorder %s86, 0
      %p715 = por %p713, %p714
      %p716 = scmp.ne.s32.totalorder %s708, %s710
      %p717 = scmp.eq.s32.totalorder %s91, 1
      %p718 = por %p716, %p717
      %p719 = scmp.ne.s32.totalorder %s710, %s711
      %p720 = scmp.eq.s32.totalorder %s91, 0
      %p721 = por %p719, %p720
      %p722 = scmp.ne.s32.totalorder %s710, %s711
      %p723 = scmp.eq.s32.totalorder %s92, 1
      %p724 = por %p722, %p723
      %p726 = scmp.ne.s32.totalorder %s711, %s725
      %p727 = scmp.eq.s32.totalorder %s92, 0
      %p728 = por %p726, %p727
      %s730 = sadd.s32 %s729, 1
      %p733 = scmp.eq.s32.totalorder %s86, 1
      %p734 = scmp.ne.s32.totalorder %s729, %s731
      %p735 = scmp.eq.s32.totalorder %s86, 0
      %p736 = por %p734, %p735
      %p737 = scmp.ne.s32.totalorder %s729, %s731
      %p738 = scmp.eq.s32.totalorder %s91, 1
      %p739 = por %p737, %p738
      %p740 = scmp.ne.s32.totalorder %s731, %s732
      %p741 = scmp.eq.s32.totalorder %s91, 0
      %p742 = por %p740, %p741
      %p743 = scmp.ne.s32.totalorder %s731, %s732
      %p744 = scmp.eq.s32.totalorder %s92, 1
      %p745 = por %p743, %p744
      %p747 = scmp.ne.s32.totalorder %s732, %s746
      %p748 = scmp.eq.s32.totalorder %s92, 0
      %p749 = por %p747, %p748
      %s751 = sadd.s32 %s750, 1
      %p754 = scmp.eq.s32.totalorder %s86, 1
      %p755 = scmp.ne.s32.totalorder %s750, %s752
      %p756 = scmp.eq.s32.totalorder %s86, 0
      %p757 = por %p755, %p756
      %p758 = scmp.ne.s32.totalorder %s750, %s752
      %p759 = scmp.eq.s32.totalorder %s91, 1
      %p760 = por %p758, %p759
      %p761 = scmp.ne.s32.totalorder %s752, %s753
      %p762 = scmp.eq.s32.totalorder %s91, 0
      %p763 = por %p761, %p762
      %p764 = scmp.ne.s32.totalorder %s752, %s753
      %p765 = scmp.eq.s32.totalorder %s92, 1
      %p766 = por %p764, %p765
      %p768 = scmp.ne.s32.totalorder %s753, %s767
      %p769 = scmp.eq.s32.totalorder %s92, 0
      %p770 = por %p768, %p769
      %s772 = sadd.s32 %s771, 1
      %p775 = scmp.eq.s32.totalorder %s86, 1
      %p776 = scmp.ne.s32.totalorder %s771, %s773
      %p777 = scmp.eq.s32.totalorder %s86, 0
      %p778 = por %p776, %p777
      %p779 = scmp.ne.s32.totalorder %s771, %s773
      %p780 = scmp.eq.s32.totalorder %s91, 1
      %p781 = por %p779, %p780
      %p782 = scmp.ne.s32.totalorder %s773, %s774
      %p783 = scmp.eq.s32.totalorder %s91, 0
      %p784 = por %p782, %p783
      %p785 = scmp.ne.s32.totalorder %s773, %s774
      %p786 = scmp.eq.s32.totalorder %s92, 1
      %p787 = por %p785, %p786
      %p789 = scmp.ne.s32.totalorder %s774, %s788
      %p790 = scmp.eq.s32.totalorder %s92, 0
      %p791 = por %p789, %p790
      %s793 = sadd.s32 %s792, 1
      %p796 = scmp.eq.s32.totalorder %s86, 1
      %p797 = scmp.ne.s32.totalorder %s792, %s794
      %p798 = scmp.eq.s32.totalorder %s86, 0
      %p799 = por %p797, %p798
      %p800 = scmp.ne.s32.totalorder %s792, %s794
      %p801 = scmp.eq.s32.totalorder %s91, 1
      %p802 = por %p800, %p801
      %p803 = scmp.ne.s32.totalorder %s794, %s795
      %p804 = scmp.eq.s32.totalorder %s91, 0
      %p805 = por %p803, %p804
      %p806 = scmp.ne.s32.totalorder %s794, %s795
      %p807 = scmp.eq.s32.totalorder %s92, 1
      %p808 = por %p806, %p807
      %p810 = scmp.ne.s32.totalorder %s795, %s809
      %p811 = scmp.eq.s32.totalorder %s92, 0
      %p812 = por %p810, %p811
      %s814 = sadd.s32 %s813, 1
      %p817 = scmp.eq.s32.totalorder %s86, 1
      %p818 = scmp.ne.s32.totalorder %s813, %s815
      %p819 = scmp.eq.s32.totalorder %s86, 0
      %p820 = por %p818, %p819
      %p821 = scmp.ne.s32.totalorder %s813, %s815
      %p822 = scmp.eq.s32.totalorder %s91, 1
      %p823 = por %p821, %p822
      %p824 = scmp.ne.s32.totalorder %s815, %s816
      %p825 = scmp.eq.s32.totalorder %s91, 0
      %p826 = por %p824, %p825
      %p827 = scmp.ne.s32.totalorder %s815, %s816
      %p828 = scmp.eq.s32.totalorder %s92, 1
      %p829 = por %p827, %p828
      %p831 = scmp.ne.s32.totalorder %s816, %s830
      %p832 = scmp.eq.s32.totalorder %s92, 0
      %p833 = por %p831, %p832
      %s834 = ssub.s32 %s86, %s93
      %p835 = scmp.eq.s32.totalorder %s834, 0
      %s837 = sadd.s32 %s836, 1
      %s838 = scalar_select %p835, %s836, %s837
      %p841 = pneg %p835
      %p842 = scmp.eq.s32.totalorder %s86, 1
      %p843 = por %p841, %p842
      %p844 = scmp.ne.s32.totalorder %s836, %s839
      %p845 = scmp.eq.s32.totalorder %s86, 0
      %p846 = por %p844, %p845
      %p847 = scmp.ne.s32.totalorder %s836, %s839
      %p848 = scmp.eq.s32.totalorder %s91, 1
      %p849 = por %p847, %p848
      %p850 = scmp.ne.s32.totalorder %s839, %s840
      %p851 = scmp.eq.s32.totalorder %s91, 0
      %p852 = por %p850, %p851
      %p853 = scmp.ne.s32.totalorder %s839, %s840
      %p854 = scmp.eq.s32.totalorder %s92, 1
      %p855 = por %p853, %p854
      %p857 = scmp.ne.s32.totalorder %s840, %s856
      %p858 = scmp.eq.s32.totalorder %s92, 0
      %p859 = por %p857, %p858
      %s860 = ssub.s32 %s86, %s93
      %p861 = scmp.eq.s32.totalorder %s860, 0
      %s863 = sadd.s32 %s862, 1
      %s864 = scalar_select %p861, %s862, %s863
      %p867 = pneg %p861
      %p868 = scmp.eq.s32.totalorder %s86, 1
      %p869 = por %p867, %p868
      %p870 = scmp.ne.s32.totalorder %s862, %s865
      %p871 = scmp.eq.s32.totalorder %s86, 0
      %p872 = por %p870, %p871
      %p873 = scmp.ne.s32.totalorder %s862, %s865
      %p874 = scmp.eq.s32.totalorder %s91, 1
      %p875 = por %p873, %p874
      %p876 = scmp.ne.s32.totalorder %s865, %s866
      %p877 = scmp.eq.s32.totalorder %s91, 0
      %p878 = por %p876, %p877
      %p879 = scmp.ne.s32.totalorder %s865, %s866
      %p880 = scmp.eq.s32.totalorder %s92, 1
      %p881 = por %p879, %p880
      %p883 = scmp.ne.s32.totalorder %s866, %s882
      %p884 = scmp.eq.s32.totalorder %s92, 0
      %p885 = por %p883, %p884
      %p886 = scmp.le.s32.totalorder 1, %s86
      %p887 = scmp.lt.s32.totalorder %s86, 3
      %p888 = pnand %p886, %p887
      %p889 = pneg %p888
      // Predicated region
      $region9: #{vit_vdp_forward.1} parent=5 // pred_check
        _
      $region10: #{vit_vdp_forward.1} parent=5 // pred_check_branch
        %891 = sbr.rel (%p888) target = $region12
      $region11: #{vit_vdp_forward.1} parent=5 // pred_region
        %s892 = ssub.s32 %s86, 1
        // Predicated region
        $region13: #{vit_vdp_forward.1} parent=11 // pred_check
          %p893 = pneg %p133
        $region14: #{vit_vdp_forward.1} parent=11 // pred_check_branch
          %895 = sbr.rel (%p893) target = $region16
        $region15: #{vit_vdp_forward.1} parent=11 // pred_region
          _
        $region16: #{vit_vdp_forward.1} parent=11 // pred_fallthru
          _
        // Predicated region
        $region17: #{vit_vdp_forward.1} parent=11 // pred_check
          %p896 = pneg %p154
        $region18: #{vit_vdp_forward.1} parent=11 // pred_check_branch
          %898 = sbr.rel (%p896) target = $region20
        $region19: #{vit_vdp_forward.1} parent=11 // pred_region
          _
        $region20: #{vit_vdp_forward.1} parent=11 // pred_fallthru
          _
        // Predicated region
        $region21: #{vit_vdp_forward.1} parent=11 // pred_check
          %p899 = pneg %p175
        $region22: #{vit_vdp_forward.1} parent=11 // pred_check_branch
          %901 = sbr.rel (%p899) target = $region24
        $region23: #{vit_vdp_forward.1} parent=11 // pred_region
          _
        $region24: #{vit_vdp_forward.1} parent=11 // pred_fallthru
          _
        // Predicated region
        $region25: #{vit_vdp_forward.1} parent=11 // pred_check
          %p902 = pneg %p196
        $region26: #{vit_vdp_forward.1} parent=11 // pred_check_branch
          %904 = sbr.rel (%p902) target = $region28
        $region27: #{vit_vdp_forward.1} parent=11 // pred_region
          _
        $region28: #{vit_vdp_forward.1} parent=11 // pred_fallthru
          _
        // Predicated region
        $region29: #{vit_vdp_forward.1} parent=11 // pred_check
          %p905 = pneg %p217
        $region30: #{vit_vdp_forward.1} parent=11 // pred_check_branch
          %907 = sbr.rel (%p905) target = $region32
        $region31: #{vit_vdp_forward.1} parent=11 // pred_region
          _
        $region32: #{vit_vdp_forward.1} parent=11 // pred_fallthru
          _
        // Predicated region
        $region33: #{vit_vdp_forward.1} parent=11 // pred_check
          %p908 = pneg %p238
        $region34: #{vit_vdp_forward.1} parent=11 // pred_check_branch
          %910 = sbr.rel (%p908) target = $region36
        $region35: #{vit_vdp_forward.1} parent=11 // pred_region
          _
        $region36: #{vit_vdp_forward.1} parent=11 // pred_fallthru
          _
        // Predicated region
        $region37: #{vit_vdp_forward.1} parent=11 // pred_check
          %p911 = pneg %p259
        $region38: #{vit_vdp_forward.1} parent=11 // pred_check_branch
          %913 = sbr.rel (%p911) target = $region40
        $region39: #{vit_vdp_forward.1} parent=11 // pred_region
          _
        $region40: #{vit_vdp_forward.1} parent=11 // pred_fallthru
          _
        // Predicated region
        $region41: #{vit_vdp_forward.1} parent=11 // pred_check
          %p914 = pneg %p280
        $region42: #{vit_vdp_forward.1} parent=11 // pred_check_branch
          %916 = sbr.rel (%p914) target = $region44
        $region43: #{vit_vdp_forward.1} parent=11 // pred_region
          _
        $region44: #{vit_vdp_forward.1} parent=11 // pred_fallthru
          _
        // Predicated region
        $region45: #{vit_vdp_forward.1} parent=11 // pred_check
          %p917 = pneg %p301
        $region46: #{vit_vdp_forward.1} parent=11 // pred_check_branch
          %919 = sbr.rel (%p917) target = $region48
        $region47: #{vit_vdp_forward.1} parent=11 // pred_region
          _
        $region48: #{vit_vdp_forward.1} parent=11 // pred_fallthru
          _
        // Predicated region
        $region49: #{vit_vdp_forward.1} parent=11 // pred_check
          %p920 = pneg %p322
        $region50: #{vit_vdp_forward.1} parent=11 // pred_check_branch
          %922 = sbr.rel (%p920) target = $region52
        $region51: #{vit_vdp_forward.1} parent=11 // pred_region
          _
        $region52: #{vit_vdp_forward.1} parent=11 // pred_fallthru
          _
        // Predicated region
        $region53: #{vit_vdp_forward.1} parent=11 // pred_check
          %p923 = pneg %p343
        $region54: #{vit_vdp_forward.1} parent=11 // pred_check_branch
          %925 = sbr.rel (%p923) target = $region56
        $region55: #{vit_vdp_forward.1} parent=11 // pred_region
          _
        $region56: #{vit_vdp_forward.1} parent=11 // pred_fallthru
          _
        // Predicated region
        $region57: #{vit_vdp_forward.1} parent=11 // pred_check
          %p926 = pneg %p364
        $region58: #{vit_vdp_forward.1} parent=11 // pred_check_branch
          %928 = sbr.rel (%p926) target = $region60
        $region59: #{vit_vdp_forward.1} parent=11 // pred_region
          _
        $region60: #{vit_vdp_forward.1} parent=11 // pred_fallthru
          _
        // Predicated region
        $region61: #{vit_vdp_forward.1} parent=11 // pred_check
          %p929 = pneg %p385
        $region62: #{vit_vdp_forward.1} parent=11 // pred_check_branch
          %931 = sbr.rel (%p929) target = $region64
        $region63: #{vit_vdp_forward.1} parent=11 // pred_region
          _
        $region64: #{vit_vdp_forward.1} parent=11 // pred_fallthru
          _
        // Predicated region
        $region65: #{vit_vdp_forward.1} parent=11 // pred_check
          %p932 = pneg %p406
        $region66: #{vit_vdp_forward.1} parent=11 // pred_check_branch
          %934 = sbr.rel (%p932) target = $region68
        $region67: #{vit_vdp_forward.1} parent=11 // pred_region
          _
        $region68: #{vit_vdp_forward.1} parent=11 // pred_fallthru
          _
        // Predicated region
        $region69: #{vit_vdp_forward.1} parent=11 // pred_check
          %p935 = pneg %p427
        $region70: #{vit_vdp_forward.1} parent=11 // pred_check_branch
          %937 = sbr.rel (%p935) target = $region72
        $region71: #{vit_vdp_forward.1} parent=11 // pred_region
          _
        $region72: #{vit_vdp_forward.1} parent=11 // pred_fallthru
          _
        // Predicated region
        $region73: #{vit_vdp_forward.1} parent=11 // pred_check
          %p938 = pneg %p448
        $region74: #{vit_vdp_forward.1} parent=11 // pred_check_branch
          %940 = sbr.rel (%p938) target = $region76
        $region75: #{vit_vdp_forward.1} parent=11 // pred_region
          _
        $region76: #{vit_vdp_forward.1} parent=11 // pred_fallthru
          _
        // Predicated region
        $region77: #{vit_vdp_forward.1} parent=11 // pred_check
          %p941 = pneg %p469
        $region78: #{vit_vdp_forward.1} parent=11 // pred_check_branch
          %943 = sbr.rel (%p941) target = $region80
        $region79: #{vit_vdp_forward.1} parent=11 // pred_region
          _
        $region80: #{vit_vdp_forward.1} parent=11 // pred_fallthru
          _
        // Predicated region
        $region81: #{vit_vdp_forward.1} parent=11 // pred_check
          %p944 = pneg %p490
        $region82: #{vit_vdp_forward.1} parent=11 // pred_check_branch
          %946 = sbr.rel (%p944) target = $region84
        $region83: #{vit_vdp_forward.1} parent=11 // pred_region
          _
        $region84: #{vit_vdp_forward.1} parent=11 // pred_fallthru
          _
        // Predicated region
        $region85: #{vit_vdp_forward.1} parent=11 // pred_check
          %p947 = pneg %p511
        $region86: #{vit_vdp_forward.1} parent=11 // pred_check_branch
          %949 = sbr.rel (%p947) target = $region88
        $region87: #{vit_vdp_forward.1} parent=11 // pred_region
          _
        $region88: #{vit_vdp_forward.1} parent=11 // pred_fallthru
          _
        // Predicated region
        $region89: #{vit_vdp_forward.1} parent=11 // pred_check
          %p950 = pneg %p532
        $region90: #{vit_vdp_forward.1} parent=11 // pred_check_branch
          %952 = sbr.rel (%p950) target = $region92
        $region91: #{vit_vdp_forward.1} parent=11 // pred_region
          _
        $region92: #{vit_vdp_forward.1} parent=11 // pred_fallthru
          _
        // Predicated region
        $region93: #{vit_vdp_forward.1} parent=11 // pred_check
          %p953 = pneg %p553
        $region94: #{vit_vdp_forward.1} parent=11 // pred_check_branch
          %955 = sbr.rel (%p953) target = $region96
        $region95: #{vit_vdp_forward.1} parent=11 // pred_region
          _
        $region96: #{vit_vdp_forward.1} parent=11 // pred_fallthru
          _
        // Predicated region
        $region97: #{vit_vdp_forward.1} parent=11 // pred_check
          %p956 = pneg %p574
        $region98: #{vit_vdp_forward.1} parent=11 // pred_check_branch
          %958 = sbr.rel (%p956) target = $region100
        $region99: #{vit_vdp_forward.1} parent=11 // pred_region
          _
        $region100: #{vit_vdp_forward.1} parent=11 // pred_fallthru
          _
        // Predicated region
        $region101: #{vit_vdp_forward.1} parent=11 // pred_check
          %p959 = pneg %p595
        $region102: #{vit_vdp_forward.1} parent=11 // pred_check_branch
          %961 = sbr.rel (%p959) target = $region104
        $region103: #{vit_vdp_forward.1} parent=11 // pred_region
          _
        $region104: #{vit_vdp_forward.1} parent=11 // pred_fallthru
          _
        // Predicated region
        $region105: #{vit_vdp_forward.1} parent=11 // pred_check
          %p962 = pneg %p616
        $region106: #{vit_vdp_forward.1} parent=11 // pred_check_branch
          %964 = sbr.rel (%p962) target = $region108
        $region107: #{vit_vdp_forward.1} parent=11 // pred_region
          _
        $region108: #{vit_vdp_forward.1} parent=11 // pred_fallthru
          _
        // Predicated region
        $region109: #{vit_vdp_forward.1} parent=11 // pred_check
          %p965 = pneg %p637
        $region110: #{vit_vdp_forward.1} parent=11 // pred_check_branch
          %967 = sbr.rel (%p965) target = $region112
        $region111: #{vit_vdp_forward.1} parent=11 // pred_region
          _
        $region112: #{vit_vdp_forward.1} parent=11 // pred_fallthru
          _
        // Predicated region
        $region113: #{vit_vdp_forward.1} parent=11 // pred_check
          %p968 = pneg %p658
        $region114: #{vit_vdp_forward.1} parent=11 // pred_check_branch
          %970 = sbr.rel (%p968) target = $region116
        $region115: #{vit_vdp_forward.1} parent=11 // pred_region
          _
        $region116: #{vit_vdp_forward.1} parent=11 // pred_fallthru
          _
        // Predicated region
        $region117: #{vit_vdp_forward.1} parent=11 // pred_check
          %p971 = pneg %p679
        $region118: #{vit_vdp_forward.1} parent=11 // pred_check_branch
          %973 = sbr.rel (%p971) target = $region120
        $region119: #{vit_vdp_forward.1} parent=11 // pred_region
          _
        $region120: #{vit_vdp_forward.1} parent=11 // pred_fallthru
          _
        // Predicated region
        $region121: #{vit_vdp_forward.1} parent=11 // pred_check
          %p974 = pneg %p700
        $region122: #{vit_vdp_forward.1} parent=11 // pred_check_branch
          %976 = sbr.rel (%p974) target = $region124
        $region123: #{vit_vdp_forward.1} parent=11 // pred_region
          _
        $region124: #{vit_vdp_forward.1} parent=11 // pred_fallthru
          _
        // Predicated region
        $region125: #{vit_vdp_forward.1} parent=11 // pred_check
          %p977 = pneg %p721
        $region126: #{vit_vdp_forward.1} parent=11 // pred_check_branch
          %979 = sbr.rel (%p977) target = $region128
        $region127: #{vit_vdp_forward.1} parent=11 // pred_region
          _
        $region128: #{vit_vdp_forward.1} parent=11 // pred_fallthru
          _
        // Predicated region
        $region129: #{vit_vdp_forward.1} parent=11 // pred_check
          %p980 = pneg %p742
        $region130: #{vit_vdp_forward.1} parent=11 // pred_check_branch
          %982 = sbr.rel (%p980) target = $region132
        $region131: #{vit_vdp_forward.1} parent=11 // pred_region
          _
        $region132: #{vit_vdp_forward.1} parent=11 // pred_fallthru
          _
        // Predicated region
        $region133: #{vit_vdp_forward.1} parent=11 // pred_check
          %p983 = pneg %p763
        $region134: #{vit_vdp_forward.1} parent=11 // pred_check_branch
          %985 = sbr.rel (%p983) target = $region136
        $region135: #{vit_vdp_forward.1} parent=11 // pred_region
          _
        $region136: #{vit_vdp_forward.1} parent=11 // pred_fallthru
          _
        // Predicated region
        $region137: #{vit_vdp_forward.1} parent=11 // pred_check
          %p986 = pneg %p784
        $region138: #{vit_vdp_forward.1} parent=11 // pred_check_branch
          %988 = sbr.rel (%p986) target = $region140
        $region139: #{vit_vdp_forward.1} parent=11 // pred_region
          _
        $region140: #{vit_vdp_forward.1} parent=11 // pred_fallthru
          _
        // Predicated region
        $region141: #{vit_vdp_forward.1} parent=11 // pred_check
          %p989 = pneg %p805
        $region142: #{vit_vdp_forward.1} parent=11 // pred_check_branch
          %991 = sbr.rel (%p989) target = $region144
        $region143: #{vit_vdp_forward.1} parent=11 // pred_region
          _
        $region144: #{vit_vdp_forward.1} parent=11 // pred_fallthru
          _
        // Predicated region
        $region145: #{vit_vdp_forward.1} parent=11 // pred_check
          %p992 = pneg %p826
        $region146: #{vit_vdp_forward.1} parent=11 // pred_check_branch
          %994 = sbr.rel (%p992) target = $region148
        $region147: #{vit_vdp_forward.1} parent=11 // pred_region
          _
        $region148: #{vit_vdp_forward.1} parent=11 // pred_fallthru
          _
      $region12: #{vit_vdp_forward.1} parent=5 // pred_fallthru
        _
      %p995 = scmp.lt.s32.totalorder %s86, 2
      // Predicated region
      $region149: #{vit_vdp_forward.1} parent=5 // pred_check
        %p996 = pneg %p995
      $region150: #{vit_vdp_forward.1} parent=5 // pred_check_branch
        %998 = sbr.rel (%p996) target = $region152
      $region151: #{vit_vdp_forward.1} parent=5 // pred_region
        // Predicated region
        $region153: #{vit_vdp_forward.1} parent=151 // pred_check
          %p999 = pneg %p106
        $region154: #{vit_vdp_forward.1} parent=151 // pred_check_branch
          %1001 = sbr.rel (%p999) target = $region156
        $region155: #{vit_vdp_forward.1} parent=151 // pred_region
          %p1002 = scmp.lt.s32.totalorder %s86, 1
          %s1003 = scalar_select %p1002, %s86, 1
          %s1004 = smul.addr %s1003, 2
          %s1005 = smul.addr %s1004, 8
          %s1006 = scalar_lea.vmem %s1, %s1005
        $region156: #{vit_vdp_forward.1} parent=151 // pred_fallthru
          _
      $region152: #{vit_vdp_forward.1} parent=5 // pred_fallthru
        _
      %p1007 = scmp.le.s32.totalorder 1, %s86
      %p1008 = scmp.lt.s32.totalorder %s86, 3
      %p1009 = pnand %p1007, %p1008
      %p1010 = pneg %p1009
      // Predicated region
      $region157: #{vit_vdp_forward.1} parent=5 // pred_check
        _
      $region158: #{vit_vdp_forward.1} parent=5 // pred_check_branch
        %1012 = sbr.rel (%p1009) target = $region160
      $region159: #{vit_vdp_forward.1} parent=5 // pred_region
        %s1013 = ssub.s32 %s86, 1
        %p1014 = scmp.lt.s32.totalorder %s91, 1
        %s1015 = scalar_select %p1014, %s91, 1
        %s1016 = smul.addr %s1015, 2
        %s1017 = smul.addr %s1016, 8
        %s1018 = scalar_lea.vmem %s1, %s1017
        %p1019 = pneg %p112
        %p1020 = pneg %p109
        %p1021 = pneg %p133
        %p1022 = pneg %p130
        %p1023 = pneg %p154
        %p1024 = pneg %p151
        %p1025 = pneg %p175
        %p1026 = pneg %p172
        %p1027 = pneg %p196
        %p1028 = pneg %p193
        %p1029 = pneg %p217
        %p1030 = pneg %p214
        %p1031 = pneg %p238
        %p1032 = pneg %p235
        %p1033 = pneg %p259
        %p1034 = pneg %p256
        %p1035 = pneg %p280
        %p1036 = pneg %p277
        %p1037 = pneg %p301
        %p1038 = pneg %p298
        %p1039 = pneg %p322
        %p1040 = pneg %p319
        %p1041 = pneg %p343
        %p1042 = pneg %p340
        %p1043 = pneg %p364
        %p1044 = pneg %p361
        %p1045 = pneg %p385
        %p1046 = pneg %p382
        %p1047 = pneg %p406
        %p1048 = pneg %p403
        %p1049 = pneg %p427
        %p1050 = pneg %p424
        %p1051 = pneg %p448
        %p1052 = pneg %p445
        %p1053 = pneg %p469
        %p1054 = pneg %p466
        %p1055 = pneg %p490
        %p1056 = pneg %p487
        %p1057 = pneg %p511
        %p1058 = pneg %p508
        %p1059 = pneg %p532
        %p1060 = pneg %p529
        %p1061 = pneg %p553
        %p1062 = pneg %p550
        %p1063 = pneg %p574
        %p1064 = pneg %p571
        %p1065 = pneg %p595
        %p1066 = pneg %p592
        %p1067 = pneg %p616
        %p1068 = pneg %p613
        %p1069 = pneg %p637
        %p1070 = pneg %p634
        %p1071 = pneg %p658
        %p1072 = pneg %p655
        %p1073 = pneg %p679
        %p1074 = pneg %p676
        %p1075 = pneg %p700
        %p1076 = pneg %p697
        %p1077 = pneg %p721
        %p1078 = pneg %p718
        %p1079 = pneg %p742
        %p1080 = pneg %p739
        %p1081 = pneg %p763
        %p1082 = pneg %p760
        %p1083 = pneg %p784
        %p1084 = pneg %p781
        %p1085 = pneg %p805
        %p1086 = pneg %p802
        %p1087 = pneg %p826
        %p1088 = pneg %p823
        %p1089 = pneg %p852
        %p1090 = pneg %p849
        %s1091 = sand.u32 %s839, 1
        %s1092 = scalar_lea.sflag [#allocation5], %s1091
        %s1093 = sand.u32 %s839, 1
        %s1094 = scalar_lea.vmem [#allocation4], %s1093
        %p1095 = pneg %p878
        %p1096 = pneg %p875
        %s1097 = sand.u32 %s865, 1
        %s1098 = scalar_lea.sflag [#allocation7], %s1097
        %s1099 = sand.u32 %s865, 1
        %s1100 = scalar_lea.vmem [#allocation6], %s1099
        %p1101 = scmp.lt.s32.totalorder %s91, 1
        %s1102 = scalar_select %p1101, %s91, 1
        %s1103 = smul.addr %s1102, 2
        %s1104 = smul.addr %s1103, 8
        %s1105 = scalar_lea.vmem %s1, %s1104
        %v1106 = vld [vmem:[%s1105] sm:$0xff]
        %v1107 = vld [vmem:[%s1105 + $0x8] sm:$0xff]
        %v1108 = vld [vmem:[%s3] sm:$0xff]
        %v1109 = vld [vmem:[%s3 + $0x8] sm:$0xff]
        %v1110 = vld [vmem:[%s7] sm:$0x1]
        %v1112 = vlaneseq
        %v1113 = vshrl.u32 %v1112, 7
        %v1114 = vsub.s32 0, %v1113
        %v1115 = vrot.slane %v1110, %v1114
        %vm1117 = vcmask 130048
        %v1119 = vsel %vm1117, %v1106, 0
        %v1122 = vsel %vm1117, %v1107, 0
        %1124 = vmatprep.subr.mxu0 0.0
        %1125 = vmatpush1.msra.mxu0 %v1108
        %1126 = vmatprep.subr.mxu0 0.0
        %1127 = vmatpush1.msra.mxu0 %v1109
        %1128 = vmatprep.subr.mxu0 0.0
        %1129 = vmatpush1.msra.mxu0 0.0
        %1130 = vmatprep.subr.mxu0 0.0
        %1131 = vmatpush1.msra.mxu0 0.0
        %1132 = vmatprep.subr.mxu0 0.0
        %1133 = vmatpush1.msra.mxu0 0.0
        %1134 = vmatprep.subr.mxu0 0.0
        %1135 = vmatpush1.msra.mxu0 0.0
        %1136 = vmatprep.subr.mxu0 0.0
        %1137 = vmatpush1.msra.mxu0 0.0
        %1138 = vmatprep.subr.mxu0 0.0
        %1139 = vmatpush1.msra.mxu0 0.0
        %1140 = vmatprep.subr.mxu0 0.0
        %1141 = vmatpush1.msra.mxu0 0.0
        %1142 = vmatprep.subr.mxu0 0.0
        %1143 = vmatpush1.msra.mxu0 0.0
        %1144 = vmatprep.subr.mxu0 0.0
        %1145 = vmatpush1.msra.mxu0 0.0
        %1146 = vmatprep.subr.mxu0 0.0
        %1147 = vmatpush1.msra.mxu0 0.0
        %1148 = vmatprep.subr.mxu0 0.0
        %1149 = vmatpush1.msra.mxu0 0.0
        %1150 = vmatprep.subr.mxu0 0.0
        %1151 = vmatpush1.msra.mxu0 0.0
        %1152 = vmatprep.subr.mxu0 0.0
        %1153 = vmatpush1.msra.mxu0 0.0
        %1154 = vmatprep.subr.mxu0 0.0
        %1155 = vmatpush1.msra.mxu0 0.0
        %1156 = vmatprep.subr.mxu0 0.0
        %1157 = vmatpush1.msra.mxu0 0.0
        %1158 = vmatprep.subr.mxu0 0.0
        %1159 = vmatpush1.msra.mxu0 0.0
        %1160 = vmatprep.subr.mxu0 0.0
        %1161 = vmatpush1.msra.mxu0 0.0
        %1162 = vmatprep.subr.mxu0 0.0
        %1163 = vmatpush1.msra.mxu0 0.0
        %1164 = vmatprep.subr.mxu0 0.0
        %1165 = vmatpush1.msra.mxu0 0.0
        %1166 = vmatprep.subr.mxu0 0.0
        %1167 = vmatpush1.msra.mxu0 0.0
        %1168 = vmatprep.subr.mxu0 0.0
        %1169 = vmatpush1.msra.mxu0 0.0
        %1170 = vmatprep.subr.mxu0 0.0
        %1171 = vmatpush1.msra.mxu0 0.0
        %1172 = vmatprep.subr.mxu0 0.0
        %1173 = vmatpush1.msra.mxu0 0.0
        %1174 = vmatprep.subr.mxu0 0.0
        %1175 = vmatpush1.msra.mxu0 0.0
        %1176 = vmatprep.subr.mxu0 0.0
        %1177 = vmatpush1.msra.mxu0 0.0
        %1178 = vmatprep.subr.mxu0 0.0
        %1179 = vmatpush1.msra.mxu0 0.0
        %1180 = vmatprep.subr.mxu0 0.0
        %1181 = vmatpush1.msra.mxu0 0.0
        %1182 = vmatprep.subr.mxu0 0.0
        %1183 = vmatpush1.msra.mxu0 0.0
        %1184 = vmatprep.subr.mxu0 0.0
        %1185 = vmatpush1.msra.mxu0 0.0
        %1186 = vmatprep.subr.mxu0 0.0
        %1187 = vmatpush1.msra.mxu0 0.0
        %1188 = vmatprep.mubr.f32.mxu0 0.0
        %1189 = vmatmul.mubr.f32.gmra.mrb[0].mxu0 %v1119
        %v1190 = vpop.f32.mrb[0].mxu0
        %v1191 = vadd.f32 %v1115, %v1190
        %v1192 = vpop.f32.mrb[0].mxu0
        %1193 = vmatprep.mubr.f32.mxu0 0.0
        %1194 = vmatmul.mubr.f32.gmra.mrb[0].mxu0 %v1122
        %v1195 = vpop.f32.mrb[0].mxu0
        %v1196 = vadd.f32 %v1115, %v1195
        %v1197 = vpop.f32.mrb[0].mxu0
        %1198 = vdwg.mxu0
        %v1199 = vld [vmem:[%s9] sm:$0xff]
        %v1200 = vld [vmem:[%s9 + $0x8] sm:$0xff]
        %v1201 = vadd.f32 %v1191, %v1199
        %v1202 = vadd.f32 %v1196, %v1200
        %v1203 = vmul.f32 %v1106, %v1106
        %v1204 = vmul.f32 %v1107, %v1107
        %v1205 = vld [vmem:[%s5] sm:$0xff]
        %v1206 = vld [vmem:[%s5 + $0x8] sm:$0xff]
        %v1208 = vsel %vm1117, %v1203, 0
        %v1211 = vsel %vm1117, %v1204, 0
        %1213 = vmatprep.subr.mxu0 0.0
        %1214 = vmatpush1.msra.mxu0 %v1205
        %1215 = vmatprep.subr.mxu0 0.0
        %1216 = vmatpush1.msra.mxu0 %v1206
        %1217 = vmatprep.subr.mxu0 0.0
        %1218 = vmatpush1.msra.mxu0 0.0
        %1219 = vmatprep.subr.mxu0 0.0
        %1220 = vmatpush1.msra.mxu0 0.0
        %1221 = vmatprep.subr.mxu0 0.0
        %1222 = vmatpush1.msra.mxu0 0.0
        %1223 = vmatprep.subr.mxu0 0.0
        %1224 = vmatpush1.msra.mxu0 0.0
        %1225 = vmatprep.subr.mxu0 0.0
        %1226 = vmatpush1.msra.mxu0 0.0
        %1227 = vmatprep.subr.mxu0 0.0
        %1228 = vmatpush1.msra.mxu0 0.0
        %1229 = vmatprep.subr.mxu0 0.0
        %1230 = vmatpush1.msra.mxu0 0.0
        %1231 = vmatprep.subr.mxu0 0.0
        %1232 = vmatpush1.msra.mxu0 0.0
        %1233 = vmatprep.subr.mxu0 0.0
        %1234 = vmatpush1.msra.mxu0 0.0
        %1235 = vmatprep.subr.mxu0 0.0
        %1236 = vmatpush1.msra.mxu0 0.0
        %1237 = vmatprep.subr.mxu0 0.0
        %1238 = vmatpush1.msra.mxu0 0.0
        %1239 = vmatprep.subr.mxu0 0.0
        %1240 = vmatpush1.msra.mxu0 0.0
        %1241 = vmatprep.subr.mxu0 0.0
        %1242 = vmatpush1.msra.mxu0 0.0
        %1243 = vmatprep.subr.mxu0 0.0
        %1244 = vmatpush1.msra.mxu0 0.0
        %1245 = vmatprep.subr.mxu0 0.0
        %1246 = vmatpush1.msra.mxu0 0.0
        %1247 = vmatprep.subr.mxu0 0.0
        %1248 = vmatpush1.msra.mxu0 0.0
        %1249 = vmatprep.subr.mxu0 0.0
        %1250 = vmatpush1.msra.mxu0 0.0
        %1251 = vmatprep.subr.mxu0 0.0
        %1252 = vmatpush1.msra.mxu0 0.0
        %1253 = vmatprep.subr.mxu0 0.0
        %1254 = vmatpush1.msra.mxu0 0.0
        %1255 = vmatprep.subr.mxu0 0.0
        %1256 = vmatpush1.msra.mxu0 0.0
        %1257 = vmatprep.subr.mxu0 0.0
        %1258 = vmatpush1.msra.mxu0 0.0
        %1259 = vmatprep.subr.mxu0 0.0
        %1260 = vmatpush1.msra.mxu0 0.0
        %1261 = vmatprep.subr.mxu0 0.0
        %1262 = vmatpush1.msra.mxu0 0.0
        %1263 = vmatprep.subr.mxu0 0.0
        %1264 = vmatpush1.msra.mxu0 0.0
        %1265 = vmatprep.subr.mxu0 0.0
        %1266 = vmatpush1.msra.mxu0 0.0
        %1267 = vmatprep.subr.mxu0 0.0
        %1268 = vmatpush1.msra.mxu0 0.0
        %1269 = vmatprep.subr.mxu0 0.0
        %1270 = vmatpush1.msra.mxu0 0.0
        %1271 = vmatprep.subr.mxu0 0.0
        %1272 = vmatpush1.msra.mxu0 0.0
        %1273 = vmatprep.subr.mxu0 0.0
        %1274 = vmatpush1.msra.mxu0 0.0
        %1275 = vmatprep.subr.mxu0 0.0
        %1276 = vmatpush1.msra.mxu0 0.0
        %1277 = vmatprep.mubr.f32.mxu0 0.0
        %1278 = vmatmul.mubr.f32.gmra.mrb[0].mxu0 %v1208
        %v1279 = vpop.f32.mrb[0].mxu0
        %v1280 = vadd.f32 0.0, %v1279
        %v1281 = vpop.f32.mrb[0].mxu0
        %1282 = vmatprep.mubr.f32.mxu0 0.0
        %1283 = vmatmul.mubr.f32.gmra.mrb[0].mxu0 %v1211
        %v1284 = vpop.f32.mrb[0].mxu0
        %v1285 = vadd.f32 0.0, %v1284
        %v1286 = vpop.f32.mrb[0].mxu0
        %1287 = vdwg.mxu0
        %v1288 = vld [vmem:[%s15] sm:$0xff]
        %v1289 = vld [vmem:[%s15 + $0x8] sm:$0xff]
        %v1290 = vld [vmem:[%s15 + $0x10] sm:$0xff]
        %v1291 = vld [vmem:[%s15 + $0x18] sm:$0xff]
        %v1292 = vld [vmem:[%s17] sm:$0xff]
        %v1293 = vld [vmem:[%s17 + $0x8] sm:$0xff]
        %v1294 = vld [vmem:[%s17 + $0x10] sm:$0xff]
        %v1295 = vld [vmem:[%s17 + $0x18] sm:$0xff]
        %v1296 = vld [vmem:[%s19] sm:$0xff]
        %v1297 = vld [vmem:[%s19 + $0x8] sm:$0xff]
        %v1298 = vld [vmem:[%s19 + $0x10] sm:$0xff]
        %v1299 = vld [vmem:[%s19 + $0x18] sm:$0xff]
        %v1300 = vld [vmem:[%s21] sm:$0x1]
        %v1301 = vld [vmem:[%s23] sm:$0x1]
        %v1302 = vld [vmem:[%s25] sm:$0xff]
        %v1303 = vld [vmem:[%s25 + $0x8] sm:$0xff]
        %v1304 = vld [vmem:[%s25 + $0x10] sm:$0xff]
        %v1305 = vld [vmem:[%s25 + $0x18] sm:$0xff]
        %v1306 = vld [vmem:[%s27] sm:$0xff]
        %v1307 = vld [vmem:[%s27 + $0x8] sm:$0xff]
        %v1308 = vld [vmem:[%s27 + $0x10] sm:$0xff]
        %v1309 = vld [vmem:[%s27 + $0x18] sm:$0xff]
        %v1310 = vld [vmem:[%s29] sm:$0xff]
        %v1311 = vld [vmem:[%s29 + $0x8] sm:$0xff]
        %v1312 = vld [vmem:[%s29 + $0x10] sm:$0xff]
        %v1313 = vld [vmem:[%s29 + $0x18] sm:$0xff]
        %v1314 = vld [vmem:[%s31] sm:$0x1]
        %vm1315 = vcmask 261120
        %v1317 = vsel %vm1315, %v1201, 0
        %v1320 = vsel %vm1315, %v1202, 0
        %1322 = vmatprep.subr.mxu0 0.0
        %1323 = vmatpush1.msra.mxu0 %v1288
        %1324 = vmatprep.subr.mxu0 0.0
        %1325 = vmatpush1.msra.mxu0 %v1289
        %1326 = vmatprep.subr.mxu0 0.0
        %1327 = vmatpush1.msra.mxu0 %v1290
        %1328 = vmatprep.subr.mxu0 0.0
        %1329 = vmatpush1.msra.mxu0 %v1291
        %1330 = vmatprep.subr.mxu0 0.0
        %1331 = vmatpush1.msra.mxu0 0.0
        %1332 = vmatprep.subr.mxu0 0.0
        %1333 = vmatpush1.msra.mxu0 0.0
        %1334 = vmatprep.subr.mxu0 0.0
        %1335 = vmatpush1.msra.mxu0 0.0
        %1336 = vmatprep.subr.mxu0 0.0
        %1337 = vmatpush1.msra.mxu0 0.0
        %1338 = vmatprep.subr.mxu0 0.0
        %1339 = vmatpush1.msra.mxu0 0.0
        %1340 = vmatprep.subr.mxu0 0.0
        %1341 = vmatpush1.msra.mxu0 0.0
        %1342 = vmatprep.subr.mxu0 0.0
        %1343 = vmatpush1.msra.mxu0 0.0
        %1344 = vmatprep.subr.mxu0 0.0
        %1345 = vmatpush1.msra.mxu0 0.0
        %1346 = vmatprep.subr.mxu0 0.0
        %1347 = vmatpush1.msra.mxu0 0.0
        %1348 = vmatprep.subr.mxu0 0.0
        %1349 = vmatpush1.msra.mxu0 0.0
        %1350 = vmatprep.subr.mxu0 0.0
        %1351 = vmatpush1.msra.mxu0 0.0
        %1352 = vmatprep.subr.mxu0 0.0
        %1353 = vmatpush1.msra.mxu0 0.0
        %1354 = vmatprep.subr.mxu0 0.0
        %1355 = vmatpush1.msra.mxu0 0.0
        %1356 = vmatprep.subr.mxu0 0.0
        %1357 = vmatpush1.msra.mxu0 0.0
        %1358 = vmatprep.subr.mxu0 0.0
        %1359 = vmatpush1.msra.mxu0 0.0
        %1360 = vmatprep.subr.mxu0 0.0
        %1361 = vmatpush1.msra.mxu0 0.0
        %1362 = vmatprep.subr.mxu0 0.0
        %1363 = vmatpush1.msra.mxu0 0.0
        %1364 = vmatprep.subr.mxu0 0.0
        %1365 = vmatpush1.msra.mxu0 0.0
        %1366 = vmatprep.subr.mxu0 0.0
        %1367 = vmatpush1.msra.mxu0 0.0
        %1368 = vmatprep.subr.mxu0 0.0
        %1369 = vmatpush1.msra.mxu0 0.0
        %1370 = vmatprep.subr.mxu0 0.0
        %1371 = vmatpush1.msra.mxu0 0.0
        %1372 = vmatprep.subr.mxu0 0.0
        %1373 = vmatpush1.msra.mxu0 0.0
        %1374 = vmatprep.subr.mxu0 0.0
        %1375 = vmatpush1.msra.mxu0 0.0
        %1376 = vmatprep.subr.mxu0 0.0
        %1377 = vmatpush1.msra.mxu0 0.0
        %1378 = vmatprep.subr.mxu0 0.0
        %1379 = vmatpush1.msra.mxu0 0.0
        %1380 = vmatprep.subr.mxu0 0.0
        %1381 = vmatpush1.msra.mxu0 0.0
        %1382 = vmatprep.subr.mxu0 0.0
        %1383 = vmatpush1.msra.mxu0 0.0
        %1384 = vmatprep.subr.mxu0 0.0
        %1385 = vmatpush1.msra.mxu0 0.0
        %1386 = vmatprep.mubr.f32.mxu0 0.0
        %1387 = vmatmul.mubr.f32.gmra.mrb[0].mxu0 %v1317
        %v1388 = vpop.f32.mrb[0].mxu0
        %v1389 = vadd.f32 0.0, %v1388
        %v1390 = vpop.f32.mrb[0].mxu0
        %1391 = vmatprep.mubr.f32.mxu0 0.0
        %1392 = vmatmul.mubr.f32.gmra.mrb[0].mxu0 %v1320
        %v1393 = vpop.f32.mrb[0].mxu0
        %v1394 = vadd.f32 0.0, %v1393
        %v1395 = vpop.f32.mrb[0].mxu0
        %1396 = vdwg.mxu0
        %v1397 = vmul.f32 %v1201, %v1201
        %v1398 = vmul.f32 %v1202, %v1202
        %v1400 = vsel %vm1315, %v1397, 0
        %v1403 = vsel %vm1315, %v1398, 0
        %1405 = vmatprep.subr.mxu0 0.0
        %1406 = vmatpush1.msra.mxu0 %v1296
        %1407 = vmatprep.subr.mxu0 0.0
        %1408 = vmatpush1.msra.mxu0 %v1297
        %1409 = vmatprep.subr.mxu0 0.0
        %1410 = vmatpush1.msra.mxu0 %v1298
        %1411 = vmatprep.subr.mxu0 0.0
        %1412 = vmatpush1.msra.mxu0 %v1299
        %1413 = vmatprep.subr.mxu0 0.0
        %1414 = vmatpush1.msra.mxu0 0.0
        %1415 = vmatprep.subr.mxu0 0.0
        %1416 = vmatpush1.msra.mxu0 0.0
        %1417 = vmatprep.subr.mxu0 0.0
        %1418 = vmatpush1.msra.mxu0 0.0
        %1419 = vmatprep.subr.mxu0 0.0
        %1420 = vmatpush1.msra.mxu0 0.0
        %1421 = vmatprep.subr.mxu0 0.0
        %1422 = vmatpush1.msra.mxu0 0.0
        %1423 = vmatprep.subr.mxu0 0.0
        %1424 = vmatpush1.msra.mxu0 0.0
        %1425 = vmatprep.subr.mxu0 0.0
        %1426 = vmatpush1.msra.mxu0 0.0
        %1427 = vmatprep.subr.mxu0 0.0
        %1428 = vmatpush1.msra.mxu0 0.0
        %1429 = vmatprep.subr.mxu0 0.0
        %1430 = vmatpush1.msra.mxu0 0.0
        %1431 = vmatprep.subr.mxu0 0.0
        %1432 = vmatpush1.msra.mxu0 0.0
        %1433 = vmatprep.subr.mxu0 0.0
        %1434 = vmatpush1.msra.mxu0 0.0
        %1435 = vmatprep.subr.mxu0 0.0
        %1436 = vmatpush1.msra.mxu0 0.0
        %1437 = vmatprep.subr.mxu0 0.0
        %1438 = vmatpush1.msra.mxu0 0.0
        %1439 = vmatprep.subr.mxu0 0.0
        %1440 = vmatpush1.msra.mxu0 0.0
        %1441 = vmatprep.subr.mxu0 0.0
        %1442 = vmatpush1.msra.mxu0 0.0
        %1443 = vmatprep.subr.mxu0 0.0
        %1444 = vmatpush1.msra.mxu0 0.0
        %1445 = vmatprep.subr.mxu0 0.0
        %1446 = vmatpush1.msra.mxu0 0.0
        %1447 = vmatprep.subr.mxu0 0.0
        %1448 = vmatpush1.msra.mxu0 0.0
        %1449 = vmatprep.subr.mxu0 0.0
        %1450 = vmatpush1.msra.mxu0 0.0
        %1451 = vmatprep.subr.mxu0 0.0
        %1452 = vmatpush1.msra.mxu0 0.0
        %1453 = vmatprep.subr.mxu0 0.0
        %1454 = vmatpush1.msra.mxu0 0.0
        %1455 = vmatprep.subr.mxu0 0.0
        %1456 = vmatpush1.msra.mxu0 0.0
        %1457 = vmatprep.subr.mxu0 0.0
        %1458 = vmatpush1.msra.mxu0 0.0
        %1459 = vmatprep.subr.mxu0 0.0
        %1460 = vmatpush1.msra.mxu0 0.0
        %1461 = vmatprep.subr.mxu0 0.0
        %1462 = vmatpush1.msra.mxu0 0.0
        %1463 = vmatprep.subr.mxu0 0.0
        %1464 = vmatpush1.msra.mxu0 0.0
        %1465 = vmatprep.subr.mxu0 0.0
        %1466 = vmatpush1.msra.mxu0 0.0
        %1467 = vmatprep.subr.mxu0 0.0
        %1468 = vmatpush1.msra.mxu0 0.0
        %1469 = vmatprep.mubr.f32.mxu0 0.0
        %1470 = vmatmul.mubr.f32.gmra.mrb[0].mxu0 %v1400
        %v1471 = vpop.f32.mrb[0].mxu0
        %v1472 = vadd.f32 0.0, %v1471
        %v1473 = vpop.f32.mrb[0].mxu0
        %1474 = vmatprep.mubr.f32.mxu0 0.0
        %1475 = vmatmul.mubr.f32.gmra.mrb[0].mxu0 %v1403
        %v1476 = vpop.f32.mrb[0].mxu0
        %v1477 = vadd.f32 0.0, %v1476
        %v1478 = vpop.f32.mrb[0].mxu0
        %1479 = vdwg.mxu0
        %v1481 = vsel %vm1315, %v1280, 0
        %v1484 = vsel %vm1315, %v1285, 0
        %1486 = vmatprep.subr.mxu0 0.0
        %1487 = vmatpush1.msra.mxu0 %v1292
        %1488 = vmatprep.subr.mxu0 0.0
        %1489 = vmatpush1.msra.mxu0 %v1293
        %1490 = vmatprep.subr.mxu0 0.0
        %1491 = vmatpush1.msra.mxu0 %v1294
        %1492 = vmatprep.subr.mxu0 0.0
        %1493 = vmatpush1.msra.mxu0 %v1295
        %1494 = vmatprep.subr.mxu0 0.0
        %1495 = vmatpush1.msra.mxu0 0.0
        %1496 = vmatprep.subr.mxu0 0.0
        %1497 = vmatpush1.msra.mxu0 0.0
        %1498 = vmatprep.subr.mxu0 0.0
        %1499 = vmatpush1.msra.mxu0 0.0
        %1500 = vmatprep.subr.mxu0 0.0
        %1501 = vmatpush1.msra.mxu0 0.0
        %1502 = vmatprep.subr.mxu0 0.0
        %1503 = vmatpush1.msra.mxu0 0.0
        %1504 = vmatprep.subr.mxu0 0.0
        %1505 = vmatpush1.msra.mxu0 0.0
        %1506 = vmatprep.subr.mxu0 0.0
        %1507 = vmatpush1.msra.mxu0 0.0
        %1508 = vmatprep.subr.mxu0 0.0
        %1509 = vmatpush1.msra.mxu0 0.0
        %1510 = vmatprep.subr.mxu0 0.0
        %1511 = vmatpush1.msra.mxu0 0.0
        %1512 = vmatprep.subr.mxu0 0.0
        %1513 = vmatpush1.msra.mxu0 0.0
        %1514 = vmatprep.subr.mxu0 0.0
        %1515 = vmatpush1.msra.mxu0 0.0
        %1516 = vmatprep.subr.mxu0 0.0
        %1517 = vmatpush1.msra.mxu0 0.0
        %1518 = vmatprep.subr.mxu0 0.0
        %1519 = vmatpush1.msra.mxu0 0.0
        %1520 = vmatprep.subr.mxu0 0.0
        %1521 = vmatpush1.msra.mxu0 0.0
        %1522 = vmatprep.subr.mxu0 0.0
        %1523 = vmatpush1.msra.mxu0 0.0
        %1524 = vmatprep.subr.mxu0 0.0
        %1525 = vmatpush1.msra.mxu0 0.0
        %1526 = vmatprep.subr.mxu0 0.0
        %1527 = vmatpush1.msra.mxu0 0.0
        %1528 = vmatprep.subr.mxu0 0.0
        %1529 = vmatpush1.msra.mxu0 0.0
        %1530 = vmatprep.subr.mxu0 0.0
        %1531 = vmatpush1.msra.mxu0 0.0
        %1532 = vmatprep.subr.mxu0 0.0
        %1533 = vmatpush1.msra.mxu0 0.0
        %1534 = vmatprep.subr.mxu0 0.0
        %1535 = vmatpush1.msra.mxu0 0.0
        %1536 = vmatprep.subr.mxu0 0.0
        %1537 = vmatpush1.msra.mxu0 0.0
        %1538 = vmatprep.subr.mxu0 0.0
        %1539 = vmatpush1.msra.mxu0 0.0
        %1540 = vmatprep.subr.mxu0 0.0
        %1541 = vmatpush1.msra.mxu0 0.0
        %1542 = vmatprep.subr.mxu0 0.0
        %1543 = vmatpush1.msra.mxu0 0.0
        %1544 = vmatprep.subr.mxu0 0.0
        %1545 = vmatpush1.msra.mxu0 0.0
        %1546 = vmatprep.subr.mxu0 0.0
        %1547 = vmatpush1.msra.mxu0 0.0
        %1548 = vmatprep.subr.mxu0 0.0
        %1549 = vmatpush1.msra.mxu0 0.0
        %1550 = vmatprep.mubr.f32.mxu0 0.0
        %1551 = vmatmul.mubr.f32.gmra.mrb[0].mxu0 %v1481
        %v1552 = vpop.f32.mrb[0].mxu0
        %v1553 = vadd.f32 %v1472, %v1552
        %v1554 = vpop.f32.mrb[0].mxu0
        %1555 = vmatprep.mubr.f32.mxu0 0.0
        %1556 = vmatmul.mubr.f32.gmra.mrb[0].mxu0 %v1484
        %v1557 = vpop.f32.mrb[0].mxu0
        %v1558 = vadd.f32 %v1477, %v1557
        %v1559 = vpop.f32.mrb[0].mxu0
        %1560 = vdwg.mxu0
        %1563 = vrot.lane.b32.xlu0 %v1389, 96
        %v1564 = vpop.permute.xlu0 %1563
        %1565 = vrot.lane.b32.xlu0 %v1394, 96
        %v1566 = vpop.permute.xlu0 %1565
        %v1567 = vsel %vm1117, %v1389, 0
        %v1569 = vsel %vm1117, %v1394, 0
        %v1571 = vsel %vm1117, %v1564, 0
        %v1573 = vsel %vm1117, %v1566, 0
        %1575 = vmatprep.subr.mxu0 0.0
        %1576 = vmatpush1.xpose.msra.mxu0 %v1571
        %1577 = vmatprep.subr.mxu0 0.0
        %1578 = vmatpush1.xpose.msra.mxu0 %v1573
        %1579 = vmatprep.subr.mxu0 0.0
        %1580 = vmatpush1.xpose.msra.mxu0 0.0
        %1581 = vmatprep.subr.mxu0 0.0
        %1582 = vmatpush1.xpose.msra.mxu0 0.0
        %1583 = vmatprep.subr.mxu0 0.0
        %1584 = vmatpush1.xpose.msra.mxu0 0.0
        %1585 = vmatprep.subr.mxu0 0.0
        %1586 = vmatpush1.xpose.msra.mxu0 0.0
        %1587 = vmatprep.subr.mxu0 0.0
        %1588 = vmatpush1.xpose.msra.mxu0 0.0
        %1589 = vmatprep.subr.mxu0 0.0
        %1590 = vmatpush1.xpose.msra.mxu0 0.0
        %1591 = vmatprep.subr.mxu0 0.0
        %1592 = vmatpush1.xpose.msra.mxu0 0.0
        %1593 = vmatprep.subr.mxu0 0.0
        %1594 = vmatpush1.xpose.msra.mxu0 0.0
        %1595 = vmatprep.subr.mxu0 0.0
        %1596 = vmatpush1.xpose.msra.mxu0 0.0
        %1597 = vmatprep.subr.mxu0 0.0
        %1598 = vmatpush1.xpose.msra.mxu0 0.0
        %1599 = vmatprep.subr.mxu0 0.0
        %1600 = vmatpush1.xpose.msra.mxu0 0.0
        %1601 = vmatprep.subr.mxu0 0.0
        %1602 = vmatpush1.xpose.msra.mxu0 0.0
        %1603 = vmatprep.subr.mxu0 0.0
        %1604 = vmatpush1.xpose.msra.mxu0 0.0
        %1605 = vmatprep.subr.mxu0 0.0
        %1606 = vmatpush1.xpose.msra.mxu0 0.0
        %1607 = vmatprep.subr.mxu0 0.0
        %1608 = vmatpush1.xpose.msra.mxu0 0.0
        %1609 = vmatprep.subr.mxu0 0.0
        %1610 = vmatpush1.xpose.msra.mxu0 0.0
        %1611 = vmatprep.subr.mxu0 0.0
        %1612 = vmatpush1.xpose.msra.mxu0 0.0
        %1613 = vmatprep.subr.mxu0 0.0
        %1614 = vmatpush1.xpose.msra.mxu0 0.0
        %1615 = vmatprep.subr.mxu0 0.0
        %1616 = vmatpush1.xpose.msra.mxu0 0.0
        %1617 = vmatprep.subr.mxu0 0.0
        %1618 = vmatpush1.xpose.msra.mxu0 0.0
        %1619 = vmatprep.subr.mxu0 0.0
        %1620 = vmatpush1.xpose.msra.mxu0 0.0
        %1621 = vmatprep.subr.mxu0 0.0
        %1622 = vmatpush1.xpose.msra.mxu0 0.0
        %1623 = vmatprep.subr.mxu0 0.0
        %1624 = vmatpush1.xpose.msra.mxu0 0.0
        %1625 = vmatprep.subr.mxu0 0.0
        %1626 = vmatpush1.xpose.msra.mxu0 0.0
        %1627 = vmatprep.subr.mxu0 0.0
        %1628 = vmatpush1.xpose.msra.mxu0 0.0
        %1629 = vmatprep.subr.mxu0 0.0
        %1630 = vmatpush1.xpose.msra.mxu0 0.0
        %1631 = vmatprep.subr.mxu0 0.0
        %1632 = vmatpush1.xpose.msra.mxu0 0.0
        %1633 = vmatprep.subr.mxu0 0.0
        %1634 = vmatpush1.xpose.msra.mxu0 0.0
        %1635 = vmatprep.subr.mxu0 0.0
        %1636 = vmatpush1.xpose.msra.mxu0 0.0
        %1637 = vmatprep.subr.mxu0 0.0
        %1638 = vmatpush1.xpose.msra.mxu0 0.0
        %1639 = vmatprep.mubr.f32.mxu0 0.0
        %1640 = vmatmul.mubr.f32.gmra.mrb[0].mxu0 %v1567
        %v1641 = vpop.f32.mrb[0].mxu0
        %v1642 = vadd.f32 0.0, %v1641
        %v1643 = vpop.f32.mrb[0].mxu0
        %1644 = vmatprep.mubr.f32.mxu0 0.0
        %1645 = vmatmul.mubr.f32.gmra.mrb[0].mxu0 %v1569
        %v1646 = vpop.f32.mrb[0].mxu0
        %v1647 = vadd.f32 0.0, %v1646
        %v1648 = vpop.f32.mrb[0].mxu0
        %1649 = vdwg.mxu0
        %v1650 = vmul.f32 %v1642, 0.17677669
        %v1651 = vmul.f32 %v1647, 0.17677669
        %v1652 = vmul.f32 %v1389, %v1389
        %v1653 = vmul.f32 %v1394, %v1394
        %v1654 = vadd.f32 %v1652, %v1553
        %v1655 = vadd.f32 %v1653, %v1558
        %1658 = vrot.lane.b32.xlu0 %v1553, 96
        %v1659 = vpop.permute.xlu0 %1658
        %1660 = vrot.lane.b32.xlu0 %v1558, 96
        %v1661 = vpop.permute.xlu0 %1660
        %v1663 = vsel %vm1117, %v1652, 0
        %v1666 = vsel %vm1117, %v1653, 0
        %v1668 = vsel %vm1117, %v1659, 0
        %v1670 = vsel %vm1117, %v1661, 0
        %1672 = vmatprep.subr.mxu0 0.0
        %1673 = vmatpush1.xpose.msra.mxu0 %v1668
        %1674 = vmatprep.subr.mxu0 0.0
        %1675 = vmatpush1.xpose.msra.mxu0 %v1670
        %1676 = vmatprep.subr.mxu0 0.0
        %1677 = vmatpush1.xpose.msra.mxu0 0.0
        %1678 = vmatprep.subr.mxu0 0.0
        %1679 = vmatpush1.xpose.msra.mxu0 0.0
        %1680 = vmatprep.subr.mxu0 0.0
        %1681 = vmatpush1.xpose.msra.mxu0 0.0
        %1682 = vmatprep.subr.mxu0 0.0
        %1683 = vmatpush1.xpose.msra.mxu0 0.0
        %1684 = vmatprep.subr.mxu0 0.0
        %1685 = vmatpush1.xpose.msra.mxu0 0.0
        %1686 = vmatprep.subr.mxu0 0.0
        %1687 = vmatpush1.xpose.msra.mxu0 0.0
        %1688 = vmatprep.subr.mxu0 0.0
        %1689 = vmatpush1.xpose.msra.mxu0 0.0
        %1690 = vmatprep.subr.mxu0 0.0
        %1691 = vmatpush1.xpose.msra.mxu0 0.0
        %1692 = vmatprep.subr.mxu0 0.0
        %1693 = vmatpush1.xpose.msra.mxu0 0.0
        %1694 = vmatprep.subr.mxu0 0.0
        %1695 = vmatpush1.xpose.msra.mxu0 0.0
        %1696 = vmatprep.subr.mxu0 0.0
        %1697 = vmatpush1.xpose.msra.mxu0 0.0
        %1698 = vmatprep.subr.mxu0 0.0
        %1699 = vmatpush1.xpose.msra.mxu0 0.0
        %1700 = vmatprep.subr.mxu0 0.0
        %1701 = vmatpush1.xpose.msra.mxu0 0.0
        %1702 = vmatprep.subr.mxu0 0.0
        %1703 = vmatpush1.xpose.msra.mxu0 0.0
        %1704 = vmatprep.subr.mxu0 0.0
        %1705 = vmatpush1.xpose.msra.mxu0 0.0
        %1706 = vmatprep.subr.mxu0 0.0
        %1707 = vmatpush1.xpose.msra.mxu0 0.0
        %1708 = vmatprep.subr.mxu0 0.0
        %1709 = vmatpush1.xpose.msra.mxu0 0.0
        %1710 = vmatprep.subr.mxu0 0.0
        %1711 = vmatpush1.xpose.msra.mxu0 0.0
        %1712 = vmatprep.subr.mxu0 0.0
        %1713 = vmatpush1.xpose.msra.mxu0 0.0
        %1714 = vmatprep.subr.mxu0 0.0
        %1715 = vmatpush1.xpose.msra.mxu0 0.0
        %1716 = vmatprep.subr.mxu0 0.0
        %1717 = vmatpush1.xpose.msra.mxu0 0.0
        %1718 = vmatprep.subr.mxu0 0.0
        %1719 = vmatpush1.xpose.msra.mxu0 0.0
        %1720 = vmatprep.subr.mxu0 0.0
        %1721 = vmatpush1.xpose.msra.mxu0 0.0
        %1722 = vmatprep.subr.mxu0 0.0
        %1723 = vmatpush1.xpose.msra.mxu0 0.0
        %1724 = vmatprep.subr.mxu0 0.0
        %1725 = vmatpush1.xpose.msra.mxu0 0.0
        %1726 = vmatprep.subr.mxu0 0.0
        %1727 = vmatpush1.xpose.msra.mxu0 0.0
        %1728 = vmatprep.subr.mxu0 0.0
        %1729 = vmatpush1.xpose.msra.mxu0 0.0
        %1730 = vmatprep.subr.mxu0 0.0
        %1731 = vmatpush1.xpose.msra.mxu0 0.0
        %1732 = vmatprep.subr.mxu0 0.0
        %1733 = vmatpush1.xpose.msra.mxu0 0.0
        %1734 = vmatprep.subr.mxu0 0.0
        %1735 = vmatpush1.xpose.msra.mxu0 0.0
        %1736 = vmatprep.mubr.f32.mxu0 0.0
        %1737 = vmatmul.mubr.f32.gmra.mrb[0].mxu0 %v1663
        %v1738 = vpop.f32.mrb[0].mxu0
        %v1739 = vadd.f32 0.0, %v1738
        %v1740 = vpop.f32.mrb[0].mxu0
        %1741 = vmatprep.mubr.f32.mxu0 0.0
        %1742 = vmatmul.mubr.f32.gmra.mrb[0].mxu0 %v1666
        %v1743 = vpop.f32.mrb[0].mxu0
        %v1744 = vadd.f32 0.0, %v1743
        %v1745 = vpop.f32.mrb[0].mxu0
        %1746 = vdwg.mxu0
        %1749 = vrot.lane.b32.xlu0 %v1654, 96
        %v1750 = vpop.permute.xlu0 %1749
        %1751 = vrot.lane.b32.xlu0 %v1655, 96
        %v1752 = vpop.permute.xlu0 %1751
        %v1753 = vsel %vm1117, %v1553, 0
        %v1755 = vsel %vm1117, %v1558, 0
        %v1757 = vsel %vm1117, %v1750, 0
        %v1759 = vsel %vm1117, %v1752, 0
        %1761 = vmatprep.subr.mxu0 0.0
        %1762 = vmatpush1.xpose.msra.mxu0 %v1757
        %1763 = vmatprep.subr.mxu0 0.0
        %1764 = vmatpush1.xpose.msra.mxu0 %v1759
        %1765 = vmatprep.subr.mxu0 0.0
        %1766 = vmatpush1.xpose.msra.mxu0 0.0
        %1767 = vmatprep.subr.mxu0 0.0
        %1768 = vmatpush1.xpose.msra.mxu0 0.0
        %1769 = vmatprep.subr.mxu0 0.0
        %1770 = vmatpush1.xpose.msra.mxu0 0.0
        %1771 = vmatprep.subr.mxu0 0.0
        %1772 = vmatpush1.xpose.msra.mxu0 0.0
        %1773 = vmatprep.subr.mxu0 0.0
        %1774 = vmatpush1.xpose.msra.mxu0 0.0
        %1775 = vmatprep.subr.mxu0 0.0
        %1776 = vmatpush1.xpose.msra.mxu0 0.0
        %1777 = vmatprep.subr.mxu0 0.0
        %1778 = vmatpush1.xpose.msra.mxu0 0.0
        %1779 = vmatprep.subr.mxu0 0.0
        %1780 = vmatpush1.xpose.msra.mxu0 0.0
        %1781 = vmatprep.subr.mxu0 0.0
        %1782 = vmatpush1.xpose.msra.mxu0 0.0
        %1783 = vmatprep.subr.mxu0 0.0
        %1784 = vmatpush1.xpose.msra.mxu0 0.0
        %1785 = vmatprep.subr.mxu0 0.0
        %1786 = vmatpush1.xpose.msra.mxu0 0.0
        %1787 = vmatprep.subr.mxu0 0.0
        %1788 = vmatpush1.xpose.msra.mxu0 0.0
        %1789 = vmatprep.subr.mxu0 0.0
        %1790 = vmatpush1.xpose.msra.mxu0 0.0
        %1791 = vmatprep.subr.mxu0 0.0
        %1792 = vmatpush1.xpose.msra.mxu0 0.0
        %1793 = vmatprep.subr.mxu0 0.0
        %1794 = vmatpush1.xpose.msra.mxu0 0.0
        %1795 = vmatprep.subr.mxu0 0.0
        %1796 = vmatpush1.xpose.msra.mxu0 0.0
        %1797 = vmatprep.subr.mxu0 0.0
        %1798 = vmatpush1.xpose.msra.mxu0 0.0
        %1799 = vmatprep.subr.mxu0 0.0
        %1800 = vmatpush1.xpose.msra.mxu0 0.0
        %1801 = vmatprep.subr.mxu0 0.0
        %1802 = vmatpush1.xpose.msra.mxu0 0.0
        %1803 = vmatprep.subr.mxu0 0.0
        %1804 = vmatpush1.xpose.msra.mxu0 0.0
        %1805 = vmatprep.subr.mxu0 0.0
        %1806 = vmatpush1.xpose.msra.mxu0 0.0
        %1807 = vmatprep.subr.mxu0 0.0
        %1808 = vmatpush1.xpose.msra.mxu0 0.0
        %1809 = vmatprep.subr.mxu0 0.0
        %1810 = vmatpush1.xpose.msra.mxu0 0.0
        %1811 = vmatprep.subr.mxu0 0.0
        %1812 = vmatpush1.xpose.msra.mxu0 0.0
        %1813 = vmatprep.subr.mxu0 0.0
        %1814 = vmatpush1.xpose.msra.mxu0 0.0
        %1815 = vmatprep.subr.mxu0 0.0
        %1816 = vmatpush1.xpose.msra.mxu0 0.0
        %1817 = vmatprep.subr.mxu0 0.0
        %1818 = vmatpush1.xpose.msra.mxu0 0.0
        %1819 = vmatprep.subr.mxu0 0.0
        %1820 = vmatpush1.xpose.msra.mxu0 0.0
        %1821 = vmatprep.subr.mxu0 0.0
        %1822 = vmatpush1.xpose.msra.mxu0 0.0
        %1823 = vmatprep.subr.mxu0 0.0
        %1824 = vmatpush1.xpose.msra.mxu0 0.0
        %1825 = vmatprep.mubr.f32.mxu0 0.0
        %1826 = vmatmul.mubr.f32.gmra.mrb[0].mxu0 %v1753
        %v1827 = vpop.f32.mrb[0].mxu0
        %v1828 = vadd.f32 %v1739, %v1827
        %v1829 = vpop.f32.mrb[0].mxu0
        %1830 = vmatprep.mubr.f32.mxu0 0.0
        %1831 = vmatmul.mubr.f32.gmra.mrb[0].mxu0 %v1755
        %v1832 = vpop.f32.mrb[0].mxu0
        %v1833 = vadd.f32 %v1744, %v1832
        %v1834 = vpop.f32.mrb[0].mxu0
        %1835 = vdwg.mxu0
        %v1836 = vmul.f32 %v1828, 0.03125
        %v1837 = vmul.f32 %v1833, 0.03125
        %v1838 = vsel %vm1117, %v1650, -inf
        %1839 = vmax.xlane.f32.xlu0 %v1838
        %v1840 = vpop.xlane.xlu0 %1839
        %v1841 = vsel %vm1117, %v1651, -inf
        %1842 = vmax.xlane.f32.xlu0 %v1841
        %v1843 = vpop.xlane.xlu0 %1842
        %v1844 = vsub.f32 %v1650, %v1840
        %v1845 = vsub.f32 %v1651, %v1843
        %v1846 = vmul.f32 %v1844, 1.442695
        %v1847 = vpow.pop %v1846
        %v1848 = vmul.f32 %v1845, 1.442695
        %v1849 = vpow.pop %v1848
        %v1850 = vsel %vm1117, %v1847, 0.0
        %1851 = vadd.xlane.f32.xlu0 %v1850
        %v1852 = vpop.xlane.xlu0 %1851
        %v1853 = vsel %vm1117, %v1849, 0.0
        %1854 = vadd.xlane.f32.xlu0 %v1853
        %v1855 = vpop.xlane.xlu0 %1854
        %v1856 = vrcp.pop %v1852
        %v1857 = vrcp.pop %v1855
        %v1858 = vmul.f32 %v1847, %v1856
        %v1859 = vmul.f32 %v1849, %v1857
        %v1860 = vmul.f32 %v1858, %v1858
        %v1861 = vmul.f32 %v1859, %v1859
        %v1862 = vmul.f32 %v1860, %v1836
        %v1863 = vmul.f32 %v1861, %v1837
        %v1864 = vsel %vm1117, %v1862, 0.0
        %1865 = vadd.xlane.f32.xlu0 %v1864
        %v1866 = vpop.xlane.xlu0 %1865
        %v1867 = vsel %vm1117, %v1863, 0.0
        %1868 = vadd.xlane.f32.xlu0 %v1867
        %v1869 = vpop.xlane.xlu0 %1868
        %v1870 = vmul.f32 %v1858, 2.0
        %v1871 = vmul.f32 %v1859, 2.0
        %v1872 = vsub.f32 1.0, %v1870
        %v1873 = vsub.f32 1.0, %v1871
        %v1874 = vmul.f32 %v1872, %v1836
        %v1875 = vmul.f32 %v1873, %v1837
        %v1876 = vadd.f32 %v1866, %v1874
        %v1877 = vadd.f32 %v1869, %v1875
        %v1878 = vmul.f32 %v1860, %v1876
        %v1879 = vmul.f32 %v1861, %v1877
        %1880 = vrot.lane.b32.xlu0 %v1389, 64
        %v1881 = vpop.permute.xlu0 %1880
        %1882 = vrot.lane.b32.xlu0 %v1394, 64
        %v1883 = vpop.permute.xlu0 %1882
        %v1887 = vsel %vm1117, %v1858, 0
        %v1890 = vsel %vm1117, %v1859, 0
        %1892 = vmatprep.subr.mxu0 0.0
        %1893 = vmatpush1.msra.mxu0 %v1881
        %1894 = vmatprep.subr.mxu0 0.0
        %1895 = vmatpush1.msra.mxu0 %v1883
        %1896 = vmatprep.subr.mxu0 0.0
        %1897 = vmatpush1.msra.mxu0 0.0
        %1898 = vmatprep.subr.mxu0 0.0
        %1899 = vmatpush1.msra.mxu0 0.0
        %1900 = vmatprep.subr.mxu0 0.0
        %1901 = vmatpush1.msra.mxu0 0.0
        %1902 = vmatprep.subr.mxu0 0.0
        %1903 = vmatpush1.msra.mxu0 0.0
        %1904 = vmatprep.subr.mxu0 0.0
        %1905 = vmatpush1.msra.mxu0 0.0
        %1906 = vmatprep.subr.mxu0 0.0
        %1907 = vmatpush1.msra.mxu0 0.0
        %1908 = vmatprep.subr.mxu0 0.0
        %1909 = vmatpush1.msra.mxu0 0.0
        %1910 = vmatprep.subr.mxu0 0.0
        %1911 = vmatpush1.msra.mxu0 0.0
        %1912 = vmatprep.subr.mxu0 0.0
        %1913 = vmatpush1.msra.mxu0 0.0
        %1914 = vmatprep.subr.mxu0 0.0
        %1915 = vmatpush1.msra.mxu0 0.0
        %1916 = vmatprep.subr.mxu0 0.0
        %1917 = vmatpush1.msra.mxu0 0.0
        %1918 = vmatprep.subr.mxu0 0.0
        %1919 = vmatpush1.msra.mxu0 0.0
        %1920 = vmatprep.subr.mxu0 0.0
        %1921 = vmatpush1.msra.mxu0 0.0
        %1922 = vmatprep.subr.mxu0 0.0
        %1923 = vmatpush1.msra.mxu0 0.0
        %1924 = vmatprep.subr.mxu0 0.0
        %1925 = vmatpush1.msra.mxu0 0.0
        %1926 = vmatprep.subr.mxu0 0.0
        %1927 = vmatpush1.msra.mxu0 0.0
        %1928 = vmatprep.subr.mxu0 0.0
        %1929 = vmatpush1.msra.mxu0 0.0
        %1930 = vmatprep.subr.mxu0 0.0
        %1931 = vmatpush1.msra.mxu0 0.0
        %1932 = vmatprep.subr.mxu0 0.0
        %1933 = vmatpush1.msra.mxu0 0.0
        %1934 = vmatprep.subr.mxu0 0.0
        %1935 = vmatpush1.msra.mxu0 0.0
        %1936 = vmatprep.subr.mxu0 0.0
        %1937 = vmatpush1.msra.mxu0 0.0
        %1938 = vmatprep.subr.mxu0 0.0
        %1939 = vmatpush1.msra.mxu0 0.0
        %1940 = vmatprep.subr.mxu0 0.0
        %1941 = vmatpush1.msra.mxu0 0.0
        %1942 = vmatprep.subr.mxu0 0.0
        %1943 = vmatpush1.msra.mxu0 0.0
        %1944 = vmatprep.subr.mxu0 0.0
        %1945 = vmatpush1.msra.mxu0 0.0
        %1946 = vmatprep.subr.mxu0 0.0
        %1947 = vmatpush1.msra.mxu0 0.0
        %1948 = vmatprep.subr.mxu0 0.0
        %1949 = vmatpush1.msra.mxu0 0.0
        %1950 = vmatprep.subr.mxu0 0.0
        %1951 = vmatpush1.msra.mxu0 0.0
        %1952 = vmatprep.subr.mxu0 0.0
        %1953 = vmatpush1.msra.mxu0 0.0
        %1954 = vmatprep.subr.mxu0 0.0
        %1955 = vmatpush1.msra.mxu0 0.0
        %1956 = vmatprep.mubr.f32.mxu0 0.0
        %1957 = vmatmul.mubr.f32.gmra.mrb[0].mxu0 %v1887
        %v1958 = vpop.f32.mrb[0].mxu0
        %v1959 = vadd.f32 0.0, %v1958
        %v1960 = vpop.f32.mrb[0].mxu0
        %1961 = vmatprep.mubr.f32.mxu0 0.0
        %1962 = vmatmul.mubr.f32.gmra.mrb[0].mxu0 %v1890
        %v1963 = vpop.f32.mrb[0].mxu0
        %v1964 = vadd.f32 0.0, %v1963
        %v1965 = vpop.f32.mrb[0].mxu0
        %1966 = vdwg.mxu0
        %1967 = vrot.lane.b32.xlu0 %v1553, 64
        %v1968 = vpop.permute.xlu0 %1967
        %1969 = vrot.lane.b32.xlu0 %v1558, 64
        %v1970 = vpop.permute.xlu0 %1969
        %v1974 = vsel %vm1117, %v1860, 0
        %v1977 = vsel %vm1117, %v1861, 0
        %1979 = vmatprep.subr.mxu0 0.0
        %1980 = vmatpush1.msra.mxu0 %v1968
        %1981 = vmatprep.subr.mxu0 0.0
        %1982 = vmatpush1.msra.mxu0 %v1970
        %1983 = vmatprep.subr.mxu0 0.0
        %1984 = vmatpush1.msra.mxu0 0.0
        %1985 = vmatprep.subr.mxu0 0.0
        %1986 = vmatpush1.msra.mxu0 0.0
        %1987 = vmatprep.subr.mxu0 0.0
        %1988 = vmatpush1.msra.mxu0 0.0
        %1989 = vmatprep.subr.mxu0 0.0
        %1990 = vmatpush1.msra.mxu0 0.0
        %1991 = vmatprep.subr.mxu0 0.0
        %1992 = vmatpush1.msra.mxu0 0.0
        %1993 = vmatprep.subr.mxu0 0.0
        %1994 = vmatpush1.msra.mxu0 0.0
        %1995 = vmatprep.subr.mxu0 0.0
        %1996 = vmatpush1.msra.mxu0 0.0
        %1997 = vmatprep.subr.mxu0 0.0
        %1998 = vmatpush1.msra.mxu0 0.0
        %1999 = vmatprep.subr.mxu0 0.0
        %2000 = vmatpush1.msra.mxu0 0.0
        %2001 = vmatprep.subr.mxu0 0.0
        %2002 = vmatpush1.msra.mxu0 0.0
        %2003 = vmatprep.subr.mxu0 0.0
        %2004 = vmatpush1.msra.mxu0 0.0
        %2005 = vmatprep.subr.mxu0 0.0
        %2006 = vmatpush1.msra.mxu0 0.0
        %2007 = vmatprep.subr.mxu0 0.0
        %2008 = vmatpush1.msra.mxu0 0.0
        %2009 = vmatprep.subr.mxu0 0.0
        %2010 = vmatpush1.msra.mxu0 0.0
        %2011 = vmatprep.subr.mxu0 0.0
        %2012 = vmatpush1.msra.mxu0 0.0
        %2013 = vmatprep.subr.mxu0 0.0
        %2014 = vmatpush1.msra.mxu0 0.0
        %2015 = vmatprep.subr.mxu0 0.0
        %2016 = vmatpush1.msra.mxu0 0.0
        %2017 = vmatprep.subr.mxu0 0.0
        %2018 = vmatpush1.msra.mxu0 0.0
        %2019 = vmatprep.subr.mxu0 0.0
        %2020 = vmatpush1.msra.mxu0 0.0
        %2021 = vmatprep.subr.mxu0 0.0
        %2022 = vmatpush1.msra.mxu0 0.0
        %2023 = vmatprep.subr.mxu0 0.0
        %2024 = vmatpush1.msra.mxu0 0.0
        %2025 = vmatprep.subr.mxu0 0.0
        %2026 = vmatpush1.msra.mxu0 0.0
        %2027 = vmatprep.subr.mxu0 0.0
        %2028 = vmatpush1.msra.mxu0 0.0
        %2029 = vmatprep.subr.mxu0 0.0
        %2030 = vmatpush1.msra.mxu0 0.0
        %2031 = vmatprep.subr.mxu0 0.0
        %2032 = vmatpush1.msra.mxu0 0.0
        %2033 = vmatprep.subr.mxu0 0.0
        %2034 = vmatpush1.msra.mxu0 0.0
        %2035 = vmatprep.subr.mxu0 0.0
        %2036 = vmatpush1.msra.mxu0 0.0
        %2037 = vmatprep.subr.mxu0 0.0
        %2038 = vmatpush1.msra.mxu0 0.0
        %2039 = vmatprep.subr.mxu0 0.0
        %2040 = vmatpush1.msra.mxu0 0.0
        %2041 = vmatprep.subr.mxu0 0.0
        %2042 = vmatpush1.msra.mxu0 0.0
        %2043 = vmatprep.mubr.f32.mxu0 0.0
        %2044 = vmatmul.mubr.f32.gmra.mrb[0].mxu0 %v1974
        %v2045 = vpop.f32.mrb[0].mxu0
        %v2046 = vadd.f32 0.0, %v2045
        %v2047 = vpop.f32.mrb[0].mxu0
        %2048 = vmatprep.mubr.f32.mxu0 0.0
        %2049 = vmatmul.mubr.f32.gmra.mrb[0].mxu0 %v1977
        %v2050 = vpop.f32.mrb[0].mxu0
        %v2051 = vadd.f32 0.0, %v2050
        %v2052 = vpop.f32.mrb[0].mxu0
        %2053 = vdwg.mxu0
        %2054 = vrot.lane.b32.xlu0 %v1654, 64
        %v2055 = vpop.permute.xlu0 %2054
        %2056 = vrot.lane.b32.xlu0 %v1655, 64
        %v2057 = vpop.permute.xlu0 %2056
        %v2061 = vsel %vm1117, %v1878, 0
        %v2064 = vsel %vm1117, %v1879, 0
        %2066 = vmatprep.subr.mxu0 0.0
        %2067 = vmatpush1.msra.mxu0 %v2055
        %2068 = vmatprep.subr.mxu0 0.0
        %2069 = vmatpush1.msra.mxu0 %v2057
        %2070 = vmatprep.subr.mxu0 0.0
        %2071 = vmatpush1.msra.mxu0 0.0
        %2072 = vmatprep.subr.mxu0 0.0
        %2073 = vmatpush1.msra.mxu0 0.0
        %2074 = vmatprep.subr.mxu0 0.0
        %2075 = vmatpush1.msra.mxu0 0.0
        %2076 = vmatprep.subr.mxu0 0.0
        %2077 = vmatpush1.msra.mxu0 0.0
        %2078 = vmatprep.subr.mxu0 0.0
        %2079 = vmatpush1.msra.mxu0 0.0
        %2080 = vmatprep.subr.mxu0 0.0
        %2081 = vmatpush1.msra.mxu0 0.0
        %2082 = vmatprep.subr.mxu0 0.0
        %2083 = vmatpush1.msra.mxu0 0.0
        %2084 = vmatprep.subr.mxu0 0.0
        %2085 = vmatpush1.msra.mxu0 0.0
        %2086 = vmatprep.subr.mxu0 0.0
        %2087 = vmatpush1.msra.mxu0 0.0
        %2088 = vmatprep.subr.mxu0 0.0
        %2089 = vmatpush1.msra.mxu0 0.0
        %2090 = vmatprep.subr.mxu0 0.0
        %2091 = vmatpush1.msra.mxu0 0.0
        %2092 = vmatprep.subr.mxu0 0.0
        %2093 = vmatpush1.msra.mxu0 0.0
        %2094 = vmatprep.subr.mxu0 0.0
        %2095 = vmatpush1.msra.mxu0 0.0
        %2096 = vmatprep.subr.mxu0 0.0
        %2097 = vmatpush1.msra.mxu0 0.0
        %2098 = vmatprep.subr.mxu0 0.0
        %2099 = vmatpush1.msra.mxu0 0.0
        %2100 = vmatprep.subr.mxu0 0.0
        %2101 = vmatpush1.msra.mxu0 0.0
        %2102 = vmatprep.subr.mxu0 0.0
        %2103 = vmatpush1.msra.mxu0 0.0
        %2104 = vmatprep.subr.mxu0 0.0
        %2105 = vmatpush1.msra.mxu0 0.0
        %2106 = vmatprep.subr.mxu0 0.0
        %2107 = vmatpush1.msra.mxu0 0.0
        %2108 = vmatprep.subr.mxu0 0.0
        %2109 = vmatpush1.msra.mxu0 0.0
        %2110 = vmatprep.subr.mxu0 0.0
        %2111 = vmatpush1.msra.mxu0 0.0
        %2112 = vmatprep.subr.mxu0 0.0
        %2113 = vmatpush1.msra.mxu0 0.0
        %2114 = vmatprep.subr.mxu0 0.0
        %2115 = vmatpush1.msra.mxu0 0.0
        %2116 = vmatprep.subr.mxu0 0.0
        %2117 = vmatpush1.msra.mxu0 0.0
        %2118 = vmatprep.subr.mxu0 0.0
        %2119 = vmatpush1.msra.mxu0 0.0
        %2120 = vmatprep.subr.mxu0 0.0
        %2121 = vmatpush1.msra.mxu0 0.0
        %2122 = vmatprep.subr.mxu0 0.0
        %2123 = vmatpush1.msra.mxu0 0.0
        %2124 = vmatprep.subr.mxu0 0.0
        %2125 = vmatpush1.msra.mxu0 0.0
        %2126 = vmatprep.subr.mxu0 0.0
        %2127 = vmatpush1.msra.mxu0 0.0
        %2128 = vmatprep.subr.mxu0 0.0
        %2129 = vmatpush1.msra.mxu0 0.0
        %2130 = vmatprep.mubr.f32.mxu0 0.0
        %2131 = vmatmul.mubr.f32.gmra.mrb[0].mxu0 %v2061
        %v2132 = vpop.f32.mrb[0].mxu0
        %v2133 = vadd.f32 %v2046, %v2132
        %v2134 = vpop.f32.mrb[0].mxu0
        %2135 = vmatprep.mubr.f32.mxu0 0.0
        %2136 = vmatmul.mubr.f32.gmra.mrb[0].mxu0 %v2064
        %v2137 = vpop.f32.mrb[0].mxu0
        %v2138 = vadd.f32 %v2051, %v2137
        %v2139 = vpop.f32.mrb[0].mxu0
        %2140 = vdwg.mxu0
        %2141 = vst.msk [vmem:[#allocation2] sm:$0xff] %vm1117, %v1959
        %2142 = vst.msk [vmem:[#allocation2 + $0x8] sm:$0xff] %vm1117, %v1964
        %2143 = vst.msk [vmem:[#allocation3] sm:$0xff] %vm1117, %v2133
        %2144 = vst.msk [vmem:[#allocation3 + $0x8] sm:$0xff] %vm1117, %v2138
        %2145 = vrot.lane.b32.xlu0 %v1389, 112
        %v2146 = vpop.permute.xlu0 %2145
        %2147 = vrot.lane.b32.xlu0 %v1394, 112
        %v2148 = vpop.permute.xlu0 %2147
        %2149 = vrot.lane.b32.xlu0 %v1389, 80
        %v2150 = vpop.permute.xlu0 %2149
        %2151 = vrot.lane.b32.xlu0 %v1394, 80
        %v2152 = vpop.permute.xlu0 %2151
        %v2153 = vsel %vm1117, %v2146, 0
        %v2155 = vsel %vm1117, %v2148, 0
        %v2157 = vsel %vm1117, %v2150, 0
        %v2159 = vsel %vm1117, %v2152, 0
        %2161 = vmatprep.subr.mxu0 0.0
        %2162 = vmatpush1.xpose.msra.mxu0 %v2157
        %2163 = vmatprep.subr.mxu0 0.0
        %2164 = vmatpush1.xpose.msra.mxu0 %v2159
        %2165 = vmatprep.subr.mxu0 0.0
        %2166 = vmatpush1.xpose.msra.mxu0 0.0
        %2167 = vmatprep.subr.mxu0 0.0
        %2168 = vmatpush1.xpose.msra.mxu0 0.0
        %2169 = vmatprep.subr.mxu0 0.0
        %2170 = vmatpush1.xpose.msra.mxu0 0.0
        %2171 = vmatprep.subr.mxu0 0.0
        %2172 = vmatpush1.xpose.msra.mxu0 0.0
        %2173 = vmatprep.subr.mxu0 0.0
        %2174 = vmatpush1.xpose.msra.mxu0 0.0
        %2175 = vmatprep.subr.mxu0 0.0
        %2176 = vmatpush1.xpose.msra.mxu0 0.0
        %2177 = vmatprep.subr.mxu0 0.0
        %2178 = vmatpush1.xpose.msra.mxu0 0.0
        %2179 = vmatprep.subr.mxu0 0.0
        %2180 = vmatpush1.xpose.msra.mxu0 0.0
        %2181 = vmatprep.subr.mxu0 0.0
        %2182 = vmatpush1.xpose.msra.mxu0 0.0
        %2183 = vmatprep.subr.mxu0 0.0
        %2184 = vmatpush1.xpose.msra.mxu0 0.0
        %2185 = vmatprep.subr.mxu0 0.0
        %2186 = vmatpush1.xpose.msra.mxu0 0.0
        %2187 = vmatprep.subr.mxu0 0.0
        %2188 = vmatpush1.xpose.msra.mxu0 0.0
        %2189 = vmatprep.subr.mxu0 0.0
        %2190 = vmatpush1.xpose.msra.mxu0 0.0
        %2191 = vmatprep.subr.mxu0 0.0
        %2192 = vmatpush1.xpose.msra.mxu0 0.0
        %2193 = vmatprep.subr.mxu0 0.0
        %2194 = vmatpush1.xpose.msra.mxu0 0.0
        %2195 = vmatprep.subr.mxu0 0.0
        %2196 = vmatpush1.xpose.msra.mxu0 0.0
        %2197 = vmatprep.subr.mxu0 0.0
        %2198 = vmatpush1.xpose.msra.mxu0 0.0
        %2199 = vmatprep.subr.mxu0 0.0
        %2200 = vmatpush1.xpose.msra.mxu0 0.0
        %2201 = vmatprep.subr.mxu0 0.0
        %2202 = vmatpush1.xpose.msra.mxu0 0.0
        %2203 = vmatprep.subr.mxu0 0.0
        %2204 = vmatpush1.xpose.msra.mxu0 0.0
        %2205 = vmatprep.subr.mxu0 0.0
        %2206 = vmatpush1.xpose.msra.mxu0 0.0
        %2207 = vmatprep.subr.mxu0 0.0
        %2208 = vmatpush1.xpose.msra.mxu0 0.0
        %2209 = vmatprep.subr.mxu0 0.0
        %2210 = vmatpush1.xpose.msra.mxu0 0.0
        %2211 = vmatprep.subr.mxu0 0.0
        %2212 = vmatpush1.xpose.msra.mxu0 0.0
        %2213 = vmatprep.subr.mxu0 0.0
        %2214 = vmatpush1.xpose.msra.mxu0 0.0
        %2215 = vmatprep.subr.mxu0 0.0
        %2216 = vmatpush1.xpose.msra.mxu0 0.0
        %2217 = vmatprep.subr.mxu0 0.0
        %2218 = vmatpush1.xpose.msra.mxu0 0.0
        %2219 = vmatprep.subr.mxu0 0.0
        %2220 = vmatpush1.xpose.msra.mxu0 0.0
        %2221 = vmatprep.subr.mxu0 0.0
        %2222 = vmatpush1.xpose.msra.mxu0 0.0
        %2223 = vmatprep.subr.mxu0 0.0
        %2224 = vmatpush1.xpose.msra.mxu0 0.0
        %2225 = vmatprep.mubr.f32.mxu0 0.0
        %2226 = vmatmul.mubr.f32.gmra.mrb[0].mxu0 %v2153
        %v2227 = vpop.f32.mrb[0].mxu0
        %v2228 = vadd.f32 0.0, %v2227
        %v2229 = vpop.f32.mrb[0].mxu0
        %2230 = vmatprep.mubr.f32.mxu0 0.0
        %2231 = vmatmul.mubr.f32.gmra.mrb[0].mxu0 %v2155
        %v2232 = vpop.f32.mrb[0].mxu0
        %v2233 = vadd.f32 0.0, %v2232
        %v2234 = vpop.f32.mrb[0].mxu0
        %2235 = vdwg.mxu0
        %v2236 = vmul.f32 %v2228, 0.17677669
        %v2237 = vmul.f32 %v2233, 0.17677669
        %2238 = vrot.lane.b32.xlu0 %v1652, 112
        %v2239 = vpop.permute.xlu0 %2238
        %2240 = vrot.lane.b32.xlu0 %v1653, 112
        %v2241 = vpop.permute.xlu0 %2240
        %2242 = vrot.lane.b32.xlu0 %v1553, 80
        %v2243 = vpop.permute.xlu0 %2242
        %2244 = vrot.lane.b32.xlu0 %v1558, 80
        %v2245 = vpop.permute.xlu0 %2244
        %v2246 = vsel %vm1117, %v2239, 0
        %v2248 = vsel %vm1117, %v2241, 0
        %v2250 = vsel %vm1117, %v2243, 0
        %v2252 = vsel %vm1117, %v2245, 0
        %2254 = vmatprep.subr.mxu0 0.0
        %2255 = vmatpush1.xpose.msra.mxu0 %v2250
        %2256 = vmatprep.subr.mxu0 0.0
        %2257 = vmatpush1.xpose.msra.mxu0 %v2252
        %2258 = vmatprep.subr.mxu0 0.0
        %2259 = vmatpush1.xpose.msra.mxu0 0.0
        %2260 = vmatprep.subr.mxu0 0.0
        %2261 = vmatpush1.xpose.msra.mxu0 0.0
        %2262 = vmatprep.subr.mxu0 0.0
        %2263 = vmatpush1.xpose.msra.mxu0 0.0
        %2264 = vmatprep.subr.mxu0 0.0
        %2265 = vmatpush1.xpose.msra.mxu0 0.0
        %2266 = vmatprep.subr.mxu0 0.0
        %2267 = vmatpush1.xpose.msra.mxu0 0.0
        %2268 = vmatprep.subr.mxu0 0.0
        %2269 = vmatpush1.xpose.msra.mxu0 0.0
        %2270 = vmatprep.subr.mxu0 0.0
        %2271 = vmatpush1.xpose.msra.mxu0 0.0
        %2272 = vmatprep.subr.mxu0 0.0
        %2273 = vmatpush1.xpose.msra.mxu0 0.0
        %2274 = vmatprep.subr.mxu0 0.0
        %2275 = vmatpush1.xpose.msra.mxu0 0.0
        %2276 = vmatprep.subr.mxu0 0.0
        %2277 = vmatpush1.xpose.msra.mxu0 0.0
        %2278 = vmatprep.subr.mxu0 0.0
        %2279 = vmatpush1.xpose.msra.mxu0 0.0
        %2280 = vmatprep.subr.mxu0 0.0
        %2281 = vmatpush1.xpose.msra.mxu0 0.0
        %2282 = vmatprep.subr.mxu0 0.0
        %2283 = vmatpush1.xpose.msra.mxu0 0.0
        %2284 = vmatprep.subr.mxu0 0.0
        %2285 = vmatpush1.xpose.msra.mxu0 0.0
        %2286 = vmatprep.subr.mxu0 0.0
        %2287 = vmatpush1.xpose.msra.mxu0 0.0
        %2288 = vmatprep.subr.mxu0 0.0
        %2289 = vmatpush1.xpose.msra.mxu0 0.0
        %2290 = vmatprep.subr.mxu0 0.0
        %2291 = vmatpush1.xpose.msra.mxu0 0.0
        %2292 = vmatprep.subr.mxu0 0.0
        %2293 = vmatpush1.xpose.msra.mxu0 0.0
        %2294 = vmatprep.subr.mxu0 0.0
        %2295 = vmatpush1.xpose.msra.mxu0 0.0
        %2296 = vmatprep.subr.mxu0 0.0
        %2297 = vmatpush1.xpose.msra.mxu0 0.0
        %2298 = vmatprep.subr.mxu0 0.0
        %2299 = vmatpush1.xpose.msra.mxu0 0.0
        %2300 = vmatprep.subr.mxu0 0.0
        %2301 = vmatpush1.xpose.msra.mxu0 0.0
        %2302 = vmatprep.subr.mxu0 0.0
        %2303 = vmatpush1.xpose.msra.mxu0 0.0
        %2304 = vmatprep.subr.mxu0 0.0
        %2305 = vmatpush1.xpose.msra.mxu0 0.0
        %2306 = vmatprep.subr.mxu0 0.0
        %2307 = vmatpush1.xpose.msra.mxu0 0.0
        %2308 = vmatprep.subr.mxu0 0.0
        %2309 = vmatpush1.xpose.msra.mxu0 0.0
        %2310 = vmatprep.subr.mxu0 0.0
        %2311 = vmatpush1.xpose.msra.mxu0 0.0
        %2312 = vmatprep.subr.mxu0 0.0
        %2313 = vmatpush1.xpose.msra.mxu0 0.0
        %2314 = vmatprep.subr.mxu0 0.0
        %2315 = vmatpush1.xpose.msra.mxu0 0.0
        %2316 = vmatprep.subr.mxu0 0.0
        %2317 = vmatpush1.xpose.msra.mxu0 0.0
        %2318 = vmatprep.mubr.f32.mxu0 0.0
        %2319 = vmatmul.mubr.f32.gmra.mrb[0].mxu0 %v2246
        %v2320 = vpop.f32.mrb[0].mxu0
        %v2321 = vadd.f32 0.0, %v2320
        %v2322 = vpop.f32.mrb[0].mxu0
        %2323 = vmatprep.mubr.f32.mxu0 0.0
        %2324 = vmatmul.mubr.f32.gmra.mrb[0].mxu0 %v2248
        %v2325 = vpop.f32.mrb[0].mxu0
        %v2326 = vadd.f32 0.0, %v2325
        %v2327 = vpop.f32.mrb[0].mxu0
        %2328 = vdwg.mxu0
        %2329 = vrot.lane.b32.xlu0 %v1553, 112
        %v2330 = vpop.permute.xlu0 %2329
        %2331 = vrot.lane.b32.xlu0 %v1558, 112
        %v2332 = vpop.permute.xlu0 %2331
        %2333 = vrot.lane.b32.xlu0 %v1654, 80
        %v2334 = vpop.permute.xlu0 %2333
        %2335 = vrot.lane.b32.xlu0 %v1655, 80
        %v2336 = vpop.permute.xlu0 %2335
        %v2337 = vsel %vm1117, %v2330, 0
        %v2339 = vsel %vm1117, %v2332, 0
        %v2341 = vsel %vm1117, %v2334, 0
        %v2343 = vsel %vm1117, %v2336, 0
        %2345 = vmatprep.subr.mxu0 0.0
        %2346 = vmatpush1.xpose.msra.mxu0 %v2341
        %2347 = vmatprep.subr.mxu0 0.0
        %2348 = vmatpush1.xpose.msra.mxu0 %v2343
        %2349 = vmatprep.subr.mxu0 0.0
        %2350 = vmatpush1.xpose.msra.mxu0 0.0
        %2351 = vmatprep.subr.mxu0 0.0
        %2352 = vmatpush1.xpose.msra.mxu0 0.0
        %2353 = vmatprep.subr.mxu0 0.0
        %2354 = vmatpush1.xpose.msra.mxu0 0.0
        %2355 = vmatprep.subr.mxu0 0.0
        %2356 = vmatpush1.xpose.msra.mxu0 0.0
        %2357 = vmatprep.subr.mxu0 0.0
        %2358 = vmatpush1.xpose.msra.mxu0 0.0
        %2359 = vmatprep.subr.mxu0 0.0
        %2360 = vmatpush1.xpose.msra.mxu0 0.0
        %2361 = vmatprep.subr.mxu0 0.0
        %2362 = vmatpush1.xpose.msra.mxu0 0.0
        %2363 = vmatprep.subr.mxu0 0.0
        %2364 = vmatpush1.xpose.msra.mxu0 0.0
        %2365 = vmatprep.subr.mxu0 0.0
        %2366 = vmatpush1.xpose.msra.mxu0 0.0
        %2367 = vmatprep.subr.mxu0 0.0
        %2368 = vmatpush1.xpose.msra.mxu0 0.0
        %2369 = vmatprep.subr.mxu0 0.0
        %2370 = vmatpush1.xpose.msra.mxu0 0.0
        %2371 = vmatprep.subr.mxu0 0.0
        %2372 = vmatpush1.xpose.msra.mxu0 0.0
        %2373 = vmatprep.subr.mxu0 0.0
        %2374 = vmatpush1.xpose.msra.mxu0 0.0
        %2375 = vmatprep.subr.mxu0 0.0
        %2376 = vmatpush1.xpose.msra.mxu0 0.0
        %2377 = vmatprep.subr.mxu0 0.0
        %2378 = vmatpush1.xpose.msra.mxu0 0.0
        %2379 = vmatprep.subr.mxu0 0.0
        %2380 = vmatpush1.xpose.msra.mxu0 0.0
        %2381 = vmatprep.subr.mxu0 0.0
        %2382 = vmatpush1.xpose.msra.mxu0 0.0
        %2383 = vmatprep.subr.mxu0 0.0
        %2384 = vmatpush1.xpose.msra.mxu0 0.0
        %2385 = vmatprep.subr.mxu0 0.0
        %2386 = vmatpush1.xpose.msra.mxu0 0.0
        %2387 = vmatprep.subr.mxu0 0.0
        %2388 = vmatpush1.xpose.msra.mxu0 0.0
        %2389 = vmatprep.subr.mxu0 0.0
        %2390 = vmatpush1.xpose.msra.mxu0 0.0
        %2391 = vmatprep.subr.mxu0 0.0
        %2392 = vmatpush1.xpose.msra.mxu0 0.0
        %2393 = vmatprep.subr.mxu0 0.0
        %2394 = vmatpush1.xpose.msra.mxu0 0.0
        %2395 = vmatprep.subr.mxu0 0.0
        %2396 = vmatpush1.xpose.msra.mxu0 0.0
        %2397 = vmatprep.subr.mxu0 0.0
        %2398 = vmatpush1.xpose.msra.mxu0 0.0
        %2399 = vmatprep.subr.mxu0 0.0
        %2400 = vmatpush1.xpose.msra.mxu0 0.0
        %2401 = vmatprep.subr.mxu0 0.0
        %2402 = vmatpush1.xpose.msra.mxu0 0.0
        %2403 = vmatprep.subr.mxu0 0.0
        %2404 = vmatpush1.xpose.msra.mxu0 0.0
        %2405 = vmatprep.subr.mxu0 0.0
        %2406 = vmatpush1.xpose.msra.mxu0 0.0
        %2407 = vmatprep.subr.mxu0 0.0
        %2408 = vmatpush1.xpose.msra.mxu0 0.0
        %2409 = vmatprep.mubr.f32.mxu0 0.0
        %2410 = vmatmul.mubr.f32.gmra.mrb[0].mxu0 %v2337
        %v2411 = vpop.f32.mrb[0].mxu0
        %v2412 = vadd.f32 %v2321, %v2411
        %v2413 = vpop.f32.mrb[0].mxu0
        %2414 = vmatprep.mubr.f32.mxu0 0.0
        %2415 = vmatmul.mubr.f32.gmra.mrb[0].mxu0 %v2339
        %v2416 = vpop.f32.mrb[0].mxu0
        %v2417 = vadd.f32 %v2326, %v2416
        %v2418 = vpop.f32.mrb[0].mxu0
        %2419 = vdwg.mxu0
        %v2420 = vmul.f32 %v2412, 0.03125
        %v2421 = vmul.f32 %v2417, 0.03125
        %v2422 = vsel %vm1117, %v2236, -inf
        %2423 = vmax.xlane.f32.xlu0 %v2422
        %v2424 = vpop.xlane.xlu0 %2423
        %v2425 = vsel %vm1117, %v2237, -inf
        %2426 = vmax.xlane.f32.xlu0 %v2425
        %v2427 = vpop.xlane.xlu0 %2426
        %v2428 = vsub.f32 %v2236, %v2424
        %v2429 = vsub.f32 %v2237, %v2427
        %v2430 = vmul.f32 %v2428, 1.442695
        %v2431 = vpow.pop %v2430
        %v2432 = vmul.f32 %v2429, 1.442695
        %v2433 = vpow.pop %v2432
        %v2434 = vsel %vm1117, %v2431, 0.0
        %2435 = vadd.xlane.f32.xlu0 %v2434
        %v2436 = vpop.xlane.xlu0 %2435
        %v2437 = vsel %vm1117, %v2433, 0.0
        %2438 = vadd.xlane.f32.xlu0 %v2437
        %v2439 = vpop.xlane.xlu0 %2438
        %v2440 = vrcp.pop %v2436
        %v2441 = vrcp.pop %v2439
        %v2442 = vmul.f32 %v2431, %v2440
        %v2443 = vmul.f32 %v2433, %v2441
        %v2444 = vmul.f32 %v2442, %v2442
        %v2445 = vmul.f32 %v2443, %v2443
        %v2446 = vmul.f32 %v2444, %v2420
        %v2447 = vmul.f32 %v2445, %v2421
        %v2448 = vsel %vm1117, %v2446, 0.0
        %2449 = vadd.xlane.f32.xlu0 %v2448
        %v2450 = vpop.xlane.xlu0 %2449
        %v2451 = vsel %vm1117, %v2447, 0.0
        %2452 = vadd.xlane.f32.xlu0 %v2451
        %v2453 = vpop.xlane.xlu0 %2452
        %v2454 = vmul.f32 %v2442, 2.0
        %v2455 = vmul.f32 %v2443, 2.0
        %v2456 = vsub.f32 1.0, %v2454
        %v2457 = vsub.f32 1.0, %v2455
        %v2458 = vmul.f32 %v2456, %v2420
        %v2459 = vmul.f32 %v2457, %v2421
        %v2460 = vadd.f32 %v2450, %v2458
        %v2461 = vadd.f32 %v2453, %v2459
        %v2462 = vmul.f32 %v2444, %v2460
        %v2463 = vmul.f32 %v2445, %v2461
        %2464 = vrot.lane.b32.xlu0 %v1389, 48
        %v2465 = vpop.permute.xlu0 %2464
        %2466 = vrot.lane.b32.xlu0 %v1394, 48
        %v2467 = vpop.permute.xlu0 %2466
        %v2471 = vsel %vm1117, %v2442, 0
        %v2474 = vsel %vm1117, %v2443, 0
        %2476 = vmatprep.subr.mxu0 0.0
        %2477 = vmatpush1.msra.mxu0 %v2465
        %2478 = vmatprep.subr.mxu0 0.0
        %2479 = vmatpush1.msra.mxu0 %v2467
        %2480 = vmatprep.subr.mxu0 0.0
        %2481 = vmatpush1.msra.mxu0 0.0
        %2482 = vmatprep.subr.mxu0 0.0
        %2483 = vmatpush1.msra.mxu0 0.0
        %2484 = vmatprep.subr.mxu0 0.0
        %2485 = vmatpush1.msra.mxu0 0.0
        %2486 = vmatprep.subr.mxu0 0.0
        %2487 = vmatpush1.msra.mxu0 0.0
        %2488 = vmatprep.subr.mxu0 0.0
        %2489 = vmatpush1.msra.mxu0 0.0
        %2490 = vmatprep.subr.mxu0 0.0
        %2491 = vmatpush1.msra.mxu0 0.0
        %2492 = vmatprep.subr.mxu0 0.0
        %2493 = vmatpush1.msra.mxu0 0.0
        %2494 = vmatprep.subr.mxu0 0.0
        %2495 = vmatpush1.msra.mxu0 0.0
        %2496 = vmatprep.subr.mxu0 0.0
        %2497 = vmatpush1.msra.mxu0 0.0
        %2498 = vmatprep.subr.mxu0 0.0
        %2499 = vmatpush1.msra.mxu0 0.0
        %2500 = vmatprep.subr.mxu0 0.0
        %2501 = vmatpush1.msra.mxu0 0.0
        %2502 = vmatprep.subr.mxu0 0.0
        %2503 = vmatpush1.msra.mxu0 0.0
        %2504 = vmatprep.subr.mxu0 0.0
        %2505 = vmatpush1.msra.mxu0 0.0
        %2506 = vmatprep.subr.mxu0 0.0
        %2507 = vmatpush1.msra.mxu0 0.0
        %2508 = vmatprep.subr.mxu0 0.0
        %2509 = vmatpush1.msra.mxu0 0.0
        %2510 = vmatprep.subr.mxu0 0.0
        %2511 = vmatpush1.msra.mxu0 0.0
        %2512 = vmatprep.subr.mxu0 0.0
        %2513 = vmatpush1.msra.mxu0 0.0
        %2514 = vmatprep.subr.mxu0 0.0
        %2515 = vmatpush1.msra.mxu0 0.0
        %2516 = vmatprep.subr.mxu0 0.0
        %2517 = vmatpush1.msra.mxu0 0.0
        %2518 = vmatprep.subr.mxu0 0.0
        %2519 = vmatpush1.msra.mxu0 0.0
        %2520 = vmatprep.subr.mxu0 0.0
        %2521 = vmatpush1.msra.mxu0 0.0
        %2522 = vmatprep.subr.mxu0 0.0
        %2523 = vmatpush1.msra.mxu0 0.0
        %2524 = vmatprep.subr.mxu0 0.0
        %2525 = vmatpush1.msra.mxu0 0.0
        %2526 = vmatprep.subr.mxu0 0.0
        %2527 = vmatpush1.msra.mxu0 0.0
        %2528 = vmatprep.subr.mxu0 0.0
        %2529 = vmatpush1.msra.mxu0 0.0
        %2530 = vmatprep.subr.mxu0 0.0
        %2531 = vmatpush1.msra.mxu0 0.0
        %2532 = vmatprep.subr.mxu0 0.0
        %2533 = vmatpush1.msra.mxu0 0.0
        %2534 = vmatprep.subr.mxu0 0.0
        %2535 = vmatpush1.msra.mxu0 0.0
        %2536 = vmatprep.subr.mxu0 0.0
        %2537 = vmatpush1.msra.mxu0 0.0
        %2538 = vmatprep.subr.mxu0 0.0
        %2539 = vmatpush1.msra.mxu0 0.0
        %2540 = vmatprep.mubr.f32.mxu0 0.0
        %2541 = vmatmul.mubr.f32.gmra.mrb[0].mxu0 %v2471
        %v2542 = vpop.f32.mrb[0].mxu0
        %v2543 = vadd.f32 0.0, %v2542
        %v2544 = vpop.f32.mrb[0].mxu0
        %2545 = vmatprep.mubr.f32.mxu0 0.0
        %2546 = vmatmul.mubr.f32.gmra.mrb[0].mxu0 %v2474
        %v2547 = vpop.f32.mrb[0].mxu0
        %v2548 = vadd.f32 0.0, %v2547
        %v2549 = vpop.f32.mrb[0].mxu0
        %2550 = vdwg.mxu0
        %2551 = vrot.lane.b32.xlu0 %v1553, 48
        %v2552 = vpop.permute.xlu0 %2551
        %2553 = vrot.lane.b32.xlu0 %v1558, 48
        %v2554 = vpop.permute.xlu0 %2553
        %v2558 = vsel %vm1117, %v2444, 0
        %v2561 = vsel %vm1117, %v2445, 0
        %2563 = vmatprep.subr.mxu0 0.0
        %2564 = vmatpush1.msra.mxu0 %v2552
        %2565 = vmatprep.subr.mxu0 0.0
        %2566 = vmatpush1.msra.mxu0 %v2554
        %2567 = vmatprep.subr.mxu0 0.0
        %2568 = vmatpush1.msra.mxu0 0.0
        %2569 = vmatprep.subr.mxu0 0.0
        %2570 = vmatpush1.msra.mxu0 0.0
        %2571 = vmatprep.subr.mxu0 0.0
        %2572 = vmatpush1.msra.mxu0 0.0
        %2573 = vmatprep.subr.mxu0 0.0
        %2574 = vmatpush1.msra.mxu0 0.0
        %2575 = vmatprep.subr.mxu0 0.0
        %2576 = vmatpush1.msra.mxu0 0.0
        %2577 = vmatprep.subr.mxu0 0.0
        %2578 = vmatpush1.msra.mxu0 0.0
        %2579 = vmatprep.subr.mxu0 0.0
        %2580 = vmatpush1.msra.mxu0 0.0
        %2581 = vmatprep.subr.mxu0 0.0
        %2582 = vmatpush1.msra.mxu0 0.0
        %2583 = vmatprep.subr.mxu0 0.0
        %2584 = vmatpush1.msra.mxu0 0.0
        %2585 = vmatprep.subr.mxu0 0.0
        %2586 = vmatpush1.msra.mxu0 0.0
        %2587 = vmatprep.subr.mxu0 0.0
        %2588 = vmatpush1.msra.mxu0 0.0
        %2589 = vmatprep.subr.mxu0 0.0
        %2590 = vmatpush1.msra.mxu0 0.0
        %2591 = vmatprep.subr.mxu0 0.0
        %2592 = vmatpush1.msra.mxu0 0.0
        %2593 = vmatprep.subr.mxu0 0.0
        %2594 = vmatpush1.msra.mxu0 0.0
        %2595 = vmatprep.subr.mxu0 0.0
        %2596 = vmatpush1.msra.mxu0 0.0
        %2597 = vmatprep.subr.mxu0 0.0
        %2598 = vmatpush1.msra.mxu0 0.0
        %2599 = vmatprep.subr.mxu0 0.0
        %2600 = vmatpush1.msra.mxu0 0.0
        %2601 = vmatprep.subr.mxu0 0.0
        %2602 = vmatpush1.msra.mxu0 0.0
        %2603 = vmatprep.subr.mxu0 0.0
        %2604 = vmatpush1.msra.mxu0 0.0
        %2605 = vmatprep.subr.mxu0 0.0
        %2606 = vmatpush1.msra.mxu0 0.0
        %2607 = vmatprep.subr.mxu0 0.0
        %2608 = vmatpush1.msra.mxu0 0.0
        %2609 = vmatprep.subr.mxu0 0.0
        %2610 = vmatpush1.msra.mxu0 0.0
        %2611 = vmatprep.subr.mxu0 0.0
        %2612 = vmatpush1.msra.mxu0 0.0
        %2613 = vmatprep.subr.mxu0 0.0
        %2614 = vmatpush1.msra.mxu0 0.0
        %2615 = vmatprep.subr.mxu0 0.0
        %2616 = vmatpush1.msra.mxu0 0.0
        %2617 = vmatprep.subr.mxu0 0.0
        %2618 = vmatpush1.msra.mxu0 0.0
        %2619 = vmatprep.subr.mxu0 0.0
        %2620 = vmatpush1.msra.mxu0 0.0
        %2621 = vmatprep.subr.mxu0 0.0
        %2622 = vmatpush1.msra.mxu0 0.0
        %2623 = vmatprep.subr.mxu0 0.0
        %2624 = vmatpush1.msra.mxu0 0.0
        %2625 = vmatprep.subr.mxu0 0.0
        %2626 = vmatpush1.msra.mxu0 0.0
        %2627 = vmatprep.mubr.f32.mxu0 0.0
        %2628 = vmatmul.mubr.f32.gmra.mrb[0].mxu0 %v2558
        %v2629 = vpop.f32.mrb[0].mxu0
        %v2630 = vadd.f32 0.0, %v2629
        %v2631 = vpop.f32.mrb[0].mxu0
        %2632 = vmatprep.mubr.f32.mxu0 0.0
        %2633 = vmatmul.mubr.f32.gmra.mrb[0].mxu0 %v2561
        %v2634 = vpop.f32.mrb[0].mxu0
        %v2635 = vadd.f32 0.0, %v2634
        %v2636 = vpop.f32.mrb[0].mxu0
        %2637 = vdwg.mxu0
        %2638 = vrot.lane.b32.xlu0 %v1654, 48
        %v2639 = vpop.permute.xlu0 %2638
        %2640 = vrot.lane.b32.xlu0 %v1655, 48
        %v2641 = vpop.permute.xlu0 %2640
        %v2645 = vsel %vm1117, %v2462, 0
        %v2648 = vsel %vm1117, %v2463, 0
        %2650 = vmatprep.subr.mxu0 0.0
        %2651 = vmatpush1.msra.mxu0 %v2639
        %2652 = vmatprep.subr.mxu0 0.0
        %2653 = vmatpush1.msra.mxu0 %v2641
        %2654 = vmatprep.subr.mxu0 0.0
        %2655 = vmatpush1.msra.mxu0 0.0
        %2656 = vmatprep.subr.mxu0 0.0
        %2657 = vmatpush1.msra.mxu0 0.0
        %2658 = vmatprep.subr.mxu0 0.0
        %2659 = vmatpush1.msra.mxu0 0.0
        %2660 = vmatprep.subr.mxu0 0.0
        %2661 = vmatpush1.msra.mxu0 0.0
        %2662 = vmatprep.subr.mxu0 0.0
        %2663 = vmatpush1.msra.mxu0 0.0
        %2664 = vmatprep.subr.mxu0 0.0
        %2665 = vmatpush1.msra.mxu0 0.0
        %2666 = vmatprep.subr.mxu0 0.0
        %2667 = vmatpush1.msra.mxu0 0.0
        %2668 = vmatprep.subr.mxu0 0.0
        %2669 = vmatpush1.msra.mxu0 0.0
        %2670 = vmatprep.subr.mxu0 0.0
        %2671 = vmatpush1.msra.mxu0 0.0
        %2672 = vmatprep.subr.mxu0 0.0
        %2673 = vmatpush1.msra.mxu0 0.0
        %2674 = vmatprep.subr.mxu0 0.0
        %2675 = vmatpush1.msra.mxu0 0.0
        %2676 = vmatprep.subr.mxu0 0.0
        %2677 = vmatpush1.msra.mxu0 0.0
        %2678 = vmatprep.subr.mxu0 0.0
        %2679 = vmatpush1.msra.mxu0 0.0
        %2680 = vmatprep.subr.mxu0 0.0
        %2681 = vmatpush1.msra.mxu0 0.0
        %2682 = vmatprep.subr.mxu0 0.0
        %2683 = vmatpush1.msra.mxu0 0.0
        %2684 = vmatprep.subr.mxu0 0.0
        %2685 = vmatpush1.msra.mxu0 0.0
        %2686 = vmatprep.subr.mxu0 0.0
        %2687 = vmatpush1.msra.mxu0 0.0
        %2688 = vmatprep.subr.mxu0 0.0
        %2689 = vmatpush1.msra.mxu0 0.0
        %2690 = vmatprep.subr.mxu0 0.0
        %2691 = vmatpush1.msra.mxu0 0.0
        %2692 = vmatprep.subr.mxu0 0.0
        %2693 = vmatpush1.msra.mxu0 0.0
        %2694 = vmatprep.subr.mxu0 0.0
        %2695 = vmatpush1.msra.mxu0 0.0
        %2696 = vmatprep.subr.mxu0 0.0
        %2697 = vmatpush1.msra.mxu0 0.0
        %2698 = vmatprep.subr.mxu0 0.0
        %2699 = vmatpush1.msra.mxu0 0.0
        %2700 = vmatprep.subr.mxu0 0.0
        %2701 = vmatpush1.msra.mxu0 0.0
        %2702 = vmatprep.subr.mxu0 0.0
        %2703 = vmatpush1.msra.mxu0 0.0
        %2704 = vmatprep.subr.mxu0 0.0
        %2705 = vmatpush1.msra.mxu0 0.0
        %2706 = vmatprep.subr.mxu0 0.0
        %2707 = vmatpush1.msra.mxu0 0.0
        %2708 = vmatprep.subr.mxu0 0.0
        %2709 = vmatpush1.msra.mxu0 0.0
        %2710 = vmatprep.subr.mxu0 0.0
        %2711 = vmatpush1.msra.mxu0 0.0
        %2712 = vmatprep.subr.mxu0 0.0
        %2713 = vmatpush1.msra.mxu0 0.0
        %2714 = vmatprep.mubr.f32.mxu0 0.0
        %2715 = vmatmul.mubr.f32.gmra.mrb[0].mxu0 %v2645
        %v2716 = vpop.f32.mrb[0].mxu0
        %v2717 = vadd.f32 %v2630, %v2716
        %v2718 = vpop.f32.mrb[0].mxu0
        %2719 = vmatprep.mubr.f32.mxu0 0.0
        %2720 = vmatmul.mubr.f32.gmra.mrb[0].mxu0 %v2648
        %v2721 = vpop.f32.mrb[0].mxu0
        %v2722 = vadd.f32 %v2635, %v2721
        %v2723 = vpop.f32.mrb[0].mxu0
        %2724 = vdwg.mxu0
        %2727 = vrot.lane.b32.xlu0 %v2543, 16
        %v2728 = vpop.permute.xlu0 %2727
        %2729 = vrot.lane.b32.xlu0 %v2548, 16
        %v2730 = vpop.permute.xlu0 %2729
        %vm2733 = vcmask 261248
        %2734 = vst.msk [vmem:[#allocation2] sm:$0xff] %vm2733, %v2728
        %2735 = vst.msk [vmem:[#allocation2 + $0x8] sm:$0xff] %vm2733, %v2730
        %2738 = vrot.lane.b32.xlu0 %v2717, 16
        %v2739 = vpop.permute.xlu0 %2738
        %2740 = vrot.lane.b32.xlu0 %v2722, 16
        %v2741 = vpop.permute.xlu0 %2740
        %2744 = vst.msk [vmem:[#allocation3] sm:$0xff] %vm2733, %v2739
        %2745 = vst.msk [vmem:[#allocation3 + $0x8] sm:$0xff] %vm2733, %v2741
        %v2746 = vld [vmem:[#allocation2] sm:$0xff]
        %v2747 = vld [vmem:[#allocation2 + $0x8] sm:$0xff]
        %v2748 = vld [vmem:[#allocation3] sm:$0xff]
        %v2749 = vld [vmem:[#allocation3 + $0x8] sm:$0xff]
        %v2750 = vadd.f32 %v1201, %v2746
        %v2751 = vadd.f32 %v1202, %v2747
        %v2752 = vadd.f32 %v1280, %v2748
        %v2753 = vadd.f32 %v1285, %v2749
        %v2754 = vsel %vm1315, %v2750, 0.0
        %2755 = vadd.xlane.f32.xlu0 %v2754
        %v2756 = vpop.xlane.xlu0 %2755
        %v2757 = vsel %vm1315, %v2751, 0.0
        %2758 = vadd.xlane.f32.xlu0 %v2757
        %v2759 = vpop.xlane.xlu0 %2758
        %v2760 = vrcp.pop 32.0
        %v2761 = vmul.f32 %v2756, %v2760
        %v2762 = vmul.f32 %v2759, %v2760
        %v2763 = vsub.f32 %v2750, %v2761
        %v2764 = vsub.f32 %v2751, %v2762
        %v2765 = vmul.f32 %v2763, %v2763
        %v2766 = vmul.f32 %v2764, %v2764
        %v2767 = vsel %vm1315, %v2765, 0.0
        %2768 = vadd.xlane.f32.xlu0 %v2767
        %v2769 = vpop.xlane.xlu0 %2768
        %v2770 = vsel %vm1315, %v2766, 0.0
        %2771 = vadd.xlane.f32.xlu0 %v2770
        %v2772 = vpop.xlane.xlu0 %2771
        %v2773 = vmul.f32 %v2769, %v2760
        %v2774 = vmul.f32 %v2772, %v2760
        %v2775 = vadd.f32 %v2773, 1e-05
        %v2776 = vadd.f32 %v2774, 1e-05
        %v2777 = vrsqrt.pop %v2775
        %v2778 = vrsqrt.pop %v2776
        %v2780 = vlaneseq
        %v2781 = vshrl.u32 %v2780, 7
        %v2782 = vsub.s32 0, %v2781
        %v2783 = vrot.slane %v1300, %v2782
        %v2785 = vmul.f32 %v2783, %v2763
        %v2786 = vmul.f32 %v2783, %v2764
        %v2787 = vmul.f32 %v2785, %v2777
        %v2788 = vmul.f32 %v2786, %v2778
        %v2790 = vlaneseq
        %v2791 = vshrl.u32 %v2790, 7
        %v2792 = vsub.s32 0, %v2791
        %v2793 = vrot.slane %v1301, %v2792
        %v2795 = vadd.f32 %v2787, %v2793
        %v2796 = vadd.f32 %v2788, %v2793
        %v2797 = vmul.f32 %v2783, %v2777
        %v2798 = vmul.f32 %v2783, %v2778
        %v2799 = vmul.f32 %v2797, %v2797
        %v2800 = vmul.f32 %v2798, %v2798
        %v2801 = vmul.f32 %v2799, %v2752
        %v2802 = vmul.f32 %v2800, %v2753
        %v2804 = vlaneseq
        %v2805 = vshrl.u32 %v2804, 7
        %v2806 = vsub.s32 0, %v2805
        %v2807 = vrot.slane %v1314, %v2806
        %v2810 = vsel %vm1315, %v2795, 0
        %v2813 = vsel %vm1315, %v2796, 0
        %2815 = vmatprep.subr.mxu0 0.0
        %2816 = vmatpush1.msra.mxu0 %v1302
        %2817 = vmatprep.subr.mxu0 0.0
        %2818 = vmatpush1.msra.mxu0 %v1303
        %2819 = vmatprep.subr.mxu0 0.0
        %2820 = vmatpush1.msra.mxu0 %v1304
        %2821 = vmatprep.subr.mxu0 0.0
        %2822 = vmatpush1.msra.mxu0 %v1305
        %2823 = vmatprep.subr.mxu0 0.0
        %2824 = vmatpush1.msra.mxu0 0.0
        %2825 = vmatprep.subr.mxu0 0.0
        %2826 = vmatpush1.msra.mxu0 0.0
        %2827 = vmatprep.subr.mxu0 0.0
        %2828 = vmatpush1.msra.mxu0 0.0
        %2829 = vmatprep.subr.mxu0 0.0
        %2830 = vmatpush1.msra.mxu0 0.0
        %2831 = vmatprep.subr.mxu0 0.0
        %2832 = vmatpush1.msra.mxu0 0.0
        %2833 = vmatprep.subr.mxu0 0.0
        %2834 = vmatpush1.msra.mxu0 0.0
        %2835 = vmatprep.subr.mxu0 0.0
        %2836 = vmatpush1.msra.mxu0 0.0
        %2837 = vmatprep.subr.mxu0 0.0
        %2838 = vmatpush1.msra.mxu0 0.0
        %2839 = vmatprep.subr.mxu0 0.0
        %2840 = vmatpush1.msra.mxu0 0.0
        %2841 = vmatprep.subr.mxu0 0.0
        %2842 = vmatpush1.msra.mxu0 0.0
        %2843 = vmatprep.subr.mxu0 0.0
        %2844 = vmatpush1.msra.mxu0 0.0
        %2845 = vmatprep.subr.mxu0 0.0
        %2846 = vmatpush1.msra.mxu0 0.0
        %2847 = vmatprep.subr.mxu0 0.0
        %2848 = vmatpush1.msra.mxu0 0.0
        %2849 = vmatprep.subr.mxu0 0.0
        %2850 = vmatpush1.msra.mxu0 0.0
        %2851 = vmatprep.subr.mxu0 0.0
        %2852 = vmatpush1.msra.mxu0 0.0
        %2853 = vmatprep.subr.mxu0 0.0
        %2854 = vmatpush1.msra.mxu0 0.0
        %2855 = vmatprep.subr.mxu0 0.0
        %2856 = vmatpush1.msra.mxu0 0.0
        %2857 = vmatprep.subr.mxu0 0.0
        %2858 = vmatpush1.msra.mxu0 0.0
        %2859 = vmatprep.subr.mxu0 0.0
        %2860 = vmatpush1.msra.mxu0 0.0
        %2861 = vmatprep.subr.mxu0 0.0
        %2862 = vmatpush1.msra.mxu0 0.0
        %2863 = vmatprep.subr.mxu0 0.0
        %2864 = vmatpush1.msra.mxu0 0.0
        %2865 = vmatprep.subr.mxu0 0.0
        %2866 = vmatpush1.msra.mxu0 0.0
        %2867 = vmatprep.subr.mxu0 0.0
        %2868 = vmatpush1.msra.mxu0 0.0
        %2869 = vmatprep.subr.mxu0 0.0
        %2870 = vmatpush1.msra.mxu0 0.0
        %2871 = vmatprep.subr.mxu0 0.0
        %2872 = vmatpush1.msra.mxu0 0.0
        %2873 = vmatprep.subr.mxu0 0.0
        %2874 = vmatpush1.msra.mxu0 0.0
        %2875 = vmatprep.subr.mxu0 0.0
        %2876 = vmatpush1.msra.mxu0 0.0
        %2877 = vmatprep.subr.mxu0 0.0
        %2878 = vmatpush1.msra.mxu0 0.0
        %2879 = vmatprep.mubr.f32.mxu0 0.0
        %2880 = vmatmul.mubr.f32.gmra.mrb[0].mxu0 %v2810
        %v2881 = vpop.f32.mrb[0].mxu0
        %v2882 = vadd.f32 %v2807, %v2881
        %v2883 = vpop.f32.mrb[0].mxu0
        %2884 = vmatprep.mubr.f32.mxu0 0.0
        %2885 = vmatmul.mubr.f32.gmra.mrb[0].mxu0 %v2813
        %v2886 = vpop.f32.mrb[0].mxu0
        %v2887 = vadd.f32 %v2807, %v2886
        %v2888 = vpop.f32.mrb[0].mxu0
        %2889 = vdwg.mxu0
        %v2890 = vmul.f32 %v2795, %v2795
        %v2891 = vmul.f32 %v2796, %v2796
        %v2893 = vsel %vm1315, %v2890, 0
        %v2896 = vsel %vm1315, %v2891, 0
        %2898 = vmatprep.subr.mxu0 0.0
        %2899 = vmatpush1.msra.mxu0 %v1310
        %2900 = vmatprep.subr.mxu0 0.0
        %2901 = vmatpush1.msra.mxu0 %v1311
        %2902 = vmatprep.subr.mxu0 0.0
        %2903 = vmatpush1.msra.mxu0 %v1312
        %2904 = vmatprep.subr.mxu0 0.0
        %2905 = vmatpush1.msra.mxu0 %v1313
        %2906 = vmatprep.subr.mxu0 0.0
        %2907 = vmatpush1.msra.mxu0 0.0
        %2908 = vmatprep.subr.mxu0 0.0
        %2909 = vmatpush1.msra.mxu0 0.0
        %2910 = vmatprep.subr.mxu0 0.0
        %2911 = vmatpush1.msra.mxu0 0.0
        %2912 = vmatprep.subr.mxu0 0.0
        %2913 = vmatpush1.msra.mxu0 0.0
        %2914 = vmatprep.subr.mxu0 0.0
        %2915 = vmatpush1.msra.mxu0 0.0
        %2916 = vmatprep.subr.mxu0 0.0
        %2917 = vmatpush1.msra.mxu0 0.0
        %2918 = vmatprep.subr.mxu0 0.0
        %2919 = vmatpush1.msra.mxu0 0.0
        %2920 = vmatprep.subr.mxu0 0.0
        %2921 = vmatpush1.msra.mxu0 0.0
        %2922 = vmatprep.subr.mxu0 0.0
        %2923 = vmatpush1.msra.mxu0 0.0
        %2924 = vmatprep.subr.mxu0 0.0
        %2925 = vmatpush1.msra.mxu0 0.0
        %2926 = vmatprep.subr.mxu0 0.0
        %2927 = vmatpush1.msra.mxu0 0.0
        %2928 = vmatprep.subr.mxu0 0.0
        %2929 = vmatpush1.msra.mxu0 0.0
        %2930 = vmatprep.subr.mxu0 0.0
        %2931 = vmatpush1.msra.mxu0 0.0
        %2932 = vmatprep.subr.mxu0 0.0
        %2933 = vmatpush1.msra.mxu0 0.0
        %2934 = vmatprep.subr.mxu0 0.0
        %2935 = vmatpush1.msra.mxu0 0.0
        %2936 = vmatprep.subr.mxu0 0.0
        %2937 = vmatpush1.msra.mxu0 0.0
        %2938 = vmatprep.subr.mxu0 0.0
        %2939 = vmatpush1.msra.mxu0 0.0
        %2940 = vmatprep.subr.mxu0 0.0
        %2941 = vmatpush1.msra.mxu0 0.0
        %2942 = vmatprep.subr.mxu0 0.0
        %2943 = vmatpush1.msra.mxu0 0.0
        %2944 = vmatprep.subr.mxu0 0.0
        %2945 = vmatpush1.msra.mxu0 0.0
        %2946 = vmatprep.subr.mxu0 0.0
        %2947 = vmatpush1.msra.mxu0 0.0
        %2948 = vmatprep.subr.mxu0 0.0
        %2949 = vmatpush1.msra.mxu0 0.0
        %2950 = vmatprep.subr.mxu0 0.0
        %2951 = vmatpush1.msra.mxu0 0.0
        %2952 = vmatprep.subr.mxu0 0.0
        %2953 = vmatpush1.msra.mxu0 0.0
        %2954 = vmatprep.subr.mxu0 0.0
        %2955 = vmatpush1.msra.mxu0 0.0
        %2956 = vmatprep.subr.mxu0 0.0
        %2957 = vmatpush1.msra.mxu0 0.0
        %2958 = vmatprep.subr.mxu0 0.0
        %2959 = vmatpush1.msra.mxu0 0.0
        %2960 = vmatprep.subr.mxu0 0.0
        %2961 = vmatpush1.msra.mxu0 0.0
        %2962 = vmatprep.mubr.f32.mxu0 0.0
        %2963 = vmatmul.mubr.f32.gmra.mrb[0].mxu0 %v2893
        %v2964 = vpop.f32.mrb[0].mxu0
        %v2965 = vadd.f32 0.0, %v2964
        %v2966 = vpop.f32.mrb[0].mxu0
        %2967 = vmatprep.mubr.f32.mxu0 0.0
        %2968 = vmatmul.mubr.f32.gmra.mrb[0].mxu0 %v2896
        %v2969 = vpop.f32.mrb[0].mxu0
        %v2970 = vadd.f32 0.0, %v2969
        %v2971 = vpop.f32.mrb[0].mxu0
        %2972 = vdwg.mxu0
        %v2974 = vsel %vm1315, %v2801, 0
        %v2977 = vsel %vm1315, %v2802, 0
        %2979 = vmatprep.subr.mxu0 0.0
        %2980 = vmatpush1.msra.mxu0 %v1306
        %2981 = vmatprep.subr.mxu0 0.0
        %2982 = vmatpush1.msra.mxu0 %v1307
        %2983 = vmatprep.subr.mxu0 0.0
        %2984 = vmatpush1.msra.mxu0 %v1308
        %2985 = vmatprep.subr.mxu0 0.0
        %2986 = vmatpush1.msra.mxu0 %v1309
        %2987 = vmatprep.subr.mxu0 0.0
        %2988 = vmatpush1.msra.mxu0 0.0
        %2989 = vmatprep.subr.mxu0 0.0
        %2990 = vmatpush1.msra.mxu0 0.0
        %2991 = vmatprep.subr.mxu0 0.0
        %2992 = vmatpush1.msra.mxu0 0.0
        %2993 = vmatprep.subr.mxu0 0.0
        %2994 = vmatpush1.msra.mxu0 0.0
        %2995 = vmatprep.subr.mxu0 0.0
        %2996 = vmatpush1.msra.mxu0 0.0
        %2997 = vmatprep.subr.mxu0 0.0
        %2998 = vmatpush1.msra.mxu0 0.0
        %2999 = vmatprep.subr.mxu0 0.0
        %3000 = vmatpush1.msra.mxu0 0.0
        %3001 = vmatprep.subr.mxu0 0.0
        %3002 = vmatpush1.msra.mxu0 0.0
        %3003 = vmatprep.subr.mxu0 0.0
        %3004 = vmatpush1.msra.mxu0 0.0
        %3005 = vmatprep.subr.mxu0 0.0
        %3006 = vmatpush1.msra.mxu0 0.0
        %3007 = vmatprep.subr.mxu0 0.0
        %3008 = vmatpush1.msra.mxu0 0.0
        %3009 = vmatprep.subr.mxu0 0.0
        %3010 = vmatpush1.msra.mxu0 0.0
        %3011 = vmatprep.subr.mxu0 0.0
        %3012 = vmatpush1.msra.mxu0 0.0
        %3013 = vmatprep.subr.mxu0 0.0
        %3014 = vmatpush1.msra.mxu0 0.0
        %3015 = vmatprep.subr.mxu0 0.0
        %3016 = vmatpush1.msra.mxu0 0.0
        %3017 = vmatprep.subr.mxu0 0.0
        %3018 = vmatpush1.msra.mxu0 0.0
        %3019 = vmatprep.subr.mxu0 0.0
        %3020 = vmatpush1.msra.mxu0 0.0
        %3021 = vmatprep.subr.mxu0 0.0
        %3022 = vmatpush1.msra.mxu0 0.0
        %3023 = vmatprep.subr.mxu0 0.0
        %3024 = vmatpush1.msra.mxu0 0.0
        %3025 = vmatprep.subr.mxu0 0.0
        %3026 = vmatpush1.msra.mxu0 0.0
        %3027 = vmatprep.subr.mxu0 0.0
        %3028 = vmatpush1.msra.mxu0 0.0
        %3029 = vmatprep.subr.mxu0 0.0
        %3030 = vmatpush1.msra.mxu0 0.0
        %3031 = vmatprep.subr.mxu0 0.0
        %3032 = vmatpush1.msra.mxu0 0.0
        %3033 = vmatprep.subr.mxu0 0.0
        %3034 = vmatpush1.msra.mxu0 0.0
        %3035 = vmatprep.subr.mxu0 0.0
        %3036 = vmatpush1.msra.mxu0 0.0
        %3037 = vmatprep.subr.mxu0 0.0
        %3038 = vmatpush1.msra.mxu0 0.0
        %3039 = vmatprep.subr.mxu0 0.0
        %3040 = vmatpush1.msra.mxu0 0.0
        %3041 = vmatprep.subr.mxu0 0.0
        %3042 = vmatpush1.msra.mxu0 0.0
        %3043 = vmatprep.mubr.f32.mxu0 0.0
        %3044 = vmatmul.mubr.f32.gmra.mrb[0].mxu0 %v2974
        %v3045 = vpop.f32.mrb[0].mxu0
        %v3046 = vadd.f32 %v2965, %v3045
        %v3047 = vpop.f32.mrb[0].mxu0
        %3048 = vmatprep.mubr.f32.mxu0 0.0
        %3049 = vmatmul.mubr.f32.gmra.mrb[0].mxu0 %v2977
        %v3050 = vpop.f32.mrb[0].mxu0
        %v3051 = vadd.f32 %v2970, %v3050
        %v3052 = vpop.f32.mrb[0].mxu0
        %3053 = vdwg.mxu0
        %vm3054 = vcmp.gt.f32.partialorder %v2882, 0.0
        %vm3055 = vcmp.gt.f32.partialorder %v2887, 0.0
        %v3056 = vsel %vm3054, 1, 0
        %v3057 = vsel %vm3055, 1, 0
        %v3058 = vcvt.s32.f32 %v3056
        %v3059 = vcvt.s32.f32 %v3057
        %v3060 = vmul.f32 %v2882, %v3058
        %v3061 = vmul.f32 %v2887, %v3059
        %v3062 = vadd.f32 %v2795, %v3060
        %v3063 = vadd.f32 %v2796, %v3061
        %v3064 = vmul.f32 %v3046, %v3058
        %v3065 = vmul.f32 %v3051, %v3059
        %v3066 = vadd.f32 %v2801, %v3064
        %v3067 = vadd.f32 %v2802, %v3065
        %v3068 = vld [vmem:[%s33] sm:$0x1]
        %v3069 = vld [vmem:[%s35] sm:$0x1]
        %v3070 = vld [vmem:[%s37] sm:$0xff]
        %v3071 = vld [vmem:[%s37 + $0x8] sm:$0xff]
        %v3072 = vld [vmem:[%s37 + $0x10] sm:$0xff]
        %v3073 = vld [vmem:[%s37 + $0x18] sm:$0xff]
        %v3074 = vld [vmem:[%s39] sm:$0xff]
        %v3075 = vld [vmem:[%s39 + $0x8] sm:$0xff]
        %v3076 = vld [vmem:[%s39 + $0x10] sm:$0xff]
        %v3077 = vld [vmem:[%s39 + $0x18] sm:$0xff]
        %v3078 = vld [vmem:[%s41] sm:$0xff]
        %v3079 = vld [vmem:[%s41 + $0x8] sm:$0xff]
        %v3080 = vld [vmem:[%s41 + $0x10] sm:$0xff]
        %v3081 = vld [vmem:[%s41 + $0x18] sm:$0xff]
        %v3082 = vld [vmem:[%s43] sm:$0x1]
        %v3083 = vld [vmem:[%s45] sm:$0x1]
        %v3084 = vld [vmem:[%s47] sm:$0xff]
        %v3085 = vld [vmem:[%s47 + $0x8] sm:$0xff]
        %v3086 = vld [vmem:[%s47 + $0x10] sm:$0xff]
        %v3087 = vld [vmem:[%s47 + $0x18] sm:$0xff]
        %v3088 = vld [vmem:[%s49] sm:$0xff]
        %v3089 = vld [vmem:[%s49 + $0x8] sm:$0xff]
        %v3090 = vld [vmem:[%s49 + $0x10] sm:$0xff]
        %v3091 = vld [vmem:[%s49 + $0x18] sm:$0xff]
        %v3092 = vld [vmem:[%s51] sm:$0xff]
        %v3093 = vld [vmem:[%s51 + $0x8] sm:$0xff]
        %v3094 = vld [vmem:[%s51 + $0x10] sm:$0xff]
        %v3095 = vld [vmem:[%s51 + $0x18] sm:$0xff]
        %v3096 = vld [vmem:[%s53] sm:$0x1]
        %v3097 = vsel %vm1315, %v3062, 0.0
        %3098 = vadd.xlane.f32.xlu0 %v3097
        %v3099 = vpop.xlane.xlu0 %3098
        %v3100 = vsel %vm1315, %v3063, 0.0
        %3101 = vadd.xlane.f32.xlu0 %v3100
        %v3102 = vpop.xlane.xlu0 %3101
        %v3103 = vmul.f32 %v3099, %v2760
        %v3104 = vmul.f32 %v3102, %v2760
        %v3105 = vsub.f32 %v3062, %v3103
        %v3106 = vsub.f32 %v3063, %v3104
        %v3107 = vmul.f32 %v3105, %v3105
        %v3108 = vmul.f32 %v3106, %v3106
        %v3109 = vsel %vm1315, %v3107, 0.0
        %3110 = vadd.xlane.f32.xlu0 %v3109
        %v3111 = vpop.xlane.xlu0 %3110
        %v3112 = vsel %vm1315, %v3108, 0.0
        %3113 = vadd.xlane.f32.xlu0 %v3112
        %v3114 = vpop.xlane.xlu0 %3113
        %v3115 = vmul.f32 %v3111, %v2760
        %v3116 = vmul.f32 %v3114, %v2760
        %v3117 = vadd.f32 %v3115, 1e-05
        %v3118 = vadd.f32 %v3116, 1e-05
        %v3119 = vrsqrt.pop %v3117
        %v3120 = vrsqrt.pop %v3118
        %v3122 = vlaneseq
        %v3123 = vshrl.u32 %v3122, 7
        %v3124 = vsub.s32 0, %v3123
        %v3125 = vrot.slane %v3068, %v3124
        %v3127 = vmul.f32 %v3125, %v3105
        %v3128 = vmul.f32 %v3125, %v3106
        %v3129 = vmul.f32 %v3127, %v3119
        %v3130 = vmul.f32 %v3128, %v3120
        %v3132 = vlaneseq
        %v3133 = vshrl.u32 %v3132, 7
        %v3134 = vsub.s32 0, %v3133
        %v3135 = vrot.slane %v3069, %v3134
        %v3137 = vadd.f32 %v3129, %v3135
        %v3138 = vadd.f32 %v3130, %v3135
        %v3139 = vmul.f32 %v3125, %v3119
        %v3140 = vmul.f32 %v3125, %v3120
        %v3141 = vmul.f32 %v3139, %v3139
        %v3142 = vmul.f32 %v3140, %v3140
        %v3143 = vmul.f32 %v3141, %v3066
        %v3144 = vmul.f32 %v3142, %v3067
        %v3146 = vsel %vm1315, %v3137, 0
        %v3149 = vsel %vm1315, %v3138, 0
        %3151 = vmatprep.subr.mxu0 0.0
        %3152 = vmatpush1.msra.mxu0 %v3070
        %3153 = vmatprep.subr.mxu0 0.0
        %3154 = vmatpush1.msra.mxu0 %v3071
        %3155 = vmatprep.subr.mxu0 0.0
        %3156 = vmatpush1.msra.mxu0 %v3072
        %3157 = vmatprep.subr.mxu0 0.0
        %3158 = vmatpush1.msra.mxu0 %v3073
        %3159 = vmatprep.subr.mxu0 0.0
        %3160 = vmatpush1.msra.mxu0 0.0
        %3161 = vmatprep.subr.mxu0 0.0
        %3162 = vmatpush1.msra.mxu0 0.0
        %3163 = vmatprep.subr.mxu0 0.0
        %3164 = vmatpush1.msra.mxu0 0.0
        %3165 = vmatprep.subr.mxu0 0.0
        %3166 = vmatpush1.msra.mxu0 0.0
        %3167 = vmatprep.subr.mxu0 0.0
        %3168 = vmatpush1.msra.mxu0 0.0
        %3169 = vmatprep.subr.mxu0 0.0
        %3170 = vmatpush1.msra.mxu0 0.0
        %3171 = vmatprep.subr.mxu0 0.0
        %3172 = vmatpush1.msra.mxu0 0.0
        %3173 = vmatprep.subr.mxu0 0.0
        %3174 = vmatpush1.msra.mxu0 0.0
        %3175 = vmatprep.subr.mxu0 0.0
        %3176 = vmatpush1.msra.mxu0 0.0
        %3177 = vmatprep.subr.mxu0 0.0
        %3178 = vmatpush1.msra.mxu0 0.0
        %3179 = vmatprep.subr.mxu0 0.0
        %3180 = vmatpush1.msra.mxu0 0.0
        %3181 = vmatprep.subr.mxu0 0.0
        %3182 = vmatpush1.msra.mxu0 0.0
        %3183 = vmatprep.subr.mxu0 0.0
        %3184 = vmatpush1.msra.mxu0 0.0
        %3185 = vmatprep.subr.mxu0 0.0
        %3186 = vmatpush1.msra.mxu0 0.0
        %3187 = vmatprep.subr.mxu0 0.0
        %3188 = vmatpush1.msra.mxu0 0.0
        %3189 = vmatprep.subr.mxu0 0.0
        %3190 = vmatpush1.msra.mxu0 0.0
        %3191 = vmatprep.subr.mxu0 0.0
        %3192 = vmatpush1.msra.mxu0 0.0
        %3193 = vmatprep.subr.mxu0 0.0
        %3194 = vmatpush1.msra.mxu0 0.0
        %3195 = vmatprep.subr.mxu0 0.0
        %3196 = vmatpush1.msra.mxu0 0.0
        %3197 = vmatprep.subr.mxu0 0.0
        %3198 = vmatpush1.msra.mxu0 0.0
        %3199 = vmatprep.subr.mxu0 0.0
        %3200 = vmatpush1.msra.mxu0 0.0
        %3201 = vmatprep.subr.mxu0 0.0
        %3202 = vmatpush1.msra.mxu0 0.0
        %3203 = vmatprep.subr.mxu0 0.0
        %3204 = vmatpush1.msra.mxu0 0.0
        %3205 = vmatprep.subr.mxu0 0.0
        %3206 = vmatpush1.msra.mxu0 0.0
        %3207 = vmatprep.subr.mxu0 0.0
        %3208 = vmatpush1.msra.mxu0 0.0
        %3209 = vmatprep.subr.mxu0 0.0
        %3210 = vmatpush1.msra.mxu0 0.0
        %3211 = vmatprep.subr.mxu0 0.0
        %3212 = vmatpush1.msra.mxu0 0.0
        %3213 = vmatprep.subr.mxu0 0.0
        %3214 = vmatpush1.msra.mxu0 0.0
        %3215 = vmatprep.mubr.f32.mxu0 0.0
        %3216 = vmatmul.mubr.f32.gmra.mrb[0].mxu0 %v3146
        %v3217 = vpop.f32.mrb[0].mxu0
        %v3218 = vadd.f32 0.0, %v3217
        %v3219 = vpop.f32.mrb[0].mxu0
        %3220 = vmatprep.mubr.f32.mxu0 0.0
        %3221 = vmatmul.mubr.f32.gmra.mrb[0].mxu0 %v3149
        %v3222 = vpop.f32.mrb[0].mxu0
        %v3223 = vadd.f32 0.0, %v3222
        %v3224 = vpop.f32.mrb[0].mxu0
        %3225 = vdwg.mxu0
        %v3226 = vmul.f32 %v3137, %v3137
        %v3227 = vmul.f32 %v3138, %v3138
        %v3229 = vsel %vm1315, %v3226, 0
        %v3232 = vsel %vm1315, %v3227, 0
        %3234 = vmatprep.subr.mxu0 0.0
        %3235 = vmatpush1.msra.mxu0 %v3078
        %3236 = vmatprep.subr.mxu0 0.0
        %3237 = vmatpush1.msra.mxu0 %v3079
        %3238 = vmatprep.subr.mxu0 0.0
        %3239 = vmatpush1.msra.mxu0 %v3080
        %3240 = vmatprep.subr.mxu0 0.0
        %3241 = vmatpush1.msra.mxu0 %v3081
        %3242 = vmatprep.subr.mxu0 0.0
        %3243 = vmatpush1.msra.mxu0 0.0
        %3244 = vmatprep.subr.mxu0 0.0
        %3245 = vmatpush1.msra.mxu0 0.0
        %3246 = vmatprep.subr.mxu0 0.0
        %3247 = vmatpush1.msra.mxu0 0.0
        %3248 = vmatprep.subr.mxu0 0.0
        %3249 = vmatpush1.msra.mxu0 0.0
        %3250 = vmatprep.subr.mxu0 0.0
        %3251 = vmatpush1.msra.mxu0 0.0
        %3252 = vmatprep.subr.mxu0 0.0
        %3253 = vmatpush1.msra.mxu0 0.0
        %3254 = vmatprep.subr.mxu0 0.0
        %3255 = vmatpush1.msra.mxu0 0.0
        %3256 = vmatprep.subr.mxu0 0.0
        %3257 = vmatpush1.msra.mxu0 0.0
        %3258 = vmatprep.subr.mxu0 0.0
        %3259 = vmatpush1.msra.mxu0 0.0
        %3260 = vmatprep.subr.mxu0 0.0
        %3261 = vmatpush1.msra.mxu0 0.0
        %3262 = vmatprep.subr.mxu0 0.0
        %3263 = vmatpush1.msra.mxu0 0.0
        %3264 = vmatprep.subr.mxu0 0.0
        %3265 = vmatpush1.msra.mxu0 0.0
        %3266 = vmatprep.subr.mxu0 0.0
        %3267 = vmatpush1.msra.mxu0 0.0
        %3268 = vmatprep.subr.mxu0 0.0
        %3269 = vmatpush1.msra.mxu0 0.0
        %3270 = vmatprep.subr.mxu0 0.0
        %3271 = vmatpush1.msra.mxu0 0.0
        %3272 = vmatprep.subr.mxu0 0.0
        %3273 = vmatpush1.msra.mxu0 0.0
        %3274 = vmatprep.subr.mxu0 0.0
        %3275 = vmatpush1.msra.mxu0 0.0
        %3276 = vmatprep.subr.mxu0 0.0
        %3277 = vmatpush1.msra.mxu0 0.0
        %3278 = vmatprep.subr.mxu0 0.0
        %3279 = vmatpush1.msra.mxu0 0.0
        %3280 = vmatprep.subr.mxu0 0.0
        %3281 = vmatpush1.msra.mxu0 0.0
        %3282 = vmatprep.subr.mxu0 0.0
        %3283 = vmatpush1.msra.mxu0 0.0
        %3284 = vmatprep.subr.mxu0 0.0
        %3285 = vmatpush1.msra.mxu0 0.0
        %3286 = vmatprep.subr.mxu0 0.0
        %3287 = vmatpush1.msra.mxu0 0.0
        %3288 = vmatprep.subr.mxu0 0.0
        %3289 = vmatpush1.msra.mxu0 0.0
        %3290 = vmatprep.subr.mxu0 0.0
        %3291 = vmatpush1.msra.mxu0 0.0
        %3292 = vmatprep.subr.mxu0 0.0
        %3293 = vmatpush1.msra.mxu0 0.0
        %3294 = vmatprep.subr.mxu0 0.0
        %3295 = vmatpush1.msra.mxu0 0.0
        %3296 = vmatprep.subr.mxu0 0.0
        %3297 = vmatpush1.msra.mxu0 0.0
        %3298 = vmatprep.mubr.f32.mxu0 0.0
        %3299 = vmatmul.mubr.f32.gmra.mrb[0].mxu0 %v3229
        %v3300 = vpop.f32.mrb[0].mxu0
        %v3301 = vadd.f32 0.0, %v3300
        %v3302 = vpop.f32.mrb[0].mxu0
        %3303 = vmatprep.mubr.f32.mxu0 0.0
        %3304 = vmatmul.mubr.f32.gmra.mrb[0].mxu0 %v3232
        %v3305 = vpop.f32.mrb[0].mxu0
        %v3306 = vadd.f32 0.0, %v3305
        %v3307 = vpop.f32.mrb[0].mxu0
        %3308 = vdwg.mxu0
        %v3310 = vsel %vm1315, %v3143, 0
        %v3313 = vsel %vm1315, %v3144, 0
        %3315 = vmatprep.subr.mxu0 0.0
        %3316 = vmatpush1.msra.mxu0 %v3074
        %3317 = vmatprep.subr.mxu0 0.0
        %3318 = vmatpush1.msra.mxu0 %v3075
        %3319 = vmatprep.subr.mxu0 0.0
        %3320 = vmatpush1.msra.mxu0 %v3076
        %3321 = vmatprep.subr.mxu0 0.0
        %3322 = vmatpush1.msra.mxu0 %v3077
        %3323 = vmatprep.subr.mxu0 0.0
        %3324 = vmatpush1.msra.mxu0 0.0
        %3325 = vmatprep.subr.mxu0 0.0
        %3326 = vmatpush1.msra.mxu0 0.0
        %3327 = vmatprep.subr.mxu0 0.0
        %3328 = vmatpush1.msra.mxu0 0.0
        %3329 = vmatprep.subr.mxu0 0.0
        %3330 = vmatpush1.msra.mxu0 0.0
        %3331 = vmatprep.subr.mxu0 0.0
        %3332 = vmatpush1.msra.mxu0 0.0
        %3333 = vmatprep.subr.mxu0 0.0
        %3334 = vmatpush1.msra.mxu0 0.0
        %3335 = vmatprep.subr.mxu0 0.0
        %3336 = vmatpush1.msra.mxu0 0.0
        %3337 = vmatprep.subr.mxu0 0.0
        %3338 = vmatpush1.msra.mxu0 0.0
        %3339 = vmatprep.subr.mxu0 0.0
        %3340 = vmatpush1.msra.mxu0 0.0
        %3341 = vmatprep.subr.mxu0 0.0
        %3342 = vmatpush1.msra.mxu0 0.0
        %3343 = vmatprep.subr.mxu0 0.0
        %3344 = vmatpush1.msra.mxu0 0.0
        %3345 = vmatprep.subr.mxu0 0.0
        %3346 = vmatpush1.msra.mxu0 0.0
        %3347 = vmatprep.subr.mxu0 0.0
        %3348 = vmatpush1.msra.mxu0 0.0
        %3349 = vmatprep.subr.mxu0 0.0
        %3350 = vmatpush1.msra.mxu0 0.0
        %3351 = vmatprep.subr.mxu0 0.0
        %3352 = vmatpush1.msra.mxu0 0.0
        %3353 = vmatprep.subr.mxu0 0.0
        %3354 = vmatpush1.msra.mxu0 0.0
        %3355 = vmatprep.subr.mxu0 0.0
        %3356 = vmatpush1.msra.mxu0 0.0
        %3357 = vmatprep.subr.mxu0 0.0
        %3358 = vmatpush1.msra.mxu0 0.0
        %3359 = vmatprep.subr.mxu0 0.0
        %3360 = vmatpush1.msra.mxu0 0.0
        %3361 = vmatprep.subr.mxu0 0.0
        %3362 = vmatpush1.msra.mxu0 0.0
        %3363 = vmatprep.subr.mxu0 0.0
        %3364 = vmatpush1.msra.mxu0 0.0
        %3365 = vmatprep.subr.mxu0 0.0
        %3366 = vmatpush1.msra.mxu0 0.0
        %3367 = vmatprep.subr.mxu0 0.0
        %3368 = vmatpush1.msra.mxu0 0.0
        %3369 = vmatprep.subr.mxu0 0.0
        %3370 = vmatpush1.msra.mxu0 0.0
        %3371 = vmatprep.subr.mxu0 0.0
        %3372 = vmatpush1.msra.mxu0 0.0
        %3373 = vmatprep.subr.mxu0 0.0
        %3374 = vmatpush1.msra.mxu0 0.0
        %3375 = vmatprep.subr.mxu0 0.0
        %3376 = vmatpush1.msra.mxu0 0.0
        %3377 = vmatprep.subr.mxu0 0.0
        %3378 = vmatpush1.msra.mxu0 0.0
        %3379 = vmatprep.mubr.f32.mxu0 0.0
        %3380 = vmatmul.mubr.f32.gmra.mrb[0].mxu0 %v3310
        %v3381 = vpop.f32.mrb[0].mxu0
        %v3382 = vadd.f32 %v3301, %v3381
        %v3383 = vpop.f32.mrb[0].mxu0
        %3384 = vmatprep.mubr.f32.mxu0 0.0
        %3385 = vmatmul.mubr.f32.gmra.mrb[0].mxu0 %v3313
        %v3386 = vpop.f32.mrb[0].mxu0
        %v3387 = vadd.f32 %v3306, %v3386
        %v3388 = vpop.f32.mrb[0].mxu0
        %3389 = vdwg.mxu0
        %3392 = vrot.lane.b32.xlu0 %v3218, 96
        %v3393 = vpop.permute.xlu0 %3392
        %3394 = vrot.lane.b32.xlu0 %v3223, 96
        %v3395 = vpop.permute.xlu0 %3394
        %v3396 = vsel %vm1117, %v3218, 0
        %v3398 = vsel %vm1117, %v3223, 0
        %v3400 = vsel %vm1117, %v3393, 0
        %v3402 = vsel %vm1117, %v3395, 0
        %3404 = vmatprep.subr.mxu0 0.0
        %3405 = vmatpush1.xpose.msra.mxu0 %v3400
        %3406 = vmatprep.subr.mxu0 0.0
        %3407 = vmatpush1.xpose.msra.mxu0 %v3402
        %3408 = vmatprep.subr.mxu0 0.0
        %3409 = vmatpush1.xpose.msra.mxu0 0.0
        %3410 = vmatprep.subr.mxu0 0.0
        %3411 = vmatpush1.xpose.msra.mxu0 0.0
        %3412 = vmatprep.subr.mxu0 0.0
        %3413 = vmatpush1.xpose.msra.mxu0 0.0
        %3414 = vmatprep.subr.mxu0 0.0
        %3415 = vmatpush1.xpose.msra.mxu0 0.0
        %3416 = vmatprep.subr.mxu0 0.0
        %3417 = vmatpush1.xpose.msra.mxu0 0.0
        %3418 = vmatprep.subr.mxu0 0.0
        %3419 = vmatpush1.xpose.msra.mxu0 0.0
        %3420 = vmatprep.subr.mxu0 0.0
        %3421 = vmatpush1.xpose.msra.mxu0 0.0
        %3422 = vmatprep.subr.mxu0 0.0
        %3423 = vmatpush1.xpose.msra.mxu0 0.0
        %3424 = vmatprep.subr.mxu0 0.0
        %3425 = vmatpush1.xpose.msra.mxu0 0.0
        %3426 = vmatprep.subr.mxu0 0.0
        %3427 = vmatpush1.xpose.msra.mxu0 0.0
        %3428 = vmatprep.subr.mxu0 0.0
        %3429 = vmatpush1.xpose.msra.mxu0 0.0
        %3430 = vmatprep.subr.mxu0 0.0
        %3431 = vmatpush1.xpose.msra.mxu0 0.0
        %3432 = vmatprep.subr.mxu0 0.0
        %3433 = vmatpush1.xpose.msra.mxu0 0.0
        %3434 = vmatprep.subr.mxu0 0.0
        %3435 = vmatpush1.xpose.msra.mxu0 0.0
        %3436 = vmatprep.subr.mxu0 0.0
        %3437 = vmatpush1.xpose.msra.mxu0 0.0
        %3438 = vmatprep.subr.mxu0 0.0
        %3439 = vmatpush1.xpose.msra.mxu0 0.0
        %3440 = vmatprep.subr.mxu0 0.0
        %3441 = vmatpush1.xpose.msra.mxu0 0.0
        %3442 = vmatprep.subr.mxu0 0.0
        %3443 = vmatpush1.xpose.msra.mxu0 0.0
        %3444 = vmatprep.subr.mxu0 0.0
        %3445 = vmatpush1.xpose.msra.mxu0 0.0
        %3446 = vmatprep.subr.mxu0 0.0
        %3447 = vmatpush1.xpose.msra.mxu0 0.0
        %3448 = vmatprep.subr.mxu0 0.0
        %3449 = vmatpush1.xpose.msra.mxu0 0.0
        %3450 = vmatprep.subr.mxu0 0.0
        %3451 = vmatpush1.xpose.msra.mxu0 0.0
        %3452 = vmatprep.subr.mxu0 0.0
        %3453 = vmatpush1.xpose.msra.mxu0 0.0
        %3454 = vmatprep.subr.mxu0 0.0
        %3455 = vmatpush1.xpose.msra.mxu0 0.0
        %3456 = vmatprep.subr.mxu0 0.0
        %3457 = vmatpush1.xpose.msra.mxu0 0.0
        %3458 = vmatprep.subr.mxu0 0.0
        %3459 = vmatpush1.xpose.msra.mxu0 0.0
        %3460 = vmatprep.subr.mxu0 0.0
        %3461 = vmatpush1.xpose.msra.mxu0 0.0
        %3462 = vmatprep.subr.mxu0 0.0
        %3463 = vmatpush1.xpose.msra.mxu0 0.0
        %3464 = vmatprep.subr.mxu0 0.0
        %3465 = vmatpush1.xpose.msra.mxu0 0.0
        %3466 = vmatprep.subr.mxu0 0.0
        %3467 = vmatpush1.xpose.msra.mxu0 0.0
        %3468 = vmatprep.mubr.f32.mxu0 0.0
        %3469 = vmatmul.mubr.f32.gmra.mrb[0].mxu0 %v3396
        %v3470 = vpop.f32.mrb[0].mxu0
        %v3471 = vadd.f32 0.0, %v3470
        %v3472 = vpop.f32.mrb[0].mxu0
        %3473 = vmatprep.mubr.f32.mxu0 0.0
        %3474 = vmatmul.mubr.f32.gmra.mrb[0].mxu0 %v3398
        %v3475 = vpop.f32.mrb[0].mxu0
        %v3476 = vadd.f32 0.0, %v3475
        %v3477 = vpop.f32.mrb[0].mxu0
        %3478 = vdwg.mxu0
        %v3479 = vmul.f32 %v3471, 0.17677669
        %v3480 = vmul.f32 %v3476, 0.17677669
        %v3481 = vmul.f32 %v3218, %v3218
        %v3482 = vmul.f32 %v3223, %v3223
        %v3483 = vadd.f32 %v3481, %v3382
        %v3484 = vadd.f32 %v3482, %v3387
        %3487 = vrot.lane.b32.xlu0 %v3382, 96
        %v3488 = vpop.permute.xlu0 %3487
        %3489 = vrot.lane.b32.xlu0 %v3387, 96
        %v3490 = vpop.permute.xlu0 %3489
        %v3492 = vsel %vm1117, %v3481, 0
        %v3495 = vsel %vm1117, %v3482, 0
        %v3497 = vsel %vm1117, %v3488, 0
        %v3499 = vsel %vm1117, %v3490, 0
        %3501 = vmatprep.subr.mxu0 0.0
        %3502 = vmatpush1.xpose.msra.mxu0 %v3497
        %3503 = vmatprep.subr.mxu0 0.0
        %3504 = vmatpush1.xpose.msra.mxu0 %v3499
        %3505 = vmatprep.subr.mxu0 0.0
        %3506 = vmatpush1.xpose.msra.mxu0 0.0
        %3507 = vmatprep.subr.mxu0 0.0
        %3508 = vmatpush1.xpose.msra.mxu0 0.0
        %3509 = vmatprep.subr.mxu0 0.0
        %3510 = vmatpush1.xpose.msra.mxu0 0.0
        %3511 = vmatprep.subr.mxu0 0.0
        %3512 = vmatpush1.xpose.msra.mxu0 0.0
        %3513 = vmatprep.subr.mxu0 0.0
        %3514 = vmatpush1.xpose.msra.mxu0 0.0
        %3515 = vmatprep.subr.mxu0 0.0
        %3516 = vmatpush1.xpose.msra.mxu0 0.0
        %3517 = vmatprep.subr.mxu0 0.0
        %3518 = vmatpush1.xpose.msra.mxu0 0.0
        %3519 = vmatprep.subr.mxu0 0.0
        %3520 = vmatpush1.xpose.msra.mxu0 0.0
        %3521 = vmatprep.subr.mxu0 0.0
        %3522 = vmatpush1.xpose.msra.mxu0 0.0
        %3523 = vmatprep.subr.mxu0 0.0
        %3524 = vmatpush1.xpose.msra.mxu0 0.0
        %3525 = vmatprep.subr.mxu0 0.0
        %3526 = vmatpush1.xpose.msra.mxu0 0.0
        %3527 = vmatprep.subr.mxu0 0.0
        %3528 = vmatpush1.xpose.msra.mxu0 0.0
        %3529 = vmatprep.subr.mxu0 0.0
        %3530 = vmatpush1.xpose.msra.mxu0 0.0
        %3531 = vmatprep.subr.mxu0 0.0
        %3532 = vmatpush1.xpose.msra.mxu0 0.0
        %3533 = vmatprep.subr.mxu0 0.0
        %3534 = vmatpush1.xpose.msra.mxu0 0.0
        %3535 = vmatprep.subr.mxu0 0.0
        %3536 = vmatpush1.xpose.msra.mxu0 0.0
        %3537 = vmatprep.subr.mxu0 0.0
        %3538 = vmatpush1.xpose.msra.mxu0 0.0
        %3539 = vmatprep.subr.mxu0 0.0
        %3540 = vmatpush1.xpose.msra.mxu0 0.0
        %3541 = vmatprep.subr.mxu0 0.0
        %3542 = vmatpush1.xpose.msra.mxu0 0.0
        %3543 = vmatprep.subr.mxu0 0.0
        %3544 = vmatpush1.xpose.msra.mxu0 0.0
        %3545 = vmatprep.subr.mxu0 0.0
        %3546 = vmatpush1.xpose.msra.mxu0 0.0
        %3547 = vmatprep.subr.mxu0 0.0
        %3548 = vmatpush1.xpose.msra.mxu0 0.0
        %3549 = vmatprep.subr.mxu0 0.0
        %3550 = vmatpush1.xpose.msra.mxu0 0.0
        %3551 = vmatprep.subr.mxu0 0.0
        %3552 = vmatpush1.xpose.msra.mxu0 0.0
        %3553 = vmatprep.subr.mxu0 0.0
        %3554 = vmatpush1.xpose.msra.mxu0 0.0
        %3555 = vmatprep.subr.mxu0 0.0
        %3556 = vmatpush1.xpose.msra.mxu0 0.0
        %3557 = vmatprep.subr.mxu0 0.0
        %3558 = vmatpush1.xpose.msra.mxu0 0.0
        %3559 = vmatprep.subr.mxu0 0.0
        %3560 = vmatpush1.xpose.msra.mxu0 0.0
        %3561 = vmatprep.subr.mxu0 0.0
        %3562 = vmatpush1.xpose.msra.mxu0 0.0
        %3563 = vmatprep.subr.mxu0 0.0
        %3564 = vmatpush1.xpose.msra.mxu0 0.0
        %3565 = vmatprep.mubr.f32.mxu0 0.0
        %3566 = vmatmul.mubr.f32.gmra.mrb[0].mxu0 %v3492
        %v3567 = vpop.f32.mrb[0].mxu0
        %v3568 = vadd.f32 0.0, %v3567
        %v3569 = vpop.f32.mrb[0].mxu0
        %3570 = vmatprep.mubr.f32.mxu0 0.0
        %3571 = vmatmul.mubr.f32.gmra.mrb[0].mxu0 %v3495
        %v3572 = vpop.f32.mrb[0].mxu0
        %v3573 = vadd.f32 0.0, %v3572
        %v3574 = vpop.f32.mrb[0].mxu0
        %3575 = vdwg.mxu0
        %3578 = vrot.lane.b32.xlu0 %v3483, 96
        %v3579 = vpop.permute.xlu0 %3578
        %3580 = vrot.lane.b32.xlu0 %v3484, 96
        %v3581 = vpop.permute.xlu0 %3580
        %v3582 = vsel %vm1117, %v3382, 0
        %v3584 = vsel %vm1117, %v3387, 0
        %v3586 = vsel %vm1117, %v3579, 0
        %v3588 = vsel %vm1117, %v3581, 0
        %3590 = vmatprep.subr.mxu0 0.0
        %3591 = vmatpush1.xpose.msra.mxu0 %v3586
        %3592 = vmatprep.subr.mxu0 0.0
        %3593 = vmatpush1.xpose.msra.mxu0 %v3588
        %3594 = vmatprep.subr.mxu0 0.0
        %3595 = vmatpush1.xpose.msra.mxu0 0.0
        %3596 = vmatprep.subr.mxu0 0.0
        %3597 = vmatpush1.xpose.msra.mxu0 0.0
        %3598 = vmatprep.subr.mxu0 0.0
        %3599 = vmatpush1.xpose.msra.mxu0 0.0
        %3600 = vmatprep.subr.mxu0 0.0
        %3601 = vmatpush1.xpose.msra.mxu0 0.0
        %3602 = vmatprep.subr.mxu0 0.0
        %3603 = vmatpush1.xpose.msra.mxu0 0.0
        %3604 = vmatprep.subr.mxu0 0.0
        %3605 = vmatpush1.xpose.msra.mxu0 0.0
        %3606 = vmatprep.subr.mxu0 0.0
        %3607 = vmatpush1.xpose.msra.mxu0 0.0
        %3608 = vmatprep.subr.mxu0 0.0
        %3609 = vmatpush1.xpose.msra.mxu0 0.0
        %3610 = vmatprep.subr.mxu0 0.0
        %3611 = vmatpush1.xpose.msra.mxu0 0.0
        %3612 = vmatprep.subr.mxu0 0.0
        %3613 = vmatpush1.xpose.msra.mxu0 0.0
        %3614 = vmatprep.subr.mxu0 0.0
        %3615 = vmatpush1.xpose.msra.mxu0 0.0
        %3616 = vmatprep.subr.mxu0 0.0
        %3617 = vmatpush1.xpose.msra.mxu0 0.0
        %3618 = vmatprep.subr.mxu0 0.0
        %3619 = vmatpush1.xpose.msra.mxu0 0.0
        %3620 = vmatprep.subr.mxu0 0.0
        %3621 = vmatpush1.xpose.msra.mxu0 0.0
        %3622 = vmatprep.subr.mxu0 0.0
        %3623 = vmatpush1.xpose.msra.mxu0 0.0
        %3624 = vmatprep.subr.mxu0 0.0
        %3625 = vmatpush1.xpose.msra.mxu0 0.0
        %3626 = vmatprep.subr.mxu0 0.0
        %3627 = vmatpush1.xpose.msra.mxu0 0.0
        %3628 = vmatprep.subr.mxu0 0.0
        %3629 = vmatpush1.xpose.msra.mxu0 0.0
        %3630 = vmatprep.subr.mxu0 0.0
        %3631 = vmatpush1.xpose.msra.mxu0 0.0
        %3632 = vmatprep.subr.mxu0 0.0
        %3633 = vmatpush1.xpose.msra.mxu0 0.0
        %3634 = vmatprep.subr.mxu0 0.0
        %3635 = vmatpush1.xpose.msra.mxu0 0.0
        %3636 = vmatprep.subr.mxu0 0.0
        %3637 = vmatpush1.xpose.msra.mxu0 0.0
        %3638 = vmatprep.subr.mxu0 0.0
        %3639 = vmatpush1.xpose.msra.mxu0 0.0
        %3640 = vmatprep.subr.mxu0 0.0
        %3641 = vmatpush1.xpose.msra.mxu0 0.0
        %3642 = vmatprep.subr.mxu0 0.0
        %3643 = vmatpush1.xpose.msra.mxu0 0.0
        %3644 = vmatprep.subr.mxu0 0.0
        %3645 = vmatpush1.xpose.msra.mxu0 0.0
        %3646 = vmatprep.subr.mxu0 0.0
        %3647 = vmatpush1.xpose.msra.mxu0 0.0
        %3648 = vmatprep.subr.mxu0 0.0
        %3649 = vmatpush1.xpose.msra.mxu0 0.0
        %3650 = vmatprep.subr.mxu0 0.0
        %3651 = vmatpush1.xpose.msra.mxu0 0.0
        %3652 = vmatprep.subr.mxu0 0.0
        %3653 = vmatpush1.xpose.msra.mxu0 0.0
        %3654 = vmatprep.mubr.f32.mxu0 0.0
        %3655 = vmatmul.mubr.f32.gmra.mrb[0].mxu0 %v3582
        %v3656 = vpop.f32.mrb[0].mxu0
        %v3657 = vadd.f32 %v3568, %v3656
        %v3658 = vpop.f32.mrb[0].mxu0
        %3659 = vmatprep.mubr.f32.mxu0 0.0
        %3660 = vmatmul.mubr.f32.gmra.mrb[0].mxu0 %v3584
        %v3661 = vpop.f32.mrb[0].mxu0
        %v3662 = vadd.f32 %v3573, %v3661
        %v3663 = vpop.f32.mrb[0].mxu0
        %3664 = vdwg.mxu0
        %v3665 = vmul.f32 %v3657, 0.03125
        %v3666 = vmul.f32 %v3662, 0.03125
        %v3667 = vsel %vm1117, %v3479, -inf
        %3668 = vmax.xlane.f32.xlu0 %v3667
        %v3669 = vpop.xlane.xlu0 %3668
        %v3670 = vsel %vm1117, %v3480, -inf
        %3671 = vmax.xlane.f32.xlu0 %v3670
        %v3672 = vpop.xlane.xlu0 %3671
        %v3673 = vsub.f32 %v3479, %v3669
        %v3674 = vsub.f32 %v3480, %v3672
        %v3675 = vmul.f32 %v3673, 1.442695
        %v3676 = vpow.pop %v3675
        %v3677 = vmul.f32 %v3674, 1.442695
        %v3678 = vpow.pop %v3677
        %v3679 = vsel %vm1117, %v3676, 0.0
        %3680 = vadd.xlane.f32.xlu0 %v3679
        %v3681 = vpop.xlane.xlu0 %3680
        %v3682 = vsel %vm1117, %v3678, 0.0
        %3683 = vadd.xlane.f32.xlu0 %v3682
        %v3684 = vpop.xlane.xlu0 %3683
        %v3685 = vrcp.pop %v3681
        %v3686 = vrcp.pop %v3684
        %v3687 = vmul.f32 %v3676, %v3685
        %v3688 = vmul.f32 %v3678, %v3686
        %v3689 = vmul.f32 %v3687, %v3687
        %v3690 = vmul.f32 %v3688, %v3688
        %v3691 = vmul.f32 %v3689, %v3665
        %v3692 = vmul.f32 %v3690, %v3666
        %v3693 = vsel %vm1117, %v3691, 0.0
        %3694 = vadd.xlane.f32.xlu0 %v3693
        %v3695 = vpop.xlane.xlu0 %3694
        %v3696 = vsel %vm1117, %v3692, 0.0
        %3697 = vadd.xlane.f32.xlu0 %v3696
        %v3698 = vpop.xlane.xlu0 %3697
        %v3699 = vmul.f32 %v3687, 2.0
        %v3700 = vmul.f32 %v3688, 2.0
        %v3701 = vsub.f32 1.0, %v3699
        %v3702 = vsub.f32 1.0, %v3700
        %v3703 = vmul.f32 %v3701, %v3665
        %v3704 = vmul.f32 %v3702, %v3666
        %v3705 = vadd.f32 %v3695, %v3703
        %v3706 = vadd.f32 %v3698, %v3704
        %v3707 = vmul.f32 %v3689, %v3705
        %v3708 = vmul.f32 %v3690, %v3706
        %3709 = vrot.lane.b32.xlu0 %v3218, 64
        %v3710 = vpop.permute.xlu0 %3709
        %3711 = vrot.lane.b32.xlu0 %v3223, 64
        %v3712 = vpop.permute.xlu0 %3711
        %v3716 = vsel %vm1117, %v3687, 0
        %v3719 = vsel %vm1117, %v3688, 0
        %3721 = vmatprep.subr.mxu0 0.0
        %3722 = vmatpush1.msra.mxu0 %v3710
        %3723 = vmatprep.subr.mxu0 0.0
        %3724 = vmatpush1.msra.mxu0 %v3712
        %3725 = vmatprep.subr.mxu0 0.0
        %3726 = vmatpush1.msra.mxu0 0.0
        %3727 = vmatprep.subr.mxu0 0.0
        %3728 = vmatpush1.msra.mxu0 0.0
        %3729 = vmatprep.subr.mxu0 0.0
        %3730 = vmatpush1.msra.mxu0 0.0
        %3731 = vmatprep.subr.mxu0 0.0
        %3732 = vmatpush1.msra.mxu0 0.0
        %3733 = vmatprep.subr.mxu0 0.0
        %3734 = vmatpush1.msra.mxu0 0.0
        %3735 = vmatprep.subr.mxu0 0.0
        %3736 = vmatpush1.msra.mxu0 0.0
        %3737 = vmatprep.subr.mxu0 0.0
        %3738 = vmatpush1.msra.mxu0 0.0
        %3739 = vmatprep.subr.mxu0 0.0
        %3740 = vmatpush1.msra.mxu0 0.0
        %3741 = vmatprep.subr.mxu0 0.0
        %3742 = vmatpush1.msra.mxu0 0.0
        %3743 = vmatprep.subr.mxu0 0.0
        %3744 = vmatpush1.msra.mxu0 0.0
        %3745 = vmatprep.subr.mxu0 0.0
        %3746 = vmatpush1.msra.mxu0 0.0
        %3747 = vmatprep.subr.mxu0 0.0
        %3748 = vmatpush1.msra.mxu0 0.0
        %3749 = vmatprep.subr.mxu0 0.0
        %3750 = vmatpush1.msra.mxu0 0.0
        %3751 = vmatprep.subr.mxu0 0.0
        %3752 = vmatpush1.msra.mxu0 0.0
        %3753 = vmatprep.subr.mxu0 0.0
        %3754 = vmatpush1.msra.mxu0 0.0
        %3755 = vmatprep.subr.mxu0 0.0
        %3756 = vmatpush1.msra.mxu0 0.0
        %3757 = vmatprep.subr.mxu0 0.0
        %3758 = vmatpush1.msra.mxu0 0.0
        %3759 = vmatprep.subr.mxu0 0.0
        %3760 = vmatpush1.msra.mxu0 0.0
        %3761 = vmatprep.subr.mxu0 0.0
        %3762 = vmatpush1.msra.mxu0 0.0
        %3763 = vmatprep.subr.mxu0 0.0
        %3764 = vmatpush1.msra.mxu0 0.0
        %3765 = vmatprep.subr.mxu0 0.0
        %3766 = vmatpush1.msra.mxu0 0.0
        %3767 = vmatprep.subr.mxu0 0.0
        %3768 = vmatpush1.msra.mxu0 0.0
        %3769 = vmatprep.subr.mxu0 0.0
        %3770 = vmatpush1.msra.mxu0 0.0
        %3771 = vmatprep.subr.mxu0 0.0
        %3772 = vmatpush1.msra.mxu0 0.0
        %3773 = vmatprep.subr.mxu0 0.0
        %3774 = vmatpush1.msra.mxu0 0.0
        %3775 = vmatprep.subr.mxu0 0.0
        %3776 = vmatpush1.msra.mxu0 0.0
        %3777 = vmatprep.subr.mxu0 0.0
        %3778 = vmatpush1.msra.mxu0 0.0
        %3779 = vmatprep.subr.mxu0 0.0
        %3780 = vmatpush1.msra.mxu0 0.0
        %3781 = vmatprep.subr.mxu0 0.0
        %3782 = vmatpush1.msra.mxu0 0.0
        %3783 = vmatprep.subr.mxu0 0.0
        %3784 = vmatpush1.msra.mxu0 0.0
        %3785 = vmatprep.mubr.f32.mxu0 0.0
        %3786 = vmatmul.mubr.f32.gmra.mrb[0].mxu0 %v3716
        %v3787 = vpop.f32.mrb[0].mxu0
        %v3788 = vadd.f32 0.0, %v3787
        %v3789 = vpop.f32.mrb[0].mxu0
        %3790 = vmatprep.mubr.f32.mxu0 0.0
        %3791 = vmatmul.mubr.f32.gmra.mrb[0].mxu0 %v3719
        %v3792 = vpop.f32.mrb[0].mxu0
        %v3793 = vadd.f32 0.0, %v3792
        %v3794 = vpop.f32.mrb[0].mxu0
        %3795 = vdwg.mxu0
        %3796 = vrot.lane.b32.xlu0 %v3382, 64
        %v3797 = vpop.permute.xlu0 %3796
        %3798 = vrot.lane.b32.xlu0 %v3387, 64
        %v3799 = vpop.permute.xlu0 %3798
        %v3803 = vsel %vm1117, %v3689, 0
        %v3806 = vsel %vm1117, %v3690, 0
        %3808 = vmatprep.subr.mxu0 0.0
        %3809 = vmatpush1.msra.mxu0 %v3797
        %3810 = vmatprep.subr.mxu0 0.0
        %3811 = vmatpush1.msra.mxu0 %v3799
        %3812 = vmatprep.subr.mxu0 0.0
        %3813 = vmatpush1.msra.mxu0 0.0
        %3814 = vmatprep.subr.mxu0 0.0
        %3815 = vmatpush1.msra.mxu0 0.0
        %3816 = vmatprep.subr.mxu0 0.0
        %3817 = vmatpush1.msra.mxu0 0.0
        %3818 = vmatprep.subr.mxu0 0.0
        %3819 = vmatpush1.msra.mxu0 0.0
        %3820 = vmatprep.subr.mxu0 0.0
        %3821 = vmatpush1.msra.mxu0 0.0
        %3822 = vmatprep.subr.mxu0 0.0
        %3823 = vmatpush1.msra.mxu0 0.0
        %3824 = vmatprep.subr.mxu0 0.0
        %3825 = vmatpush1.msra.mxu0 0.0
        %3826 = vmatprep.subr.mxu0 0.0
        %3827 = vmatpush1.msra.mxu0 0.0
        %3828 = vmatprep.subr.mxu0 0.0
        %3829 = vmatpush1.msra.mxu0 0.0
        %3830 = vmatprep.subr.mxu0 0.0
        %3831 = vmatpush1.msra.mxu0 0.0
        %3832 = vmatprep.subr.mxu0 0.0
        %3833 = vmatpush1.msra.mxu0 0.0
        %3834 = vmatprep.subr.mxu0 0.0
        %3835 = vmatpush1.msra.mxu0 0.0
        %3836 = vmatprep.subr.mxu0 0.0
        %3837 = vmatpush1.msra.mxu0 0.0
        %3838 = vmatprep.subr.mxu0 0.0
        %3839 = vmatpush1.msra.mxu0 0.0
        %3840 = vmatprep.subr.mxu0 0.0
        %3841 = vmatpush1.msra.mxu0 0.0
        %3842 = vmatprep.subr.mxu0 0.0
        %3843 = vmatpush1.msra.mxu0 0.0
        %3844 = vmatprep.subr.mxu0 0.0
        %3845 = vmatpush1.msra.mxu0 0.0
        %3846 = vmatprep.subr.mxu0 0.0
        %3847 = vmatpush1.msra.mxu0 0.0
        %3848 = vmatprep.subr.mxu0 0.0
        %3849 = vmatpush1.msra.mxu0 0.0
        %3850 = vmatprep.subr.mxu0 0.0
        %3851 = vmatpush1.msra.mxu0 0.0
        %3852 = vmatprep.subr.mxu0 0.0
        %3853 = vmatpush1.msra.mxu0 0.0
        %3854 = vmatprep.subr.mxu0 0.0
        %3855 = vmatpush1.msra.mxu0 0.0
        %3856 = vmatprep.subr.mxu0 0.0
        %3857 = vmatpush1.msra.mxu0 0.0
        %3858 = vmatprep.subr.mxu0 0.0
        %3859 = vmatpush1.msra.mxu0 0.0
        %3860 = vmatprep.subr.mxu0 0.0
        %3861 = vmatpush1.msra.mxu0 0.0
        %3862 = vmatprep.subr.mxu0 0.0
        %3863 = vmatpush1.msra.mxu0 0.0
        %3864 = vmatprep.subr.mxu0 0.0
        %3865 = vmatpush1.msra.mxu0 0.0
        %3866 = vmatprep.subr.mxu0 0.0
        %3867 = vmatpush1.msra.mxu0 0.0
        %3868 = vmatprep.subr.mxu0 0.0
        %3869 = vmatpush1.msra.mxu0 0.0
        %3870 = vmatprep.subr.mxu0 0.0
        %3871 = vmatpush1.msra.mxu0 0.0
        %3872 = vmatprep.mubr.f32.mxu0 0.0
        %3873 = vmatmul.mubr.f32.gmra.mrb[0].mxu0 %v3803
        %v3874 = vpop.f32.mrb[0].mxu0
        %v3875 = vadd.f32 0.0, %v3874
        %v3876 = vpop.f32.mrb[0].mxu0
        %3877 = vmatprep.mubr.f32.mxu0 0.0
        %3878 = vmatmul.mubr.f32.gmra.mrb[0].mxu0 %v3806
        %v3879 = vpop.f32.mrb[0].mxu0
        %v3880 = vadd.f32 0.0, %v3879
        %v3881 = vpop.f32.mrb[0].mxu0
        %3882 = vdwg.mxu0
        %3883 = vrot.lane.b32.xlu0 %v3483, 64
        %v3884 = vpop.permute.xlu0 %3883
        %3885 = vrot.lane.b32.xlu0 %v3484, 64
        %v3886 = vpop.permute.xlu0 %3885
        %v3890 = vsel %vm1117, %v3707, 0
        %v3893 = vsel %vm1117, %v3708, 0
        %3895 = vmatprep.subr.mxu0 0.0
        %3896 = vmatpush1.msra.mxu0 %v3884
        %3897 = vmatprep.subr.mxu0 0.0
        %3898 = vmatpush1.msra.mxu0 %v3886
        %3899 = vmatprep.subr.mxu0 0.0
        %3900 = vmatpush1.msra.mxu0 0.0
        %3901 = vmatprep.subr.mxu0 0.0
        %3902 = vmatpush1.msra.mxu0 0.0
        %3903 = vmatprep.subr.mxu0 0.0
        %3904 = vmatpush1.msra.mxu0 0.0
        %3905 = vmatprep.subr.mxu0 0.0
        %3906 = vmatpush1.msra.mxu0 0.0
        %3907 = vmatprep.subr.mxu0 0.0
        %3908 = vmatpush1.msra.mxu0 0.0
        %3909 = vmatprep.subr.mxu0 0.0
        %3910 = vmatpush1.msra.mxu0 0.0
        %3911 = vmatprep.subr.mxu0 0.0
        %3912 = vmatpush1.msra.mxu0 0.0
        %3913 = vmatprep.subr.mxu0 0.0
        %3914 = vmatpush1.msra.mxu0 0.0
        %3915 = vmatprep.subr.mxu0 0.0
        %3916 = vmatpush1.msra.mxu0 0.0
        %3917 = vmatprep.subr.mxu0 0.0
        %3918 = vmatpush1.msra.mxu0 0.0
        %3919 = vmatprep.subr.mxu0 0.0
        %3920 = vmatpush1.msra.mxu0 0.0
        %3921 = vmatprep.subr.mxu0 0.0
        %3922 = vmatpush1.msra.mxu0 0.0
        %3923 = vmatprep.subr.mxu0 0.0
        %3924 = vmatpush1.msra.mxu0 0.0
        %3925 = vmatprep.subr.mxu0 0.0
        %3926 = vmatpush1.msra.mxu0 0.0
        %3927 = vmatprep.subr.mxu0 0.0
        %3928 = vmatpush1.msra.mxu0 0.0
        %3929 = vmatprep.subr.mxu0 0.0
        %3930 = vmatpush1.msra.mxu0 0.0
        %3931 = vmatprep.subr.mxu0 0.0
        %3932 = vmatpush1.msra.mxu0 0.0
        %3933 = vmatprep.subr.mxu0 0.0
        %3934 = vmatpush1.msra.mxu0 0.0
        %3935 = vmatprep.subr.mxu0 0.0
        %3936 = vmatpush1.msra.mxu0 0.0
        %3937 = vmatprep.subr.mxu0 0.0
        %3938 = vmatpush1.msra.mxu0 0.0
        %3939 = vmatprep.subr.mxu0 0.0
        %3940 = vmatpush1.msra.mxu0 0.0
        %3941 = vmatprep.subr.mxu0 0.0
        %3942 = vmatpush1.msra.mxu0 0.0
        %3943 = vmatprep.subr.mxu0 0.0
        %3944 = vmatpush1.msra.mxu0 0.0
        %3945 = vmatprep.subr.mxu0 0.0
        %3946 = vmatpush1.msra.mxu0 0.0
        %3947 = vmatprep.subr.mxu0 0.0
        %3948 = vmatpush1.msra.mxu0 0.0
        %3949 = vmatprep.subr.mxu0 0.0
        %3950 = vmatpush1.msra.mxu0 0.0
        %3951 = vmatprep.subr.mxu0 0.0
        %3952 = vmatpush1.msra.mxu0 0.0
        %3953 = vmatprep.subr.mxu0 0.0
        %3954 = vmatpush1.msra.mxu0 0.0
        %3955 = vmatprep.subr.mxu0 0.0
        %3956 = vmatpush1.msra.mxu0 0.0
        %3957 = vmatprep.subr.mxu0 0.0
        %3958 = vmatpush1.msra.mxu0 0.0
        %3959 = vmatprep.mubr.f32.mxu0 0.0
        %3960 = vmatmul.mubr.f32.gmra.mrb[0].mxu0 %v3890
        %v3961 = vpop.f32.mrb[0].mxu0
        %v3962 = vadd.f32 %v3875, %v3961
        %v3963 = vpop.f32.mrb[0].mxu0
        %3964 = vmatprep.mubr.f32.mxu0 0.0
        %3965 = vmatmul.mubr.f32.gmra.mrb[0].mxu0 %v3893
        %v3966 = vpop.f32.mrb[0].mxu0
        %v3967 = vadd.f32 %v3880, %v3966
        %v3968 = vpop.f32.mrb[0].mxu0
        %3969 = vdwg.mxu0
        %3970 = vst.msk [vmem:[#allocation2] sm:$0xff] %vm1117, %v3788
        %3971 = vst.msk [vmem:[#allocation2 + $0x8] sm:$0xff] %vm1117, %v3793
        %3972 = vst.msk [vmem:[#allocation3] sm:$0xff] %vm1117, %v3962
        %3973 = vst.msk [vmem:[#allocation3 + $0x8] sm:$0xff] %vm1117, %v3967
        %3974 = vrot.lane.b32.xlu0 %v3218, 112
        %v3975 = vpop.permute.xlu0 %3974
        %3976 = vrot.lane.b32.xlu0 %v3223, 112
        %v3977 = vpop.permute.xlu0 %3976
        %3978 = vrot.lane.b32.xlu0 %v3218, 80
        %v3979 = vpop.permute.xlu0 %3978
        %3980 = vrot.lane.b32.xlu0 %v3223, 80
        %v3981 = vpop.permute.xlu0 %3980
        %v3982 = vsel %vm1117, %v3975, 0
        %v3984 = vsel %vm1117, %v3977, 0
        %v3986 = vsel %vm1117, %v3979, 0
        %v3988 = vsel %vm1117, %v3981, 0
        %3990 = vmatprep.subr.mxu0 0.0
        %3991 = vmatpush1.xpose.msra.mxu0 %v3986
        %3992 = vmatprep.subr.mxu0 0.0
        %3993 = vmatpush1.xpose.msra.mxu0 %v3988
        %3994 = vmatprep.subr.mxu0 0.0
        %3995 = vmatpush1.xpose.msra.mxu0 0.0
        %3996 = vmatprep.subr.mxu0 0.0
        %3997 = vmatpush1.xpose.msra.mxu0 0.0
        %3998 = vmatprep.subr.mxu0 0.0
        %3999 = vmatpush1.xpose.msra.mxu0 0.0
        %4000 = vmatprep.subr.mxu0 0.0
        %4001 = vmatpush1.xpose.msra.mxu0 0.0
        %4002 = vmatprep.subr.mxu0 0.0
        %4003 = vmatpush1.xpose.msra.mxu0 0.0
        %4004 = vmatprep.subr.mxu0 0.0
        %4005 = vmatpush1.xpose.msra.mxu0 0.0
        %4006 = vmatprep.subr.mxu0 0.0
        %4007 = vmatpush1.xpose.msra.mxu0 0.0
        %4008 = vmatprep.subr.mxu0 0.0
        %4009 = vmatpush1.xpose.msra.mxu0 0.0
        %4010 = vmatprep.subr.mxu0 0.0
        %4011 = vmatpush1.xpose.msra.mxu0 0.0
        %4012 = vmatprep.subr.mxu0 0.0
        %4013 = vmatpush1.xpose.msra.mxu0 0.0
        %4014 = vmatprep.subr.mxu0 0.0
        %4015 = vmatpush1.xpose.msra.mxu0 0.0
        %4016 = vmatprep.subr.mxu0 0.0
        %4017 = vmatpush1.xpose.msra.mxu0 0.0
        %4018 = vmatprep.subr.mxu0 0.0
        %4019 = vmatpush1.xpose.msra.mxu0 0.0
        %4020 = vmatprep.subr.mxu0 0.0
        %4021 = vmatpush1.xpose.msra.mxu0 0.0
        %4022 = vmatprep.subr.mxu0 0.0
        %4023 = vmatpush1.xpose.msra.mxu0 0.0
        %4024 = vmatprep.subr.mxu0 0.0
        %4025 = vmatpush1.xpose.msra.mxu0 0.0
        %4026 = vmatprep.subr.mxu0 0.0
        %4027 = vmatpush1.xpose.msra.mxu0 0.0
        %4028 = vmatprep.subr.mxu0 0.0
        %4029 = vmatpush1.xpose.msra.mxu0 0.0
        %4030 = vmatprep.subr.mxu0 0.0
        %4031 = vmatpush1.xpose.msra.mxu0 0.0
        %4032 = vmatprep.subr.mxu0 0.0
        %4033 = vmatpush1.xpose.msra.mxu0 0.0
        %4034 = vmatprep.subr.mxu0 0.0
        %4035 = vmatpush1.xpose.msra.mxu0 0.0
        %4036 = vmatprep.subr.mxu0 0.0
        %4037 = vmatpush1.xpose.msra.mxu0 0.0
        %4038 = vmatprep.subr.mxu0 0.0
        %4039 = vmatpush1.xpose.msra.mxu0 0.0
        %4040 = vmatprep.subr.mxu0 0.0
        %4041 = vmatpush1.xpose.msra.mxu0 0.0
        %4042 = vmatprep.subr.mxu0 0.0
        %4043 = vmatpush1.xpose.msra.mxu0 0.0
        %4044 = vmatprep.subr.mxu0 0.0
        %4045 = vmatpush1.xpose.msra.mxu0 0.0
        %4046 = vmatprep.subr.mxu0 0.0
        %4047 = vmatpush1.xpose.msra.mxu0 0.0
        %4048 = vmatprep.subr.mxu0 0.0
        %4049 = vmatpush1.xpose.msra.mxu0 0.0
        %4050 = vmatprep.subr.mxu0 0.0
        %4051 = vmatpush1.xpose.msra.mxu0 0.0
        %4052 = vmatprep.subr.mxu0 0.0
        %4053 = vmatpush1.xpose.msra.mxu0 0.0
        %4054 = vmatprep.mubr.f32.mxu0 0.0
        %4055 = vmatmul.mubr.f32.gmra.mrb[0].mxu0 %v3982
        %v4056 = vpop.f32.mrb[0].mxu0
        %v4057 = vadd.f32 0.0, %v4056
        %v4058 = vpop.f32.mrb[0].mxu0
        %4059 = vmatprep.mubr.f32.mxu0 0.0
        %4060 = vmatmul.mubr.f32.gmra.mrb[0].mxu0 %v3984
        %v4061 = vpop.f32.mrb[0].mxu0
        %v4062 = vadd.f32 0.0, %v4061
        %v4063 = vpop.f32.mrb[0].mxu0
        %4064 = vdwg.mxu0
        %v4065 = vmul.f32 %v4057, 0.17677669
        %v4066 = vmul.f32 %v4062, 0.17677669
        %4067 = vrot.lane.b32.xlu0 %v3481, 112
        %v4068 = vpop.permute.xlu0 %4067
        %4069 = vrot.lane.b32.xlu0 %v3482, 112
        %v4070 = vpop.permute.xlu0 %4069
        %4071 = vrot.lane.b32.xlu0 %v3382, 80
        %v4072 = vpop.permute.xlu0 %4071
        %4073 = vrot.lane.b32.xlu0 %v3387, 80
        %v4074 = vpop.permute.xlu0 %4073
        %v4075 = vsel %vm1117, %v4068, 0
        %v4077 = vsel %vm1117, %v4070, 0
        %v4079 = vsel %vm1117, %v4072, 0
        %v4081 = vsel %vm1117, %v4074, 0
        %4083 = vmatprep.subr.mxu0 0.0
        %4084 = vmatpush1.xpose.msra.mxu0 %v4079
        %4085 = vmatprep.subr.mxu0 0.0
        %4086 = vmatpush1.xpose.msra.mxu0 %v4081
        %4087 = vmatprep.subr.mxu0 0.0
        %4088 = vmatpush1.xpose.msra.mxu0 0.0
        %4089 = vmatprep.subr.mxu0 0.0
        %4090 = vmatpush1.xpose.msra.mxu0 0.0
        %4091 = vmatprep.subr.mxu0 0.0
        %4092 = vmatpush1.xpose.msra.mxu0 0.0
        %4093 = vmatprep.subr.mxu0 0.0
        %4094 = vmatpush1.xpose.msra.mxu0 0.0
        %4095 = vmatprep.subr.mxu0 0.0
        %4096 = vmatpush1.xpose.msra.mxu0 0.0
        %4097 = vmatprep.subr.mxu0 0.0
        %4098 = vmatpush1.xpose.msra.mxu0 0.0
        %4099 = vmatprep.subr.mxu0 0.0
        %4100 = vmatpush1.xpose.msra.mxu0 0.0
        %4101 = vmatprep.subr.mxu0 0.0
        %4102 = vmatpush1.xpose.msra.mxu0 0.0
        %4103 = vmatprep.subr.mxu0 0.0
        %4104 = vmatpush1.xpose.msra.mxu0 0.0
        %4105 = vmatprep.subr.mxu0 0.0
        %4106 = vmatpush1.xpose.msra.mxu0 0.0
        %4107 = vmatprep.subr.mxu0 0.0
        %4108 = vmatpush1.xpose.msra.mxu0 0.0
        %4109 = vmatprep.subr.mxu0 0.0
        %4110 = vmatpush1.xpose.msra.mxu0 0.0
        %4111 = vmatprep.subr.mxu0 0.0
        %4112 = vmatpush1.xpose.msra.mxu0 0.0
        %4113 = vmatprep.subr.mxu0 0.0
        %4114 = vmatpush1.xpose.msra.mxu0 0.0
        %4115 = vmatprep.subr.mxu0 0.0
        %4116 = vmatpush1.xpose.msra.mxu0 0.0
        %4117 = vmatprep.subr.mxu0 0.0
        %4118 = vmatpush1.xpose.msra.mxu0 0.0
        %4119 = vmatprep.subr.mxu0 0.0
        %4120 = vmatpush1.xpose.msra.mxu0 0.0
        %4121 = vmatprep.subr.mxu0 0.0
        %4122 = vmatpush1.xpose.msra.mxu0 0.0
        %4123 = vmatprep.subr.mxu0 0.0
        %4124 = vmatpush1.xpose.msra.mxu0 0.0
        %4125 = vmatprep.subr.mxu0 0.0
        %4126 = vmatpush1.xpose.msra.mxu0 0.0
        %4127 = vmatprep.subr.mxu0 0.0
        %4128 = vmatpush1.xpose.msra.mxu0 0.0
        %4129 = vmatprep.subr.mxu0 0.0
        %4130 = vmatpush1.xpose.msra.mxu0 0.0
        %4131 = vmatprep.subr.mxu0 0.0
        %4132 = vmatpush1.xpose.msra.mxu0 0.0
        %4133 = vmatprep.subr.mxu0 0.0
        %4134 = vmatpush1.xpose.msra.mxu0 0.0
        %4135 = vmatprep.subr.mxu0 0.0
        %4136 = vmatpush1.xpose.msra.mxu0 0.0
        %4137 = vmatprep.subr.mxu0 0.0
        %4138 = vmatpush1.xpose.msra.mxu0 0.0
        %4139 = vmatprep.subr.mxu0 0.0
        %4140 = vmatpush1.xpose.msra.mxu0 0.0
        %4141 = vmatprep.subr.mxu0 0.0
        %4142 = vmatpush1.xpose.msra.mxu0 0.0
        %4143 = vmatprep.subr.mxu0 0.0
        %4144 = vmatpush1.xpose.msra.mxu0 0.0
        %4145 = vmatprep.subr.mxu0 0.0
        %4146 = vmatpush1.xpose.msra.mxu0 0.0
        %4147 = vmatprep.mubr.f32.mxu0 0.0
        %4148 = vmatmul.mubr.f32.gmra.mrb[0].mxu0 %v4075
        %v4149 = vpop.f32.mrb[0].mxu0
        %v4150 = vadd.f32 0.0, %v4149
        %v4151 = vpop.f32.mrb[0].mxu0
        %4152 = vmatprep.mubr.f32.mxu0 0.0
        %4153 = vmatmul.mubr.f32.gmra.mrb[0].mxu0 %v4077
        %v4154 = vpop.f32.mrb[0].mxu0
        %v4155 = vadd.f32 0.0, %v4154
        %v4156 = vpop.f32.mrb[0].mxu0
        %4157 = vdwg.mxu0
        %4158 = vrot.lane.b32.xlu0 %v3382, 112
        %v4159 = vpop.permute.xlu0 %4158
        %4160 = vrot.lane.b32.xlu0 %v3387, 112
        %v4161 = vpop.permute.xlu0 %4160
        %4162 = vrot.lane.b32.xlu0 %v3483, 80
        %v4163 = vpop.permute.xlu0 %4162
        %4164 = vrot.lane.b32.xlu0 %v3484, 80
        %v4165 = vpop.permute.xlu0 %4164
        %v4166 = vsel %vm1117, %v4159, 0
        %v4168 = vsel %vm1117, %v4161, 0
        %v4170 = vsel %vm1117, %v4163, 0
        %v4172 = vsel %vm1117, %v4165, 0
        %4174 = vmatprep.subr.mxu0 0.0
        %4175 = vmatpush1.xpose.msra.mxu0 %v4170
        %4176 = vmatprep.subr.mxu0 0.0
        %4177 = vmatpush1.xpose.msra.mxu0 %v4172
        %4178 = vmatprep.subr.mxu0 0.0
        %4179 = vmatpush1.xpose.msra.mxu0 0.0
        %4180 = vmatprep.subr.mxu0 0.0
        %4181 = vmatpush1.xpose.msra.mxu0 0.0
        %4182 = vmatprep.subr.mxu0 0.0
        %4183 = vmatpush1.xpose.msra.mxu0 0.0
        %4184 = vmatprep.subr.mxu0 0.0
        %4185 = vmatpush1.xpose.msra.mxu0 0.0
        %4186 = vmatprep.subr.mxu0 0.0
        %4187 = vmatpush1.xpose.msra.mxu0 0.0
        %4188 = vmatprep.subr.mxu0 0.0
        %4189 = vmatpush1.xpose.msra.mxu0 0.0
        %4190 = vmatprep.subr.mxu0 0.0
        %4191 = vmatpush1.xpose.msra.mxu0 0.0
        %4192 = vmatprep.subr.mxu0 0.0
        %4193 = vmatpush1.xpose.msra.mxu0 0.0
        %4194 = vmatprep.subr.mxu0 0.0
        %4195 = vmatpush1.xpose.msra.mxu0 0.0
        %4196 = vmatprep.subr.mxu0 0.0
        %4197 = vmatpush1.xpose.msra.mxu0 0.0
        %4198 = vmatprep.subr.mxu0 0.0
        %4199 = vmatpush1.xpose.msra.mxu0 0.0
        %4200 = vmatprep.subr.mxu0 0.0
        %4201 = vmatpush1.xpose.msra.mxu0 0.0
        %4202 = vmatprep.subr.mxu0 0.0
        %4203 = vmatpush1.xpose.msra.mxu0 0.0
        %4204 = vmatprep.subr.mxu0 0.0
        %4205 = vmatpush1.xpose.msra.mxu0 0.0
        %4206 = vmatprep.subr.mxu0 0.0
        %4207 = vmatpush1.xpose.msra.mxu0 0.0
        %4208 = vmatprep.subr.mxu0 0.0
        %4209 = vmatpush1.xpose.msra.mxu0 0.0
        %4210 = vmatprep.subr.mxu0 0.0
        %4211 = vmatpush1.xpose.msra.mxu0 0.0
        %4212 = vmatprep.subr.mxu0 0.0
        %4213 = vmatpush1.xpose.msra.mxu0 0.0
        %4214 = vmatprep.subr.mxu0 0.0
        %4215 = vmatpush1.xpose.msra.mxu0 0.0
        %4216 = vmatprep.subr.mxu0 0.0
        %4217 = vmatpush1.xpose.msra.mxu0 0.0
        %4218 = vmatprep.subr.mxu0 0.0
        %4219 = vmatpush1.xpose.msra.mxu0 0.0
        %4220 = vmatprep.subr.mxu0 0.0
        %4221 = vmatpush1.xpose.msra.mxu0 0.0
        %4222 = vmatprep.subr.mxu0 0.0
        %4223 = vmatpush1.xpose.msra.mxu0 0.0
        %4224 = vmatprep.subr.mxu0 0.0
        %4225 = vmatpush1.xpose.msra.mxu0 0.0
        %4226 = vmatprep.subr.mxu0 0.0
        %4227 = vmatpush1.xpose.msra.mxu0 0.0
        %4228 = vmatprep.subr.mxu0 0.0
        %4229 = vmatpush1.xpose.msra.mxu0 0.0
        %4230 = vmatprep.subr.mxu0 0.0
        %4231 = vmatpush1.xpose.msra.mxu0 0.0
        %4232 = vmatprep.subr.mxu0 0.0
        %4233 = vmatpush1.xpose.msra.mxu0 0.0
        %4234 = vmatprep.subr.mxu0 0.0
        %4235 = vmatpush1.xpose.msra.mxu0 0.0
        %4236 = vmatprep.subr.mxu0 0.0
        %4237 = vmatpush1.xpose.msra.mxu0 0.0
        %4238 = vmatprep.mubr.f32.mxu0 0.0
        %4239 = vmatmul.mubr.f32.gmra.mrb[0].mxu0 %v4166
        %v4240 = vpop.f32.mrb[0].mxu0
        %v4241 = vadd.f32 %v4150, %v4240
        %v4242 = vpop.f32.mrb[0].mxu0
        %4243 = vmatprep.mubr.f32.mxu0 0.0
        %4244 = vmatmul.mubr.f32.gmra.mrb[0].mxu0 %v4168
        %v4245 = vpop.f32.mrb[0].mxu0
        %v4246 = vadd.f32 %v4155, %v4245
        %v4247 = vpop.f32.mrb[0].mxu0
        %4248 = vdwg.mxu0
        %v4249 = vmul.f32 %v4241, 0.03125
        %v4250 = vmul.f32 %v4246, 0.03125
        %v4251 = vsel %vm1117, %v4065, -inf
        %4252 = vmax.xlane.f32.xlu0 %v4251
        %v4253 = vpop.xlane.xlu0 %4252
        %v4254 = vsel %vm1117, %v4066, -inf
        %4255 = vmax.xlane.f32.xlu0 %v4254
        %v4256 = vpop.xlane.xlu0 %4255
        %v4257 = vsub.f32 %v4065, %v4253
        %v4258 = vsub.f32 %v4066, %v4256
        %v4259 = vmul.f32 %v4257, 1.442695
        %v4260 = vpow.pop %v4259
        %v4261 = vmul.f32 %v4258, 1.442695
        %v4262 = vpow.pop %v4261
        %v4263 = vsel %vm1117, %v4260, 0.0
        %4264 = vadd.xlane.f32.xlu0 %v4263
        %v4265 = vpop.xlane.xlu0 %4264
        %v4266 = vsel %vm1117, %v4262, 0.0
        %4267 = vadd.xlane.f32.xlu0 %v4266
        %v4268 = vpop.xlane.xlu0 %4267
        %v4269 = vrcp.pop %v4265
        %v4270 = vrcp.pop %v4268
        %v4271 = vmul.f32 %v4260, %v4269
        %v4272 = vmul.f32 %v4262, %v4270
        %v4273 = vmul.f32 %v4271, %v4271
        %v4274 = vmul.f32 %v4272, %v4272
        %v4275 = vmul.f32 %v4273, %v4249
        %v4276 = vmul.f32 %v4274, %v4250
        %v4277 = vsel %vm1117, %v4275, 0.0
        %4278 = vadd.xlane.f32.xlu0 %v4277
        %v4279 = vpop.xlane.xlu0 %4278
        %v4280 = vsel %vm1117, %v4276, 0.0
        %4281 = vadd.xlane.f32.xlu0 %v4280
        %v4282 = vpop.xlane.xlu0 %4281
        %v4283 = vmul.f32 %v4271, 2.0
        %v4284 = vmul.f32 %v4272, 2.0
        %v4285 = vsub.f32 1.0, %v4283
        %v4286 = vsub.f32 1.0, %v4284
        %v4287 = vmul.f32 %v4285, %v4249
        %v4288 = vmul.f32 %v4286, %v4250
        %v4289 = vadd.f32 %v4279, %v4287
        %v4290 = vadd.f32 %v4282, %v4288
        %v4291 = vmul.f32 %v4273, %v4289
        %v4292 = vmul.f32 %v4274, %v4290
        %4293 = vrot.lane.b32.xlu0 %v3218, 48
        %v4294 = vpop.permute.xlu0 %4293
        %4295 = vrot.lane.b32.xlu0 %v3223, 48
        %v4296 = vpop.permute.xlu0 %4295
        %v4300 = vsel %vm1117, %v4271, 0
        %v4303 = vsel %vm1117, %v4272, 0
        %4305 = vmatprep.subr.mxu0 0.0
        %4306 = vmatpush1.msra.mxu0 %v4294
        %4307 = vmatprep.subr.mxu0 0.0
        %4308 = vmatpush1.msra.mxu0 %v4296
        %4309 = vmatprep.subr.mxu0 0.0
        %4310 = vmatpush1.msra.mxu0 0.0
        %4311 = vmatprep.subr.mxu0 0.0
        %4312 = vmatpush1.msra.mxu0 0.0
        %4313 = vmatprep.subr.mxu0 0.0
        %4314 = vmatpush1.msra.mxu0 0.0
        %4315 = vmatprep.subr.mxu0 0.0
        %4316 = vmatpush1.msra.mxu0 0.0
        %4317 = vmatprep.subr.mxu0 0.0
        %4318 = vmatpush1.msra.mxu0 0.0
        %4319 = vmatprep.subr.mxu0 0.0
        %4320 = vmatpush1.msra.mxu0 0.0
        %4321 = vmatprep.subr.mxu0 0.0
        %4322 = vmatpush1.msra.mxu0 0.0
        %4323 = vmatprep.subr.mxu0 0.0
        %4324 = vmatpush1.msra.mxu0 0.0
        %4325 = vmatprep.subr.mxu0 0.0
        %4326 = vmatpush1.msra.mxu0 0.0
        %4327 = vmatprep.subr.mxu0 0.0
        %4328 = vmatpush1.msra.mxu0 0.0
        %4329 = vmatprep.subr.mxu0 0.0
        %4330 = vmatpush1.msra.mxu0 0.0
        %4331 = vmatprep.subr.mxu0 0.0
        %4332 = vmatpush1.msra.mxu0 0.0
        %4333 = vmatprep.subr.mxu0 0.0
        %4334 = vmatpush1.msra.mxu0 0.0
        %4335 = vmatprep.subr.mxu0 0.0
        %4336 = vmatpush1.msra.mxu0 0.0
        %4337 = vmatprep.subr.mxu0 0.0
        %4338 = vmatpush1.msra.mxu0 0.0
        %4339 = vmatprep.subr.mxu0 0.0
        %4340 = vmatpush1.msra.mxu0 0.0
        %4341 = vmatprep.subr.mxu0 0.0
        %4342 = vmatpush1.msra.mxu0 0.0
        %4343 = vmatprep.subr.mxu0 0.0
        %4344 = vmatpush1.msra.mxu0 0.0
        %4345 = vmatprep.subr.mxu0 0.0
        %4346 = vmatpush1.msra.mxu0 0.0
        %4347 = vmatprep.subr.mxu0 0.0
        %4348 = vmatpush1.msra.mxu0 0.0
        %4349 = vmatprep.subr.mxu0 0.0
        %4350 = vmatpush1.msra.mxu0 0.0
        %4351 = vmatprep.subr.mxu0 0.0
        %4352 = vmatpush1.msra.mxu0 0.0
        %4353 = vmatprep.subr.mxu0 0.0
        %4354 = vmatpush1.msra.mxu0 0.0
        %4355 = vmatprep.subr.mxu0 0.0
        %4356 = vmatpush1.msra.mxu0 0.0
        %4357 = vmatprep.subr.mxu0 0.0
        %4358 = vmatpush1.msra.mxu0 0.0
        %4359 = vmatprep.subr.mxu0 0.0
        %4360 = vmatpush1.msra.mxu0 0.0
        %4361 = vmatprep.subr.mxu0 0.0
        %4362 = vmatpush1.msra.mxu0 0.0
        %4363 = vmatprep.subr.mxu0 0.0
        %4364 = vmatpush1.msra.mxu0 0.0
        %4365 = vmatprep.subr.mxu0 0.0
        %4366 = vmatpush1.msra.mxu0 0.0
        %4367 = vmatprep.subr.mxu0 0.0
        %4368 = vmatpush1.msra.mxu0 0.0
        %4369 = vmatprep.mubr.f32.mxu0 0.0
        %4370 = vmatmul.mubr.f32.gmra.mrb[0].mxu0 %v4300
        %v4371 = vpop.f32.mrb[0].mxu0
        %v4372 = vadd.f32 0.0, %v4371
        %v4373 = vpop.f32.mrb[0].mxu0
        %4374 = vmatprep.mubr.f32.mxu0 0.0
        %4375 = vmatmul.mubr.f32.gmra.mrb[0].mxu0 %v4303
        %v4376 = vpop.f32.mrb[0].mxu0
        %v4377 = vadd.f32 0.0, %v4376
        %v4378 = vpop.f32.mrb[0].mxu0
        %4379 = vdwg.mxu0
        %4380 = vrot.lane.b32.xlu0 %v3382, 48
        %v4381 = vpop.permute.xlu0 %4380
        %4382 = vrot.lane.b32.xlu0 %v3387, 48
        %v4383 = vpop.permute.xlu0 %4382
        %v4387 = vsel %vm1117, %v4273, 0
        %v4390 = vsel %vm1117, %v4274, 0
        %4392 = vmatprep.subr.mxu0 0.0
        %4393 = vmatpush1.msra.mxu0 %v4381
        %4394 = vmatprep.subr.mxu0 0.0
        %4395 = vmatpush1.msra.mxu0 %v4383
        %4396 = vmatprep.subr.mxu0 0.0
        %4397 = vmatpush1.msra.mxu0 0.0
        %4398 = vmatprep.subr.mxu0 0.0
        %4399 = vmatpush1.msra.mxu0 0.0
        %4400 = vmatprep.subr.mxu0 0.0
        %4401 = vmatpush1.msra.mxu0 0.0
        %4402 = vmatprep.subr.mxu0 0.0
        %4403 = vmatpush1.msra.mxu0 0.0
        %4404 = vmatprep.subr.mxu0 0.0
        %4405 = vmatpush1.msra.mxu0 0.0
        %4406 = vmatprep.subr.mxu0 0.0
        %4407 = vmatpush1.msra.mxu0 0.0
        %4408 = vmatprep.subr.mxu0 0.0
        %4409 = vmatpush1.msra.mxu0 0.0
        %4410 = vmatprep.subr.mxu0 0.0
        %4411 = vmatpush1.msra.mxu0 0.0
        %4412 = vmatprep.subr.mxu0 0.0
        %4413 = vmatpush1.msra.mxu0 0.0
        %4414 = vmatprep.subr.mxu0 0.0
        %4415 = vmatpush1.msra.mxu0 0.0
        %4416 = vmatprep.subr.mxu0 0.0
        %4417 = vmatpush1.msra.mxu0 0.0
        %4418 = vmatprep.subr.mxu0 0.0
        %4419 = vmatpush1.msra.mxu0 0.0
        %4420 = vmatprep.subr.mxu0 0.0
        %4421 = vmatpush1.msra.mxu0 0.0
        %4422 = vmatprep.subr.mxu0 0.0
        %4423 = vmatpush1.msra.mxu0 0.0
        %4424 = vmatprep.subr.mxu0 0.0
        %4425 = vmatpush1.msra.mxu0 0.0
        %4426 = vmatprep.subr.mxu0 0.0
        %4427 = vmatpush1.msra.mxu0 0.0
        %4428 = vmatprep.subr.mxu0 0.0
        %4429 = vmatpush1.msra.mxu0 0.0
        %4430 = vmatprep.subr.mxu0 0.0
        %4431 = vmatpush1.msra.mxu0 0.0
        %4432 = vmatprep.subr.mxu0 0.0
        %4433 = vmatpush1.msra.mxu0 0.0
        %4434 = vmatprep.subr.mxu0 0.0
        %4435 = vmatpush1.msra.mxu0 0.0
        %4436 = vmatprep.subr.mxu0 0.0
        %4437 = vmatpush1.msra.mxu0 0.0
        %4438 = vmatprep.subr.mxu0 0.0
        %4439 = vmatpush1.msra.mxu0 0.0
        %4440 = vmatprep.subr.mxu0 0.0
        %4441 = vmatpush1.msra.mxu0 0.0
        %4442 = vmatprep.subr.mxu0 0.0
        %4443 = vmatpush1.msra.mxu0 0.0
        %4444 = vmatprep.subr.mxu0 0.0
        %4445 = vmatpush1.msra.mxu0 0.0
        %4446 = vmatprep.subr.mxu0 0.0
        %4447 = vmatpush1.msra.mxu0 0.0
        %4448 = vmatprep.subr.mxu0 0.0
        %4449 = vmatpush1.msra.mxu0 0.0
        %4450 = vmatprep.subr.mxu0 0.0
        %4451 = vmatpush1.msra.mxu0 0.0
        %4452 = vmatprep.subr.mxu0 0.0
        %4453 = vmatpush1.msra.mxu0 0.0
        %4454 = vmatprep.subr.mxu0 0.0
        %4455 = vmatpush1.msra.mxu0 0.0
        %4456 = vmatprep.mubr.f32.mxu0 0.0
        %4457 = vmatmul.mubr.f32.gmra.mrb[0].mxu0 %v4387
        %v4458 = vpop.f32.mrb[0].mxu0
        %v4459 = vadd.f32 0.0, %v4458
        %v4460 = vpop.f32.mrb[0].mxu0
        %4461 = vmatprep.mubr.f32.mxu0 0.0
        %4462 = vmatmul.mubr.f32.gmra.mrb[0].mxu0 %v4390
        %v4463 = vpop.f32.mrb[0].mxu0
        %v4464 = vadd.f32 0.0, %v4463
        %v4465 = vpop.f32.mrb[0].mxu0
        %4466 = vdwg.mxu0
        %4467 = vrot.lane.b32.xlu0 %v3483, 48
        %v4468 = vpop.permute.xlu0 %4467
        %4469 = vrot.lane.b32.xlu0 %v3484, 48
        %v4470 = vpop.permute.xlu0 %4469
        %v4474 = vsel %vm1117, %v4291, 0
        %v4477 = vsel %vm1117, %v4292, 0
        %4479 = vmatprep.subr.mxu0 0.0
        %4480 = vmatpush1.msra.mxu0 %v4468
        %4481 = vmatprep.subr.mxu0 0.0
        %4482 = vmatpush1.msra.mxu0 %v4470
        %4483 = vmatprep.subr.mxu0 0.0
        %4484 = vmatpush1.msra.mxu0 0.0
        %4485 = vmatprep.subr.mxu0 0.0
        %4486 = vmatpush1.msra.mxu0 0.0
        %4487 = vmatprep.subr.mxu0 0.0
        %4488 = vmatpush1.msra.mxu0 0.0
        %4489 = vmatprep.subr.mxu0 0.0
        %4490 = vmatpush1.msra.mxu0 0.0
        %4491 = vmatprep.subr.mxu0 0.0
        %4492 = vmatpush1.msra.mxu0 0.0
        %4493 = vmatprep.subr.mxu0 0.0
        %4494 = vmatpush1.msra.mxu0 0.0
        %4495 = vmatprep.subr.mxu0 0.0
        %4496 = vmatpush1.msra.mxu0 0.0
        %4497 = vmatprep.subr.mxu0 0.0
        %4498 = vmatpush1.msra.mxu0 0.0
        %4499 = vmatprep.subr.mxu0 0.0
        %4500 = vmatpush1.msra.mxu0 0.0
        %4501 = vmatprep.subr.mxu0 0.0
        %4502 = vmatpush1.msra.mxu0 0.0
        %4503 = vmatprep.subr.mxu0 0.0
        %4504 = vmatpush1.msra.mxu0 0.0
        %4505 = vmatprep.subr.mxu0 0.0
        %4506 = vmatpush1.msra.mxu0 0.0
        %4507 = vmatprep.subr.mxu0 0.0
        %4508 = vmatpush1.msra.mxu0 0.0
        %4509 = vmatprep.subr.mxu0 0.0
        %4510 = vmatpush1.msra.mxu0 0.0
        %4511 = vmatprep.subr.mxu0 0.0
        %4512 = vmatpush1.msra.mxu0 0.0
        %4513 = vmatprep.subr.mxu0 0.0
        %4514 = vmatpush1.msra.mxu0 0.0
        %4515 = vmatprep.subr.mxu0 0.0
        %4516 = vmatpush1.msra.mxu0 0.0
        %4517 = vmatprep.subr.mxu0 0.0
        %4518 = vmatpush1.msra.mxu0 0.0
        %4519 = vmatprep.subr.mxu0 0.0
        %4520 = vmatpush1.msra.mxu0 0.0
        %4521 = vmatprep.subr.mxu0 0.0
        %4522 = vmatpush1.msra.mxu0 0.0
        %4523 = vmatprep.subr.mxu0 0.0
        %4524 = vmatpush1.msra.mxu0 0.0
        %4525 = vmatprep.subr.mxu0 0.0
        %4526 = vmatpush1.msra.mxu0 0.0
        %4527 = vmatprep.subr.mxu0 0.0
        %4528 = vmatpush1.msra.mxu0 0.0
        %4529 = vmatprep.subr.mxu0 0.0
        %4530 = vmatpush1.msra.mxu0 0.0
        %4531 = vmatprep.subr.mxu0 0.0
        %4532 = vmatpush1.msra.mxu0 0.0
        %4533 = vmatprep.subr.mxu0 0.0
        %4534 = vmatpush1.msra.mxu0 0.0
        %4535 = vmatprep.subr.mxu0 0.0
        %4536 = vmatpush1.msra.mxu0 0.0
        %4537 = vmatprep.subr.mxu0 0.0
        %4538 = vmatpush1.msra.mxu0 0.0
        %4539 = vmatprep.subr.mxu0 0.0
        %4540 = vmatpush1.msra.mxu0 0.0
        %4541 = vmatprep.subr.mxu0 0.0
        %4542 = vmatpush1.msra.mxu0 0.0
        %4543 = vmatprep.mubr.f32.mxu0 0.0
        %4544 = vmatmul.mubr.f32.gmra.mrb[0].mxu0 %v4474
        %v4545 = vpop.f32.mrb[0].mxu0
        %v4546 = vadd.f32 %v4459, %v4545
        %v4547 = vpop.f32.mrb[0].mxu0
        %4548 = vmatprep.mubr.f32.mxu0 0.0
        %4549 = vmatmul.mubr.f32.gmra.mrb[0].mxu0 %v4477
        %v4550 = vpop.f32.mrb[0].mxu0
        %v4551 = vadd.f32 %v4464, %v4550
        %v4552 = vpop.f32.mrb[0].mxu0
        %4553 = vdwg.mxu0
        %4556 = vrot.lane.b32.xlu0 %v4372, 16
        %v4557 = vpop.permute.xlu0 %4556
        %4558 = vrot.lane.b32.xlu0 %v4377, 16
        %v4559 = vpop.permute.xlu0 %4558
        %4562 = vst.msk [vmem:[#allocation2] sm:$0xff] %vm2733, %v4557
        %4563 = vst.msk [vmem:[#allocation2 + $0x8] sm:$0xff] %vm2733, %v4559
        %4566 = vrot.lane.b32.xlu0 %v4546, 16
        %v4567 = vpop.permute.xlu0 %4566
        %4568 = vrot.lane.b32.xlu0 %v4551, 16
        %v4569 = vpop.permute.xlu0 %4568
        %4572 = vst.msk [vmem:[#allocation3] sm:$0xff] %vm2733, %v4567
        %4573 = vst.msk [vmem:[#allocation3 + $0x8] sm:$0xff] %vm2733, %v4569
        %v4574 = vld [vmem:[#allocation2] sm:$0xff]
        %v4575 = vld [vmem:[#allocation2 + $0x8] sm:$0xff]
        %v4576 = vld [vmem:[#allocation3] sm:$0xff]
        %v4577 = vld [vmem:[#allocation3 + $0x8] sm:$0xff]
        %v4578 = vadd.f32 %v3137, %v4574
        %v4579 = vadd.f32 %v3138, %v4575
        %v4580 = vadd.f32 %v3143, %v4576
        %v4581 = vadd.f32 %v3144, %v4577
        %v4582 = vsel %vm1315, %v4578, 0.0
        %4583 = vadd.xlane.f32.xlu0 %v4582
        %v4584 = vpop.xlane.xlu0 %4583
        %v4585 = vsel %vm1315, %v4579, 0.0
        %4586 = vadd.xlane.f32.xlu0 %v4585
        %v4587 = vpop.xlane.xlu0 %4586
        %v4588 = vmul.f32 %v4584, %v2760
        %v4589 = vmul.f32 %v4587, %v2760
        %v4590 = vsub.f32 %v4578, %v4588
        %v4591 = vsub.f32 %v4579, %v4589
        %v4592 = vmul.f32 %v4590, %v4590
        %v4593 = vmul.f32 %v4591, %v4591
        %v4594 = vsel %vm1315, %v4592, 0.0
        %4595 = vadd.xlane.f32.xlu0 %v4594
        %v4596 = vpop.xlane.xlu0 %4595
        %v4597 = vsel %vm1315, %v4593, 0.0
        %4598 = vadd.xlane.f32.xlu0 %v4597
        %v4599 = vpop.xlane.xlu0 %4598
        %v4600 = vmul.f32 %v4596, %v2760
        %v4601 = vmul.f32 %v4599, %v2760
        %v4602 = vadd.f32 %v4600, 1e-05
        %v4603 = vadd.f32 %v4601, 1e-05
        %v4604 = vrsqrt.pop %v4602
        %v4605 = vrsqrt.pop %v4603
        %v4607 = vlaneseq
        %v4608 = vshrl.u32 %v4607, 7
        %v4609 = vsub.s32 0, %v4608
        %v4610 = vrot.slane %v3082, %v4609
        %v4612 = vmul.f32 %v4610, %v4590
        %v4613 = vmul.f32 %v4610, %v4591
        %v4614 = vmul.f32 %v4612, %v4604
        %v4615 = vmul.f32 %v4613, %v4605
        %v4617 = vlaneseq
        %v4618 = vshrl.u32 %v4617, 7
        %v4619 = vsub.s32 0, %v4618
        %v4620 = vrot.slane %v3083, %v4619
        %v4622 = vadd.f32 %v4614, %v4620
        %v4623 = vadd.f32 %v4615, %v4620
        %v4624 = vmul.f32 %v4610, %v4604
        %v4625 = vmul.f32 %v4610, %v4605
        %v4626 = vmul.f32 %v4624, %v4624
        %v4627 = vmul.f32 %v4625, %v4625
        %v4628 = vmul.f32 %v4626, %v4580
        %v4629 = vmul.f32 %v4627, %v4581
        %v4631 = vlaneseq
        %v4632 = vshrl.u32 %v4631, 7
        %v4633 = vsub.s32 0, %v4632
        %v4634 = vrot.slane %v3096, %v4633
        %v4637 = vsel %vm1315, %v4622, 0
        %v4640 = vsel %vm1315, %v4623, 0
        %4642 = vmatprep.subr.mxu0 0.0
        %4643 = vmatpush1.msra.mxu0 %v3084
        %4644 = vmatprep.subr.mxu0 0.0
        %4645 = vmatpush1.msra.mxu0 %v3085
        %4646 = vmatprep.subr.mxu0 0.0
        %4647 = vmatpush1.msra.mxu0 %v3086
        %4648 = vmatprep.subr.mxu0 0.0
        %4649 = vmatpush1.msra.mxu0 %v3087
        %4650 = vmatprep.subr.mxu0 0.0
        %4651 = vmatpush1.msra.mxu0 0.0
        %4652 = vmatprep.subr.mxu0 0.0
        %4653 = vmatpush1.msra.mxu0 0.0
        %4654 = vmatprep.subr.mxu0 0.0
        %4655 = vmatpush1.msra.mxu0 0.0
        %4656 = vmatprep.subr.mxu0 0.0
        %4657 = vmatpush1.msra.mxu0 0.0
        %4658 = vmatprep.subr.mxu0 0.0
        %4659 = vmatpush1.msra.mxu0 0.0
        %4660 = vmatprep.subr.mxu0 0.0
        %4661 = vmatpush1.msra.mxu0 0.0
        %4662 = vmatprep.subr.mxu0 0.0
        %4663 = vmatpush1.msra.mxu0 0.0
        %4664 = vmatprep.subr.mxu0 0.0
        %4665 = vmatpush1.msra.mxu0 0.0
        %4666 = vmatprep.subr.mxu0 0.0
        %4667 = vmatpush1.msra.mxu0 0.0
        %4668 = vmatprep.subr.mxu0 0.0
        %4669 = vmatpush1.msra.mxu0 0.0
        %4670 = vmatprep.subr.mxu0 0.0
        %4671 = vmatpush1.msra.mxu0 0.0
        %4672 = vmatprep.subr.mxu0 0.0
        %4673 = vmatpush1.msra.mxu0 0.0
        %4674 = vmatprep.subr.mxu0 0.0
        %4675 = vmatpush1.msra.mxu0 0.0
        %4676 = vmatprep.subr.mxu0 0.0
        %4677 = vmatpush1.msra.mxu0 0.0
        %4678 = vmatprep.subr.mxu0 0.0
        %4679 = vmatpush1.msra.mxu0 0.0
        %4680 = vmatprep.subr.mxu0 0.0
        %4681 = vmatpush1.msra.mxu0 0.0
        %4682 = vmatprep.subr.mxu0 0.0
        %4683 = vmatpush1.msra.mxu0 0.0
        %4684 = vmatprep.subr.mxu0 0.0
        %4685 = vmatpush1.msra.mxu0 0.0
        %4686 = vmatprep.subr.mxu0 0.0
        %4687 = vmatpush1.msra.mxu0 0.0
        %4688 = vmatprep.subr.mxu0 0.0
        %4689 = vmatpush1.msra.mxu0 0.0
        %4690 = vmatprep.subr.mxu0 0.0
        %4691 = vmatpush1.msra.mxu0 0.0
        %4692 = vmatprep.subr.mxu0 0.0
        %4693 = vmatpush1.msra.mxu0 0.0
        %4694 = vmatprep.subr.mxu0 0.0
        %4695 = vmatpush1.msra.mxu0 0.0
        %4696 = vmatprep.subr.mxu0 0.0
        %4697 = vmatpush1.msra.mxu0 0.0
        %4698 = vmatprep.subr.mxu0 0.0
        %4699 = vmatpush1.msra.mxu0 0.0
        %4700 = vmatprep.subr.mxu0 0.0
        %4701 = vmatpush1.msra.mxu0 0.0
        %4702 = vmatprep.subr.mxu0 0.0
        %4703 = vmatpush1.msra.mxu0 0.0
        %4704 = vmatprep.subr.mxu0 0.0
        %4705 = vmatpush1.msra.mxu0 0.0
        %4706 = vmatprep.mubr.f32.mxu0 0.0
        %4707 = vmatmul.mubr.f32.gmra.mrb[0].mxu0 %v4637
        %v4708 = vpop.f32.mrb[0].mxu0
        %v4709 = vadd.f32 %v4634, %v4708
        %v4710 = vpop.f32.mrb[0].mxu0
        %4711 = vmatprep.mubr.f32.mxu0 0.0
        %4712 = vmatmul.mubr.f32.gmra.mrb[0].mxu0 %v4640
        %v4713 = vpop.f32.mrb[0].mxu0
        %v4714 = vadd.f32 %v4634, %v4713
        %v4715 = vpop.f32.mrb[0].mxu0
        %4716 = vdwg.mxu0
        %v4717 = vmul.f32 %v4622, %v4622
        %v4718 = vmul.f32 %v4623, %v4623
        %v4720 = vsel %vm1315, %v4717, 0
        %v4723 = vsel %vm1315, %v4718, 0
        %4725 = vmatprep.subr.mxu0 0.0
        %4726 = vmatpush1.msra.mxu0 %v3092
        %4727 = vmatprep.subr.mxu0 0.0
        %4728 = vmatpush1.msra.mxu0 %v3093
        %4729 = vmatprep.subr.mxu0 0.0
        %4730 = vmatpush1.msra.mxu0 %v3094
        %4731 = vmatprep.subr.mxu0 0.0
        %4732 = vmatpush1.msra.mxu0 %v3095
        %4733 = vmatprep.subr.mxu0 0.0
        %4734 = vmatpush1.msra.mxu0 0.0
        %4735 = vmatprep.subr.mxu0 0.0
        %4736 = vmatpush1.msra.mxu0 0.0
        %4737 = vmatprep.subr.mxu0 0.0
        %4738 = vmatpush1.msra.mxu0 0.0
        %4739 = vmatprep.subr.mxu0 0.0
        %4740 = vmatpush1.msra.mxu0 0.0
        %4741 = vmatprep.subr.mxu0 0.0
        %4742 = vmatpush1.msra.mxu0 0.0
        %4743 = vmatprep.subr.mxu0 0.0
        %4744 = vmatpush1.msra.mxu0 0.0
        %4745 = vmatprep.subr.mxu0 0.0
        %4746 = vmatpush1.msra.mxu0 0.0
        %4747 = vmatprep.subr.mxu0 0.0
        %4748 = vmatpush1.msra.mxu0 0.0
        %4749 = vmatprep.subr.mxu0 0.0
        %4750 = vmatpush1.msra.mxu0 0.0
        %4751 = vmatprep.subr.mxu0 0.0
        %4752 = vmatpush1.msra.mxu0 0.0
        %4753 = vmatprep.subr.mxu0 0.0
        %4754 = vmatpush1.msra.mxu0 0.0
        %4755 = vmatprep.subr.mxu0 0.0
        %4756 = vmatpush1.msra.mxu0 0.0
        %4757 = vmatprep.subr.mxu0 0.0
        %4758 = vmatpush1.msra.mxu0 0.0
        %4759 = vmatprep.subr.mxu0 0.0
        %4760 = vmatpush1.msra.mxu0 0.0
        %4761 = vmatprep.subr.mxu0 0.0
        %4762 = vmatpush1.msra.mxu0 0.0
        %4763 = vmatprep.subr.mxu0 0.0
        %4764 = vmatpush1.msra.mxu0 0.0
        %4765 = vmatprep.subr.mxu0 0.0
        %4766 = vmatpush1.msra.mxu0 0.0
        %4767 = vmatprep.subr.mxu0 0.0
        %4768 = vmatpush1.msra.mxu0 0.0
        %4769 = vmatprep.subr.mxu0 0.0
        %4770 = vmatpush1.msra.mxu0 0.0
        %4771 = vmatprep.subr.mxu0 0.0
        %4772 = vmatpush1.msra.mxu0 0.0
        %4773 = vmatprep.subr.mxu0 0.0
        %4774 = vmatpush1.msra.mxu0 0.0
        %4775 = vmatprep.subr.mxu0 0.0
        %4776 = vmatpush1.msra.mxu0 0.0
        %4777 = vmatprep.subr.mxu0 0.0
        %4778 = vmatpush1.msra.mxu0 0.0
        %4779 = vmatprep.subr.mxu0 0.0
        %4780 = vmatpush1.msra.mxu0 0.0
        %4781 = vmatprep.subr.mxu0 0.0
        %4782 = vmatpush1.msra.mxu0 0.0
        %4783 = vmatprep.subr.mxu0 0.0
        %4784 = vmatpush1.msra.mxu0 0.0
        %4785 = vmatprep.subr.mxu0 0.0
        %4786 = vmatpush1.msra.mxu0 0.0
        %4787 = vmatprep.subr.mxu0 0.0
        %4788 = vmatpush1.msra.mxu0 0.0
        %4789 = vmatprep.mubr.f32.mxu0 0.0
        %4790 = vmatmul.mubr.f32.gmra.mrb[0].mxu0 %v4720
        %v4791 = vpop.f32.mrb[0].mxu0
        %v4792 = vadd.f32 0.0, %v4791
        %v4793 = vpop.f32.mrb[0].mxu0
        %4794 = vmatprep.mubr.f32.mxu0 0.0
        %4795 = vmatmul.mubr.f32.gmra.mrb[0].mxu0 %v4723
        %v4796 = vpop.f32.mrb[0].mxu0
        %v4797 = vadd.f32 0.0, %v4796
        %v4798 = vpop.f32.mrb[0].mxu0
        %4799 = vdwg.mxu0
        %v4801 = vsel %vm1315, %v4628, 0
        %v4804 = vsel %vm1315, %v4629, 0
        %4806 = vmatprep.subr.mxu0 0.0
        %4807 = vmatpush1.msra.mxu0 %v3088
        %4808 = vmatprep.subr.mxu0 0.0
        %4809 = vmatpush1.msra.mxu0 %v3089
        %4810 = vmatprep.subr.mxu0 0.0
        %4811 = vmatpush1.msra.mxu0 %v3090
        %4812 = vmatprep.subr.mxu0 0.0
        %4813 = vmatpush1.msra.mxu0 %v3091
        %4814 = vmatprep.subr.mxu0 0.0
        %4815 = vmatpush1.msra.mxu0 0.0
        %4816 = vmatprep.subr.mxu0 0.0
        %4817 = vmatpush1.msra.mxu0 0.0
        %4818 = vmatprep.subr.mxu0 0.0
        %4819 = vmatpush1.msra.mxu0 0.0
        %4820 = vmatprep.subr.mxu0 0.0
        %4821 = vmatpush1.msra.mxu0 0.0
        %4822 = vmatprep.subr.mxu0 0.0
        %4823 = vmatpush1.msra.mxu0 0.0
        %4824 = vmatprep.subr.mxu0 0.0
        %4825 = vmatpush1.msra.mxu0 0.0
        %4826 = vmatprep.subr.mxu0 0.0
        %4827 = vmatpush1.msra.mxu0 0.0
        %4828 = vmatprep.subr.mxu0 0.0
        %4829 = vmatpush1.msra.mxu0 0.0
        %4830 = vmatprep.subr.mxu0 0.0
        %4831 = vmatpush1.msra.mxu0 0.0
        %4832 = vmatprep.subr.mxu0 0.0
        %4833 = vmatpush1.msra.mxu0 0.0
        %4834 = vmatprep.subr.mxu0 0.0
        %4835 = vmatpush1.msra.mxu0 0.0
        %4836 = vmatprep.subr.mxu0 0.0
        %4837 = vmatpush1.msra.mxu0 0.0
        %4838 = vmatprep.subr.mxu0 0.0
        %4839 = vmatpush1.msra.mxu0 0.0
        %4840 = vmatprep.subr.mxu0 0.0
        %4841 = vmatpush1.msra.mxu0 0.0
        %4842 = vmatprep.subr.mxu0 0.0
        %4843 = vmatpush1.msra.mxu0 0.0
        %4844 = vmatprep.subr.mxu0 0.0
        %4845 = vmatpush1.msra.mxu0 0.0
        %4846 = vmatprep.subr.mxu0 0.0
        %4847 = vmatpush1.msra.mxu0 0.0
        %4848 = vmatprep.subr.mxu0 0.0
        %4849 = vmatpush1.msra.mxu0 0.0
        %4850 = vmatprep.subr.mxu0 0.0
        %4851 = vmatpush1.msra.mxu0 0.0
        %4852 = vmatprep.subr.mxu0 0.0
        %4853 = vmatpush1.msra.mxu0 0.0
        %4854 = vmatprep.subr.mxu0 0.0
        %4855 = vmatpush1.msra.mxu0 0.0
        %4856 = vmatprep.subr.mxu0 0.0
        %4857 = vmatpush1.msra.mxu0 0.0
        %4858 = vmatprep.subr.mxu0 0.0
        %4859 = vmatpush1.msra.mxu0 0.0
        %4860 = vmatprep.subr.mxu0 0.0
        %4861 = vmatpush1.msra.mxu0 0.0
        %4862 = vmatprep.subr.mxu0 0.0
        %4863 = vmatpush1.msra.mxu0 0.0
        %4864 = vmatprep.subr.mxu0 0.0
        %4865 = vmatpush1.msra.mxu0 0.0
        %4866 = vmatprep.subr.mxu0 0.0
        %4867 = vmatpush1.msra.mxu0 0.0
        %4868 = vmatprep.subr.mxu0 0.0
        %4869 = vmatpush1.msra.mxu0 0.0
        %4870 = vmatprep.mubr.f32.mxu0 0.0
        %4871 = vmatmul.mubr.f32.gmra.mrb[0].mxu0 %v4801
        %v4872 = vpop.f32.mrb[0].mxu0
        %v4873 = vadd.f32 %v4792, %v4872
        %v4874 = vpop.f32.mrb[0].mxu0
        %4875 = vmatprep.mubr.f32.mxu0 0.0
        %4876 = vmatmul.mubr.f32.gmra.mrb[0].mxu0 %v4804
        %v4877 = vpop.f32.mrb[0].mxu0
        %v4878 = vadd.f32 %v4797, %v4877
        %v4879 = vpop.f32.mrb[0].mxu0
        %4880 = vdwg.mxu0
        %vm4881 = vcmp.gt.f32.partialorder %v4709, 0.0
        %vm4882 = vcmp.gt.f32.partialorder %v4714, 0.0
        %v4883 = vsel %vm4881, 1, 0
        %v4884 = vsel %vm4882, 1, 0
        %v4885 = vcvt.s32.f32 %v4883
        %v4886 = vcvt.s32.f32 %v4884
        %v4887 = vmul.f32 %v4709, %v4885
        %v4888 = vmul.f32 %v4714, %v4886
        %v4889 = vadd.f32 %v4622, %v4887
        %v4890 = vadd.f32 %v4623, %v4888
        %v4891 = vmul.f32 %v4873, %v4885
        %v4892 = vmul.f32 %v4878, %v4886
        %v4893 = vadd.f32 %v4628, %v4891
        %v4894 = vadd.f32 %v4629, %v4892
        %v4895 = vsel %vm1315, %v4889, 0.0
        %v4896 = vsel %vm1315, %v4890, 0.0
        %v4897 = vadd.f32 %v4895, %v4896
        %v4898 = vrot.slane %v4897, 4
        %v4899 = vadd.f32 %v4897, %v4898
        %v4900 = vrot.slane %v4899, 2
        %v4901 = vadd.f32 %v4899, %v4900
        %v4902 = vrot.slane %v4901, 1
        %v4903 = vadd.f32 %v4901, %v4902
        %v4904 = vrcp.pop 16.0
        %v4905 = vmul.f32 %v4903, %v4904
        %v4906 = vsel %vm1315, %v4893, 0.0
        %v4907 = vsel %vm1315, %v4894, 0.0
        %v4908 = vadd.f32 %v4906, %v4907
        %v4909 = vrot.slane %v4908, 4
        %v4910 = vadd.f32 %v4908, %v4909
        %v4911 = vrot.slane %v4910, 2
        %v4912 = vadd.f32 %v4910, %v4911
        %v4913 = vrot.slane %v4912, 1
        %v4914 = vadd.f32 %v4912, %v4913
        %v4915 = vmul.f32 %v4914, %v4904
        %v4916 = vmul.f32 %v4915, 0.0625
        %v4917 = vld [vmem:[%s55] sm:$0xff]
        %v4918 = vld [vmem:[%s55 + $0x8] sm:$0xff]
        %v4919 = vld [vmem:[%s55 + $0x10] sm:$0xff]
        %v4920 = vld [vmem:[%s55 + $0x18] sm:$0xff]
        %v4921 = vld [vmem:[%s57] sm:$0xff]
        %v4922 = vld [vmem:[%s57 + $0x8] sm:$0xff]
        %v4923 = vld [vmem:[%s57 + $0x10] sm:$0xff]
        %v4924 = vld [vmem:[%s57 + $0x18] sm:$0xff]
        %v4925 = vld [vmem:[%s59] sm:$0xff]
        %v4926 = vld [vmem:[%s59 + $0x8] sm:$0xff]
        %v4927 = vld [vmem:[%s59 + $0x10] sm:$0xff]
        %v4928 = vld [vmem:[%s59 + $0x18] sm:$0xff]
        %v4929 = vld [vmem:[%s61] sm:$0x1]
        %v4931 = vsel %vm1315, %v4905, 0
        %4933 = vmatprep.subr.mxu0 0.0
        %4934 = vmatpush1.msra.mxu0 %v4917
        %4935 = vmatprep.subr.mxu0 0.0
        %4936 = vmatpush1.msra.mxu0 %v4918
        %4937 = vmatprep.subr.mxu0 0.0
        %4938 = vmatpush1.msra.mxu0 %v4919
        %4939 = vmatprep.subr.mxu0 0.0
        %4940 = vmatpush1.msra.mxu0 %v4920
        %4941 = vmatprep.subr.mxu0 0.0
        %4942 = vmatpush1.msra.mxu0 0.0
        %4943 = vmatprep.subr.mxu0 0.0
        %4944 = vmatpush1.msra.mxu0 0.0
        %4945 = vmatprep.subr.mxu0 0.0
        %4946 = vmatpush1.msra.mxu0 0.0
        %4947 = vmatprep.subr.mxu0 0.0
        %4948 = vmatpush1.msra.mxu0 0.0
        %4949 = vmatprep.subr.mxu0 0.0
        %4950 = vmatpush1.msra.mxu0 0.0
        %4951 = vmatprep.subr.mxu0 0.0
        %4952 = vmatpush1.msra.mxu0 0.0
        %4953 = vmatprep.subr.mxu0 0.0
        %4954 = vmatpush1.msra.mxu0 0.0
        %4955 = vmatprep.subr.mxu0 0.0
        %4956 = vmatpush1.msra.mxu0 0.0
        %4957 = vmatprep.subr.mxu0 0.0
        %4958 = vmatpush1.msra.mxu0 0.0
        %4959 = vmatprep.subr.mxu0 0.0
        %4960 = vmatpush1.msra.mxu0 0.0
        %4961 = vmatprep.subr.mxu0 0.0
        %4962 = vmatpush1.msra.mxu0 0.0
        %4963 = vmatprep.subr.mxu0 0.0
        %4964 = vmatpush1.msra.mxu0 0.0
        %4965 = vmatprep.subr.mxu0 0.0
        %4966 = vmatpush1.msra.mxu0 0.0
        %4967 = vmatprep.subr.mxu0 0.0
        %4968 = vmatpush1.msra.mxu0 0.0
        %4969 = vmatprep.subr.mxu0 0.0
        %4970 = vmatpush1.msra.mxu0 0.0
        %4971 = vmatprep.subr.mxu0 0.0
        %4972 = vmatpush1.msra.mxu0 0.0
        %4973 = vmatprep.subr.mxu0 0.0
        %4974 = vmatpush1.msra.mxu0 0.0
        %4975 = vmatprep.subr.mxu0 0.0
        %4976 = vmatpush1.msra.mxu0 0.0
        %4977 = vmatprep.subr.mxu0 0.0
        %4978 = vmatpush1.msra.mxu0 0.0
        %4979 = vmatprep.subr.mxu0 0.0
        %4980 = vmatpush1.msra.mxu0 0.0
        %4981 = vmatprep.subr.mxu0 0.0
        %4982 = vmatpush1.msra.mxu0 0.0
        %4983 = vmatprep.subr.mxu0 0.0
        %4984 = vmatpush1.msra.mxu0 0.0
        %4985 = vmatprep.subr.mxu0 0.0
        %4986 = vmatpush1.msra.mxu0 0.0
        %4987 = vmatprep.subr.mxu0 0.0
        %4988 = vmatpush1.msra.mxu0 0.0
        %4989 = vmatprep.subr.mxu0 0.0
        %4990 = vmatpush1.msra.mxu0 0.0
        %4991 = vmatprep.subr.mxu0 0.0
        %4992 = vmatpush1.msra.mxu0 0.0
        %4993 = vmatprep.subr.mxu0 0.0
        %4994 = vmatpush1.msra.mxu0 0.0
        %4995 = vmatprep.subr.mxu0 0.0
        %4996 = vmatpush1.msra.mxu0 0.0
        %4997 = vmatprep.mubr.f32.mxu0 0.0
        %4998 = vmatmul.mubr.f32.gmra.mrb[0].mxu0 %v4931
        %v4999 = vpop.f32.mrb[0].mxu0
        %v5000 = vadd.f32 %v4929, %v4999
        %v5001 = vpop.f32.mrb[0].mxu0
        %5002 = vdwg.mxu0
        %v5003 = vmul.f32 %v4905, %v4905
        %v5005 = vsel %vm1315, %v5003, 0
        %5007 = vmatprep.subr.mxu0 0.0
        %5008 = vmatpush1.msra.mxu0 %v4925
        %5009 = vmatprep.subr.mxu0 0.0
        %5010 = vmatpush1.msra.mxu0 %v4926
        %5011 = vmatprep.subr.mxu0 0.0
        %5012 = vmatpush1.msra.mxu0 %v4927
        %5013 = vmatprep.subr.mxu0 0.0
        %5014 = vmatpush1.msra.mxu0 %v4928
        %5015 = vmatprep.subr.mxu0 0.0
        %5016 = vmatpush1.msra.mxu0 0.0
        %5017 = vmatprep.subr.mxu0 0.0
        %5018 = vmatpush1.msra.mxu0 0.0
        %5019 = vmatprep.subr.mxu0 0.0
        %5020 = vmatpush1.msra.mxu0 0.0
        %5021 = vmatprep.subr.mxu0 0.0
        %5022 = vmatpush1.msra.mxu0 0.0
        %5023 = vmatprep.subr.mxu0 0.0
        %5024 = vmatpush1.msra.mxu0 0.0
        %5025 = vmatprep.subr.mxu0 0.0
        %5026 = vmatpush1.msra.mxu0 0.0
        %5027 = vmatprep.subr.mxu0 0.0
        %5028 = vmatpush1.msra.mxu0 0.0
        %5029 = vmatprep.subr.mxu0 0.0
        %5030 = vmatpush1.msra.mxu0 0.0
        %5031 = vmatprep.subr.mxu0 0.0
        %5032 = vmatpush1.msra.mxu0 0.0
        %5033 = vmatprep.subr.mxu0 0.0
        %5034 = vmatpush1.msra.mxu0 0.0
        %5035 = vmatprep.subr.mxu0 0.0
        %5036 = vmatpush1.msra.mxu0 0.0
        %5037 = vmatprep.subr.mxu0 0.0
        %5038 = vmatpush1.msra.mxu0 0.0
        %5039 = vmatprep.subr.mxu0 0.0
        %5040 = vmatpush1.msra.mxu0 0.0
        %5041 = vmatprep.subr.mxu0 0.0
        %5042 = vmatpush1.msra.mxu0 0.0
        %5043 = vmatprep.subr.mxu0 0.0
        %5044 = vmatpush1.msra.mxu0 0.0
        %5045 = vmatprep.subr.mxu0 0.0
        %5046 = vmatpush1.msra.mxu0 0.0
        %5047 = vmatprep.subr.mxu0 0.0
        %5048 = vmatpush1.msra.mxu0 0.0
        %5049 = vmatprep.subr.mxu0 0.0
        %5050 = vmatpush1.msra.mxu0 0.0
        %5051 = vmatprep.subr.mxu0 0.0
        %5052 = vmatpush1.msra.mxu0 0.0
        %5053 = vmatprep.subr.mxu0 0.0
        %5054 = vmatpush1.msra.mxu0 0.0
        %5055 = vmatprep.subr.mxu0 0.0
        %5056 = vmatpush1.msra.mxu0 0.0
        %5057 = vmatprep.subr.mxu0 0.0
        %5058 = vmatpush1.msra.mxu0 0.0
        %5059 = vmatprep.subr.mxu0 0.0
        %5060 = vmatpush1.msra.mxu0 0.0
        %5061 = vmatprep.subr.mxu0 0.0
        %5062 = vmatpush1.msra.mxu0 0.0
        %5063 = vmatprep.subr.mxu0 0.0
        %5064 = vmatpush1.msra.mxu0 0.0
        %5065 = vmatprep.subr.mxu0 0.0
        %5066 = vmatpush1.msra.mxu0 0.0
        %5067 = vmatprep.subr.mxu0 0.0
        %5068 = vmatpush1.msra.mxu0 0.0
        %5069 = vmatprep.subr.mxu0 0.0
        %5070 = vmatpush1.msra.mxu0 0.0
        %5071 = vmatprep.mubr.f32.mxu0 0.0
        %5072 = vmatmul.mubr.f32.gmra.mrb[0].mxu0 %v5005
        %v5073 = vpop.f32.mrb[0].mxu0
        %v5074 = vadd.f32 0.0, %v5073
        %v5075 = vpop.f32.mrb[0].mxu0
        %5076 = vdwg.mxu0
        %v5078 = vsel %vm1315, %v4916, 0
        %5080 = vmatprep.subr.mxu0 0.0
        %5081 = vmatpush1.msra.mxu0 %v4921
        %5082 = vmatprep.subr.mxu0 0.0
        %5083 = vmatpush1.msra.mxu0 %v4922
        %5084 = vmatprep.subr.mxu0 0.0
        %5085 = vmatpush1.msra.mxu0 %v4923
        %5086 = vmatprep.subr.mxu0 0.0
        %5087 = vmatpush1.msra.mxu0 %v4924
        %5088 = vmatprep.subr.mxu0 0.0
        %5089 = vmatpush1.msra.mxu0 0.0
        %5090 = vmatprep.subr.mxu0 0.0
        %5091 = vmatpush1.msra.mxu0 0.0
        %5092 = vmatprep.subr.mxu0 0.0
        %5093 = vmatpush1.msra.mxu0 0.0
        %5094 = vmatprep.subr.mxu0 0.0
        %5095 = vmatpush1.msra.mxu0 0.0
        %5096 = vmatprep.subr.mxu0 0.0
        %5097 = vmatpush1.msra.mxu0 0.0
        %5098 = vmatprep.subr.mxu0 0.0
        %5099 = vmatpush1.msra.mxu0 0.0
        %5100 = vmatprep.subr.mxu0 0.0
        %5101 = vmatpush1.msra.mxu0 0.0
        %5102 = vmatprep.subr.mxu0 0.0
        %5103 = vmatpush1.msra.mxu0 0.0
        %5104 = vmatprep.subr.mxu0 0.0
        %5105 = vmatpush1.msra.mxu0 0.0
        %5106 = vmatprep.subr.mxu0 0.0
        %5107 = vmatpush1.msra.mxu0 0.0
        %5108 = vmatprep.subr.mxu0 0.0
        %5109 = vmatpush1.msra.mxu0 0.0
        %5110 = vmatprep.subr.mxu0 0.0
        %5111 = vmatpush1.msra.mxu0 0.0
        %5112 = vmatprep.subr.mxu0 0.0
        %5113 = vmatpush1.msra.mxu0 0.0
        %5114 = vmatprep.subr.mxu0 0.0
        %5115 = vmatpush1.msra.mxu0 0.0
        %5116 = vmatprep.subr.mxu0 0.0
        %5117 = vmatpush1.msra.mxu0 0.0
        %5118 = vmatprep.subr.mxu0 0.0
        %5119 = vmatpush1.msra.mxu0 0.0
        %5120 = vmatprep.subr.mxu0 0.0
        %5121 = vmatpush1.msra.mxu0 0.0
        %5122 = vmatprep.subr.mxu0 0.0
        %5123 = vmatpush1.msra.mxu0 0.0
        %5124 = vmatprep.subr.mxu0 0.0
        %5125 = vmatpush1.msra.mxu0 0.0
        %5126 = vmatprep.subr.mxu0 0.0
        %5127 = vmatpush1.msra.mxu0 0.0
        %5128 = vmatprep.subr.mxu0 0.0
        %5129 = vmatpush1.msra.mxu0 0.0
        %5130 = vmatprep.subr.mxu0 0.0
        %5131 = vmatpush1.msra.mxu0 0.0
        %5132 = vmatprep.subr.mxu0 0.0
        %5133 = vmatpush1.msra.mxu0 0.0
        %5134 = vmatprep.subr.mxu0 0.0
        %5135 = vmatpush1.msra.mxu0 0.0
        %5136 = vmatprep.subr.mxu0 0.0
        %5137 = vmatpush1.msra.mxu0 0.0
        %5138 = vmatprep.subr.mxu0 0.0
        %5139 = vmatpush1.msra.mxu0 0.0
        %5140 = vmatprep.subr.mxu0 0.0
        %5141 = vmatpush1.msra.mxu0 0.0
        %5142 = vmatprep.subr.mxu0 0.0
        %5143 = vmatpush1.msra.mxu0 0.0
        %5144 = vmatprep.mubr.f32.mxu0 0.0
        %5145 = vmatmul.mubr.f32.gmra.mrb[0].mxu0 %v5078
        %v5146 = vpop.f32.mrb[0].mxu0
        %v5147 = vadd.f32 %v5074, %v5146
        %v5148 = vpop.f32.mrb[0].mxu0
        %5149 = vdwg.mxu0
        %vm5150 = vcmp.gt.f32.partialorder %v5000, 0.0
        %v5151 = vsel %vm5150, 1, 0
        %v5152 = vcvt.s32.f32 %v5151
        %v5153 = vmul.f32 %v5000, %v5152
        %v5154 = vmul.f32 %v5147, %v5152
        %v5155 = vld [vmem:[%s63] sm:$0xff]
        %v5156 = vld [vmem:[%s63 + $0x8] sm:$0xff]
        %v5157 = vld [vmem:[%s65] sm:$0xff]
        %v5158 = vld [vmem:[%s65 + $0x8] sm:$0xff]
        %v5159 = vld [vmem:[%s67] sm:$0xff]
        %v5160 = vld [vmem:[%s67 + $0x8] sm:$0xff]
        %v5161 = vld [vmem:[%s69] sm:$0x1]
        %v5163 = vsel %vm1117, %v5153, 0
        %5165 = vmatprep.subr.mxu0 0.0
        %5166 = vmatpush1.msra.mxu0 %v5155
        %5167 = vmatprep.subr.mxu0 0.0
        %5168 = vmatpush1.msra.mxu0 %v5156
        %5169 = vmatprep.subr.mxu0 0.0
        %5170 = vmatpush1.msra.mxu0 0.0
        %5171 = vmatprep.subr.mxu0 0.0
        %5172 = vmatpush1.msra.mxu0 0.0
        %5173 = vmatprep.subr.mxu0 0.0
        %5174 = vmatpush1.msra.mxu0 0.0
        %5175 = vmatprep.subr.mxu0 0.0
        %5176 = vmatpush1.msra.mxu0 0.0
        %5177 = vmatprep.subr.mxu0 0.0
        %5178 = vmatpush1.msra.mxu0 0.0
        %5179 = vmatprep.subr.mxu0 0.0
        %5180 = vmatpush1.msra.mxu0 0.0
        %5181 = vmatprep.subr.mxu0 0.0
        %5182 = vmatpush1.msra.mxu0 0.0
        %5183 = vmatprep.subr.mxu0 0.0
        %5184 = vmatpush1.msra.mxu0 0.0
        %5185 = vmatprep.subr.mxu0 0.0
        %5186 = vmatpush1.msra.mxu0 0.0
        %5187 = vmatprep.subr.mxu0 0.0
        %5188 = vmatpush1.msra.mxu0 0.0
        %5189 = vmatprep.subr.mxu0 0.0
        %5190 = vmatpush1.msra.mxu0 0.0
        %5191 = vmatprep.subr.mxu0 0.0
        %5192 = vmatpush1.msra.mxu0 0.0
        %5193 = vmatprep.subr.mxu0 0.0
        %5194 = vmatpush1.msra.mxu0 0.0
        %5195 = vmatprep.subr.mxu0 0.0
        %5196 = vmatpush1.msra.mxu0 0.0
        %5197 = vmatprep.subr.mxu0 0.0
        %5198 = vmatpush1.msra.mxu0 0.0
        %5199 = vmatprep.subr.mxu0 0.0
        %5200 = vmatpush1.msra.mxu0 0.0
        %5201 = vmatprep.subr.mxu0 0.0
        %5202 = vmatpush1.msra.mxu0 0.0
        %5203 = vmatprep.subr.mxu0 0.0
        %5204 = vmatpush1.msra.mxu0 0.0
        %5205 = vmatprep.subr.mxu0 0.0
        %5206 = vmatpush1.msra.mxu0 0.0
        %5207 = vmatprep.subr.mxu0 0.0
        %5208 = vmatpush1.msra.mxu0 0.0
        %5209 = vmatprep.subr.mxu0 0.0
        %5210 = vmatpush1.msra.mxu0 0.0
        %5211 = vmatprep.subr.mxu0 0.0
        %5212 = vmatpush1.msra.mxu0 0.0
        %5213 = vmatprep.subr.mxu0 0.0
        %5214 = vmatpush1.msra.mxu0 0.0
        %5215 = vmatprep.subr.mxu0 0.0
        %5216 = vmatpush1.msra.mxu0 0.0
        %5217 = vmatprep.subr.mxu0 0.0
        %5218 = vmatpush1.msra.mxu0 0.0
        %5219 = vmatprep.subr.mxu0 0.0
        %5220 = vmatpush1.msra.mxu0 0.0
        %5221 = vmatprep.subr.mxu0 0.0
        %5222 = vmatpush1.msra.mxu0 0.0
        %5223 = vmatprep.subr.mxu0 0.0
        %5224 = vmatpush1.msra.mxu0 0.0
        %5225 = vmatprep.subr.mxu0 0.0
        %5226 = vmatpush1.msra.mxu0 0.0
        %5227 = vmatprep.subr.mxu0 0.0
        %5228 = vmatpush1.msra.mxu0 0.0
        %5229 = vmatprep.mubr.f32.mxu0 0.0
        %5230 = vmatmul.mubr.f32.gmra.mrb[0].mxu0 %v5163
        %v5231 = vpop.f32.mrb[0].mxu0
        %v5232 = vadd.f32 %v5161, %v5231
        %v5233 = vpop.f32.mrb[0].mxu0
        %5234 = vdwg.mxu0
        %v5235 = vmul.f32 %v5153, %v5153
        %v5237 = vsel %vm1117, %v5235, 0
        %5239 = vmatprep.subr.mxu0 0.0
        %5240 = vmatpush1.msra.mxu0 %v5159
        %5241 = vmatprep.subr.mxu0 0.0
        %5242 = vmatpush1.msra.mxu0 %v5160
        %5243 = vmatprep.subr.mxu0 0.0
        %5244 = vmatpush1.msra.mxu0 0.0
        %5245 = vmatprep.subr.mxu0 0.0
        %5246 = vmatpush1.msra.mxu0 0.0
        %5247 = vmatprep.subr.mxu0 0.0
        %5248 = vmatpush1.msra.mxu0 0.0
        %5249 = vmatprep.subr.mxu0 0.0
        %5250 = vmatpush1.msra.mxu0 0.0
        %5251 = vmatprep.subr.mxu0 0.0
        %5252 = vmatpush1.msra.mxu0 0.0
        %5253 = vmatprep.subr.mxu0 0.0
        %5254 = vmatpush1.msra.mxu0 0.0
        %5255 = vmatprep.subr.mxu0 0.0
        %5256 = vmatpush1.msra.mxu0 0.0
        %5257 = vmatprep.subr.mxu0 0.0
        %5258 = vmatpush1.msra.mxu0 0.0
        %5259 = vmatprep.subr.mxu0 0.0
        %5260 = vmatpush1.msra.mxu0 0.0
        %5261 = vmatprep.subr.mxu0 0.0
        %5262 = vmatpush1.msra.mxu0 0.0
        %5263 = vmatprep.subr.mxu0 0.0
        %5264 = vmatpush1.msra.mxu0 0.0
        %5265 = vmatprep.subr.mxu0 0.0
        %5266 = vmatpush1.msra.mxu0 0.0
        %5267 = vmatprep.subr.mxu0 0.0
        %5268 = vmatpush1.msra.mxu0 0.0
        %5269 = vmatprep.subr.mxu0 0.0
        %5270 = vmatpush1.msra.mxu0 0.0
        %5271 = vmatprep.subr.mxu0 0.0
        %5272 = vmatpush1.msra.mxu0 0.0
        %5273 = vmatprep.subr.mxu0 0.0
        %5274 = vmatpush1.msra.mxu0 0.0
        %5275 = vmatprep.subr.mxu0 0.0
        %5276 = vmatpush1.msra.mxu0 0.0
        %5277 = vmatprep.subr.mxu0 0.0
        %5278 = vmatpush1.msra.mxu0 0.0
        %5279 = vmatprep.subr.mxu0 0.0
        %5280 = vmatpush1.msra.mxu0 0.0
        %5281 = vmatprep.subr.mxu0 0.0
        %5282 = vmatpush1.msra.mxu0 0.0
        %5283 = vmatprep.subr.mxu0 0.0
        %5284 = vmatpush1.msra.mxu0 0.0
        %5285 = vmatprep.subr.mxu0 0.0
        %5286 = vmatpush1.msra.mxu0 0.0
        %5287 = vmatprep.subr.mxu0 0.0
        %5288 = vmatpush1.msra.mxu0 0.0
        %5289 = vmatprep.subr.mxu0 0.0
        %5290 = vmatpush1.msra.mxu0 0.0
        %5291 = vmatprep.subr.mxu0 0.0
        %5292 = vmatpush1.msra.mxu0 0.0
        %5293 = vmatprep.subr.mxu0 0.0
        %5294 = vmatpush1.msra.mxu0 0.0
        %5295 = vmatprep.subr.mxu0 0.0
        %5296 = vmatpush1.msra.mxu0 0.0
        %5297 = vmatprep.subr.mxu0 0.0
        %5298 = vmatpush1.msra.mxu0 0.0
        %5299 = vmatprep.subr.mxu0 0.0
        %5300 = vmatpush1.msra.mxu0 0.0
        %5301 = vmatprep.subr.mxu0 0.0
        %5302 = vmatpush1.msra.mxu0 0.0
        %5303 = vmatprep.mubr.f32.mxu0 0.0
        %5304 = vmatmul.mubr.f32.gmra.mrb[0].mxu0 %v5237
        %v5305 = vpop.f32.mrb[0].mxu0
        %v5306 = vadd.f32 0.0, %v5305
        %v5307 = vpop.f32.mrb[0].mxu0
        %5308 = vdwg.mxu0
        %v5310 = vsel %vm1117, %v5154, 0
        %5312 = vmatprep.subr.mxu0 0.0
        %5313 = vmatpush1.msra.mxu0 %v5157
        %5314 = vmatprep.subr.mxu0 0.0
        %5315 = vmatpush1.msra.mxu0 %v5158
        %5316 = vmatprep.subr.mxu0 0.0
        %5317 = vmatpush1.msra.mxu0 0.0
        %5318 = vmatprep.subr.mxu0 0.0
        %5319 = vmatpush1.msra.mxu0 0.0
        %5320 = vmatprep.subr.mxu0 0.0
        %5321 = vmatpush1.msra.mxu0 0.0
        %5322 = vmatprep.subr.mxu0 0.0
        %5323 = vmatpush1.msra.mxu0 0.0
        %5324 = vmatprep.subr.mxu0 0.0
        %5325 = vmatpush1.msra.mxu0 0.0
        %5326 = vmatprep.subr.mxu0 0.0
        %5327 = vmatpush1.msra.mxu0 0.0
        %5328 = vmatprep.subr.mxu0 0.0
        %5329 = vmatpush1.msra.mxu0 0.0
        %5330 = vmatprep.subr.mxu0 0.0
        %5331 = vmatpush1.msra.mxu0 0.0
        %5332 = vmatprep.subr.mxu0 0.0
        %5333 = vmatpush1.msra.mxu0 0.0
        %5334 = vmatprep.subr.mxu0 0.0
        %5335 = vmatpush1.msra.mxu0 0.0
        %5336 = vmatprep.subr.mxu0 0.0
        %5337 = vmatpush1.msra.mxu0 0.0
        %5338 = vmatprep.subr.mxu0 0.0
        %5339 = vmatpush1.msra.mxu0 0.0
        %5340 = vmatprep.subr.mxu0 0.0
        %5341 = vmatpush1.msra.mxu0 0.0
        %5342 = vmatprep.subr.mxu0 0.0
        %5343 = vmatpush1.msra.mxu0 0.0
        %5344 = vmatprep.subr.mxu0 0.0
        %5345 = vmatpush1.msra.mxu0 0.0
        %5346 = vmatprep.subr.mxu0 0.0
        %5347 = vmatpush1.msra.mxu0 0.0
        %5348 = vmatprep.subr.mxu0 0.0
        %5349 = vmatpush1.msra.mxu0 0.0
        %5350 = vmatprep.subr.mxu0 0.0
        %5351 = vmatpush1.msra.mxu0 0.0
        %5352 = vmatprep.subr.mxu0 0.0
        %5353 = vmatpush1.msra.mxu0 0.0
        %5354 = vmatprep.subr.mxu0 0.0
        %5355 = vmatpush1.msra.mxu0 0.0
        %5356 = vmatprep.subr.mxu0 0.0
        %5357 = vmatpush1.msra.mxu0 0.0
        %5358 = vmatprep.subr.mxu0 0.0
        %5359 = vmatpush1.msra.mxu0 0.0
        %5360 = vmatprep.subr.mxu0 0.0
        %5361 = vmatpush1.msra.mxu0 0.0
        %5362 = vmatprep.subr.mxu0 0.0
        %5363 = vmatpush1.msra.mxu0 0.0
        %5364 = vmatprep.subr.mxu0 0.0
        %5365 = vmatpush1.msra.mxu0 0.0
        %5366 = vmatprep.subr.mxu0 0.0
        %5367 = vmatpush1.msra.mxu0 0.0
        %5368 = vmatprep.subr.mxu0 0.0
        %5369 = vmatpush1.msra.mxu0 0.0
        %5370 = vmatprep.subr.mxu0 0.0
        %5371 = vmatpush1.msra.mxu0 0.0
        %5372 = vmatprep.subr.mxu0 0.0
        %5373 = vmatpush1.msra.mxu0 0.0
        %5374 = vmatprep.subr.mxu0 0.0
        %5375 = vmatpush1.msra.mxu0 0.0
        %5376 = vmatprep.mubr.f32.mxu0 0.0
        %5377 = vmatmul.mubr.f32.gmra.mrb[0].mxu0 %v5310
        %v5378 = vpop.f32.mrb[0].mxu0
        %v5379 = vadd.f32 %v5306, %v5378
        %v5380 = vpop.f32.mrb[0].mxu0
        %5381 = vdwg.mxu0
        %vm5382 = vcmask 73728
        %v5383 = vsel %vm5382, %v5232, -inf
        %5384 = vmax.xlane.f32.xlu0 %v5383
        %v5385 = vpop.xlane.xlu0 %5384
        %v5386 = vsub.f32 %v5232, %v5385
        %v5387 = vmul.f32 %v5386, 1.442695
        %v5388 = vpow.pop %v5387
        %v5389 = vsel %vm5382, %v5388, 0.0
        %5390 = vadd.xlane.f32.xlu0 %v5389
        %v5391 = vpop.xlane.xlu0 %5390
        %v5392 = vrcp.pop %v5391
        %v5393 = vmul.f32 %v5388, %v5392
        %v5394 = vmul.f32 %v5393, %v5393
        %v5395 = vmul.f32 %v5394, %v5379
        %v5396 = vsel %vm5382, %v5395, 0.0
        %5397 = vadd.xlane.f32.xlu0 %v5396
        %v5398 = vpop.xlane.xlu0 %5397
        %5399 = vst.msk [vmem:[%s1094] sm:$0x1] %vm5382, %v5393
        %v5400 = vmul.f32 %v5393, 2.0
        %v5401 = vsub.f32 1.0, %v5400
        %v5402 = vmul.f32 %v5401, %v5379
        %v5403 = vadd.f32 %v5398, %v5402
        %v5404 = vmul.f32 %v5394, %v5403
        %5405 = vst.msk [vmem:[%s1100] sm:$0x1] %vm5382, %v5404
        %s5406 = sand.u32 %s839, 1
        %s5407 = scalar_lea.sflag [#allocation5], %s5406
        %s5408 = sand.u32 %s839, 1
        %s5409 = scalar_lea.vmem [#allocation4], %s5408
        %s5410 = sand.u32 %s865, 1
        %s5411 = scalar_lea.sflag [#allocation7], %s5410
        %s5412 = sand.u32 %s865, 1
        %s5413 = scalar_lea.vmem [#allocation6], %s5412
        // Predicated region
        $region161: #{vit_vdp_forward.1} parent=159 // pred_check
          %p5414 = pneg %p849
        $region162: #{vit_vdp_forward.1} parent=159 // pred_check_branch
          %5416 = sbr.rel (%p5414) target = $region164
        $region163: #{vit_vdp_forward.1} parent=159 // pred_region
          %s5418 = ssub.s32 16, 16
          %5419 = vsyncadd %s5407, %s5418
          %s5420 = smul.addr %s91, 16
          %s5421 = scalar_lea.hbm %s71, %s5420
          %s5423 = sshll.u32 %s5409, 4
          %s5424 = int_to_ptr.vmem [resolvable:$true] %s5423
          %5426 = dma.vmem_to_hbm [thread:$0]  %s5424, 16, %s5421, %s5407
        $region164: #{vit_vdp_forward.1} parent=159 // pred_fallthru
          _
        // Predicated region
        $region165: #{vit_vdp_forward.1} parent=159 // pred_check
          %p5427 = pneg %p875
        $region166: #{vit_vdp_forward.1} parent=159 // pred_check_branch
          %5429 = sbr.rel (%p5427) target = $region168
        $region167: #{vit_vdp_forward.1} parent=159 // pred_region
          %s5431 = ssub.s32 16, 16
          %5432 = vsyncadd %s5411, %s5431
          %s5433 = smul.addr %s91, 16
          %s5434 = scalar_lea.hbm %s73, %s5433
          %s5436 = sshll.u32 %s5413, 4
          %s5437 = int_to_ptr.vmem [resolvable:$true] %s5436
          %5439 = dma.vmem_to_hbm [thread:$0]  %s5437, 16, %s5434, %s5411
        $region168: #{vit_vdp_forward.1} parent=159 // pred_fallthru
          _
      $region160: #{vit_vdp_forward.1} parent=5 // pred_fallthru
        _
      %p5440 = scmp.le.s32.totalorder 2, %s86
      // Predicated region
      $region169: #{vit_vdp_forward.1} parent=5 // pred_check
        %p5441 = pneg %p5440
      $region170: #{vit_vdp_forward.1} parent=5 // pred_check_branch
        %5443 = sbr.rel (%p5441) target = $region172
      $region171: #{vit_vdp_forward.1} parent=5 // pred_region
        %s5444 = ssub.s32 %s86, 2
        // Predicated region
        $region173: #{vit_vdp_forward.1} parent=171 // pred_check
          %p5445 = pneg %p855
        $region174: #{vit_vdp_forward.1} parent=171 // pred_check_branch
          %5447 = sbr.rel (%p5445) target = $region176
        $region175: #{vit_vdp_forward.1} parent=171 // pred_region
          %s5448 = sand.u32 %s840, 1
          %s5449 = scalar_lea.sflag [#allocation5], %s5448
          %s5450 = sand.u32 %s840, 1
          %s5451 = scalar_lea.vmem [#allocation4], %s5450
          %5452 = dma.done %s5449, 16
        $region176: #{vit_vdp_forward.1} parent=171 // pred_fallthru
          _
        // Predicated region
        $region177: #{vit_vdp_forward.1} parent=171 // pred_check
          %p5453 = pneg %p881
        $region178: #{vit_vdp_forward.1} parent=171 // pred_check_branch
          %5455 = sbr.rel (%p5453) target = $region180
        $region179: #{vit_vdp_forward.1} parent=171 // pred_region
          %s5456 = sand.u32 %s866, 1
          %s5457 = scalar_lea.sflag [#allocation7], %s5456
          %s5458 = sand.u32 %s866, 1
          %s5459 = scalar_lea.vmem [#allocation6], %s5458
          %5460 = dma.done %s5457, 16
        $region180: #{vit_vdp_forward.1} parent=171 // pred_fallthru
          _
      $region172: #{vit_vdp_forward.1} parent=5 // pred_fallthru
        _
    $region6: #{vit_vdp_forward.1} parent=1 // loop_footer
      %s90 = sadd.s32 1, %s86
    $region7: #{vit_vdp_forward.1} parent=1 // loop_footer_branch
      %85 = sbr.rel target = $region3
    $region8: #{vit_vdp_forward.1} parent=1 // loop_exit
      _
    %5461 = vsyncpa [#allocation5], 1
    %s5462 = scalar_lea.sflag [#allocation5], 1
    %5463 = vsyncpa %s5462, 1
    %5464 = vsyncpa [#allocation7], 1
    %s5465 = scalar_lea.sflag [#allocation7], 1
    %5466 = vsyncpa %s5465, 1

</llo_original>
